<compile_context>
chip_gen: v6e
topology: v6e:2x2x1
jax: 0.10.0
libtpu: 0.0.40
codegen_flags: <defaults>
</compile_context>

<pallas_src>
import functools

import jax
import jax.numpy as jnp
from jax.experimental import pallas as pl
from jax.experimental.pallas import tpu as pltpu

PLANES = 1024            # densenet121 feature channels
LOCAL_OUT = 128          # local_conv_out_channels
NUM_CLASSES = 1000
NUM_CLASSES_PAD = 1024   # padded to a multiple of 128 for lane-dense stores
BN_EPS = 1e-5            # PyTorch BatchNorm default


def head_kernel(feat_ref, bn_scale_ref, bn_shift_ref,
                wl_ref, wv_ref, fcw_ref,
                loc_scale_ref, loc_shift_ref,
                ver_scale_ref, ver_shift_ref, fcb_ref,
                global_ref, local_ref, vert_ref, logits_ref):
    B, H, W, C = feat_ref.shape
    inv_hw = 1.0 / float(H * W)

    xf = feat_ref[...].astype(jnp.float32)                 # [B, H, W, C]

    # Row *sums* with f32 accumulation.  The leading-dim reshape (B,H)->(B*H)
    # is layout-free; the 1/W, 1/H normalizations are folded into the
    # post-matmul scales, 1/(H*W) is applied only on the tiny [B, C] row.
    xw = jnp.sum(xf.reshape(B * H, W, C), axis=1)          # [B*H, C] sum over W
    xh3 = jnp.sum(xf, axis=1)                              # [B, W, C] sum over H
    xh = xh3.reshape(B * W, C)                              # [B*W, C]
    g = jnp.sum(xh3, axis=1) * inv_hw                       # [B, C] global avg pool

    global_ref[...] = g                                     # pre-BN global feature

    # BatchNorm1d (eval) folded to scale/shift, then fc (bf16 x bf16 -> f32).
    g_bn = g * bn_scale_ref[...] + bn_shift_ref[...]
    logits_ref[...] = (
        jnp.dot(g_bn.astype(jnp.bfloat16), fcw_ref[...],
                preferred_element_type=jnp.float32) + fcb_ref[...])

    # Local branch: 1x1 conv on the W-pooled rows; conv bias folded into the
    # BN shift, 1/W folded into the BN scale; ReLU.
    loc = jnp.dot(xw.astype(jnp.bfloat16), wl_ref[...],
                  preferred_element_type=jnp.float32)
    local_ref[...] = jnp.maximum(
        loc * loc_scale_ref[...] + loc_shift_ref[...], 0.0)

    # Vertical branch: 1x1 conv on the H-pooled rows.
    ver = jnp.dot(xh.astype(jnp.bfloat16), wv_ref[...],
                  preferred_element_type=jnp.float32)
    vert_ref[...] = jnp.maximum(
        ver * ver_scale_ref[...] + ver_shift_ref[...], 0.0)


def fold_bn(gamma, beta, rmean, rvar):
    scale = gamma / jnp.sqrt(rvar + BN_EPS)
    shift = beta - rmean * scale
    return scale[None, :], shift[None, :]                    # [1, C] row vectors


def prepare_kernel_params(p, H, W):
    """Fuse/fold PyTorch-shaped params into the kernel's operand set."""
    fcw_pad = jnp.zeros((PLANES, NUM_CLASSES_PAD), jnp.float32)
    fcw_pad = fcw_pad.at[:, :NUM_CLASSES].set(p["fcw_t"])
    fcb_pad = jnp.zeros((1, NUM_CLASSES_PAD), jnp.float32)
    fcb_pad = fcb_pad.at[:, :NUM_CLASSES].set(p["fcb"])
    return dict(
        bn_scale=p["bn_scale"], bn_shift=p["bn_shift"],
        wl=p["wl_t"].astype(jnp.bfloat16),                    # [C, L] bf16
        wv=p["wv_t"].astype(jnp.bfloat16),                    # [C, L] bf16
        fcw=fcw_pad.astype(jnp.bfloat16),                     # [C, 1024] bf16
        loc_scale=p["lbn_scale"] / float(W),                  # fold 1/W (mean over W)
        loc_shift=p["bl"] * p["lbn_scale"] + p["lbn_shift"],
        ver_scale=p["vbn_scale"] / float(H),                  # fold 1/H (mean over H)
        ver_shift=p["bv"] * p["vbn_scale"] + p["vbn_shift"],
        fcb=fcb_pad,
    )


def _vmem_limit_bytes(B, H, W):
    # Double-buffered bf16 feat block + double-buffered bf16 resident weights
    # + double-buffered f32 outputs + headroom for the f32 intermediates.
    feat = 2 * B * H * W * PLANES * 2
    weights = 2 * PLANES * (2 * LOCAL_OUT + NUM_CLASSES_PAD) * 2
    outs = 2 * 4 * (B * PLANES + B * H * LOCAL_OUT
                    + B * W * LOCAL_OUT + B * NUM_CLASSES_PAD)
    interm = 2 * B * H * W * PLANES * 4 + (2 << 20)
    # Cap well under v7x's 64 MiB per-TC VMEM; floor at 16 MiB.
    return int(min(max(feat + weights + outs + interm, 16 << 20), 48 << 20))


@functools.partial(jax.jit, static_argnames=("block_n",))
def model_head(feat_nhwc, kp, *, block_n=8):
    N, H, W, C = feat_nhwc.shape
    assert C == PLANES
    L = LOCAL_OUT

    # Batch-block the grid: B images per grid step.  B is forced to a multiple
    # of 8 so every block's second-to-last dim stays sublane-aligned; N is
    # zero-padded up to a multiple of B.  For small N this yields a single
    # grid step (no duplicated per-core weight DMA on v7x); for larger N there
    # are >= 2 "parallel" steps so megacore can split work.
    B = max(8, (block_n + 7) // 8 * 8)
    n_pad = pl.cdiv(N, B) * B
    G = n_pad // B

    feat = feat_nhwc.astype(jnp.bfloat16)
    if n_pad != N:
        feat = jnp.pad(feat, ((0, n_pad - N), (0, 0), (0, 0), (0, 0)))

    def resident(a):
        # Weights / scales stay VMEM-resident across the grid (constant index
        # map -> never refetched).  Default double-buffering of the ~2.5 MiB
        # bf16 weights is accounted for in _vmem_limit_bytes.
        return pl.BlockSpec(a.shape, lambda n: (0,) * a.ndim)

    g, loc, ver, logits_p = pl.pallas_call(
        head_kernel,
        grid=(G,),
        in_specs=[
            pl.BlockSpec((B, H, W, C), lambda n: (n, 0, 0, 0)),
            resident(kp["bn_scale"]), resident(kp["bn_shift"]),
            resident(kp["wl"]), resident(kp["wv"]), resident(kp["fcw"]),
            resident(kp["loc_scale"]), resident(kp["loc_shift"]),
            resident(kp["ver_scale"]), resident(kp["ver_shift"]),
            resident(kp["fcb"]),
        ],
        out_specs=(
            pl.BlockSpec((B, C), lambda n: (n, 0)),
            pl.BlockSpec((B * H, L), lambda n: (n, 0)),
            pl.BlockSpec((B * W, L), lambda n: (n, 0)),
            pl.BlockSpec((B, NUM_CLASSES_PAD), lambda n: (n, 0)),
        ),
        out_shape=(
            jax.ShapeDtypeStruct((n_pad, C), jnp.float32),            # global_feat
            jax.ShapeDtypeStruct((n_pad * H, L), jnp.float32),        # local_feat
            jax.ShapeDtypeStruct((n_pad * W, L), jnp.float32),        # vert_local_feat
            jax.ShapeDtypeStruct((n_pad, NUM_CLASSES_PAD), jnp.float32),  # logits (pad)
        ),
        compiler_params=pltpu.CompilerParams(
            dimension_semantics=("parallel",),
            vmem_limit_bytes=_vmem_limit_bytes(B, H, W),
        ),
    )(feat, kp["bn_scale"], kp["bn_shift"], kp["wl"], kp["wv"], kp["fcw"],
      kp["loc_scale"], kp["loc_shift"], kp["ver_scale"], kp["ver_shift"],
      kp["fcb"])

    return (g[:N],
            loc.reshape(n_pad, H, L)[:N],
            ver.reshape(n_pad, W, L)[:N],
            logits_p[:N, :NUM_CLASSES])


def make_params(key):
    ks = jax.random.split(key, 16)
    C, L, NC = PLANES, LOCAL_OUT, NUM_CLASSES

    def bn_set(k, n):
        k1, k2, k3, k4 = jax.random.split(k, 4)
        gamma = jax.random.uniform(k1, (n,), jnp.float32, 0.5, 1.5)
        beta = 0.1 * jax.random.normal(k2, (n,), jnp.float32)
        rmean = 0.1 * jax.random.normal(k3, (n,), jnp.float32)
        rvar = jax.random.uniform(k4, (n,), jnp.float32, 0.5, 1.5)
        return fold_bn(gamma, beta, rmean, rvar)

    bn_scale, bn_shift = bn_set(ks[0], C)            # nn.BatchNorm1d(1024)
    lbn_scale, lbn_shift = bn_set(ks[1], L)          # local_bn
    vbn_scale, vbn_shift = bn_set(ks[2], L)          # local_vert_bn

    # 1x1 convs: PyTorch weight [L, C, 1, 1]; stored pre-transposed as [C, L].
    wl_t = 0.02 * jax.random.normal(ks[3], (C, L), jnp.float32)
    bl = (0.02 * jax.random.normal(ks[4], (L,), jnp.float32))[None, :]
    wv_t = 0.02 * jax.random.normal(ks[5], (C, L), jnp.float32)
    bv = (0.02 * jax.random.normal(ks[6], (L,), jnp.float32))[None, :]

    # fc: init.normal_(std=0.001), bias 0; stored pre-transposed as [C, NC].
    fcw_t = 0.001 * jax.random.normal(ks[7], (C, NC), jnp.float32)
    fcb = jnp.zeros((1, NC), jnp.float32)

    return dict(bn_scale=bn_scale, bn_shift=bn_shift,
                wl_t=wl_t, bl=bl, lbn_scale=lbn_scale, lbn_shift=lbn_shift,
                wv_t=wv_t, bv=bv, vbn_scale=vbn_scale, vbn_shift=vbn_shift,
                fcw_t=fcw_t, fcb=fcb)


def reference(feat_bf16, p):
    """Plain-JAX forward mirroring the PyTorch Model (eval-mode BN).

    Uses the same dtype policy as the kernel (bf16 feature map / bf16 matmul
    operands, f32 accumulation) so the comparison isolates kernel correctness
    rather than quantization policy.
    """
    xf = feat_bf16.astype(jnp.float32)
    N, H, W, C = xf.shape

    # global branch
    g = jnp.mean(xf, axis=(1, 2))                                   # [N, C]
    g_bn = g * p["bn_scale"] + p["bn_shift"]
    logits = jnp.dot(g_bn.astype(jnp.bfloat16),
                     p["fcw_t"].astype(jnp.bfloat16),
                     preferred_element_type=jnp.float32) + p["fcb"]

    # local branch: mean over W -> 1x1 conv -> BN -> ReLU
    sum_w = jnp.sum(xf, axis=2)                                     # [N, H, C]
    conv_l = jnp.dot(sum_w.astype(jnp.bfloat16).reshape(N * H, C),
                     p["wl_t"].astype(jnp.bfloat16),
                     preferred_element_type=jnp.float32).reshape(N, H, -1)
    conv_l = conv_l / W + p["bl"]
    loc = jnp.maximum(conv_l * p["lbn_scale"] + p["lbn_shift"], 0.0)

    # vertical branch: mean over H -> 1x1 conv -> BN -> ReLU
    sum_h = jnp.sum(xf, axis=1)                                     # [N, W, C]
    conv_v = jnp.dot(sum_h.astype(jnp.bfloat16).reshape(N * W, C),
                     p["wv_t"].astype(jnp.bfloat16),
                     preferred_element_type=jnp.float32).reshape(N, W, -1)
    conv_v = conv_v / H + p["bv"]
    ver = jnp.maximum(conv_v * p["vbn_scale"] + p["vbn_shift"], 0.0)
    return g, loc, ver, logits


if __name__ == "__main__":
    key = jax.random.PRNGKey(0)
    kf, kp_key = jax.random.split(key)

    # Feature-map shape consistent with densenet121 features (stride 32):
    # a 128x256 image -> feat [N, 1024, 4, 8] (NCHW) == [N, 4, 8, 1024] NHWC.
    # N = 10 with block_n = 8 exercises both the N-padding path and a 2-step
    # batch-blocked grid (B = 8 images per step).
    N, H, W = 10, 4, 8
    feat = jax.random.normal(kf, (N, H, W, PLANES), jnp.float32)
    feat_bf16 = feat.astype(jnp.bfloat16)   # backbone output handed over in bf16

    params = make_params(kp_key)
    kparams = prepare_kernel_params(params, H, W)

    outs = model_head(feat_bf16, kparams, block_n=8)
    outs = jax.block_until_ready(outs)

    refs = reference(feat_bf16, params)
    names = ("global_feat", "local_feat", "vert_local_feat", "logits")
    for name, o, r in zip(names, outs, refs):
        assert o.shape == r.shape, (name, o.shape, r.shape)
        assert jnp.allclose(o, r, atol=1e-2, rtol=1e-2), f"mismatch vs reference: {name}"

    print("KERNEL_OK")
</pallas_src>

<mosaic_0001>
module attributes {stable_mosaic.version = 11 : i64} {
  func.func @head_kernel(%arg0: i32, %arg1: memref<8x4x8x1024xbf16, #tpu.memory_space<vmem>>, %arg2: memref<1x1024xf32, #tpu.memory_space<vmem>>, %arg3: memref<1x1024xf32, #tpu.memory_space<vmem>>, %arg4: memref<1024x128xbf16, #tpu.memory_space<vmem>>, %arg5: memref<1024x128xbf16, #tpu.memory_space<vmem>>, %arg6: memref<1024x1024xbf16, #tpu.memory_space<vmem>>, %arg7: memref<1x128xf32, #tpu.memory_space<vmem>>, %arg8: memref<1x128xf32, #tpu.memory_space<vmem>>, %arg9: memref<1x128xf32, #tpu.memory_space<vmem>>, %arg10: memref<1x128xf32, #tpu.memory_space<vmem>>, %arg11: memref<1x1024xf32, #tpu.memory_space<vmem>>, %arg12: memref<8x1024xf32, #tpu.memory_space<vmem>>, %arg13: memref<32x128xf32, #tpu.memory_space<vmem>>, %arg14: memref<64x128xf32, #tpu.memory_space<vmem>>, %arg15: memref<8x1024xf32, #tpu.memory_space<vmem>>) attributes {dimension_semantics = [#tpu.dimension_semantics<parallel>], iteration_bounds = array<i64: 2>, scalar_prefetch = 0 : i64, scratch_operands = 0 : i64, tpu.core_type = #tpu.core_type<tc>, window_params = [{transform_indices = @transform_0, window_bounds = array<i64: 8, 4, 8, 1024>}, {pipeline_mode = #tpu.pipeline_mode<synchronous>, transform_indices = @transform_1, window_bounds = array<i64: 1, 1024>}, {pipeline_mode = #tpu.pipeline_mode<synchronous>, transform_indices = @transform_2, window_bounds = array<i64: 1, 1024>}, {pipeline_mode = #tpu.pipeline_mode<synchronous>, transform_indices = @transform_3, window_bounds = array<i64: 1024, 128>}, {pipeline_mode = #tpu.pipeline_mode<synchronous>, transform_indices = @transform_4, window_bounds = array<i64: 1024, 128>}, {pipeline_mode = #tpu.pipeline_mode<synchronous>, transform_indices = @transform_5, window_bounds = array<i64: 1024, 1024>}, {pipeline_mode = #tpu.pipeline_mode<synchronous>, transform_indices = @transform_6, window_bounds = array<i64: 1, 128>}, {pipeline_mode = #tpu.pipeline_mode<synchronous>, transform_indices = @transform_7, window_bounds = array<i64: 1, 128>}, {pipeline_mode = #tpu.pipeline_mode<synchronous>, transform_indices = @transform_8, window_bounds = array<i64: 1, 128>}, {pipeline_mode = #tpu.pipeline_mode<synchronous>, transform_indices = @transform_9, window_bounds = array<i64: 1, 128>}, {pipeline_mode = #tpu.pipeline_mode<synchronous>, transform_indices = @transform_10, window_bounds = array<i64: 1, 1024>}, {transform_indices = @transform_11, window_bounds = array<i64: 8, 1024>}, {transform_indices = @transform_12, window_bounds = array<i64: 32, 128>}, {transform_indices = @transform_13, window_bounds = array<i64: 64, 128>}, {transform_indices = @transform_14, window_bounds = array<i64: 8, 1024>}]} {
    %c0 = arith.constant 0 : index
    %c0_0 = arith.constant 0 : index
    %c0_1 = arith.constant 0 : index
    %c0_2 = arith.constant 0 : index
    %0 = vector.load %arg1[%c0, %c0_0, %c0_1, %c0_2] : memref<8x4x8x1024xbf16, #tpu.memory_space<vmem>>, vector<8x4x8x1024xbf16>
    %1 = arith.extf %0 : vector<8x4x8x1024xbf16> to vector<8x4x8x1024xf32>
    %2 = vector.shape_cast %1 : vector<8x4x8x1024xf32> to vector<32x8x1024xf32>
    %cst = arith.constant dense<0.000000e+00> : vector<32x1024xf32>
    %3 = vector.multi_reduction <add>, %2, %cst [1] : vector<32x8x1024xf32> to vector<32x1024xf32>
    %cst_3 = arith.constant dense<0.000000e+00> : vector<8x8x1024xf32>
    %4 = vector.multi_reduction <add>, %1, %cst_3 [1] : vector<8x4x8x1024xf32> to vector<8x8x1024xf32>
    %5 = vector.shape_cast %4 : vector<8x8x1024xf32> to vector<64x1024xf32>
    %cst_4 = arith.constant dense<0.000000e+00> : vector<8x1024xf32>
    %6 = vector.multi_reduction <add>, %4, %cst_4 [1] : vector<8x8x1024xf32> to vector<8x1024xf32>
    %cst_5 = arith.constant 3.125000e-02 : f32
    %7 = vector.broadcast %cst_5 : f32 to vector<8x1024xf32>
    %8 = arith.mulf %6, %7 : vector<8x1024xf32>
    %c0_6 = arith.constant 0 : index
    %c0_7 = arith.constant 0 : index
    %9 = vector.load %arg12[%c0_6, %c0_7] : memref<8x1024xf32, #tpu.memory_space<vmem>>, vector<8x1024xf32>
    tpu.vector_store %arg12[%c0_6, %c0_7], %8 {strides = array<i32>} : memref<8x1024xf32, #tpu.memory_space<vmem>>, vector<8x1024xf32>,
    %c0_8 = arith.constant 0 : index
    %c0_9 = arith.constant 0 : index
    %10 = vector.load %arg2[%c0_8, %c0_9] : memref<1x1024xf32, #tpu.memory_space<vmem>>, vector<1x1024xf32>
    %11 = vector.broadcast %10 : vector<1x1024xf32> to vector<8x1024xf32>
    %12 = arith.mulf %8, %11 : vector<8x1024xf32>
    %c0_10 = arith.constant 0 : index
    %c0_11 = arith.constant 0 : index
    %13 = vector.load %arg3[%c0_10, %c0_11] : memref<1x1024xf32, #tpu.memory_space<vmem>>, vector<1x1024xf32>
    %14 = vector.broadcast %13 : vector<1x1024xf32> to vector<8x1024xf32>
    %15 = arith.addf %12, %14 : vector<8x1024xf32>
    %16 = arith.truncf %15 : vector<8x1024xf32> to vector<8x1024xbf16>
    %c0_12 = arith.constant 0 : index
    %c0_13 = arith.constant 0 : index
    %17 = vector.load %arg6[%c0_12, %c0_13] : memref<1024x1024xbf16, #tpu.memory_space<vmem>>, vector<1024x1024xbf16>
    %cst_14 = arith.constant dense<0.000000e+00> : vector<8x1024xf32>
    %18 = tpu.matmul %16, %17, %cst_14 {dimension_numbers = #tpu.dot_dimension_numbers<[1], [0], [0], [1], [0, 0, 1, 1], [], []>} : vector<8x1024xbf16>, vector<1024x1024xbf16>, vector<8x1024xf32> -> vector<8x1024xf32>
    %c0_15 = arith.constant 0 : index
    %c0_16 = arith.constant 0 : index
    %19 = vector.load %arg11[%c0_15, %c0_16] : memref<1x1024xf32, #tpu.memory_space<vmem>>, vector<1x1024xf32>
    %20 = vector.broadcast %19 : vector<1x1024xf32> to vector<8x1024xf32>
    %21 = arith.addf %18, %20 : vector<8x1024xf32>
    %c0_17 = arith.constant 0 : index
    %c0_18 = arith.constant 0 : index
    %22 = vector.load %arg15[%c0_17, %c0_18] : memref<8x1024xf32, #tpu.memory_space<vmem>>, vector<8x1024xf32>
    tpu.vector_store %arg15[%c0_17, %c0_18], %21 {strides = array<i32>} : memref<8x1024xf32, #tpu.memory_space<vmem>>, vector<8x1024xf32>,
    %23 = arith.truncf %3 : vector<32x1024xf32> to vector<32x1024xbf16>
    %c0_19 = arith.constant 0 : index
    %c0_20 = arith.constant 0 : index
    %24 = vector.load %arg4[%c0_19, %c0_20] : memref<1024x128xbf16, #tpu.memory_space<vmem>>, vector<1024x128xbf16>
    %cst_21 = arith.constant dense<0.000000e+00> : vector<32x128xf32>
    %25 = tpu.matmul %23, %24, %cst_21 {dimension_numbers = #tpu.dot_dimension_numbers<[1], [0], [0], [1], [0, 0, 1, 1], [], []>} : vector<32x1024xbf16>, vector<1024x128xbf16>, vector<32x128xf32> -> vector<32x128xf32>
    %c0_22 = arith.constant 0 : index
    %c0_23 = arith.constant 0 : index
    %26 = vector.load %arg7[%c0_22, %c0_23] : memref<1x128xf32, #tpu.memory_space<vmem>>, vector<1x128xf32>
    %27 = vector.broadcast %26 : vector<1x128xf32> to vector<32x128xf32>
    %28 = arith.mulf %25, %27 : vector<32x128xf32>
    %c0_24 = arith.constant 0 : index
    %c0_25 = arith.constant 0 : index
    %29 = vector.load %arg8[%c0_24, %c0_25] : memref<1x128xf32, #tpu.memory_space<vmem>>, vector<1x128xf32>
    %30 = vector.broadcast %29 : vector<1x128xf32> to vector<32x128xf32>
    %31 = arith.addf %28, %30 : vector<32x128xf32>
    %cst_26 = arith.constant 0.000000e+00 : f32
    %32 = vector.broadcast %cst_26 : f32 to vector<32x128xf32>
    %33 = arith.maximumf %31, %32 : vector<32x128xf32>
    %c0_27 = arith.constant 0 : index
    %c0_28 = arith.constant 0 : index
    %34 = vector.load %arg13[%c0_27, %c0_28] : memref<32x128xf32, #tpu.memory_space<vmem>>, vector<32x128xf32>
    tpu.vector_store %arg13[%c0_27, %c0_28], %33 {strides = array<i32>} : memref<32x128xf32, #tpu.memory_space<vmem>>, vector<32x128xf32>,
    %35 = arith.truncf %5 : vector<64x1024xf32> to vector<64x1024xbf16>
    %c0_29 = arith.constant 0 : index
    %c0_30 = arith.constant 0 : index
    %36 = vector.load %arg5[%c0_29, %c0_30] : memref<1024x128xbf16, #tpu.memory_space<vmem>>, vector<1024x128xbf16>
    %cst_31 = arith.constant dense<0.000000e+00> : vector<64x128xf32>
    %37 = tpu.matmul %35, %36, %cst_31 {dimension_numbers = #tpu.dot_dimension_numbers<[1], [0], [0], [1], [0, 0, 1, 1], [], []>} : vector<64x1024xbf16>, vector<1024x128xbf16>, vector<64x128xf32> -> vector<64x128xf32>
    %c0_32 = arith.constant 0 : index
    %c0_33 = arith.constant 0 : index
    %38 = vector.load %arg9[%c0_32, %c0_33] : memref<1x128xf32, #tpu.memory_space<vmem>>, vector<1x128xf32>
    %39 = vector.broadcast %38 : vector<1x128xf32> to vector<64x128xf32>
    %40 = arith.mulf %37, %39 : vector<64x128xf32>
    %c0_34 = arith.constant 0 : index
    %c0_35 = arith.constant 0 : index
    %41 = vector.load %arg10[%c0_34, %c0_35] : memref<1x128xf32, #tpu.memory_space<vmem>>, vector<1x128xf32>
    %42 = vector.broadcast %41 : vector<1x128xf32> to vector<64x128xf32>
    %43 = arith.addf %40, %42 : vector<64x128xf32>
    %cst_36 = arith.constant 0.000000e+00 : f32
    %44 = vector.broadcast %cst_36 : f32 to vector<64x128xf32>
    %45 = arith.maximumf %43, %44 : vector<64x128xf32>
    %c0_37 = arith.constant 0 : index
    %c0_38 = arith.constant 0 : index
    %46 = vector.load %arg14[%c0_37, %c0_38] : memref<64x128xf32, #tpu.memory_space<vmem>>, vector<64x128xf32>
    tpu.vector_store %arg14[%c0_37, %c0_38], %45 {strides = array<i32>} : memref<64x128xf32, #tpu.memory_space<vmem>>, vector<64x128xf32>,
    return
  }
  func.func @transform_0(%arg0: i32) -> (i32, i32, i32, i32) {
    %c0_i32 = arith.constant 0 : i32
    %c0_i32_0 = arith.constant 0 : i32
    %c0_i32_1 = arith.constant 0 : i32
    %c0_i32_2 = arith.constant 0 : i32
    return %arg0, %c0_i32, %c0_i32_0, %c0_i32_1 : i32, i32, i32, i32
  }
  func.func @transform_1(%arg0: i32) -> (i32, i32) {
    %c0_i32 = arith.constant 0 : i32
    %c0_i32_0 = arith.constant 0 : i32
    %c0_i32_1 = arith.constant 0 : i32
    return %c0_i32, %c0_i32_0 : i32, i32
  }
  func.func @transform_2(%arg0: i32) -> (i32, i32) {
    %c0_i32 = arith.constant 0 : i32
    %c0_i32_0 = arith.constant 0 : i32
    %c0_i32_1 = arith.constant 0 : i32
    return %c0_i32, %c0_i32_0 : i32, i32
  }
  func.func @transform_3(%arg0: i32) -> (i32, i32) {
    %c0_i32 = arith.constant 0 : i32
    %c0_i32_0 = arith.constant 0 : i32
    %c0_i32_1 = arith.constant 0 : i32
    return %c0_i32, %c0_i32_0 : i32, i32
  }
  func.func @transform_4(%arg0: i32) -> (i32, i32) {
    %c0_i32 = arith.constant 0 : i32
    %c0_i32_0 = arith.constant 0 : i32
    %c0_i32_1 = arith.constant 0 : i32
    return %c0_i32, %c0_i32_0 : i32, i32
  }
  func.func @transform_5(%arg0: i32) -> (i32, i32) {
    %c0_i32 = arith.constant 0 : i32
    %c0_i32_0 = arith.constant 0 : i32
    %c0_i32_1 = arith.constant 0 : i32
    return %c0_i32, %c0_i32_0 : i32, i32
  }
  func.func @transform_6(%arg0: i32) -> (i32, i32) {
    %c0_i32 = arith.constant 0 : i32
    %c0_i32_0 = arith.constant 0 : i32
    %c0_i32_1 = arith.constant 0 : i32
    return %c0_i32, %c0_i32_0 : i32, i32
  }
  func.func @transform_7(%arg0: i32) -> (i32, i32) {
    %c0_i32 = arith.constant 0 : i32
    %c0_i32_0 = arith.constant 0 : i32
    %c0_i32_1 = arith.constant 0 : i32
    return %c0_i32, %c0_i32_0 : i32, i32
  }
  func.func @transform_8(%arg0: i32) -> (i32, i32) {
    %c0_i32 = arith.constant 0 : i32
    %c0_i32_0 = arith.constant 0 : i32
    %c0_i32_1 = arith.constant 0 : i32
    return %c0_i32, %c0_i32_0 : i32, i32
  }
  func.func @transform_9(%arg0: i32) -> (i32, i32) {
    %c0_i32 = arith.constant 0 : i32
    %c0_i32_0 = arith.constant 0 : i32
    %c0_i32_1 = arith.constant 0 : i32
    return %c0_i32, %c0_i32_0 : i32, i32
  }
  func.func @transform_10(%arg0: i32) -> (i32, i32) {
    %c0_i32 = arith.constant 0 : i32
    %c0_i32_0 = arith.constant 0 : i32
    %c0_i32_1 = arith.constant 0 : i32
    return %c0_i32, %c0_i32_0 : i32, i32
  }
  func.func @transform_11(%arg0: i32) -> (i32, i32) {
    %c0_i32 = arith.constant 0 : i32
    %c0_i32_0 = arith.constant 0 : i32
    return %arg0, %c0_i32 : i32, i32
  }
  func.func @transform_12(%arg0: i32) -> (i32, i32) {
    %c0_i32 = arith.constant 0 : i32
    %c0_i32_0 = arith.constant 0 : i32
    return %arg0, %c0_i32 : i32, i32
  }
  func.func @transform_13(%arg0: i32) -> (i32, i32) {
    %c0_i32 = arith.constant 0 : i32
    %c0_i32_0 = arith.constant 0 : i32
    return %arg0, %c0_i32 : i32, i32
  }
  func.func @transform_14(%arg0: i32) -> (i32, i32) {
    %c0_i32 = arith.constant 0 : i32
    %c0_i32_0 = arith.constant 0 : i32
    return %arg0, %c0_i32 : i32, i32
  }
}

</mosaic_0001>

<llo_original>
// kernel: model_head.1
$region0: #{model_head.1}
  #allocation0 [shape = 'u32[]', space=smem, size = 0x4, offset = 0x4, fixed_abs, tag = 'smem constant byte address 0x4 - core index']
  #allocation1 [shape = 'u32[144,128]{1,0:T(1,128)}', space=vmem, size = 0x12000, scoped, tag = 'internal scratch']
  %s0 = inlined_call_operand.vmem [shape: bf16[16,4,8,1024], index: 0, kind: input, shape index: {}]
  %s1 = inlined_call_operand.hbm [shape: f32[1,1024], index: 1, kind: input, shape index: {}]
  %s2 = inlined_call_operand.hbm [shape: f32[1,1024], index: 2, kind: input, shape index: {}]
  %s3 = inlined_call_operand.hbm [shape: bf16[1024,128], index: 3, kind: input, shape index: {}]
  %s4 = inlined_call_operand.hbm [shape: bf16[1024,128], index: 4, kind: input, shape index: {}]
  %s5 = inlined_call_operand.hbm [shape: bf16[1024,1024], index: 5, kind: input, shape index: {}]
  %s6 = inlined_call_operand.hbm [shape: f32[1,128], index: 6, kind: input, shape index: {}]
  %s7 = inlined_call_operand.hbm [shape: f32[1,128], index: 7, kind: input, shape index: {}]
  %s8 = inlined_call_operand.hbm [shape: f32[1,128], index: 8, kind: input, shape index: {}]
  %s9 = inlined_call_operand.hbm [shape: f32[1,128], index: 9, kind: input, shape index: {}]
  %s10 = inlined_call_operand.hbm [shape: f32[1,1024], index: 10, kind: input, shape index: {}]
  %s11 = inlined_call_operand.hbm [shape: f32[16,1024], index: 11, kind: output, shape index: {0}]
  %s12 = inlined_call_operand.vmem [shape: f32[64,128], index: 12, kind: output, shape index: {1}]
  %s13 = inlined_call_operand.vmem [shape: f32[128,128], index: 13, kind: output, shape index: {2}]
  %s14 = inlined_call_operand.hbm [shape: f32[16,1024], index: 14, kind: output, shape index: {3}]
  %15 = xla_tuple %s11, %s12, %s13, %s14
  %s16 = sld [smem:[#allocation0]]
  $region141: #{model_head.1} parent=0
    _
  %s18 = ssub.s32 1, %s16
  %s19 = scalar_select 0, %s18, %s16
  $region1: #{model_head.1} parent=0
    #allocation2 [shape = 'u8[4096]{0}', space=vmem, size = 0x1000, scoped, tag = 'input window, operand 1, single buffered']
    #allocation3 [shape = 's32[2]{0}', space=sflag, size = 0x8, scoped, tag = 'scoped memory for model_head.1']
    #allocation4 [shape = 's32[2]{0}', space=sflag, size = 0x8, scoped, tag = 'scoped memory for model_head.1']
    #allocation5 [shape = 'u8[4096]{0}', space=vmem, size = 0x1000, scoped, tag = 'input window, operand 2, single buffered']
    #allocation6 [shape = 's32[1]{0}', space=sflag, size = 0x4, scoped, tag = 'scoped memory for model_head.1']
    #allocation7 [shape = 'u8[262144]{0}', space=vmem, size = 0x40000, scoped, tag = 'input window, operand 3, single buffered']
    #allocation8 [shape = 'u8[262144]{0}', space=vmem, size = 0x40000, scoped, tag = 'input window, operand 4, single buffered']
    #allocation9 [shape = 's32[1]{0}', space=sflag, size = 0x4, scoped, tag = 'scoped memory for model_head.1']
    #allocation10 [shape = 'u8[2097152]{0}', space=vmem, size = 0x200000, scoped, tag = 'input window, operand 5, single buffered']
    #allocation11 [shape = 'u8[512]{0}', space=vmem, size = 0x400, scoped, tag = 'input window, operand 6, single buffered']
    #allocation12 [shape = 's32[1]{0}', space=sflag, size = 0x4, scoped, tag = 'scoped memory for model_head.1']
    #allocation13 [shape = 'u8[512]{0}', space=vmem, size = 0x400, scoped, tag = 'input window, operand 7, single buffered']
    #allocation14 [shape = 'u8[512]{0}', space=vmem, size = 0x400, scoped, tag = 'input window, operand 8, single buffered']
    #allocation15 [shape = 's32[1]{0}', space=sflag, size = 0x4, scoped, tag = 'scoped memory for model_head.1']
    #allocation16 [shape = 'u8[512]{0}', space=vmem, size = 0x400, scoped, tag = 'input window, operand 9, single buffered']
    #allocation17 [shape = 'u8[4096]{0}', space=vmem, size = 0x1000, scoped, tag = 'input window, operand 10, single buffered']
    #allocation18 [shape = 's32[1]{0}', space=sflag, size = 0x4, scoped, tag = 'scoped memory for model_head.1']
    #allocation19 [shape = 'u8[65536]{0}', space=vmem, size = 0x10000, scoped, tag = 'output window, operand 0']
    #allocation20 [shape = 'u8[65536]{0}', space=vmem, size = 0x10000, scoped, tag = 'output window, operand 3']
    #allocation21 [shape = 's32[2]{0}', space=sflag, size = 0x8, scoped, tag = 'scoped memory for model_head.1']
    %20 = vsyncpa [#allocation3], 0
    %21 = vsyncpa [#allocation6], 0
    %22 = vsyncpa [#allocation9], 0
    %23 = vsyncpa [#allocation12], 0
    %24 = vsyncpa [#allocation15], 0
    %25 = vsyncpa [#allocation18], 0
    %26 = vsyncpa [#allocation4], 0
    %s27 = scalar_lea.sflag [#allocation4], 1
    %28 = vsyncpa %s27, 0
    %29 = vsyncpa [#allocation21], 0
    %s30 = scalar_lea.sflag [#allocation21], 1
    %31 = vsyncpa %s30, 0
    loop: start=0, step=1, limit=4
    $region2: #{model_head.1} parent=1 // loop_pre_header
      _
    $region3: #{model_head.1} parent=1 // loop_header
      %s33 = sphi 0, %s37
      %p34 = scmp.ge.s32.totalorder %s33, 4
      %s43 = sphi 0, %s45
      %s46 = sphi 0, %s43
      %s47 = sphi 0, %s46
      %s63 = sphi 0, %s47
      %s67 = sphi 0, %s67
      %s69 = sphi 0, %s67
      %s70 = sphi 0, %s69
      %s84 = sphi 0, %s70
      %s88 = sphi 0, %s88
      %s90 = sphi 0, %s88
      %s91 = sphi 0, %s90
      %s105 = sphi 0, %s91
      %s109 = sphi 0, %s109
      %s111 = sphi 0, %s109
      %s112 = sphi 0, %s111
      %s126 = sphi 0, %s112
      %s130 = sphi 0, %s130
      %s132 = sphi 0, %s130
      %s133 = sphi 0, %s132
      %s147 = sphi 0, %s133
      %s151 = sphi 0, %s151
      %s153 = sphi 0, %s151
      %s154 = sphi 0, %s153
      %s168 = sphi 0, %s154
      %s172 = sphi 0, %s172
      %s174 = sphi 0, %s172
      %s175 = sphi 0, %s174
      %s189 = sphi 0, %s175
      %s193 = sphi 0, %s193
      %s195 = sphi 0, %s193
      %s196 = sphi 0, %s195
      %s210 = sphi 0, %s196
      %s214 = sphi 0, %s214
      %s216 = sphi 0, %s214
      %s217 = sphi 0, %s216
      %s231 = sphi 0, %s217
      %s235 = sphi 0, %s235
      %s237 = sphi 0, %s235
      %s238 = sphi 0, %s237
      %s252 = sphi 0, %s238
      %s256 = sphi 0, %s256
      %s258 = sphi 0, %s256
      %s259 = sphi 0, %s258
      %s273 = sphi 0, %s259
      %s279 = sphi 0, %s281
      %s282 = sphi 0, %s279
      %s283 = sphi 0, %s282
      %s299 = sphi 0, %s283
      %s305 = sphi 0, %s307
      %s308 = sphi 0, %s305
      %s309 = sphi 0, %s308
      %s325 = sphi 0, %s309
      %s331 = sphi 0, %s333
      %s334 = sphi 0, %s331
      %s335 = sphi 0, %s334
      %s351 = sphi 0, %s335
      %s357 = sphi 0, %s359
      %s360 = sphi 0, %s357
      %s361 = sphi 0, %s360
      %s377 = sphi 0, %s361
    $region4: #{model_head.1} parent=1 // loop_header_branch
      %36 = sbr.rel (%p34) target = $region8
    $region5: #{model_head.1} parent=1 // loop_body
      %s38 = ssub.s32 %s33, 1
      %s39 = ssub.s32 %s33, 2
      %s40 = sadd.s32 %s33, 1
      %s41 = ssub.s32 %s33, %s40
      %p42 = scmp.eq.s32.totalorder %s41, 0
      %s44 = sadd.s32 %s43, 1
      %s45 = scalar_select %p42, %s43, %s44
      %p48 = pneg %p42
      %p49 = scmp.eq.s32.totalorder %s33, 1
      %p50 = por %p48, %p49
      %p51 = scmp.ne.s32.totalorder %s43, %s46
      %p52 = scmp.eq.s32.totalorder %s33, 0
      %p53 = por %p51, %p52
      %p54 = scmp.ne.s32.totalorder %s43, %s46
      %p55 = scmp.eq.s32.totalorder %s38, 1
      %p56 = por %p54, %p55
      %p57 = scmp.ne.s32.totalorder %s46, %s47
      %p58 = scmp.eq.s32.totalorder %s38, 0
      %p59 = por %p57, %p58
      %p60 = scmp.ne.s32.totalorder %s46, %s47
      %p61 = scmp.eq.s32.totalorder %s39, 1
      %p62 = por %p60, %p61
      %p64 = scmp.ne.s32.totalorder %s47, %s63
      %p65 = scmp.eq.s32.totalorder %s39, 0
      %p66 = por %p64, %p65
      %s68 = sadd.s32 %s67, 1
      %p71 = scmp.eq.s32.totalorder %s33, 1
      %p72 = scmp.ne.s32.totalorder %s67, %s69
      %p73 = scmp.eq.s32.totalorder %s33, 0
      %p74 = por %p72, %p73
      %p75 = scmp.ne.s32.totalorder %s67, %s69
      %p76 = scmp.eq.s32.totalorder %s38, 1
      %p77 = por %p75, %p76
      %p78 = scmp.ne.s32.totalorder %s69, %s70
      %p79 = scmp.eq.s32.totalorder %s38, 0
      %p80 = por %p78, %p79
      %p81 = scmp.ne.s32.totalorder %s69, %s70
      %p82 = scmp.eq.s32.totalorder %s39, 1
      %p83 = por %p81, %p82
      %p85 = scmp.ne.s32.totalorder %s70, %s84
      %p86 = scmp.eq.s32.totalorder %s39, 0
      %p87 = por %p85, %p86
      %s89 = sadd.s32 %s88, 1
      %p92 = scmp.eq.s32.totalorder %s33, 1
      %p93 = scmp.ne.s32.totalorder %s88, %s90
      %p94 = scmp.eq.s32.totalorder %s33, 0
      %p95 = por %p93, %p94
      %p96 = scmp.ne.s32.totalorder %s88, %s90
      %p97 = scmp.eq.s32.totalorder %s38, 1
      %p98 = por %p96, %p97
      %p99 = scmp.ne.s32.totalorder %s90, %s91
      %p100 = scmp.eq.s32.totalorder %s38, 0
      %p101 = por %p99, %p100
      %p102 = scmp.ne.s32.totalorder %s90, %s91
      %p103 = scmp.eq.s32.totalorder %s39, 1
      %p104 = por %p102, %p103
      %p106 = scmp.ne.s32.totalorder %s91, %s105
      %p107 = scmp.eq.s32.totalorder %s39, 0
      %p108 = por %p106, %p107
      %s110 = sadd.s32 %s109, 1
      %p113 = scmp.eq.s32.totalorder %s33, 1
      %p114 = scmp.ne.s32.totalorder %s109, %s111
      %p115 = scmp.eq.s32.totalorder %s33, 0
      %p116 = por %p114, %p115
      %p117 = scmp.ne.s32.totalorder %s109, %s111
      %p118 = scmp.eq.s32.totalorder %s38, 1
      %p119 = por %p117, %p118
      %p120 = scmp.ne.s32.totalorder %s111, %s112
      %p121 = scmp.eq.s32.totalorder %s38, 0
      %p122 = por %p120, %p121
      %p123 = scmp.ne.s32.totalorder %s111, %s112
      %p124 = scmp.eq.s32.totalorder %s39, 1
      %p125 = por %p123, %p124
      %p127 = scmp.ne.s32.totalorder %s112, %s126
      %p128 = scmp.eq.s32.totalorder %s39, 0
      %p129 = por %p127, %p128
      %s131 = sadd.s32 %s130, 1
      %p134 = scmp.eq.s32.totalorder %s33, 1
      %p135 = scmp.ne.s32.totalorder %s130, %s132
      %p136 = scmp.eq.s32.totalorder %s33, 0
      %p137 = por %p135, %p136
      %p138 = scmp.ne.s32.totalorder %s130, %s132
      %p139 = scmp.eq.s32.totalorder %s38, 1
      %p140 = por %p138, %p139
      %p141 = scmp.ne.s32.totalorder %s132, %s133
      %p142 = scmp.eq.s32.totalorder %s38, 0
      %p143 = por %p141, %p142
      %p144 = scmp.ne.s32.totalorder %s132, %s133
      %p145 = scmp.eq.s32.totalorder %s39, 1
      %p146 = por %p144, %p145
      %p148 = scmp.ne.s32.totalorder %s133, %s147
      %p149 = scmp.eq.s32.totalorder %s39, 0
      %p150 = por %p148, %p149
      %s152 = sadd.s32 %s151, 1
      %p155 = scmp.eq.s32.totalorder %s33, 1
      %p156 = scmp.ne.s32.totalorder %s151, %s153
      %p157 = scmp.eq.s32.totalorder %s33, 0
      %p158 = por %p156, %p157
      %p159 = scmp.ne.s32.totalorder %s151, %s153
      %p160 = scmp.eq.s32.totalorder %s38, 1
      %p161 = por %p159, %p160
      %p162 = scmp.ne.s32.totalorder %s153, %s154
      %p163 = scmp.eq.s32.totalorder %s38, 0
      %p164 = por %p162, %p163
      %p165 = scmp.ne.s32.totalorder %s153, %s154
      %p166 = scmp.eq.s32.totalorder %s39, 1
      %p167 = por %p165, %p166
      %p169 = scmp.ne.s32.totalorder %s154, %s168
      %p170 = scmp.eq.s32.totalorder %s39, 0
      %p171 = por %p169, %p170
      %s173 = sadd.s32 %s172, 1
      %p176 = scmp.eq.s32.totalorder %s33, 1
      %p177 = scmp.ne.s32.totalorder %s172, %s174
      %p178 = scmp.eq.s32.totalorder %s33, 0
      %p179 = por %p177, %p178
      %p180 = scmp.ne.s32.totalorder %s172, %s174
      %p181 = scmp.eq.s32.totalorder %s38, 1
      %p182 = por %p180, %p181
      %p183 = scmp.ne.s32.totalorder %s174, %s175
      %p184 = scmp.eq.s32.totalorder %s38, 0
      %p185 = por %p183, %p184
      %p186 = scmp.ne.s32.totalorder %s174, %s175
      %p187 = scmp.eq.s32.totalorder %s39, 1
      %p188 = por %p186, %p187
      %p190 = scmp.ne.s32.totalorder %s175, %s189
      %p191 = scmp.eq.s32.totalorder %s39, 0
      %p192 = por %p190, %p191
      %s194 = sadd.s32 %s193, 1
      %p197 = scmp.eq.s32.totalorder %s33, 1
      %p198 = scmp.ne.s32.totalorder %s193, %s195
      %p199 = scmp.eq.s32.totalorder %s33, 0
      %p200 = por %p198, %p199
      %p201 = scmp.ne.s32.totalorder %s193, %s195
      %p202 = scmp.eq.s32.totalorder %s38, 1
      %p203 = por %p201, %p202
      %p204 = scmp.ne.s32.totalorder %s195, %s196
      %p205 = scmp.eq.s32.totalorder %s38, 0
      %p206 = por %p204, %p205
      %p207 = scmp.ne.s32.totalorder %s195, %s196
      %p208 = scmp.eq.s32.totalorder %s39, 1
      %p209 = por %p207, %p208
      %p211 = scmp.ne.s32.totalorder %s196, %s210
      %p212 = scmp.eq.s32.totalorder %s39, 0
      %p213 = por %p211, %p212
      %s215 = sadd.s32 %s214, 1
      %p218 = scmp.eq.s32.totalorder %s33, 1
      %p219 = scmp.ne.s32.totalorder %s214, %s216
      %p220 = scmp.eq.s32.totalorder %s33, 0
      %p221 = por %p219, %p220
      %p222 = scmp.ne.s32.totalorder %s214, %s216
      %p223 = scmp.eq.s32.totalorder %s38, 1
      %p224 = por %p222, %p223
      %p225 = scmp.ne.s32.totalorder %s216, %s217
      %p226 = scmp.eq.s32.totalorder %s38, 0
      %p227 = por %p225, %p226
      %p228 = scmp.ne.s32.totalorder %s216, %s217
      %p229 = scmp.eq.s32.totalorder %s39, 1
      %p230 = por %p228, %p229
      %p232 = scmp.ne.s32.totalorder %s217, %s231
      %p233 = scmp.eq.s32.totalorder %s39, 0
      %p234 = por %p232, %p233
      %s236 = sadd.s32 %s235, 1
      %p239 = scmp.eq.s32.totalorder %s33, 1
      %p240 = scmp.ne.s32.totalorder %s235, %s237
      %p241 = scmp.eq.s32.totalorder %s33, 0
      %p242 = por %p240, %p241
      %p243 = scmp.ne.s32.totalorder %s235, %s237
      %p244 = scmp.eq.s32.totalorder %s38, 1
      %p245 = por %p243, %p244
      %p246 = scmp.ne.s32.totalorder %s237, %s238
      %p247 = scmp.eq.s32.totalorder %s38, 0
      %p248 = por %p246, %p247
      %p249 = scmp.ne.s32.totalorder %s237, %s238
      %p250 = scmp.eq.s32.totalorder %s39, 1
      %p251 = por %p249, %p250
      %p253 = scmp.ne.s32.totalorder %s238, %s252
      %p254 = scmp.eq.s32.totalorder %s39, 0
      %p255 = por %p253, %p254
      %s257 = sadd.s32 %s256, 1
      %p260 = scmp.eq.s32.totalorder %s33, 1
      %p261 = scmp.ne.s32.totalorder %s256, %s258
      %p262 = scmp.eq.s32.totalorder %s33, 0
      %p263 = por %p261, %p262
      %p264 = scmp.ne.s32.totalorder %s256, %s258
      %p265 = scmp.eq.s32.totalorder %s38, 1
      %p266 = por %p264, %p265
      %p267 = scmp.ne.s32.totalorder %s258, %s259
      %p268 = scmp.eq.s32.totalorder %s38, 0
      %p269 = por %p267, %p268
      %p270 = scmp.ne.s32.totalorder %s258, %s259
      %p271 = scmp.eq.s32.totalorder %s39, 1
      %p272 = por %p270, %p271
      %p274 = scmp.ne.s32.totalorder %s259, %s273
      %p275 = scmp.eq.s32.totalorder %s39, 0
      %p276 = por %p274, %p275
      %s277 = ssub.s32 %s33, %s40
      %p278 = scmp.eq.s32.totalorder %s277, 0
      %s280 = sadd.s32 %s279, 1
      %s281 = scalar_select %p278, %s279, %s280
      %p284 = pneg %p278
      %p285 = scmp.eq.s32.totalorder %s33, 1
      %p286 = por %p284, %p285
      %p287 = scmp.ne.s32.totalorder %s279, %s282
      %p288 = scmp.eq.s32.totalorder %s33, 0
      %p289 = por %p287, %p288
      %p290 = scmp.ne.s32.totalorder %s279, %s282
      %p291 = scmp.eq.s32.totalorder %s38, 1
      %p292 = por %p290, %p291
      %p293 = scmp.ne.s32.totalorder %s282, %s283
      %p294 = scmp.eq.s32.totalorder %s38, 0
      %p295 = por %p293, %p294
      %p296 = scmp.ne.s32.totalorder %s282, %s283
      %p297 = scmp.eq.s32.totalorder %s39, 1
      %p298 = por %p296, %p297
      %p300 = scmp.ne.s32.totalorder %s283, %s299
      %p301 = scmp.eq.s32.totalorder %s39, 0
      %p302 = por %p300, %p301
      %s303 = ssub.s32 %s33, %s40
      %p304 = scmp.eq.s32.totalorder %s303, 0
      %s306 = sadd.s32 %s305, 1
      %s307 = scalar_select %p304, %s305, %s306
      %p310 = pneg %p304
      %p311 = scmp.eq.s32.totalorder %s33, 1
      %p312 = por %p310, %p311
      %p313 = scmp.ne.s32.totalorder %s305, %s308
      %p314 = scmp.eq.s32.totalorder %s33, 0
      %p315 = por %p313, %p314
      %p316 = scmp.ne.s32.totalorder %s305, %s308
      %p317 = scmp.eq.s32.totalorder %s38, 1
      %p318 = por %p316, %p317
      %p319 = scmp.ne.s32.totalorder %s308, %s309
      %p320 = scmp.eq.s32.totalorder %s38, 0
      %p321 = por %p319, %p320
      %p322 = scmp.ne.s32.totalorder %s308, %s309
      %p323 = scmp.eq.s32.totalorder %s39, 1
      %p324 = por %p322, %p323
      %p326 = scmp.ne.s32.totalorder %s309, %s325
      %p327 = scmp.eq.s32.totalorder %s39, 0
      %p328 = por %p326, %p327
      %s329 = ssub.s32 %s33, %s40
      %p330 = scmp.eq.s32.totalorder %s329, 0
      %s332 = sadd.s32 %s331, 1
      %s333 = scalar_select %p330, %s331, %s332
      %p336 = pneg %p330
      %p337 = scmp.eq.s32.totalorder %s33, 1
      %p338 = por %p336, %p337
      %p339 = scmp.ne.s32.totalorder %s331, %s334
      %p340 = scmp.eq.s32.totalorder %s33, 0
      %p341 = por %p339, %p340
      %p342 = scmp.ne.s32.totalorder %s331, %s334
      %p343 = scmp.eq.s32.totalorder %s38, 1
      %p344 = por %p342, %p343
      %p345 = scmp.ne.s32.totalorder %s334, %s335
      %p346 = scmp.eq.s32.totalorder %s38, 0
      %p347 = por %p345, %p346
      %p348 = scmp.ne.s32.totalorder %s334, %s335
      %p349 = scmp.eq.s32.totalorder %s39, 1
      %p350 = por %p348, %p349
      %p352 = scmp.ne.s32.totalorder %s335, %s351
      %p353 = scmp.eq.s32.totalorder %s39, 0
      %p354 = por %p352, %p353
      %s355 = ssub.s32 %s33, %s40
      %p356 = scmp.eq.s32.totalorder %s355, 0
      %s358 = sadd.s32 %s357, 1
      %s359 = scalar_select %p356, %s357, %s358
      %p362 = pneg %p356
      %p363 = scmp.eq.s32.totalorder %s33, 1
      %p364 = por %p362, %p363
      %p365 = scmp.ne.s32.totalorder %s357, %s360
      %p366 = scmp.eq.s32.totalorder %s33, 0
      %p367 = por %p365, %p366
      %p368 = scmp.ne.s32.totalorder %s357, %s360
      %p369 = scmp.eq.s32.totalorder %s38, 1
      %p370 = por %p368, %p369
      %p371 = scmp.ne.s32.totalorder %s360, %s361
      %p372 = scmp.eq.s32.totalorder %s38, 0
      %p373 = por %p371, %p372
      %p374 = scmp.ne.s32.totalorder %s360, %s361
      %p375 = scmp.eq.s32.totalorder %s39, 1
      %p376 = por %p374, %p375
      %p378 = scmp.ne.s32.totalorder %s361, %s377
      %p379 = scmp.eq.s32.totalorder %s39, 0
      %p380 = por %p378, %p379
      %p381 = scmp.le.s32.totalorder 1, %s33
      %p382 = scmp.lt.s32.totalorder %s33, 3
      %p383 = pnand %p381, %p382
      %p384 = pneg %p383
      // Predicated region
      $region9: #{model_head.1} parent=5 // pred_check
        _
      $region10: #{model_head.1} parent=5 // pred_check_branch
        %386 = sbr.rel (%p383) target = $region12
      $region11: #{model_head.1} parent=5 // pred_region
        %s387 = ssub.s32 %s33, 1
        // Predicated region
        $region13: #{model_head.1} parent=11 // pred_check
          %p388 = pneg %p80
        $region14: #{model_head.1} parent=11 // pred_check_branch
          %390 = sbr.rel (%p388) target = $region16
        $region15: #{model_head.1} parent=11 // pred_region
          %s392 = ssub.s32 128, 128
          %393 = vsyncadd [#allocation3], %s392
          %s395 = sshll.u32 [#allocation2], 4
          %s396 = int_to_ptr.vmem [resolvable:$true] %s395
          %398 = dma.hbm_to_vmem [thread:$0]  %s1, 128, %s396, [#allocation3]
        $region16: #{model_head.1} parent=11 // pred_fallthru
          _
        // Predicated region
        $region17: #{model_head.1} parent=11 // pred_check
          %p399 = pneg %p101
        $region18: #{model_head.1} parent=11 // pred_check_branch
          %401 = sbr.rel (%p399) target = $region20
        $region19: #{model_head.1} parent=11 // pred_region
          %s403 = ssub.s32 128, 128
          %404 = vsyncadd [#allocation6], %s403
          %s406 = sshll.u32 [#allocation5], 4
          %s407 = int_to_ptr.vmem [resolvable:$true] %s406
          %409 = dma.hbm_to_vmem [thread:$0]  %s2, 128, %s407, [#allocation6]
        $region20: #{model_head.1} parent=11 // pred_fallthru
          _
        // Predicated region
        $region21: #{model_head.1} parent=11 // pred_check
          %p410 = pneg %p122
        $region22: #{model_head.1} parent=11 // pred_check_branch
          %412 = sbr.rel (%p410) target = $region24
        $region23: #{model_head.1} parent=11 // pred_region
          %s414 = ssub.s32 8192, 8192
          %415 = vsyncadd [#allocation6], %s414
          %s416 = sshll.u32 [#allocation7], 4
          %s417 = int_to_ptr.vmem [resolvable:$true] %s416
          %422 = dma.hbm_to_vmem [thread:$0]  %s3, 8192, %s417, [#allocation6], 64, 64, 4
        $region24: #{model_head.1} parent=11 // pred_fallthru
          _
        // Predicated region
        $region25: #{model_head.1} parent=11 // pred_check
          %p423 = pneg %p143
        $region26: #{model_head.1} parent=11 // pred_check_branch
          %425 = sbr.rel (%p423) target = $region28
        $region27: #{model_head.1} parent=11 // pred_region
          %s427 = ssub.s32 8192, 8192
          %428 = vsyncadd [#allocation9], %s427
          %s429 = sshll.u32 [#allocation8], 4
          %s430 = int_to_ptr.vmem [resolvable:$true] %s429
          %435 = dma.hbm_to_vmem [thread:$0]  %s4, 8192, %s430, [#allocation9], 64, 64, 4
        $region28: #{model_head.1} parent=11 // pred_fallthru
          _
        // Predicated region
        $region29: #{model_head.1} parent=11 // pred_check
          %p436 = pneg %p164
        $region30: #{model_head.1} parent=11 // pred_check_branch
          %438 = sbr.rel (%p436) target = $region32
        $region31: #{model_head.1} parent=11 // pred_region
          %s440 = ssub.s32 65536, 65536
          %441 = vsyncadd [#allocation9], %s440
          %s442 = sshll.u32 [#allocation10], 4
          %s443 = int_to_ptr.vmem [resolvable:$true] %s442
          %448 = dma.hbm_to_vmem [thread:$0]  %s5, 65536, %s443, [#allocation9], 512, 512, 32
        $region32: #{model_head.1} parent=11 // pred_fallthru
          _
        // Predicated region
        $region33: #{model_head.1} parent=11 // pred_check
          %p449 = pneg %p185
        $region34: #{model_head.1} parent=11 // pred_check_branch
          %451 = sbr.rel (%p449) target = $region36
        $region35: #{model_head.1} parent=11 // pred_region
          %s453 = ssub.s32 16, 16
          %454 = vsyncadd [#allocation12], %s453
          %s456 = sshll.u32 [#allocation11], 4
          %s457 = int_to_ptr.vmem [resolvable:$true] %s456
          %459 = dma.hbm_to_vmem [thread:$0]  %s6, 16, %s457, [#allocation12]
        $region36: #{model_head.1} parent=11 // pred_fallthru
          _
        // Predicated region
        $region37: #{model_head.1} parent=11 // pred_check
          %p460 = pneg %p206
        $region38: #{model_head.1} parent=11 // pred_check_branch
          %462 = sbr.rel (%p460) target = $region40
        $region39: #{model_head.1} parent=11 // pred_region
          %s464 = ssub.s32 16, 16
          %465 = vsyncadd [#allocation12], %s464
          %s467 = sshll.u32 [#allocation13], 4
          %s468 = int_to_ptr.vmem [resolvable:$true] %s467
          %470 = dma.hbm_to_vmem [thread:$0]  %s7, 16, %s468, [#allocation12]
        $region40: #{model_head.1} parent=11 // pred_fallthru
          _
        // Predicated region
        $region41: #{model_head.1} parent=11 // pred_check
          %p471 = pneg %p227
        $region42: #{model_head.1} parent=11 // pred_check_branch
          %473 = sbr.rel (%p471) target = $region44
        $region43: #{model_head.1} parent=11 // pred_region
          %s475 = ssub.s32 16, 16
          %476 = vsyncadd [#allocation15], %s475
          %s478 = sshll.u32 [#allocation14], 4
          %s479 = int_to_ptr.vmem [resolvable:$true] %s478
          %481 = dma.hbm_to_vmem [thread:$0]  %s8, 16, %s479, [#allocation15]
        $region44: #{model_head.1} parent=11 // pred_fallthru
          _
        // Predicated region
        $region45: #{model_head.1} parent=11 // pred_check
          %p482 = pneg %p248
        $region46: #{model_head.1} parent=11 // pred_check_branch
          %484 = sbr.rel (%p482) target = $region48
        $region47: #{model_head.1} parent=11 // pred_region
          %s486 = ssub.s32 16, 16
          %487 = vsyncadd [#allocation15], %s486
          %s489 = sshll.u32 [#allocation16], 4
          %s490 = int_to_ptr.vmem [resolvable:$true] %s489
          %492 = dma.hbm_to_vmem [thread:$0]  %s9, 16, %s490, [#allocation15]
        $region48: #{model_head.1} parent=11 // pred_fallthru
          _
        // Predicated region
        $region49: #{model_head.1} parent=11 // pred_check
          %p493 = pneg %p269
        $region50: #{model_head.1} parent=11 // pred_check_branch
          %495 = sbr.rel (%p493) target = $region52
        $region51: #{model_head.1} parent=11 // pred_region
          %s497 = ssub.s32 128, 128
          %498 = vsyncadd [#allocation18], %s497
          %s500 = sshll.u32 [#allocation17], 4
          %s501 = int_to_ptr.vmem [resolvable:$true] %s500
          %503 = dma.hbm_to_vmem [thread:$0]  %s10, 128, %s501, [#allocation18]
        $region52: #{model_head.1} parent=11 // pred_fallthru
          _
      $region12: #{model_head.1} parent=5 // pred_fallthru
        _
      %p504 = scmp.lt.s32.totalorder %s33, 2
      // Predicated region
      $region53: #{model_head.1} parent=5 // pred_check
        %p505 = pneg %p504
      $region54: #{model_head.1} parent=5 // pred_check_branch
        %507 = sbr.rel (%p505) target = $region56
      $region55: #{model_head.1} parent=5 // pred_region
        // Predicated region
        $region57: #{model_head.1} parent=55 // pred_check
          %p508 = pneg %p53
        $region58: #{model_head.1} parent=55 // pred_check_branch
          %510 = sbr.rel (%p508) target = $region60
        $region59: #{model_head.1} parent=55 // pred_region
          %s511 = smul.u32 8, %s33
          %p512 = scmp.lt.s32.totalorder %s511, 15
          %s513 = scalar_select %p512, %s511, 15
          %s514 = smul.addr %s513, 32
          %s515 = smul.addr %s514, 4
          %s516 = scalar_lea.vmem %s0, %s515
          %s517 = smul.u32 8, %s33
        $region60: #{model_head.1} parent=55 // pred_fallthru
          _
      $region56: #{model_head.1} parent=5 // pred_fallthru
        _
      %p518 = scmp.le.s32.totalorder 1, %s33
      %p519 = scmp.lt.s32.totalorder %s33, 3
      %p520 = pnand %p518, %p519
      %p521 = pneg %p520
      // Predicated region
      $region61: #{model_head.1} parent=5 // pred_check
        _
      $region62: #{model_head.1} parent=5 // pred_check_branch
        %523 = sbr.rel (%p520) target = $region64
      $region63: #{model_head.1} parent=5 // pred_region
        %s524 = ssub.s32 %s33, 1
        // Predicated region
        $region65: #{model_head.1} parent=63 // pred_check
          %p525 = pneg %p80
        $region66: #{model_head.1} parent=63 // pred_check_branch
          %527 = sbr.rel (%p525) target = $region68
        $region67: #{model_head.1} parent=63 // pred_region
          %528 = dma.done [#allocation3], 128
        $region68: #{model_head.1} parent=63 // pred_fallthru
          _
        // Predicated region
        $region69: #{model_head.1} parent=63 // pred_check
          %p529 = pneg %p101
        $region70: #{model_head.1} parent=63 // pred_check_branch
          %531 = sbr.rel (%p529) target = $region72
        $region71: #{model_head.1} parent=63 // pred_region
          %532 = dma.done [#allocation6], 128
        $region72: #{model_head.1} parent=63 // pred_fallthru
          _
        // Predicated region
        $region73: #{model_head.1} parent=63 // pred_check
          %p533 = pneg %p122
        $region74: #{model_head.1} parent=63 // pred_check_branch
          %535 = sbr.rel (%p533) target = $region76
        $region75: #{model_head.1} parent=63 // pred_region
          %536 = dma.done [#allocation6], 8192
        $region76: #{model_head.1} parent=63 // pred_fallthru
          _
        // Predicated region
        $region77: #{model_head.1} parent=63 // pred_check
          %p537 = pneg %p143
        $region78: #{model_head.1} parent=63 // pred_check_branch
          %539 = sbr.rel (%p537) target = $region80
        $region79: #{model_head.1} parent=63 // pred_region
          %540 = dma.done [#allocation9], 8192
        $region80: #{model_head.1} parent=63 // pred_fallthru
          _
        // Predicated region
        $region81: #{model_head.1} parent=63 // pred_check
          %p541 = pneg %p164
        $region82: #{model_head.1} parent=63 // pred_check_branch
          %543 = sbr.rel (%p541) target = $region84
        $region83: #{model_head.1} parent=63 // pred_region
          %544 = dma.done [#allocation9], 65536
        $region84: #{model_head.1} parent=63 // pred_fallthru
          _
        // Predicated region
        $region85: #{model_head.1} parent=63 // pred_check
          %p545 = pneg %p185
        $region86: #{model_head.1} parent=63 // pred_check_branch
          %547 = sbr.rel (%p545) target = $region88
        $region87: #{model_head.1} parent=63 // pred_region
          %548 = dma.done [#allocation12], 16
        $region88: #{model_head.1} parent=63 // pred_fallthru
          _
        // Predicated region
        $region89: #{model_head.1} parent=63 // pred_check
          %p549 = pneg %p206
        $region90: #{model_head.1} parent=63 // pred_check_branch
          %551 = sbr.rel (%p549) target = $region92
        $region91: #{model_head.1} parent=63 // pred_region
          %552 = dma.done [#allocation12], 16
        $region92: #{model_head.1} parent=63 // pred_fallthru
          _
        // Predicated region
        $region93: #{model_head.1} parent=63 // pred_check
          %p553 = pneg %p227
        $region94: #{model_head.1} parent=63 // pred_check_branch
          %555 = sbr.rel (%p553) target = $region96
        $region95: #{model_head.1} parent=63 // pred_region
          %556 = dma.done [#allocation15], 16
        $region96: #{model_head.1} parent=63 // pred_fallthru
          _
        // Predicated region
        $region97: #{model_head.1} parent=63 // pred_check
          %p557 = pneg %p248
        $region98: #{model_head.1} parent=63 // pred_check_branch
          %559 = sbr.rel (%p557) target = $region100
        $region99: #{model_head.1} parent=63 // pred_region
          %560 = dma.done [#allocation15], 16
        $region100: #{model_head.1} parent=63 // pred_fallthru
          _
        // Predicated region
        $region101: #{model_head.1} parent=63 // pred_check
          %p561 = pneg %p269
        $region102: #{model_head.1} parent=63 // pred_check_branch
          %563 = sbr.rel (%p561) target = $region104
        $region103: #{model_head.1} parent=63 // pred_region
          %564 = dma.done [#allocation18], 128
        $region104: #{model_head.1} parent=63 // pred_fallthru
          _
        %s565 = smul.u32 8, %s38
        %p566 = scmp.lt.s32.totalorder %s565, 15
        %s567 = scalar_select %p566, %s565, 15
        %s568 = smul.addr %s567, 32
        %s569 = smul.addr %s568, 4
        %s570 = scalar_lea.vmem %s0, %s569
        %p571 = pneg %p59
        %p572 = pneg %p56
        %p573 = pneg %p80
        %p574 = pneg %p77
        %p575 = pneg %p101
        %p576 = pneg %p98
        %p577 = pneg %p122
        %p578 = pneg %p119
        %p579 = pneg %p143
        %p580 = pneg %p140
        %p581 = pneg %p164
        %p582 = pneg %p161
        %p583 = pneg %p185
        %p584 = pneg %p182
        %p585 = pneg %p206
        %p586 = pneg %p203
        %p587 = pneg %p227
        %p588 = pneg %p224
        %p589 = pneg %p248
        %p590 = pneg %p245
        %p591 = pneg %p269
        %p592 = pneg %p266
        %p593 = pneg %p295
        %p594 = pneg %p292
        %s595 = sand.u32 %s282, 1
        %s596 = scalar_lea.sflag [#allocation4], %s595
        %s597 = sand.u32 %s282, 1
        %s598 = smul.addr %s597, 64
        %s599 = scalar_lea.vmem [#allocation19], %s598
        %p600 = pneg %p321
        %p601 = pneg %p318
        %s602 = smul.u32 4, %s38
        %p603 = scmp.lt.s32.totalorder %s602, 7
        %s604 = scalar_select %p603, %s602, 7
        %s605 = smul.addr %s604, 8
        %s606 = scalar_lea.vmem %s12, %s605
        %p607 = pneg %p347
        %p608 = pneg %p344
        %s609 = smul.u32 8, %s38
        %p610 = scmp.lt.s32.totalorder %s609, 15
        %s611 = scalar_select %p610, %s609, 15
        %s612 = smul.addr %s611, 8
        %s613 = scalar_lea.vmem %s13, %s612
        %p614 = pneg %p373
        %p615 = pneg %p370
        %s616 = sand.u32 %s360, 1
        %s617 = scalar_lea.sflag [#allocation21], %s616
        %s618 = sand.u32 %s360, 1
        %s619 = smul.addr %s618, 64
        %s620 = scalar_lea.vmem [#allocation20], %s619
        %s621 = smul.u32 8, %s38
        %p622 = scmp.lt.s32.totalorder %s621, 15
        %s623 = scalar_select %p622, %s621, 15
        %s624 = smul.addr %s623, 32
        %s625 = smul.addr %s624, 4
        %s626 = scalar_lea.vmem %s0, %s625
        %s627 = smul.u32 8, %s38
        %s628 = smul.u32 4, %s38
        %p629 = scmp.lt.s32.totalorder %s628, 7
        %s630 = scalar_select %p629, %s628, 7
        %s631 = smul.addr %s630, 8
        %s632 = scalar_lea.vmem %s12, %s631
        %s633 = smul.u32 4, %s38
        %s634 = smul.u32 8, %s38
        %p635 = scmp.lt.s32.totalorder %s634, 15
        %s636 = scalar_select %p635, %s634, 15
        %s637 = smul.addr %s636, 8
        %s638 = scalar_lea.vmem %s13, %s637
        %s639 = smul.u32 8, %s38
        %v641 = vld [vmem:[%s626] sm:$0xff]
        %v642 = vld [vmem:[%s626 + $0x8] sm:$0xff]
        %v643 = vld [vmem:[%s626 + $0x10] sm:$0xff]
        %v644 = vld [vmem:[%s626 + $0x18] sm:$0xff]
        %v645 = vld [vmem:[%s626 + $0x20] sm:$0xff]
        %v646 = vld [vmem:[%s626 + $0x28] sm:$0xff]
        %v647 = vld [vmem:[%s626 + $0x30] sm:$0xff]
        %v648 = vld [vmem:[%s626 + $0x38] sm:$0xff]
        %v649 = vld [vmem:[%s626 + $0x40] sm:$0xff]
        %v650 = vld [vmem:[%s626 + $0x48] sm:$0xff]
        %v651 = vld [vmem:[%s626 + $0x50] sm:$0xff]
        %v652 = vld [vmem:[%s626 + $0x58] sm:$0xff]
        %v653 = vld [vmem:[%s626 + $0x60] sm:$0xff]
        %v654 = vld [vmem:[%s626 + $0x68] sm:$0xff]
        %v655 = vld [vmem:[%s626 + $0x70] sm:$0xff]
        %v656 = vld [vmem:[%s626 + $0x78] sm:$0xff]
        %v657 = vld [vmem:[%s626 + $0x80] sm:$0xff]
        %v658 = vld [vmem:[%s626 + $0x88] sm:$0xff]
        %v659 = vld [vmem:[%s626 + $0x90] sm:$0xff]
        %v660 = vld [vmem:[%s626 + $0x98] sm:$0xff]
        %v661 = vld [vmem:[%s626 + $0xa0] sm:$0xff]
        %v662 = vld [vmem:[%s626 + $0xa8] sm:$0xff]
        %v663 = vld [vmem:[%s626 + $0xb0] sm:$0xff]
        %v664 = vld [vmem:[%s626 + $0xb8] sm:$0xff]
        %v665 = vld [vmem:[%s626 + $0xc0] sm:$0xff]
        %v666 = vld [vmem:[%s626 + $0xc8] sm:$0xff]
        %v667 = vld [vmem:[%s626 + $0xd0] sm:$0xff]
        %v668 = vld [vmem:[%s626 + $0xd8] sm:$0xff]
        %v669 = vld [vmem:[%s626 + $0xe0] sm:$0xff]
        %v670 = vld [vmem:[%s626 + $0xe8] sm:$0xff]
        %v671 = vld [vmem:[%s626 + $0xf0] sm:$0xff]
        %v672 = vld [vmem:[%s626 + $0xf8] sm:$0xff]
        %v673 = vld [vmem:[%s626 + $0x100] sm:$0xff]
        %v674 = vld [vmem:[%s626 + $0x108] sm:$0xff]
        %v675 = vld [vmem:[%s626 + $0x110] sm:$0xff]
        %v676 = vld [vmem:[%s626 + $0x118] sm:$0xff]
        %v677 = vld [vmem:[%s626 + $0x120] sm:$0xff]
        %v678 = vld [vmem:[%s626 + $0x128] sm:$0xff]
        %v679 = vld [vmem:[%s626 + $0x130] sm:$0xff]
        %v680 = vld [vmem:[%s626 + $0x138] sm:$0xff]
        %v681 = vld [vmem:[%s626 + $0x140] sm:$0xff]
        %v682 = vld [vmem:[%s626 + $0x148] sm:$0xff]
        %v683 = vld [vmem:[%s626 + $0x150] sm:$0xff]
        %v684 = vld [vmem:[%s626 + $0x158] sm:$0xff]
        %v685 = vld [vmem:[%s626 + $0x160] sm:$0xff]
        %v686 = vld [vmem:[%s626 + $0x168] sm:$0xff]
        %v687 = vld [vmem:[%s626 + $0x170] sm:$0xff]
        %v688 = vld [vmem:[%s626 + $0x178] sm:$0xff]
        %v689 = vld [vmem:[%s626 + $0x180] sm:$0xff]
        %v690 = vld [vmem:[%s626 + $0x188] sm:$0xff]
        %v691 = vld [vmem:[%s626 + $0x190] sm:$0xff]
        %v692 = vld [vmem:[%s626 + $0x198] sm:$0xff]
        %v693 = vld [vmem:[%s626 + $0x1a0] sm:$0xff]
        %v694 = vld [vmem:[%s626 + $0x1a8] sm:$0xff]
        %v695 = vld [vmem:[%s626 + $0x1b0] sm:$0xff]
        %v696 = vld [vmem:[%s626 + $0x1b8] sm:$0xff]
        %v697 = vld [vmem:[%s626 + $0x1c0] sm:$0xff]
        %v698 = vld [vmem:[%s626 + $0x1c8] sm:$0xff]
        %v699 = vld [vmem:[%s626 + $0x1d0] sm:$0xff]
        %v700 = vld [vmem:[%s626 + $0x1d8] sm:$0xff]
        %v701 = vld [vmem:[%s626 + $0x1e0] sm:$0xff]
        %v702 = vld [vmem:[%s626 + $0x1e8] sm:$0xff]
        %v703 = vld [vmem:[%s626 + $0x1f0] sm:$0xff]
        %v704 = vld [vmem:[%s626 + $0x1f8] sm:$0xff]
        %v705 = vld [vmem:[%s626 + $0x200] sm:$0xff]
        %v706 = vld [vmem:[%s626 + $0x208] sm:$0xff]
        %v707 = vld [vmem:[%s626 + $0x210] sm:$0xff]
        %v708 = vld [vmem:[%s626 + $0x218] sm:$0xff]
        %v709 = vld [vmem:[%s626 + $0x220] sm:$0xff]
        %v710 = vld [vmem:[%s626 + $0x228] sm:$0xff]
        %v711 = vld [vmem:[%s626 + $0x230] sm:$0xff]
        %v712 = vld [vmem:[%s626 + $0x238] sm:$0xff]
        %v713 = vld [vmem:[%s626 + $0x240] sm:$0xff]
        %v714 = vld [vmem:[%s626 + $0x248] sm:$0xff]
        %v715 = vld [vmem:[%s626 + $0x250] sm:$0xff]
        %v716 = vld [vmem:[%s626 + $0x258] sm:$0xff]
        %v717 = vld [vmem:[%s626 + $0x260] sm:$0xff]
        %v718 = vld [vmem:[%s626 + $0x268] sm:$0xff]
        %v719 = vld [vmem:[%s626 + $0x270] sm:$0xff]
        %v720 = vld [vmem:[%s626 + $0x278] sm:$0xff]
        %v721 = vld [vmem:[%s626 + $0x280] sm:$0xff]
        %v722 = vld [vmem:[%s626 + $0x288] sm:$0xff]
        %v723 = vld [vmem:[%s626 + $0x290] sm:$0xff]
        %v724 = vld [vmem:[%s626 + $0x298] sm:$0xff]
        %v725 = vld [vmem:[%s626 + $0x2a0] sm:$0xff]
        %v726 = vld [vmem:[%s626 + $0x2a8] sm:$0xff]
        %v727 = vld [vmem:[%s626 + $0x2b0] sm:$0xff]
        %v728 = vld [vmem:[%s626 + $0x2b8] sm:$0xff]
        %v729 = vld [vmem:[%s626 + $0x2c0] sm:$0xff]
        %v730 = vld [vmem:[%s626 + $0x2c8] sm:$0xff]
        %v731 = vld [vmem:[%s626 + $0x2d0] sm:$0xff]
        %v732 = vld [vmem:[%s626 + $0x2d8] sm:$0xff]
        %v733 = vld [vmem:[%s626 + $0x2e0] sm:$0xff]
        %v734 = vld [vmem:[%s626 + $0x2e8] sm:$0xff]
        %v735 = vld [vmem:[%s626 + $0x2f0] sm:$0xff]
        %v736 = vld [vmem:[%s626 + $0x2f8] sm:$0xff]
        %v737 = vld [vmem:[%s626 + $0x300] sm:$0xff]
        %v738 = vld [vmem:[%s626 + $0x308] sm:$0xff]
        %v739 = vld [vmem:[%s626 + $0x310] sm:$0xff]
        %v740 = vld [vmem:[%s626 + $0x318] sm:$0xff]
        %v741 = vld [vmem:[%s626 + $0x320] sm:$0xff]
        %v742 = vld [vmem:[%s626 + $0x328] sm:$0xff]
        %v743 = vld [vmem:[%s626 + $0x330] sm:$0xff]
        %v744 = vld [vmem:[%s626 + $0x338] sm:$0xff]
        %v745 = vld [vmem:[%s626 + $0x340] sm:$0xff]
        %v746 = vld [vmem:[%s626 + $0x348] sm:$0xff]
        %v747 = vld [vmem:[%s626 + $0x350] sm:$0xff]
        %v748 = vld [vmem:[%s626 + $0x358] sm:$0xff]
        %v749 = vld [vmem:[%s626 + $0x360] sm:$0xff]
        %v750 = vld [vmem:[%s626 + $0x368] sm:$0xff]
        %v751 = vld [vmem:[%s626 + $0x370] sm:$0xff]
        %v752 = vld [vmem:[%s626 + $0x378] sm:$0xff]
        %v753 = vld [vmem:[%s626 + $0x380] sm:$0xff]
        %v754 = vld [vmem:[%s626 + $0x388] sm:$0xff]
        %v755 = vld [vmem:[%s626 + $0x390] sm:$0xff]
        %v756 = vld [vmem:[%s626 + $0x398] sm:$0xff]
        %v757 = vld [vmem:[%s626 + $0x3a0] sm:$0xff]
        %v758 = vld [vmem:[%s626 + $0x3a8] sm:$0xff]
        %v759 = vld [vmem:[%s626 + $0x3b0] sm:$0xff]
        %v760 = vld [vmem:[%s626 + $0x3b8] sm:$0xff]
        %v761 = vld [vmem:[%s626 + $0x3c0] sm:$0xff]
        %v762 = vld [vmem:[%s626 + $0x3c8] sm:$0xff]
        %v763 = vld [vmem:[%s626 + $0x3d0] sm:$0xff]
        %v764 = vld [vmem:[%s626 + $0x3d8] sm:$0xff]
        %v765 = vld [vmem:[%s626 + $0x3e0] sm:$0xff]
        %v766 = vld [vmem:[%s626 + $0x3e8] sm:$0xff]
        %v767 = vld [vmem:[%s626 + $0x3f0] sm:$0xff]
        %v768 = vld [vmem:[%s626 + $0x3f8] sm:$0xff]
        %v769 = vunpack.c.l.bf16 %v641
        %v770 = vunpack.c.h.bf16 %v641
        %v771 = vunpack.c.l.bf16 %v642
        %v772 = vunpack.c.h.bf16 %v642
        %v773 = vunpack.c.l.bf16 %v643
        %v774 = vunpack.c.h.bf16 %v643
        %v775 = vunpack.c.l.bf16 %v644
        %v776 = vunpack.c.h.bf16 %v644
        %v777 = vunpack.c.l.bf16 %v645
        %v778 = vunpack.c.h.bf16 %v645
        %v779 = vunpack.c.l.bf16 %v646
        %v780 = vunpack.c.h.bf16 %v646
        %v781 = vunpack.c.l.bf16 %v647
        %v782 = vunpack.c.h.bf16 %v647
        %v783 = vunpack.c.l.bf16 %v648
        %v784 = vunpack.c.h.bf16 %v648
        %v785 = vunpack.c.l.bf16 %v649
        %v786 = vunpack.c.h.bf16 %v649
        %v787 = vunpack.c.l.bf16 %v650
        %v788 = vunpack.c.h.bf16 %v650
        %v789 = vunpack.c.l.bf16 %v651
        %v790 = vunpack.c.h.bf16 %v651
        %v791 = vunpack.c.l.bf16 %v652
        %v792 = vunpack.c.h.bf16 %v652
        %v793 = vunpack.c.l.bf16 %v653
        %v794 = vunpack.c.h.bf16 %v653
        %v795 = vunpack.c.l.bf16 %v654
        %v796 = vunpack.c.h.bf16 %v654
        %v797 = vunpack.c.l.bf16 %v655
        %v798 = vunpack.c.h.bf16 %v655
        %v799 = vunpack.c.l.bf16 %v656
        %v800 = vunpack.c.h.bf16 %v656
        %v801 = vunpack.c.l.bf16 %v657
        %v802 = vunpack.c.h.bf16 %v657
        %v803 = vunpack.c.l.bf16 %v658
        %v804 = vunpack.c.h.bf16 %v658
        %v805 = vunpack.c.l.bf16 %v659
        %v806 = vunpack.c.h.bf16 %v659
        %v807 = vunpack.c.l.bf16 %v660
        %v808 = vunpack.c.h.bf16 %v660
        %v809 = vunpack.c.l.bf16 %v661
        %v810 = vunpack.c.h.bf16 %v661
        %v811 = vunpack.c.l.bf16 %v662
        %v812 = vunpack.c.h.bf16 %v662
        %v813 = vunpack.c.l.bf16 %v663
        %v814 = vunpack.c.h.bf16 %v663
        %v815 = vunpack.c.l.bf16 %v664
        %v816 = vunpack.c.h.bf16 %v664
        %v817 = vunpack.c.l.bf16 %v665
        %v818 = vunpack.c.h.bf16 %v665
        %v819 = vunpack.c.l.bf16 %v666
        %v820 = vunpack.c.h.bf16 %v666
        %v821 = vunpack.c.l.bf16 %v667
        %v822 = vunpack.c.h.bf16 %v667
        %v823 = vunpack.c.l.bf16 %v668
        %v824 = vunpack.c.h.bf16 %v668
        %v825 = vunpack.c.l.bf16 %v669
        %v826 = vunpack.c.h.bf16 %v669
        %v827 = vunpack.c.l.bf16 %v670
        %v828 = vunpack.c.h.bf16 %v670
        %v829 = vunpack.c.l.bf16 %v671
        %v830 = vunpack.c.h.bf16 %v671
        %v831 = vunpack.c.l.bf16 %v672
        %v832 = vunpack.c.h.bf16 %v672
        %v833 = vunpack.c.l.bf16 %v673
        %v834 = vunpack.c.h.bf16 %v673
        %v835 = vunpack.c.l.bf16 %v674
        %v836 = vunpack.c.h.bf16 %v674
        %v837 = vunpack.c.l.bf16 %v675
        %v838 = vunpack.c.h.bf16 %v675
        %v839 = vunpack.c.l.bf16 %v676
        %v840 = vunpack.c.h.bf16 %v676
        %v841 = vunpack.c.l.bf16 %v677
        %v842 = vunpack.c.h.bf16 %v677
        %v843 = vunpack.c.l.bf16 %v678
        %v844 = vunpack.c.h.bf16 %v678
        %v845 = vunpack.c.l.bf16 %v679
        %v846 = vunpack.c.h.bf16 %v679
        %v847 = vunpack.c.l.bf16 %v680
        %v848 = vunpack.c.h.bf16 %v680
        %v849 = vunpack.c.l.bf16 %v681
        %v850 = vunpack.c.h.bf16 %v681
        %v851 = vunpack.c.l.bf16 %v682
        %v852 = vunpack.c.h.bf16 %v682
        %v853 = vunpack.c.l.bf16 %v683
        %v854 = vunpack.c.h.bf16 %v683
        %v855 = vunpack.c.l.bf16 %v684
        %v856 = vunpack.c.h.bf16 %v684
        %v857 = vunpack.c.l.bf16 %v685
        %v858 = vunpack.c.h.bf16 %v685
        %v859 = vunpack.c.l.bf16 %v686
        %v860 = vunpack.c.h.bf16 %v686
        %v861 = vunpack.c.l.bf16 %v687
        %v862 = vunpack.c.h.bf16 %v687
        %v863 = vunpack.c.l.bf16 %v688
        %v864 = vunpack.c.h.bf16 %v688
        %v865 = vunpack.c.l.bf16 %v689
        %v866 = vunpack.c.h.bf16 %v689
        %v867 = vunpack.c.l.bf16 %v690
        %v868 = vunpack.c.h.bf16 %v690
        %v869 = vunpack.c.l.bf16 %v691
        %v870 = vunpack.c.h.bf16 %v691
        %v871 = vunpack.c.l.bf16 %v692
        %v872 = vunpack.c.h.bf16 %v692
        %v873 = vunpack.c.l.bf16 %v693
        %v874 = vunpack.c.h.bf16 %v693
        %v875 = vunpack.c.l.bf16 %v694
        %v876 = vunpack.c.h.bf16 %v694
        %v877 = vunpack.c.l.bf16 %v695
        %v878 = vunpack.c.h.bf16 %v695
        %v879 = vunpack.c.l.bf16 %v696
        %v880 = vunpack.c.h.bf16 %v696
        %v881 = vunpack.c.l.bf16 %v697
        %v882 = vunpack.c.h.bf16 %v697
        %v883 = vunpack.c.l.bf16 %v698
        %v884 = vunpack.c.h.bf16 %v698
        %v885 = vunpack.c.l.bf16 %v699
        %v886 = vunpack.c.h.bf16 %v699
        %v887 = vunpack.c.l.bf16 %v700
        %v888 = vunpack.c.h.bf16 %v700
        %v889 = vunpack.c.l.bf16 %v701
        %v890 = vunpack.c.h.bf16 %v701
        %v891 = vunpack.c.l.bf16 %v702
        %v892 = vunpack.c.h.bf16 %v702
        %v893 = vunpack.c.l.bf16 %v703
        %v894 = vunpack.c.h.bf16 %v703
        %v895 = vunpack.c.l.bf16 %v704
        %v896 = vunpack.c.h.bf16 %v704
        %v897 = vunpack.c.l.bf16 %v705
        %v898 = vunpack.c.h.bf16 %v705
        %v899 = vunpack.c.l.bf16 %v706
        %v900 = vunpack.c.h.bf16 %v706
        %v901 = vunpack.c.l.bf16 %v707
        %v902 = vunpack.c.h.bf16 %v707
        %v903 = vunpack.c.l.bf16 %v708
        %v904 = vunpack.c.h.bf16 %v708
        %v905 = vunpack.c.l.bf16 %v709
        %v906 = vunpack.c.h.bf16 %v709
        %v907 = vunpack.c.l.bf16 %v710
        %v908 = vunpack.c.h.bf16 %v710
        %v909 = vunpack.c.l.bf16 %v711
        %v910 = vunpack.c.h.bf16 %v711
        %v911 = vunpack.c.l.bf16 %v712
        %v912 = vunpack.c.h.bf16 %v712
        %v913 = vunpack.c.l.bf16 %v713
        %v914 = vunpack.c.h.bf16 %v713
        %v915 = vunpack.c.l.bf16 %v714
        %v916 = vunpack.c.h.bf16 %v714
        %v917 = vunpack.c.l.bf16 %v715
        %v918 = vunpack.c.h.bf16 %v715
        %v919 = vunpack.c.l.bf16 %v716
        %v920 = vunpack.c.h.bf16 %v716
        %v921 = vunpack.c.l.bf16 %v717
        %v922 = vunpack.c.h.bf16 %v717
        %v923 = vunpack.c.l.bf16 %v718
        %v924 = vunpack.c.h.bf16 %v718
        %v925 = vunpack.c.l.bf16 %v719
        %v926 = vunpack.c.h.bf16 %v719
        %v927 = vunpack.c.l.bf16 %v720
        %v928 = vunpack.c.h.bf16 %v720
        %v929 = vunpack.c.l.bf16 %v721
        %v930 = vunpack.c.h.bf16 %v721
        %v931 = vunpack.c.l.bf16 %v722
        %v932 = vunpack.c.h.bf16 %v722
        %v933 = vunpack.c.l.bf16 %v723
        %v934 = vunpack.c.h.bf16 %v723
        %v935 = vunpack.c.l.bf16 %v724
        %v936 = vunpack.c.h.bf16 %v724
        %v937 = vunpack.c.l.bf16 %v725
        %v938 = vunpack.c.h.bf16 %v725
        %v939 = vunpack.c.l.bf16 %v726
        %v940 = vunpack.c.h.bf16 %v726
        %v941 = vunpack.c.l.bf16 %v727
        %v942 = vunpack.c.h.bf16 %v727
        %v943 = vunpack.c.l.bf16 %v728
        %v944 = vunpack.c.h.bf16 %v728
        %v945 = vunpack.c.l.bf16 %v729
        %v946 = vunpack.c.h.bf16 %v729
        %v947 = vunpack.c.l.bf16 %v730
        %v948 = vunpack.c.h.bf16 %v730
        %v949 = vunpack.c.l.bf16 %v731
        %v950 = vunpack.c.h.bf16 %v731
        %v951 = vunpack.c.l.bf16 %v732
        %v952 = vunpack.c.h.bf16 %v732
        %v953 = vunpack.c.l.bf16 %v733
        %v954 = vunpack.c.h.bf16 %v733
        %v955 = vunpack.c.l.bf16 %v734
        %v956 = vunpack.c.h.bf16 %v734
        %v957 = vunpack.c.l.bf16 %v735
        %v958 = vunpack.c.h.bf16 %v735
        %v959 = vunpack.c.l.bf16 %v736
        %v960 = vunpack.c.h.bf16 %v736
        %v961 = vunpack.c.l.bf16 %v737
        %v962 = vunpack.c.h.bf16 %v737
        %v963 = vunpack.c.l.bf16 %v738
        %v964 = vunpack.c.h.bf16 %v738
        %v965 = vunpack.c.l.bf16 %v739
        %v966 = vunpack.c.h.bf16 %v739
        %v967 = vunpack.c.l.bf16 %v740
        %v968 = vunpack.c.h.bf16 %v740
        %v969 = vunpack.c.l.bf16 %v741
        %v970 = vunpack.c.h.bf16 %v741
        %v971 = vunpack.c.l.bf16 %v742
        %v972 = vunpack.c.h.bf16 %v742
        %v973 = vunpack.c.l.bf16 %v743
        %v974 = vunpack.c.h.bf16 %v743
        %v975 = vunpack.c.l.bf16 %v744
        %v976 = vunpack.c.h.bf16 %v744
        %v977 = vunpack.c.l.bf16 %v745
        %v978 = vunpack.c.h.bf16 %v745
        %v979 = vunpack.c.l.bf16 %v746
        %v980 = vunpack.c.h.bf16 %v746
        %v981 = vunpack.c.l.bf16 %v747
        %v982 = vunpack.c.h.bf16 %v747
        %v983 = vunpack.c.l.bf16 %v748
        %v984 = vunpack.c.h.bf16 %v748
        %v985 = vunpack.c.l.bf16 %v749
        %v986 = vunpack.c.h.bf16 %v749
        %v987 = vunpack.c.l.bf16 %v750
        %v988 = vunpack.c.h.bf16 %v750
        %v989 = vunpack.c.l.bf16 %v751
        %v990 = vunpack.c.h.bf16 %v751
        %v991 = vunpack.c.l.bf16 %v752
        %v992 = vunpack.c.h.bf16 %v752
        %v993 = vunpack.c.l.bf16 %v753
        %v994 = vunpack.c.h.bf16 %v753
        %v995 = vunpack.c.l.bf16 %v754
        %v996 = vunpack.c.h.bf16 %v754
        %v997 = vunpack.c.l.bf16 %v755
        %v998 = vunpack.c.h.bf16 %v755
        %v999 = vunpack.c.l.bf16 %v756
        %v1000 = vunpack.c.h.bf16 %v756
        %v1001 = vunpack.c.l.bf16 %v757
        %v1002 = vunpack.c.h.bf16 %v757
        %v1003 = vunpack.c.l.bf16 %v758
        %v1004 = vunpack.c.h.bf16 %v758
        %v1005 = vunpack.c.l.bf16 %v759
        %v1006 = vunpack.c.h.bf16 %v759
        %v1007 = vunpack.c.l.bf16 %v760
        %v1008 = vunpack.c.h.bf16 %v760
        %v1009 = vunpack.c.l.bf16 %v761
        %v1010 = vunpack.c.h.bf16 %v761
        %v1011 = vunpack.c.l.bf16 %v762
        %v1012 = vunpack.c.h.bf16 %v762
        %v1013 = vunpack.c.l.bf16 %v763
        %v1014 = vunpack.c.h.bf16 %v763
        %v1015 = vunpack.c.l.bf16 %v764
        %v1016 = vunpack.c.h.bf16 %v764
        %v1017 = vunpack.c.l.bf16 %v765
        %v1018 = vunpack.c.h.bf16 %v765
        %v1019 = vunpack.c.l.bf16 %v766
        %v1020 = vunpack.c.h.bf16 %v766
        %v1021 = vunpack.c.l.bf16 %v767
        %v1022 = vunpack.c.h.bf16 %v767
        %v1023 = vunpack.c.l.bf16 %v768
        %v1024 = vunpack.c.h.bf16 %v768
        %v1025 = vrot.slane %v769, 4
        %v1026 = vadd.f32 %v769, %v1025
        %v1027 = vrot.slane %v1026, 2
        %v1028 = vadd.f32 %v1026, %v1027
        %v1029 = vrot.slane %v1028, 1
        %v1030 = vadd.f32 %v1028, %v1029
        %v1031 = vrot.slane %v770, 4
        %v1032 = vadd.f32 %v770, %v1031
        %v1033 = vrot.slane %v1032, 2
        %v1034 = vadd.f32 %v1032, %v1033
        %v1035 = vrot.slane %v1034, 1
        %v1036 = vadd.f32 %v1034, %v1035
        %v1037 = vrot.slane %v771, 4
        %v1038 = vadd.f32 %v771, %v1037
        %v1039 = vrot.slane %v1038, 2
        %v1040 = vadd.f32 %v1038, %v1039
        %v1041 = vrot.slane %v1040, 1
        %v1042 = vadd.f32 %v1040, %v1041
        %v1043 = vrot.slane %v772, 4
        %v1044 = vadd.f32 %v772, %v1043
        %v1045 = vrot.slane %v1044, 2
        %v1046 = vadd.f32 %v1044, %v1045
        %v1047 = vrot.slane %v1046, 1
        %v1048 = vadd.f32 %v1046, %v1047
        %v1049 = vrot.slane %v773, 4
        %v1050 = vadd.f32 %v773, %v1049
        %v1051 = vrot.slane %v1050, 2
        %v1052 = vadd.f32 %v1050, %v1051
        %v1053 = vrot.slane %v1052, 1
        %v1054 = vadd.f32 %v1052, %v1053
        %v1055 = vrot.slane %v774, 4
        %v1056 = vadd.f32 %v774, %v1055
        %v1057 = vrot.slane %v1056, 2
        %v1058 = vadd.f32 %v1056, %v1057
        %v1059 = vrot.slane %v1058, 1
        %v1060 = vadd.f32 %v1058, %v1059
        %v1061 = vrot.slane %v775, 4
        %v1062 = vadd.f32 %v775, %v1061
        %v1063 = vrot.slane %v1062, 2
        %v1064 = vadd.f32 %v1062, %v1063
        %v1065 = vrot.slane %v1064, 1
        %v1066 = vadd.f32 %v1064, %v1065
        %v1067 = vrot.slane %v776, 4
        %v1068 = vadd.f32 %v776, %v1067
        %v1069 = vrot.slane %v1068, 2
        %v1070 = vadd.f32 %v1068, %v1069
        %v1071 = vrot.slane %v1070, 1
        %v1072 = vadd.f32 %v1070, %v1071
        %v1073 = vrot.slane %v777, 4
        %v1074 = vadd.f32 %v777, %v1073
        %v1075 = vrot.slane %v1074, 2
        %v1076 = vadd.f32 %v1074, %v1075
        %v1077 = vrot.slane %v1076, 1
        %v1078 = vadd.f32 %v1076, %v1077
        %v1079 = vrot.slane %v778, 4
        %v1080 = vadd.f32 %v778, %v1079
        %v1081 = vrot.slane %v1080, 2
        %v1082 = vadd.f32 %v1080, %v1081
        %v1083 = vrot.slane %v1082, 1
        %v1084 = vadd.f32 %v1082, %v1083
        %v1085 = vrot.slane %v779, 4
        %v1086 = vadd.f32 %v779, %v1085
        %v1087 = vrot.slane %v1086, 2
        %v1088 = vadd.f32 %v1086, %v1087
        %v1089 = vrot.slane %v1088, 1
        %v1090 = vadd.f32 %v1088, %v1089
        %v1091 = vrot.slane %v780, 4
        %v1092 = vadd.f32 %v780, %v1091
        %v1093 = vrot.slane %v1092, 2
        %v1094 = vadd.f32 %v1092, %v1093
        %v1095 = vrot.slane %v1094, 1
        %v1096 = vadd.f32 %v1094, %v1095
        %v1097 = vrot.slane %v781, 4
        %v1098 = vadd.f32 %v781, %v1097
        %v1099 = vrot.slane %v1098, 2
        %v1100 = vadd.f32 %v1098, %v1099
        %v1101 = vrot.slane %v1100, 1
        %v1102 = vadd.f32 %v1100, %v1101
        %v1103 = vrot.slane %v782, 4
        %v1104 = vadd.f32 %v782, %v1103
        %v1105 = vrot.slane %v1104, 2
        %v1106 = vadd.f32 %v1104, %v1105
        %v1107 = vrot.slane %v1106, 1
        %v1108 = vadd.f32 %v1106, %v1107
        %v1109 = vrot.slane %v783, 4
        %v1110 = vadd.f32 %v783, %v1109
        %v1111 = vrot.slane %v1110, 2
        %v1112 = vadd.f32 %v1110, %v1111
        %v1113 = vrot.slane %v1112, 1
        %v1114 = vadd.f32 %v1112, %v1113
        %v1115 = vrot.slane %v784, 4
        %v1116 = vadd.f32 %v784, %v1115
        %v1117 = vrot.slane %v1116, 2
        %v1118 = vadd.f32 %v1116, %v1117
        %v1119 = vrot.slane %v1118, 1
        %v1120 = vadd.f32 %v1118, %v1119
        %v1121 = vrot.slane %v785, 4
        %v1122 = vadd.f32 %v785, %v1121
        %v1123 = vrot.slane %v1122, 2
        %v1124 = vadd.f32 %v1122, %v1123
        %v1125 = vrot.slane %v1124, 1
        %v1126 = vadd.f32 %v1124, %v1125
        %v1127 = vrot.slane %v786, 4
        %v1128 = vadd.f32 %v786, %v1127
        %v1129 = vrot.slane %v1128, 2
        %v1130 = vadd.f32 %v1128, %v1129
        %v1131 = vrot.slane %v1130, 1
        %v1132 = vadd.f32 %v1130, %v1131
        %v1133 = vrot.slane %v787, 4
        %v1134 = vadd.f32 %v787, %v1133
        %v1135 = vrot.slane %v1134, 2
        %v1136 = vadd.f32 %v1134, %v1135
        %v1137 = vrot.slane %v1136, 1
        %v1138 = vadd.f32 %v1136, %v1137
        %v1139 = vrot.slane %v788, 4
        %v1140 = vadd.f32 %v788, %v1139
        %v1141 = vrot.slane %v1140, 2
        %v1142 = vadd.f32 %v1140, %v1141
        %v1143 = vrot.slane %v1142, 1
        %v1144 = vadd.f32 %v1142, %v1143
        %v1145 = vrot.slane %v789, 4
        %v1146 = vadd.f32 %v789, %v1145
        %v1147 = vrot.slane %v1146, 2
        %v1148 = vadd.f32 %v1146, %v1147
        %v1149 = vrot.slane %v1148, 1
        %v1150 = vadd.f32 %v1148, %v1149
        %v1151 = vrot.slane %v790, 4
        %v1152 = vadd.f32 %v790, %v1151
        %v1153 = vrot.slane %v1152, 2
        %v1154 = vadd.f32 %v1152, %v1153
        %v1155 = vrot.slane %v1154, 1
        %v1156 = vadd.f32 %v1154, %v1155
        %v1157 = vrot.slane %v791, 4
        %v1158 = vadd.f32 %v791, %v1157
        %v1159 = vrot.slane %v1158, 2
        %v1160 = vadd.f32 %v1158, %v1159
        %v1161 = vrot.slane %v1160, 1
        %v1162 = vadd.f32 %v1160, %v1161
        %v1163 = vrot.slane %v792, 4
        %v1164 = vadd.f32 %v792, %v1163
        %v1165 = vrot.slane %v1164, 2
        %v1166 = vadd.f32 %v1164, %v1165
        %v1167 = vrot.slane %v1166, 1
        %v1168 = vadd.f32 %v1166, %v1167
        %v1169 = vrot.slane %v793, 4
        %v1170 = vadd.f32 %v793, %v1169
        %v1171 = vrot.slane %v1170, 2
        %v1172 = vadd.f32 %v1170, %v1171
        %v1173 = vrot.slane %v1172, 1
        %v1174 = vadd.f32 %v1172, %v1173
        %v1175 = vrot.slane %v794, 4
        %v1176 = vadd.f32 %v794, %v1175
        %v1177 = vrot.slane %v1176, 2
        %v1178 = vadd.f32 %v1176, %v1177
        %v1179 = vrot.slane %v1178, 1
        %v1180 = vadd.f32 %v1178, %v1179
        %v1181 = vrot.slane %v795, 4
        %v1182 = vadd.f32 %v795, %v1181
        %v1183 = vrot.slane %v1182, 2
        %v1184 = vadd.f32 %v1182, %v1183
        %v1185 = vrot.slane %v1184, 1
        %v1186 = vadd.f32 %v1184, %v1185
        %v1187 = vrot.slane %v796, 4
        %v1188 = vadd.f32 %v796, %v1187
        %v1189 = vrot.slane %v1188, 2
        %v1190 = vadd.f32 %v1188, %v1189
        %v1191 = vrot.slane %v1190, 1
        %v1192 = vadd.f32 %v1190, %v1191
        %v1193 = vrot.slane %v797, 4
        %v1194 = vadd.f32 %v797, %v1193
        %v1195 = vrot.slane %v1194, 2
        %v1196 = vadd.f32 %v1194, %v1195
        %v1197 = vrot.slane %v1196, 1
        %v1198 = vadd.f32 %v1196, %v1197
        %v1199 = vrot.slane %v798, 4
        %v1200 = vadd.f32 %v798, %v1199
        %v1201 = vrot.slane %v1200, 2
        %v1202 = vadd.f32 %v1200, %v1201
        %v1203 = vrot.slane %v1202, 1
        %v1204 = vadd.f32 %v1202, %v1203
        %v1205 = vrot.slane %v799, 4
        %v1206 = vadd.f32 %v799, %v1205
        %v1207 = vrot.slane %v1206, 2
        %v1208 = vadd.f32 %v1206, %v1207
        %v1209 = vrot.slane %v1208, 1
        %v1210 = vadd.f32 %v1208, %v1209
        %v1211 = vrot.slane %v800, 4
        %v1212 = vadd.f32 %v800, %v1211
        %v1213 = vrot.slane %v1212, 2
        %v1214 = vadd.f32 %v1212, %v1213
        %v1215 = vrot.slane %v1214, 1
        %v1216 = vadd.f32 %v1214, %v1215
        %v1217 = vrot.slane %v801, 4
        %v1218 = vadd.f32 %v801, %v1217
        %v1219 = vrot.slane %v1218, 2
        %v1220 = vadd.f32 %v1218, %v1219
        %v1221 = vrot.slane %v1220, 1
        %v1222 = vadd.f32 %v1220, %v1221
        %v1223 = vrot.slane %v802, 4
        %v1224 = vadd.f32 %v802, %v1223
        %v1225 = vrot.slane %v1224, 2
        %v1226 = vadd.f32 %v1224, %v1225
        %v1227 = vrot.slane %v1226, 1
        %v1228 = vadd.f32 %v1226, %v1227
        %v1229 = vrot.slane %v803, 4
        %v1230 = vadd.f32 %v803, %v1229
        %v1231 = vrot.slane %v1230, 2
        %v1232 = vadd.f32 %v1230, %v1231
        %v1233 = vrot.slane %v1232, 1
        %v1234 = vadd.f32 %v1232, %v1233
        %v1235 = vrot.slane %v804, 4
        %v1236 = vadd.f32 %v804, %v1235
        %v1237 = vrot.slane %v1236, 2
        %v1238 = vadd.f32 %v1236, %v1237
        %v1239 = vrot.slane %v1238, 1
        %v1240 = vadd.f32 %v1238, %v1239
        %v1241 = vrot.slane %v805, 4
        %v1242 = vadd.f32 %v805, %v1241
        %v1243 = vrot.slane %v1242, 2
        %v1244 = vadd.f32 %v1242, %v1243
        %v1245 = vrot.slane %v1244, 1
        %v1246 = vadd.f32 %v1244, %v1245
        %v1247 = vrot.slane %v806, 4
        %v1248 = vadd.f32 %v806, %v1247
        %v1249 = vrot.slane %v1248, 2
        %v1250 = vadd.f32 %v1248, %v1249
        %v1251 = vrot.slane %v1250, 1
        %v1252 = vadd.f32 %v1250, %v1251
        %v1253 = vrot.slane %v807, 4
        %v1254 = vadd.f32 %v807, %v1253
        %v1255 = vrot.slane %v1254, 2
        %v1256 = vadd.f32 %v1254, %v1255
        %v1257 = vrot.slane %v1256, 1
        %v1258 = vadd.f32 %v1256, %v1257
        %v1259 = vrot.slane %v808, 4
        %v1260 = vadd.f32 %v808, %v1259
        %v1261 = vrot.slane %v1260, 2
        %v1262 = vadd.f32 %v1260, %v1261
        %v1263 = vrot.slane %v1262, 1
        %v1264 = vadd.f32 %v1262, %v1263
        %v1265 = vrot.slane %v809, 4
        %v1266 = vadd.f32 %v809, %v1265
        %v1267 = vrot.slane %v1266, 2
        %v1268 = vadd.f32 %v1266, %v1267
        %v1269 = vrot.slane %v1268, 1
        %v1270 = vadd.f32 %v1268, %v1269
        %v1271 = vrot.slane %v810, 4
        %v1272 = vadd.f32 %v810, %v1271
        %v1273 = vrot.slane %v1272, 2
        %v1274 = vadd.f32 %v1272, %v1273
        %v1275 = vrot.slane %v1274, 1
        %v1276 = vadd.f32 %v1274, %v1275
        %v1277 = vrot.slane %v811, 4
        %v1278 = vadd.f32 %v811, %v1277
        %v1279 = vrot.slane %v1278, 2
        %v1280 = vadd.f32 %v1278, %v1279
        %v1281 = vrot.slane %v1280, 1
        %v1282 = vadd.f32 %v1280, %v1281
        %v1283 = vrot.slane %v812, 4
        %v1284 = vadd.f32 %v812, %v1283
        %v1285 = vrot.slane %v1284, 2
        %v1286 = vadd.f32 %v1284, %v1285
        %v1287 = vrot.slane %v1286, 1
        %v1288 = vadd.f32 %v1286, %v1287
        %v1289 = vrot.slane %v813, 4
        %v1290 = vadd.f32 %v813, %v1289
        %v1291 = vrot.slane %v1290, 2
        %v1292 = vadd.f32 %v1290, %v1291
        %v1293 = vrot.slane %v1292, 1
        %v1294 = vadd.f32 %v1292, %v1293
        %v1295 = vrot.slane %v814, 4
        %v1296 = vadd.f32 %v814, %v1295
        %v1297 = vrot.slane %v1296, 2
        %v1298 = vadd.f32 %v1296, %v1297
        %v1299 = vrot.slane %v1298, 1
        %v1300 = vadd.f32 %v1298, %v1299
        %v1301 = vrot.slane %v815, 4
        %v1302 = vadd.f32 %v815, %v1301
        %v1303 = vrot.slane %v1302, 2
        %v1304 = vadd.f32 %v1302, %v1303
        %v1305 = vrot.slane %v1304, 1
        %v1306 = vadd.f32 %v1304, %v1305
        %v1307 = vrot.slane %v816, 4
        %v1308 = vadd.f32 %v816, %v1307
        %v1309 = vrot.slane %v1308, 2
        %v1310 = vadd.f32 %v1308, %v1309
        %v1311 = vrot.slane %v1310, 1
        %v1312 = vadd.f32 %v1310, %v1311
        %v1313 = vrot.slane %v817, 4
        %v1314 = vadd.f32 %v817, %v1313
        %v1315 = vrot.slane %v1314, 2
        %v1316 = vadd.f32 %v1314, %v1315
        %v1317 = vrot.slane %v1316, 1
        %v1318 = vadd.f32 %v1316, %v1317
        %v1319 = vrot.slane %v818, 4
        %v1320 = vadd.f32 %v818, %v1319
        %v1321 = vrot.slane %v1320, 2
        %v1322 = vadd.f32 %v1320, %v1321
        %v1323 = vrot.slane %v1322, 1
        %v1324 = vadd.f32 %v1322, %v1323
        %v1325 = vrot.slane %v819, 4
        %v1326 = vadd.f32 %v819, %v1325
        %v1327 = vrot.slane %v1326, 2
        %v1328 = vadd.f32 %v1326, %v1327
        %v1329 = vrot.slane %v1328, 1
        %v1330 = vadd.f32 %v1328, %v1329
        %v1331 = vrot.slane %v820, 4
        %v1332 = vadd.f32 %v820, %v1331
        %v1333 = vrot.slane %v1332, 2
        %v1334 = vadd.f32 %v1332, %v1333
        %v1335 = vrot.slane %v1334, 1
        %v1336 = vadd.f32 %v1334, %v1335
        %v1337 = vrot.slane %v821, 4
        %v1338 = vadd.f32 %v821, %v1337
        %v1339 = vrot.slane %v1338, 2
        %v1340 = vadd.f32 %v1338, %v1339
        %v1341 = vrot.slane %v1340, 1
        %v1342 = vadd.f32 %v1340, %v1341
        %v1343 = vrot.slane %v822, 4
        %v1344 = vadd.f32 %v822, %v1343
        %v1345 = vrot.slane %v1344, 2
        %v1346 = vadd.f32 %v1344, %v1345
        %v1347 = vrot.slane %v1346, 1
        %v1348 = vadd.f32 %v1346, %v1347
        %v1349 = vrot.slane %v823, 4
        %v1350 = vadd.f32 %v823, %v1349
        %v1351 = vrot.slane %v1350, 2
        %v1352 = vadd.f32 %v1350, %v1351
        %v1353 = vrot.slane %v1352, 1
        %v1354 = vadd.f32 %v1352, %v1353
        %v1355 = vrot.slane %v824, 4
        %v1356 = vadd.f32 %v824, %v1355
        %v1357 = vrot.slane %v1356, 2
        %v1358 = vadd.f32 %v1356, %v1357
        %v1359 = vrot.slane %v1358, 1
        %v1360 = vadd.f32 %v1358, %v1359
        %v1361 = vrot.slane %v825, 4
        %v1362 = vadd.f32 %v825, %v1361
        %v1363 = vrot.slane %v1362, 2
        %v1364 = vadd.f32 %v1362, %v1363
        %v1365 = vrot.slane %v1364, 1
        %v1366 = vadd.f32 %v1364, %v1365
        %v1367 = vrot.slane %v826, 4
        %v1368 = vadd.f32 %v826, %v1367
        %v1369 = vrot.slane %v1368, 2
        %v1370 = vadd.f32 %v1368, %v1369
        %v1371 = vrot.slane %v1370, 1
        %v1372 = vadd.f32 %v1370, %v1371
        %v1373 = vrot.slane %v827, 4
        %v1374 = vadd.f32 %v827, %v1373
        %v1375 = vrot.slane %v1374, 2
        %v1376 = vadd.f32 %v1374, %v1375
        %v1377 = vrot.slane %v1376, 1
        %v1378 = vadd.f32 %v1376, %v1377
        %v1379 = vrot.slane %v828, 4
        %v1380 = vadd.f32 %v828, %v1379
        %v1381 = vrot.slane %v1380, 2
        %v1382 = vadd.f32 %v1380, %v1381
        %v1383 = vrot.slane %v1382, 1
        %v1384 = vadd.f32 %v1382, %v1383
        %v1385 = vrot.slane %v829, 4
        %v1386 = vadd.f32 %v829, %v1385
        %v1387 = vrot.slane %v1386, 2
        %v1388 = vadd.f32 %v1386, %v1387
        %v1389 = vrot.slane %v1388, 1
        %v1390 = vadd.f32 %v1388, %v1389
        %v1391 = vrot.slane %v830, 4
        %v1392 = vadd.f32 %v830, %v1391
        %v1393 = vrot.slane %v1392, 2
        %v1394 = vadd.f32 %v1392, %v1393
        %v1395 = vrot.slane %v1394, 1
        %v1396 = vadd.f32 %v1394, %v1395
        %v1397 = vrot.slane %v831, 4
        %v1398 = vadd.f32 %v831, %v1397
        %v1399 = vrot.slane %v1398, 2
        %v1400 = vadd.f32 %v1398, %v1399
        %v1401 = vrot.slane %v1400, 1
        %v1402 = vadd.f32 %v1400, %v1401
        %v1403 = vrot.slane %v832, 4
        %v1404 = vadd.f32 %v832, %v1403
        %v1405 = vrot.slane %v1404, 2
        %v1406 = vadd.f32 %v1404, %v1405
        %v1407 = vrot.slane %v1406, 1
        %v1408 = vadd.f32 %v1406, %v1407
        %v1409 = vrot.slane %v833, 4
        %v1410 = vadd.f32 %v833, %v1409
        %v1411 = vrot.slane %v1410, 2
        %v1412 = vadd.f32 %v1410, %v1411
        %v1413 = vrot.slane %v1412, 1
        %v1414 = vadd.f32 %v1412, %v1413
        %v1415 = vrot.slane %v834, 4
        %v1416 = vadd.f32 %v834, %v1415
        %v1417 = vrot.slane %v1416, 2
        %v1418 = vadd.f32 %v1416, %v1417
        %v1419 = vrot.slane %v1418, 1
        %v1420 = vadd.f32 %v1418, %v1419
        %v1421 = vrot.slane %v835, 4
        %v1422 = vadd.f32 %v835, %v1421
        %v1423 = vrot.slane %v1422, 2
        %v1424 = vadd.f32 %v1422, %v1423
        %v1425 = vrot.slane %v1424, 1
        %v1426 = vadd.f32 %v1424, %v1425
        %v1427 = vrot.slane %v836, 4
        %v1428 = vadd.f32 %v836, %v1427
        %v1429 = vrot.slane %v1428, 2
        %v1430 = vadd.f32 %v1428, %v1429
        %v1431 = vrot.slane %v1430, 1
        %v1432 = vadd.f32 %v1430, %v1431
        %v1433 = vrot.slane %v837, 4
        %v1434 = vadd.f32 %v837, %v1433
        %v1435 = vrot.slane %v1434, 2
        %v1436 = vadd.f32 %v1434, %v1435
        %v1437 = vrot.slane %v1436, 1
        %v1438 = vadd.f32 %v1436, %v1437
        %v1439 = vrot.slane %v838, 4
        %v1440 = vadd.f32 %v838, %v1439
        %v1441 = vrot.slane %v1440, 2
        %v1442 = vadd.f32 %v1440, %v1441
        %v1443 = vrot.slane %v1442, 1
        %v1444 = vadd.f32 %v1442, %v1443
        %v1445 = vrot.slane %v839, 4
        %v1446 = vadd.f32 %v839, %v1445
        %v1447 = vrot.slane %v1446, 2
        %v1448 = vadd.f32 %v1446, %v1447
        %v1449 = vrot.slane %v1448, 1
        %v1450 = vadd.f32 %v1448, %v1449
        %v1451 = vrot.slane %v840, 4
        %v1452 = vadd.f32 %v840, %v1451
        %v1453 = vrot.slane %v1452, 2
        %v1454 = vadd.f32 %v1452, %v1453
        %v1455 = vrot.slane %v1454, 1
        %v1456 = vadd.f32 %v1454, %v1455
        %v1457 = vrot.slane %v841, 4
        %v1458 = vadd.f32 %v841, %v1457
        %v1459 = vrot.slane %v1458, 2
        %v1460 = vadd.f32 %v1458, %v1459
        %v1461 = vrot.slane %v1460, 1
        %v1462 = vadd.f32 %v1460, %v1461
        %v1463 = vrot.slane %v842, 4
        %v1464 = vadd.f32 %v842, %v1463
        %v1465 = vrot.slane %v1464, 2
        %v1466 = vadd.f32 %v1464, %v1465
        %v1467 = vrot.slane %v1466, 1
        %v1468 = vadd.f32 %v1466, %v1467
        %v1469 = vrot.slane %v843, 4
        %v1470 = vadd.f32 %v843, %v1469
        %v1471 = vrot.slane %v1470, 2
        %v1472 = vadd.f32 %v1470, %v1471
        %v1473 = vrot.slane %v1472, 1
        %v1474 = vadd.f32 %v1472, %v1473
        %v1475 = vrot.slane %v844, 4
        %v1476 = vadd.f32 %v844, %v1475
        %v1477 = vrot.slane %v1476, 2
        %v1478 = vadd.f32 %v1476, %v1477
        %v1479 = vrot.slane %v1478, 1
        %v1480 = vadd.f32 %v1478, %v1479
        %v1481 = vrot.slane %v845, 4
        %v1482 = vadd.f32 %v845, %v1481
        %v1483 = vrot.slane %v1482, 2
        %v1484 = vadd.f32 %v1482, %v1483
        %v1485 = vrot.slane %v1484, 1
        %v1486 = vadd.f32 %v1484, %v1485
        %v1487 = vrot.slane %v846, 4
        %v1488 = vadd.f32 %v846, %v1487
        %v1489 = vrot.slane %v1488, 2
        %v1490 = vadd.f32 %v1488, %v1489
        %v1491 = vrot.slane %v1490, 1
        %v1492 = vadd.f32 %v1490, %v1491
        %v1493 = vrot.slane %v847, 4
        %v1494 = vadd.f32 %v847, %v1493
        %v1495 = vrot.slane %v1494, 2
        %v1496 = vadd.f32 %v1494, %v1495
        %v1497 = vrot.slane %v1496, 1
        %v1498 = vadd.f32 %v1496, %v1497
        %v1499 = vrot.slane %v848, 4
        %v1500 = vadd.f32 %v848, %v1499
        %v1501 = vrot.slane %v1500, 2
        %v1502 = vadd.f32 %v1500, %v1501
        %v1503 = vrot.slane %v1502, 1
        %v1504 = vadd.f32 %v1502, %v1503
        %v1505 = vrot.slane %v849, 4
        %v1506 = vadd.f32 %v849, %v1505
        %v1507 = vrot.slane %v1506, 2
        %v1508 = vadd.f32 %v1506, %v1507
        %v1509 = vrot.slane %v1508, 1
        %v1510 = vadd.f32 %v1508, %v1509
        %v1511 = vrot.slane %v850, 4
        %v1512 = vadd.f32 %v850, %v1511
        %v1513 = vrot.slane %v1512, 2
        %v1514 = vadd.f32 %v1512, %v1513
        %v1515 = vrot.slane %v1514, 1
        %v1516 = vadd.f32 %v1514, %v1515
        %v1517 = vrot.slane %v851, 4
        %v1518 = vadd.f32 %v851, %v1517
        %v1519 = vrot.slane %v1518, 2
        %v1520 = vadd.f32 %v1518, %v1519
        %v1521 = vrot.slane %v1520, 1
        %v1522 = vadd.f32 %v1520, %v1521
        %v1523 = vrot.slane %v852, 4
        %v1524 = vadd.f32 %v852, %v1523
        %v1525 = vrot.slane %v1524, 2
        %v1526 = vadd.f32 %v1524, %v1525
        %v1527 = vrot.slane %v1526, 1
        %v1528 = vadd.f32 %v1526, %v1527
        %v1529 = vrot.slane %v853, 4
        %v1530 = vadd.f32 %v853, %v1529
        %v1531 = vrot.slane %v1530, 2
        %v1532 = vadd.f32 %v1530, %v1531
        %v1533 = vrot.slane %v1532, 1
        %v1534 = vadd.f32 %v1532, %v1533
        %v1535 = vrot.slane %v854, 4
        %v1536 = vadd.f32 %v854, %v1535
        %v1537 = vrot.slane %v1536, 2
        %v1538 = vadd.f32 %v1536, %v1537
        %v1539 = vrot.slane %v1538, 1
        %v1540 = vadd.f32 %v1538, %v1539
        %v1541 = vrot.slane %v855, 4
        %v1542 = vadd.f32 %v855, %v1541
        %v1543 = vrot.slane %v1542, 2
        %v1544 = vadd.f32 %v1542, %v1543
        %v1545 = vrot.slane %v1544, 1
        %v1546 = vadd.f32 %v1544, %v1545
        %v1547 = vrot.slane %v856, 4
        %v1548 = vadd.f32 %v856, %v1547
        %v1549 = vrot.slane %v1548, 2
        %v1550 = vadd.f32 %v1548, %v1549
        %v1551 = vrot.slane %v1550, 1
        %v1552 = vadd.f32 %v1550, %v1551
        %v1553 = vrot.slane %v857, 4
        %v1554 = vadd.f32 %v857, %v1553
        %v1555 = vrot.slane %v1554, 2
        %v1556 = vadd.f32 %v1554, %v1555
        %v1557 = vrot.slane %v1556, 1
        %v1558 = vadd.f32 %v1556, %v1557
        %v1559 = vrot.slane %v858, 4
        %v1560 = vadd.f32 %v858, %v1559
        %v1561 = vrot.slane %v1560, 2
        %v1562 = vadd.f32 %v1560, %v1561
        %v1563 = vrot.slane %v1562, 1
        %v1564 = vadd.f32 %v1562, %v1563
        %v1565 = vrot.slane %v859, 4
        %v1566 = vadd.f32 %v859, %v1565
        %v1567 = vrot.slane %v1566, 2
        %v1568 = vadd.f32 %v1566, %v1567
        %v1569 = vrot.slane %v1568, 1
        %v1570 = vadd.f32 %v1568, %v1569
        %v1571 = vrot.slane %v860, 4
        %v1572 = vadd.f32 %v860, %v1571
        %v1573 = vrot.slane %v1572, 2
        %v1574 = vadd.f32 %v1572, %v1573
        %v1575 = vrot.slane %v1574, 1
        %v1576 = vadd.f32 %v1574, %v1575
        %v1577 = vrot.slane %v861, 4
        %v1578 = vadd.f32 %v861, %v1577
        %v1579 = vrot.slane %v1578, 2
        %v1580 = vadd.f32 %v1578, %v1579
        %v1581 = vrot.slane %v1580, 1
        %v1582 = vadd.f32 %v1580, %v1581
        %v1583 = vrot.slane %v862, 4
        %v1584 = vadd.f32 %v862, %v1583
        %v1585 = vrot.slane %v1584, 2
        %v1586 = vadd.f32 %v1584, %v1585
        %v1587 = vrot.slane %v1586, 1
        %v1588 = vadd.f32 %v1586, %v1587
        %v1589 = vrot.slane %v863, 4
        %v1590 = vadd.f32 %v863, %v1589
        %v1591 = vrot.slane %v1590, 2
        %v1592 = vadd.f32 %v1590, %v1591
        %v1593 = vrot.slane %v1592, 1
        %v1594 = vadd.f32 %v1592, %v1593
        %v1595 = vrot.slane %v864, 4
        %v1596 = vadd.f32 %v864, %v1595
        %v1597 = vrot.slane %v1596, 2
        %v1598 = vadd.f32 %v1596, %v1597
        %v1599 = vrot.slane %v1598, 1
        %v1600 = vadd.f32 %v1598, %v1599
        %v1601 = vrot.slane %v865, 4
        %v1602 = vadd.f32 %v865, %v1601
        %v1603 = vrot.slane %v1602, 2
        %v1604 = vadd.f32 %v1602, %v1603
        %v1605 = vrot.slane %v1604, 1
        %v1606 = vadd.f32 %v1604, %v1605
        %v1607 = vrot.slane %v866, 4
        %v1608 = vadd.f32 %v866, %v1607
        %v1609 = vrot.slane %v1608, 2
        %v1610 = vadd.f32 %v1608, %v1609
        %v1611 = vrot.slane %v1610, 1
        %v1612 = vadd.f32 %v1610, %v1611
        %v1613 = vrot.slane %v867, 4
        %v1614 = vadd.f32 %v867, %v1613
        %v1615 = vrot.slane %v1614, 2
        %v1616 = vadd.f32 %v1614, %v1615
        %v1617 = vrot.slane %v1616, 1
        %v1618 = vadd.f32 %v1616, %v1617
        %v1619 = vrot.slane %v868, 4
        %v1620 = vadd.f32 %v868, %v1619
        %v1621 = vrot.slane %v1620, 2
        %v1622 = vadd.f32 %v1620, %v1621
        %v1623 = vrot.slane %v1622, 1
        %v1624 = vadd.f32 %v1622, %v1623
        %v1625 = vrot.slane %v869, 4
        %v1626 = vadd.f32 %v869, %v1625
        %v1627 = vrot.slane %v1626, 2
        %v1628 = vadd.f32 %v1626, %v1627
        %v1629 = vrot.slane %v1628, 1
        %v1630 = vadd.f32 %v1628, %v1629
        %v1631 = vrot.slane %v870, 4
        %v1632 = vadd.f32 %v870, %v1631
        %v1633 = vrot.slane %v1632, 2
        %v1634 = vadd.f32 %v1632, %v1633
        %v1635 = vrot.slane %v1634, 1
        %v1636 = vadd.f32 %v1634, %v1635
        %v1637 = vrot.slane %v871, 4
        %v1638 = vadd.f32 %v871, %v1637
        %v1639 = vrot.slane %v1638, 2
        %v1640 = vadd.f32 %v1638, %v1639
        %v1641 = vrot.slane %v1640, 1
        %v1642 = vadd.f32 %v1640, %v1641
        %v1643 = vrot.slane %v872, 4
        %v1644 = vadd.f32 %v872, %v1643
        %v1645 = vrot.slane %v1644, 2
        %v1646 = vadd.f32 %v1644, %v1645
        %v1647 = vrot.slane %v1646, 1
        %v1648 = vadd.f32 %v1646, %v1647
        %v1649 = vrot.slane %v873, 4
        %v1650 = vadd.f32 %v873, %v1649
        %v1651 = vrot.slane %v1650, 2
        %v1652 = vadd.f32 %v1650, %v1651
        %v1653 = vrot.slane %v1652, 1
        %v1654 = vadd.f32 %v1652, %v1653
        %v1655 = vrot.slane %v874, 4
        %v1656 = vadd.f32 %v874, %v1655
        %v1657 = vrot.slane %v1656, 2
        %v1658 = vadd.f32 %v1656, %v1657
        %v1659 = vrot.slane %v1658, 1
        %v1660 = vadd.f32 %v1658, %v1659
        %v1661 = vrot.slane %v875, 4
        %v1662 = vadd.f32 %v875, %v1661
        %v1663 = vrot.slane %v1662, 2
        %v1664 = vadd.f32 %v1662, %v1663
        %v1665 = vrot.slane %v1664, 1
        %v1666 = vadd.f32 %v1664, %v1665
        %v1667 = vrot.slane %v876, 4
        %v1668 = vadd.f32 %v876, %v1667
        %v1669 = vrot.slane %v1668, 2
        %v1670 = vadd.f32 %v1668, %v1669
        %v1671 = vrot.slane %v1670, 1
        %v1672 = vadd.f32 %v1670, %v1671
        %v1673 = vrot.slane %v877, 4
        %v1674 = vadd.f32 %v877, %v1673
        %v1675 = vrot.slane %v1674, 2
        %v1676 = vadd.f32 %v1674, %v1675
        %v1677 = vrot.slane %v1676, 1
        %v1678 = vadd.f32 %v1676, %v1677
        %v1679 = vrot.slane %v878, 4
        %v1680 = vadd.f32 %v878, %v1679
        %v1681 = vrot.slane %v1680, 2
        %v1682 = vadd.f32 %v1680, %v1681
        %v1683 = vrot.slane %v1682, 1
        %v1684 = vadd.f32 %v1682, %v1683
        %v1685 = vrot.slane %v879, 4
        %v1686 = vadd.f32 %v879, %v1685
        %v1687 = vrot.slane %v1686, 2
        %v1688 = vadd.f32 %v1686, %v1687
        %v1689 = vrot.slane %v1688, 1
        %v1690 = vadd.f32 %v1688, %v1689
        %v1691 = vrot.slane %v880, 4
        %v1692 = vadd.f32 %v880, %v1691
        %v1693 = vrot.slane %v1692, 2
        %v1694 = vadd.f32 %v1692, %v1693
        %v1695 = vrot.slane %v1694, 1
        %v1696 = vadd.f32 %v1694, %v1695
        %v1697 = vrot.slane %v881, 4
        %v1698 = vadd.f32 %v881, %v1697
        %v1699 = vrot.slane %v1698, 2
        %v1700 = vadd.f32 %v1698, %v1699
        %v1701 = vrot.slane %v1700, 1
        %v1702 = vadd.f32 %v1700, %v1701
        %v1703 = vrot.slane %v882, 4
        %v1704 = vadd.f32 %v882, %v1703
        %v1705 = vrot.slane %v1704, 2
        %v1706 = vadd.f32 %v1704, %v1705
        %v1707 = vrot.slane %v1706, 1
        %v1708 = vadd.f32 %v1706, %v1707
        %v1709 = vrot.slane %v883, 4
        %v1710 = vadd.f32 %v883, %v1709
        %v1711 = vrot.slane %v1710, 2
        %v1712 = vadd.f32 %v1710, %v1711
        %v1713 = vrot.slane %v1712, 1
        %v1714 = vadd.f32 %v1712, %v1713
        %v1715 = vrot.slane %v884, 4
        %v1716 = vadd.f32 %v884, %v1715
        %v1717 = vrot.slane %v1716, 2
        %v1718 = vadd.f32 %v1716, %v1717
        %v1719 = vrot.slane %v1718, 1
        %v1720 = vadd.f32 %v1718, %v1719
        %v1721 = vrot.slane %v885, 4
        %v1722 = vadd.f32 %v885, %v1721
        %v1723 = vrot.slane %v1722, 2
        %v1724 = vadd.f32 %v1722, %v1723
        %v1725 = vrot.slane %v1724, 1
        %v1726 = vadd.f32 %v1724, %v1725
        %v1727 = vrot.slane %v886, 4
        %v1728 = vadd.f32 %v886, %v1727
        %v1729 = vrot.slane %v1728, 2
        %v1730 = vadd.f32 %v1728, %v1729
        %v1731 = vrot.slane %v1730, 1
        %v1732 = vadd.f32 %v1730, %v1731
        %v1733 = vrot.slane %v887, 4
        %v1734 = vadd.f32 %v887, %v1733
        %v1735 = vrot.slane %v1734, 2
        %v1736 = vadd.f32 %v1734, %v1735
        %v1737 = vrot.slane %v1736, 1
        %v1738 = vadd.f32 %v1736, %v1737
        %v1739 = vrot.slane %v888, 4
        %v1740 = vadd.f32 %v888, %v1739
        %v1741 = vrot.slane %v1740, 2
        %v1742 = vadd.f32 %v1740, %v1741
        %v1743 = vrot.slane %v1742, 1
        %v1744 = vadd.f32 %v1742, %v1743
        %v1745 = vrot.slane %v889, 4
        %v1746 = vadd.f32 %v889, %v1745
        %v1747 = vrot.slane %v1746, 2
        %v1748 = vadd.f32 %v1746, %v1747
        %v1749 = vrot.slane %v1748, 1
        %v1750 = vadd.f32 %v1748, %v1749
        %v1751 = vrot.slane %v890, 4
        %v1752 = vadd.f32 %v890, %v1751
        %v1753 = vrot.slane %v1752, 2
        %v1754 = vadd.f32 %v1752, %v1753
        %v1755 = vrot.slane %v1754, 1
        %v1756 = vadd.f32 %v1754, %v1755
        %v1757 = vrot.slane %v891, 4
        %v1758 = vadd.f32 %v891, %v1757
        %v1759 = vrot.slane %v1758, 2
        %v1760 = vadd.f32 %v1758, %v1759
        %v1761 = vrot.slane %v1760, 1
        %v1762 = vadd.f32 %v1760, %v1761
        %v1763 = vrot.slane %v892, 4
        %v1764 = vadd.f32 %v892, %v1763
        %v1765 = vrot.slane %v1764, 2
        %v1766 = vadd.f32 %v1764, %v1765
        %v1767 = vrot.slane %v1766, 1
        %v1768 = vadd.f32 %v1766, %v1767
        %v1769 = vrot.slane %v893, 4
        %v1770 = vadd.f32 %v893, %v1769
        %v1771 = vrot.slane %v1770, 2
        %v1772 = vadd.f32 %v1770, %v1771
        %v1773 = vrot.slane %v1772, 1
        %v1774 = vadd.f32 %v1772, %v1773
        %v1775 = vrot.slane %v894, 4
        %v1776 = vadd.f32 %v894, %v1775
        %v1777 = vrot.slane %v1776, 2
        %v1778 = vadd.f32 %v1776, %v1777
        %v1779 = vrot.slane %v1778, 1
        %v1780 = vadd.f32 %v1778, %v1779
        %v1781 = vrot.slane %v895, 4
        %v1782 = vadd.f32 %v895, %v1781
        %v1783 = vrot.slane %v1782, 2
        %v1784 = vadd.f32 %v1782, %v1783
        %v1785 = vrot.slane %v1784, 1
        %v1786 = vadd.f32 %v1784, %v1785
        %v1787 = vrot.slane %v896, 4
        %v1788 = vadd.f32 %v896, %v1787
        %v1789 = vrot.slane %v1788, 2
        %v1790 = vadd.f32 %v1788, %v1789
        %v1791 = vrot.slane %v1790, 1
        %v1792 = vadd.f32 %v1790, %v1791
        %v1793 = vrot.slane %v897, 4
        %v1794 = vadd.f32 %v897, %v1793
        %v1795 = vrot.slane %v1794, 2
        %v1796 = vadd.f32 %v1794, %v1795
        %v1797 = vrot.slane %v1796, 1
        %v1798 = vadd.f32 %v1796, %v1797
        %v1799 = vrot.slane %v898, 4
        %v1800 = vadd.f32 %v898, %v1799
        %v1801 = vrot.slane %v1800, 2
        %v1802 = vadd.f32 %v1800, %v1801
        %v1803 = vrot.slane %v1802, 1
        %v1804 = vadd.f32 %v1802, %v1803
        %v1805 = vrot.slane %v899, 4
        %v1806 = vadd.f32 %v899, %v1805
        %v1807 = vrot.slane %v1806, 2
        %v1808 = vadd.f32 %v1806, %v1807
        %v1809 = vrot.slane %v1808, 1
        %v1810 = vadd.f32 %v1808, %v1809
        %v1811 = vrot.slane %v900, 4
        %v1812 = vadd.f32 %v900, %v1811
        %v1813 = vrot.slane %v1812, 2
        %v1814 = vadd.f32 %v1812, %v1813
        %v1815 = vrot.slane %v1814, 1
        %v1816 = vadd.f32 %v1814, %v1815
        %v1817 = vrot.slane %v901, 4
        %v1818 = vadd.f32 %v901, %v1817
        %v1819 = vrot.slane %v1818, 2
        %v1820 = vadd.f32 %v1818, %v1819
        %v1821 = vrot.slane %v1820, 1
        %v1822 = vadd.f32 %v1820, %v1821
        %v1823 = vrot.slane %v902, 4
        %v1824 = vadd.f32 %v902, %v1823
        %v1825 = vrot.slane %v1824, 2
        %v1826 = vadd.f32 %v1824, %v1825
        %v1827 = vrot.slane %v1826, 1
        %v1828 = vadd.f32 %v1826, %v1827
        %v1829 = vrot.slane %v903, 4
        %v1830 = vadd.f32 %v903, %v1829
        %v1831 = vrot.slane %v1830, 2
        %v1832 = vadd.f32 %v1830, %v1831
        %v1833 = vrot.slane %v1832, 1
        %v1834 = vadd.f32 %v1832, %v1833
        %v1835 = vrot.slane %v904, 4
        %v1836 = vadd.f32 %v904, %v1835
        %v1837 = vrot.slane %v1836, 2
        %v1838 = vadd.f32 %v1836, %v1837
        %v1839 = vrot.slane %v1838, 1
        %v1840 = vadd.f32 %v1838, %v1839
        %v1841 = vrot.slane %v905, 4
        %v1842 = vadd.f32 %v905, %v1841
        %v1843 = vrot.slane %v1842, 2
        %v1844 = vadd.f32 %v1842, %v1843
        %v1845 = vrot.slane %v1844, 1
        %v1846 = vadd.f32 %v1844, %v1845
        %v1847 = vrot.slane %v906, 4
        %v1848 = vadd.f32 %v906, %v1847
        %v1849 = vrot.slane %v1848, 2
        %v1850 = vadd.f32 %v1848, %v1849
        %v1851 = vrot.slane %v1850, 1
        %v1852 = vadd.f32 %v1850, %v1851
        %v1853 = vrot.slane %v907, 4
        %v1854 = vadd.f32 %v907, %v1853
        %v1855 = vrot.slane %v1854, 2
        %v1856 = vadd.f32 %v1854, %v1855
        %v1857 = vrot.slane %v1856, 1
        %v1858 = vadd.f32 %v1856, %v1857
        %v1859 = vrot.slane %v908, 4
        %v1860 = vadd.f32 %v908, %v1859
        %v1861 = vrot.slane %v1860, 2
        %v1862 = vadd.f32 %v1860, %v1861
        %v1863 = vrot.slane %v1862, 1
        %v1864 = vadd.f32 %v1862, %v1863
        %v1865 = vrot.slane %v909, 4
        %v1866 = vadd.f32 %v909, %v1865
        %v1867 = vrot.slane %v1866, 2
        %v1868 = vadd.f32 %v1866, %v1867
        %v1869 = vrot.slane %v1868, 1
        %v1870 = vadd.f32 %v1868, %v1869
        %v1871 = vrot.slane %v910, 4
        %v1872 = vadd.f32 %v910, %v1871
        %v1873 = vrot.slane %v1872, 2
        %v1874 = vadd.f32 %v1872, %v1873
        %v1875 = vrot.slane %v1874, 1
        %v1876 = vadd.f32 %v1874, %v1875
        %v1877 = vrot.slane %v911, 4
        %v1878 = vadd.f32 %v911, %v1877
        %v1879 = vrot.slane %v1878, 2
        %v1880 = vadd.f32 %v1878, %v1879
        %v1881 = vrot.slane %v1880, 1
        %v1882 = vadd.f32 %v1880, %v1881
        %v1883 = vrot.slane %v912, 4
        %v1884 = vadd.f32 %v912, %v1883
        %v1885 = vrot.slane %v1884, 2
        %v1886 = vadd.f32 %v1884, %v1885
        %v1887 = vrot.slane %v1886, 1
        %v1888 = vadd.f32 %v1886, %v1887
        %v1889 = vrot.slane %v913, 4
        %v1890 = vadd.f32 %v913, %v1889
        %v1891 = vrot.slane %v1890, 2
        %v1892 = vadd.f32 %v1890, %v1891
        %v1893 = vrot.slane %v1892, 1
        %v1894 = vadd.f32 %v1892, %v1893
        %v1895 = vrot.slane %v914, 4
        %v1896 = vadd.f32 %v914, %v1895
        %v1897 = vrot.slane %v1896, 2
        %v1898 = vadd.f32 %v1896, %v1897
        %v1899 = vrot.slane %v1898, 1
        %v1900 = vadd.f32 %v1898, %v1899
        %v1901 = vrot.slane %v915, 4
        %v1902 = vadd.f32 %v915, %v1901
        %v1903 = vrot.slane %v1902, 2
        %v1904 = vadd.f32 %v1902, %v1903
        %v1905 = vrot.slane %v1904, 1
        %v1906 = vadd.f32 %v1904, %v1905
        %v1907 = vrot.slane %v916, 4
        %v1908 = vadd.f32 %v916, %v1907
        %v1909 = vrot.slane %v1908, 2
        %v1910 = vadd.f32 %v1908, %v1909
        %v1911 = vrot.slane %v1910, 1
        %v1912 = vadd.f32 %v1910, %v1911
        %v1913 = vrot.slane %v917, 4
        %v1914 = vadd.f32 %v917, %v1913
        %v1915 = vrot.slane %v1914, 2
        %v1916 = vadd.f32 %v1914, %v1915
        %v1917 = vrot.slane %v1916, 1
        %v1918 = vadd.f32 %v1916, %v1917
        %v1919 = vrot.slane %v918, 4
        %v1920 = vadd.f32 %v918, %v1919
        %v1921 = vrot.slane %v1920, 2
        %v1922 = vadd.f32 %v1920, %v1921
        %v1923 = vrot.slane %v1922, 1
        %v1924 = vadd.f32 %v1922, %v1923
        %v1925 = vrot.slane %v919, 4
        %v1926 = vadd.f32 %v919, %v1925
        %v1927 = vrot.slane %v1926, 2
        %v1928 = vadd.f32 %v1926, %v1927
        %v1929 = vrot.slane %v1928, 1
        %v1930 = vadd.f32 %v1928, %v1929
        %v1931 = vrot.slane %v920, 4
        %v1932 = vadd.f32 %v920, %v1931
        %v1933 = vrot.slane %v1932, 2
        %v1934 = vadd.f32 %v1932, %v1933
        %v1935 = vrot.slane %v1934, 1
        %v1936 = vadd.f32 %v1934, %v1935
        %v1937 = vrot.slane %v921, 4
        %v1938 = vadd.f32 %v921, %v1937
        %v1939 = vrot.slane %v1938, 2
        %v1940 = vadd.f32 %v1938, %v1939
        %v1941 = vrot.slane %v1940, 1
        %v1942 = vadd.f32 %v1940, %v1941
        %v1943 = vrot.slane %v922, 4
        %v1944 = vadd.f32 %v922, %v1943
        %v1945 = vrot.slane %v1944, 2
        %v1946 = vadd.f32 %v1944, %v1945
        %v1947 = vrot.slane %v1946, 1
        %v1948 = vadd.f32 %v1946, %v1947
        %v1949 = vrot.slane %v923, 4
        %v1950 = vadd.f32 %v923, %v1949
        %v1951 = vrot.slane %v1950, 2
        %v1952 = vadd.f32 %v1950, %v1951
        %v1953 = vrot.slane %v1952, 1
        %v1954 = vadd.f32 %v1952, %v1953
        %v1955 = vrot.slane %v924, 4
        %v1956 = vadd.f32 %v924, %v1955
        %v1957 = vrot.slane %v1956, 2
        %v1958 = vadd.f32 %v1956, %v1957
        %v1959 = vrot.slane %v1958, 1
        %v1960 = vadd.f32 %v1958, %v1959
        %v1961 = vrot.slane %v925, 4
        %v1962 = vadd.f32 %v925, %v1961
        %v1963 = vrot.slane %v1962, 2
        %v1964 = vadd.f32 %v1962, %v1963
        %v1965 = vrot.slane %v1964, 1
        %v1966 = vadd.f32 %v1964, %v1965
        %v1967 = vrot.slane %v926, 4
        %v1968 = vadd.f32 %v926, %v1967
        %v1969 = vrot.slane %v1968, 2
        %v1970 = vadd.f32 %v1968, %v1969
        %v1971 = vrot.slane %v1970, 1
        %v1972 = vadd.f32 %v1970, %v1971
        %v1973 = vrot.slane %v927, 4
        %v1974 = vadd.f32 %v927, %v1973
        %v1975 = vrot.slane %v1974, 2
        %v1976 = vadd.f32 %v1974, %v1975
        %v1977 = vrot.slane %v1976, 1
        %v1978 = vadd.f32 %v1976, %v1977
        %v1979 = vrot.slane %v928, 4
        %v1980 = vadd.f32 %v928, %v1979
        %v1981 = vrot.slane %v1980, 2
        %v1982 = vadd.f32 %v1980, %v1981
        %v1983 = vrot.slane %v1982, 1
        %v1984 = vadd.f32 %v1982, %v1983
        %v1985 = vrot.slane %v929, 4
        %v1986 = vadd.f32 %v929, %v1985
        %v1987 = vrot.slane %v1986, 2
        %v1988 = vadd.f32 %v1986, %v1987
        %v1989 = vrot.slane %v1988, 1
        %v1990 = vadd.f32 %v1988, %v1989
        %v1991 = vrot.slane %v930, 4
        %v1992 = vadd.f32 %v930, %v1991
        %v1993 = vrot.slane %v1992, 2
        %v1994 = vadd.f32 %v1992, %v1993
        %v1995 = vrot.slane %v1994, 1
        %v1996 = vadd.f32 %v1994, %v1995
        %v1997 = vrot.slane %v931, 4
        %v1998 = vadd.f32 %v931, %v1997
        %v1999 = vrot.slane %v1998, 2
        %v2000 = vadd.f32 %v1998, %v1999
        %v2001 = vrot.slane %v2000, 1
        %v2002 = vadd.f32 %v2000, %v2001
        %v2003 = vrot.slane %v932, 4
        %v2004 = vadd.f32 %v932, %v2003
        %v2005 = vrot.slane %v2004, 2
        %v2006 = vadd.f32 %v2004, %v2005
        %v2007 = vrot.slane %v2006, 1
        %v2008 = vadd.f32 %v2006, %v2007
        %v2009 = vrot.slane %v933, 4
        %v2010 = vadd.f32 %v933, %v2009
        %v2011 = vrot.slane %v2010, 2
        %v2012 = vadd.f32 %v2010, %v2011
        %v2013 = vrot.slane %v2012, 1
        %v2014 = vadd.f32 %v2012, %v2013
        %v2015 = vrot.slane %v934, 4
        %v2016 = vadd.f32 %v934, %v2015
        %v2017 = vrot.slane %v2016, 2
        %v2018 = vadd.f32 %v2016, %v2017
        %v2019 = vrot.slane %v2018, 1
        %v2020 = vadd.f32 %v2018, %v2019
        %v2021 = vrot.slane %v935, 4
        %v2022 = vadd.f32 %v935, %v2021
        %v2023 = vrot.slane %v2022, 2
        %v2024 = vadd.f32 %v2022, %v2023
        %v2025 = vrot.slane %v2024, 1
        %v2026 = vadd.f32 %v2024, %v2025
        %v2027 = vrot.slane %v936, 4
        %v2028 = vadd.f32 %v936, %v2027
        %v2029 = vrot.slane %v2028, 2
        %v2030 = vadd.f32 %v2028, %v2029
        %v2031 = vrot.slane %v2030, 1
        %v2032 = vadd.f32 %v2030, %v2031
        %v2033 = vrot.slane %v937, 4
        %v2034 = vadd.f32 %v937, %v2033
        %v2035 = vrot.slane %v2034, 2
        %v2036 = vadd.f32 %v2034, %v2035
        %v2037 = vrot.slane %v2036, 1
        %v2038 = vadd.f32 %v2036, %v2037
        %v2039 = vrot.slane %v938, 4
        %v2040 = vadd.f32 %v938, %v2039
        %v2041 = vrot.slane %v2040, 2
        %v2042 = vadd.f32 %v2040, %v2041
        %v2043 = vrot.slane %v2042, 1
        %v2044 = vadd.f32 %v2042, %v2043
        %v2045 = vrot.slane %v939, 4
        %v2046 = vadd.f32 %v939, %v2045
        %v2047 = vrot.slane %v2046, 2
        %v2048 = vadd.f32 %v2046, %v2047
        %v2049 = vrot.slane %v2048, 1
        %v2050 = vadd.f32 %v2048, %v2049
        %v2051 = vrot.slane %v940, 4
        %v2052 = vadd.f32 %v940, %v2051
        %v2053 = vrot.slane %v2052, 2
        %v2054 = vadd.f32 %v2052, %v2053
        %v2055 = vrot.slane %v2054, 1
        %v2056 = vadd.f32 %v2054, %v2055
        %v2057 = vrot.slane %v941, 4
        %v2058 = vadd.f32 %v941, %v2057
        %v2059 = vrot.slane %v2058, 2
        %v2060 = vadd.f32 %v2058, %v2059
        %v2061 = vrot.slane %v2060, 1
        %v2062 = vadd.f32 %v2060, %v2061
        %v2063 = vrot.slane %v942, 4
        %v2064 = vadd.f32 %v942, %v2063
        %v2065 = vrot.slane %v2064, 2
        %v2066 = vadd.f32 %v2064, %v2065
        %v2067 = vrot.slane %v2066, 1
        %v2068 = vadd.f32 %v2066, %v2067
        %v2069 = vrot.slane %v943, 4
        %v2070 = vadd.f32 %v943, %v2069
        %v2071 = vrot.slane %v2070, 2
        %v2072 = vadd.f32 %v2070, %v2071
        %v2073 = vrot.slane %v2072, 1
        %v2074 = vadd.f32 %v2072, %v2073
        %v2075 = vrot.slane %v944, 4
        %v2076 = vadd.f32 %v944, %v2075
        %v2077 = vrot.slane %v2076, 2
        %v2078 = vadd.f32 %v2076, %v2077
        %v2079 = vrot.slane %v2078, 1
        %v2080 = vadd.f32 %v2078, %v2079
        %v2081 = vrot.slane %v945, 4
        %v2082 = vadd.f32 %v945, %v2081
        %v2083 = vrot.slane %v2082, 2
        %v2084 = vadd.f32 %v2082, %v2083
        %v2085 = vrot.slane %v2084, 1
        %v2086 = vadd.f32 %v2084, %v2085
        %v2087 = vrot.slane %v946, 4
        %v2088 = vadd.f32 %v946, %v2087
        %v2089 = vrot.slane %v2088, 2
        %v2090 = vadd.f32 %v2088, %v2089
        %v2091 = vrot.slane %v2090, 1
        %v2092 = vadd.f32 %v2090, %v2091
        %v2093 = vrot.slane %v947, 4
        %v2094 = vadd.f32 %v947, %v2093
        %v2095 = vrot.slane %v2094, 2
        %v2096 = vadd.f32 %v2094, %v2095
        %v2097 = vrot.slane %v2096, 1
        %v2098 = vadd.f32 %v2096, %v2097
        %v2099 = vrot.slane %v948, 4
        %v2100 = vadd.f32 %v948, %v2099
        %v2101 = vrot.slane %v2100, 2
        %v2102 = vadd.f32 %v2100, %v2101
        %v2103 = vrot.slane %v2102, 1
        %v2104 = vadd.f32 %v2102, %v2103
        %v2105 = vrot.slane %v949, 4
        %v2106 = vadd.f32 %v949, %v2105
        %v2107 = vrot.slane %v2106, 2
        %v2108 = vadd.f32 %v2106, %v2107
        %v2109 = vrot.slane %v2108, 1
        %v2110 = vadd.f32 %v2108, %v2109
        %v2111 = vrot.slane %v950, 4
        %v2112 = vadd.f32 %v950, %v2111
        %v2113 = vrot.slane %v2112, 2
        %v2114 = vadd.f32 %v2112, %v2113
        %v2115 = vrot.slane %v2114, 1
        %v2116 = vadd.f32 %v2114, %v2115
        %v2117 = vrot.slane %v951, 4
        %v2118 = vadd.f32 %v951, %v2117
        %v2119 = vrot.slane %v2118, 2
        %v2120 = vadd.f32 %v2118, %v2119
        %v2121 = vrot.slane %v2120, 1
        %v2122 = vadd.f32 %v2120, %v2121
        %v2123 = vrot.slane %v952, 4
        %v2124 = vadd.f32 %v952, %v2123
        %v2125 = vrot.slane %v2124, 2
        %v2126 = vadd.f32 %v2124, %v2125
        %v2127 = vrot.slane %v2126, 1
        %v2128 = vadd.f32 %v2126, %v2127
        %v2129 = vrot.slane %v953, 4
        %v2130 = vadd.f32 %v953, %v2129
        %v2131 = vrot.slane %v2130, 2
        %v2132 = vadd.f32 %v2130, %v2131
        %v2133 = vrot.slane %v2132, 1
        %v2134 = vadd.f32 %v2132, %v2133
        %v2135 = vrot.slane %v954, 4
        %v2136 = vadd.f32 %v954, %v2135
        %v2137 = vrot.slane %v2136, 2
        %v2138 = vadd.f32 %v2136, %v2137
        %v2139 = vrot.slane %v2138, 1
        %v2140 = vadd.f32 %v2138, %v2139
        %v2141 = vrot.slane %v955, 4
        %v2142 = vadd.f32 %v955, %v2141
        %v2143 = vrot.slane %v2142, 2
        %v2144 = vadd.f32 %v2142, %v2143
        %v2145 = vrot.slane %v2144, 1
        %v2146 = vadd.f32 %v2144, %v2145
        %v2147 = vrot.slane %v956, 4
        %v2148 = vadd.f32 %v956, %v2147
        %v2149 = vrot.slane %v2148, 2
        %v2150 = vadd.f32 %v2148, %v2149
        %v2151 = vrot.slane %v2150, 1
        %v2152 = vadd.f32 %v2150, %v2151
        %v2153 = vrot.slane %v957, 4
        %v2154 = vadd.f32 %v957, %v2153
        %v2155 = vrot.slane %v2154, 2
        %v2156 = vadd.f32 %v2154, %v2155
        %v2157 = vrot.slane %v2156, 1
        %v2158 = vadd.f32 %v2156, %v2157
        %v2159 = vrot.slane %v958, 4
        %v2160 = vadd.f32 %v958, %v2159
        %v2161 = vrot.slane %v2160, 2
        %v2162 = vadd.f32 %v2160, %v2161
        %v2163 = vrot.slane %v2162, 1
        %v2164 = vadd.f32 %v2162, %v2163
        %v2165 = vrot.slane %v959, 4
        %v2166 = vadd.f32 %v959, %v2165
        %v2167 = vrot.slane %v2166, 2
        %v2168 = vadd.f32 %v2166, %v2167
        %v2169 = vrot.slane %v2168, 1
        %v2170 = vadd.f32 %v2168, %v2169
        %v2171 = vrot.slane %v960, 4
        %v2172 = vadd.f32 %v960, %v2171
        %v2173 = vrot.slane %v2172, 2
        %v2174 = vadd.f32 %v2172, %v2173
        %v2175 = vrot.slane %v2174, 1
        %v2176 = vadd.f32 %v2174, %v2175
        %v2177 = vrot.slane %v961, 4
        %v2178 = vadd.f32 %v961, %v2177
        %v2179 = vrot.slane %v2178, 2
        %v2180 = vadd.f32 %v2178, %v2179
        %v2181 = vrot.slane %v2180, 1
        %v2182 = vadd.f32 %v2180, %v2181
        %v2183 = vrot.slane %v962, 4
        %v2184 = vadd.f32 %v962, %v2183
        %v2185 = vrot.slane %v2184, 2
        %v2186 = vadd.f32 %v2184, %v2185
        %v2187 = vrot.slane %v2186, 1
        %v2188 = vadd.f32 %v2186, %v2187
        %v2189 = vrot.slane %v963, 4
        %v2190 = vadd.f32 %v963, %v2189
        %v2191 = vrot.slane %v2190, 2
        %v2192 = vadd.f32 %v2190, %v2191
        %v2193 = vrot.slane %v2192, 1
        %v2194 = vadd.f32 %v2192, %v2193
        %v2195 = vrot.slane %v964, 4
        %v2196 = vadd.f32 %v964, %v2195
        %v2197 = vrot.slane %v2196, 2
        %v2198 = vadd.f32 %v2196, %v2197
        %v2199 = vrot.slane %v2198, 1
        %v2200 = vadd.f32 %v2198, %v2199
        %v2201 = vrot.slane %v965, 4
        %v2202 = vadd.f32 %v965, %v2201
        %v2203 = vrot.slane %v2202, 2
        %v2204 = vadd.f32 %v2202, %v2203
        %v2205 = vrot.slane %v2204, 1
        %v2206 = vadd.f32 %v2204, %v2205
        %v2207 = vrot.slane %v966, 4
        %v2208 = vadd.f32 %v966, %v2207
        %v2209 = vrot.slane %v2208, 2
        %v2210 = vadd.f32 %v2208, %v2209
        %v2211 = vrot.slane %v2210, 1
        %v2212 = vadd.f32 %v2210, %v2211
        %v2213 = vrot.slane %v967, 4
        %v2214 = vadd.f32 %v967, %v2213
        %v2215 = vrot.slane %v2214, 2
        %v2216 = vadd.f32 %v2214, %v2215
        %v2217 = vrot.slane %v2216, 1
        %v2218 = vadd.f32 %v2216, %v2217
        %v2219 = vrot.slane %v968, 4
        %v2220 = vadd.f32 %v968, %v2219
        %v2221 = vrot.slane %v2220, 2
        %v2222 = vadd.f32 %v2220, %v2221
        %v2223 = vrot.slane %v2222, 1
        %v2224 = vadd.f32 %v2222, %v2223
        %v2225 = vrot.slane %v969, 4
        %v2226 = vadd.f32 %v969, %v2225
        %v2227 = vrot.slane %v2226, 2
        %v2228 = vadd.f32 %v2226, %v2227
        %v2229 = vrot.slane %v2228, 1
        %v2230 = vadd.f32 %v2228, %v2229
        %v2231 = vrot.slane %v970, 4
        %v2232 = vadd.f32 %v970, %v2231
        %v2233 = vrot.slane %v2232, 2
        %v2234 = vadd.f32 %v2232, %v2233
        %v2235 = vrot.slane %v2234, 1
        %v2236 = vadd.f32 %v2234, %v2235
        %v2237 = vrot.slane %v971, 4
        %v2238 = vadd.f32 %v971, %v2237
        %v2239 = vrot.slane %v2238, 2
        %v2240 = vadd.f32 %v2238, %v2239
        %v2241 = vrot.slane %v2240, 1
        %v2242 = vadd.f32 %v2240, %v2241
        %v2243 = vrot.slane %v972, 4
        %v2244 = vadd.f32 %v972, %v2243
        %v2245 = vrot.slane %v2244, 2
        %v2246 = vadd.f32 %v2244, %v2245
        %v2247 = vrot.slane %v2246, 1
        %v2248 = vadd.f32 %v2246, %v2247
        %v2249 = vrot.slane %v973, 4
        %v2250 = vadd.f32 %v973, %v2249
        %v2251 = vrot.slane %v2250, 2
        %v2252 = vadd.f32 %v2250, %v2251
        %v2253 = vrot.slane %v2252, 1
        %v2254 = vadd.f32 %v2252, %v2253
        %v2255 = vrot.slane %v974, 4
        %v2256 = vadd.f32 %v974, %v2255
        %v2257 = vrot.slane %v2256, 2
        %v2258 = vadd.f32 %v2256, %v2257
        %v2259 = vrot.slane %v2258, 1
        %v2260 = vadd.f32 %v2258, %v2259
        %v2261 = vrot.slane %v975, 4
        %v2262 = vadd.f32 %v975, %v2261
        %v2263 = vrot.slane %v2262, 2
        %v2264 = vadd.f32 %v2262, %v2263
        %v2265 = vrot.slane %v2264, 1
        %v2266 = vadd.f32 %v2264, %v2265
        %v2267 = vrot.slane %v976, 4
        %v2268 = vadd.f32 %v976, %v2267
        %v2269 = vrot.slane %v2268, 2
        %v2270 = vadd.f32 %v2268, %v2269
        %v2271 = vrot.slane %v2270, 1
        %v2272 = vadd.f32 %v2270, %v2271
        %v2273 = vrot.slane %v977, 4
        %v2274 = vadd.f32 %v977, %v2273
        %v2275 = vrot.slane %v2274, 2
        %v2276 = vadd.f32 %v2274, %v2275
        %v2277 = vrot.slane %v2276, 1
        %v2278 = vadd.f32 %v2276, %v2277
        %v2279 = vrot.slane %v978, 4
        %v2280 = vadd.f32 %v978, %v2279
        %v2281 = vrot.slane %v2280, 2
        %v2282 = vadd.f32 %v2280, %v2281
        %v2283 = vrot.slane %v2282, 1
        %v2284 = vadd.f32 %v2282, %v2283
        %v2285 = vrot.slane %v979, 4
        %v2286 = vadd.f32 %v979, %v2285
        %v2287 = vrot.slane %v2286, 2
        %v2288 = vadd.f32 %v2286, %v2287
        %v2289 = vrot.slane %v2288, 1
        %v2290 = vadd.f32 %v2288, %v2289
        %v2291 = vrot.slane %v980, 4
        %v2292 = vadd.f32 %v980, %v2291
        %v2293 = vrot.slane %v2292, 2
        %v2294 = vadd.f32 %v2292, %v2293
        %v2295 = vrot.slane %v2294, 1
        %v2296 = vadd.f32 %v2294, %v2295
        %v2297 = vrot.slane %v981, 4
        %v2298 = vadd.f32 %v981, %v2297
        %v2299 = vrot.slane %v2298, 2
        %v2300 = vadd.f32 %v2298, %v2299
        %v2301 = vrot.slane %v2300, 1
        %v2302 = vadd.f32 %v2300, %v2301
        %v2303 = vrot.slane %v982, 4
        %v2304 = vadd.f32 %v982, %v2303
        %v2305 = vrot.slane %v2304, 2
        %v2306 = vadd.f32 %v2304, %v2305
        %v2307 = vrot.slane %v2306, 1
        %v2308 = vadd.f32 %v2306, %v2307
        %v2309 = vrot.slane %v983, 4
        %v2310 = vadd.f32 %v983, %v2309
        %v2311 = vrot.slane %v2310, 2
        %v2312 = vadd.f32 %v2310, %v2311
        %v2313 = vrot.slane %v2312, 1
        %v2314 = vadd.f32 %v2312, %v2313
        %v2315 = vrot.slane %v984, 4
        %v2316 = vadd.f32 %v984, %v2315
        %v2317 = vrot.slane %v2316, 2
        %v2318 = vadd.f32 %v2316, %v2317
        %v2319 = vrot.slane %v2318, 1
        %v2320 = vadd.f32 %v2318, %v2319
        %v2321 = vrot.slane %v985, 4
        %v2322 = vadd.f32 %v985, %v2321
        %v2323 = vrot.slane %v2322, 2
        %v2324 = vadd.f32 %v2322, %v2323
        %v2325 = vrot.slane %v2324, 1
        %v2326 = vadd.f32 %v2324, %v2325
        %v2327 = vrot.slane %v986, 4
        %v2328 = vadd.f32 %v986, %v2327
        %v2329 = vrot.slane %v2328, 2
        %v2330 = vadd.f32 %v2328, %v2329
        %v2331 = vrot.slane %v2330, 1
        %v2332 = vadd.f32 %v2330, %v2331
        %v2333 = vrot.slane %v987, 4
        %v2334 = vadd.f32 %v987, %v2333
        %v2335 = vrot.slane %v2334, 2
        %v2336 = vadd.f32 %v2334, %v2335
        %v2337 = vrot.slane %v2336, 1
        %v2338 = vadd.f32 %v2336, %v2337
        %v2339 = vrot.slane %v988, 4
        %v2340 = vadd.f32 %v988, %v2339
        %v2341 = vrot.slane %v2340, 2
        %v2342 = vadd.f32 %v2340, %v2341
        %v2343 = vrot.slane %v2342, 1
        %v2344 = vadd.f32 %v2342, %v2343
        %v2345 = vrot.slane %v989, 4
        %v2346 = vadd.f32 %v989, %v2345
        %v2347 = vrot.slane %v2346, 2
        %v2348 = vadd.f32 %v2346, %v2347
        %v2349 = vrot.slane %v2348, 1
        %v2350 = vadd.f32 %v2348, %v2349
        %v2351 = vrot.slane %v990, 4
        %v2352 = vadd.f32 %v990, %v2351
        %v2353 = vrot.slane %v2352, 2
        %v2354 = vadd.f32 %v2352, %v2353
        %v2355 = vrot.slane %v2354, 1
        %v2356 = vadd.f32 %v2354, %v2355
        %v2357 = vrot.slane %v991, 4
        %v2358 = vadd.f32 %v991, %v2357
        %v2359 = vrot.slane %v2358, 2
        %v2360 = vadd.f32 %v2358, %v2359
        %v2361 = vrot.slane %v2360, 1
        %v2362 = vadd.f32 %v2360, %v2361
        %v2363 = vrot.slane %v992, 4
        %v2364 = vadd.f32 %v992, %v2363
        %v2365 = vrot.slane %v2364, 2
        %v2366 = vadd.f32 %v2364, %v2365
        %v2367 = vrot.slane %v2366, 1
        %v2368 = vadd.f32 %v2366, %v2367
        %v2369 = vrot.slane %v993, 4
        %v2370 = vadd.f32 %v993, %v2369
        %v2371 = vrot.slane %v2370, 2
        %v2372 = vadd.f32 %v2370, %v2371
        %v2373 = vrot.slane %v2372, 1
        %v2374 = vadd.f32 %v2372, %v2373
        %v2375 = vrot.slane %v994, 4
        %v2376 = vadd.f32 %v994, %v2375
        %v2377 = vrot.slane %v2376, 2
        %v2378 = vadd.f32 %v2376, %v2377
        %v2379 = vrot.slane %v2378, 1
        %v2380 = vadd.f32 %v2378, %v2379
        %v2381 = vrot.slane %v995, 4
        %v2382 = vadd.f32 %v995, %v2381
        %v2383 = vrot.slane %v2382, 2
        %v2384 = vadd.f32 %v2382, %v2383
        %v2385 = vrot.slane %v2384, 1
        %v2386 = vadd.f32 %v2384, %v2385
        %v2387 = vrot.slane %v996, 4
        %v2388 = vadd.f32 %v996, %v2387
        %v2389 = vrot.slane %v2388, 2
        %v2390 = vadd.f32 %v2388, %v2389
        %v2391 = vrot.slane %v2390, 1
        %v2392 = vadd.f32 %v2390, %v2391
        %v2393 = vrot.slane %v997, 4
        %v2394 = vadd.f32 %v997, %v2393
        %v2395 = vrot.slane %v2394, 2
        %v2396 = vadd.f32 %v2394, %v2395
        %v2397 = vrot.slane %v2396, 1
        %v2398 = vadd.f32 %v2396, %v2397
        %v2399 = vrot.slane %v998, 4
        %v2400 = vadd.f32 %v998, %v2399
        %v2401 = vrot.slane %v2400, 2
        %v2402 = vadd.f32 %v2400, %v2401
        %v2403 = vrot.slane %v2402, 1
        %v2404 = vadd.f32 %v2402, %v2403
        %v2405 = vrot.slane %v999, 4
        %v2406 = vadd.f32 %v999, %v2405
        %v2407 = vrot.slane %v2406, 2
        %v2408 = vadd.f32 %v2406, %v2407
        %v2409 = vrot.slane %v2408, 1
        %v2410 = vadd.f32 %v2408, %v2409
        %v2411 = vrot.slane %v1000, 4
        %v2412 = vadd.f32 %v1000, %v2411
        %v2413 = vrot.slane %v2412, 2
        %v2414 = vadd.f32 %v2412, %v2413
        %v2415 = vrot.slane %v2414, 1
        %v2416 = vadd.f32 %v2414, %v2415
        %v2417 = vrot.slane %v1001, 4
        %v2418 = vadd.f32 %v1001, %v2417
        %v2419 = vrot.slane %v2418, 2
        %v2420 = vadd.f32 %v2418, %v2419
        %v2421 = vrot.slane %v2420, 1
        %v2422 = vadd.f32 %v2420, %v2421
        %v2423 = vrot.slane %v1002, 4
        %v2424 = vadd.f32 %v1002, %v2423
        %v2425 = vrot.slane %v2424, 2
        %v2426 = vadd.f32 %v2424, %v2425
        %v2427 = vrot.slane %v2426, 1
        %v2428 = vadd.f32 %v2426, %v2427
        %v2429 = vrot.slane %v1003, 4
        %v2430 = vadd.f32 %v1003, %v2429
        %v2431 = vrot.slane %v2430, 2
        %v2432 = vadd.f32 %v2430, %v2431
        %v2433 = vrot.slane %v2432, 1
        %v2434 = vadd.f32 %v2432, %v2433
        %v2435 = vrot.slane %v1004, 4
        %v2436 = vadd.f32 %v1004, %v2435
        %v2437 = vrot.slane %v2436, 2
        %v2438 = vadd.f32 %v2436, %v2437
        %v2439 = vrot.slane %v2438, 1
        %v2440 = vadd.f32 %v2438, %v2439
        %v2441 = vrot.slane %v1005, 4
        %v2442 = vadd.f32 %v1005, %v2441
        %v2443 = vrot.slane %v2442, 2
        %v2444 = vadd.f32 %v2442, %v2443
        %v2445 = vrot.slane %v2444, 1
        %v2446 = vadd.f32 %v2444, %v2445
        %v2447 = vrot.slane %v1006, 4
        %v2448 = vadd.f32 %v1006, %v2447
        %v2449 = vrot.slane %v2448, 2
        %v2450 = vadd.f32 %v2448, %v2449
        %v2451 = vrot.slane %v2450, 1
        %v2452 = vadd.f32 %v2450, %v2451
        %v2453 = vrot.slane %v1007, 4
        %v2454 = vadd.f32 %v1007, %v2453
        %v2455 = vrot.slane %v2454, 2
        %v2456 = vadd.f32 %v2454, %v2455
        %v2457 = vrot.slane %v2456, 1
        %v2458 = vadd.f32 %v2456, %v2457
        %v2459 = vrot.slane %v1008, 4
        %v2460 = vadd.f32 %v1008, %v2459
        %v2461 = vrot.slane %v2460, 2
        %v2462 = vadd.f32 %v2460, %v2461
        %v2463 = vrot.slane %v2462, 1
        %v2464 = vadd.f32 %v2462, %v2463
        %v2465 = vrot.slane %v1009, 4
        %v2466 = vadd.f32 %v1009, %v2465
        %v2467 = vrot.slane %v2466, 2
        %v2468 = vadd.f32 %v2466, %v2467
        %v2469 = vrot.slane %v2468, 1
        %v2470 = vadd.f32 %v2468, %v2469
        %v2471 = vrot.slane %v1010, 4
        %v2472 = vadd.f32 %v1010, %v2471
        %v2473 = vrot.slane %v2472, 2
        %v2474 = vadd.f32 %v2472, %v2473
        %v2475 = vrot.slane %v2474, 1
        %v2476 = vadd.f32 %v2474, %v2475
        %v2477 = vrot.slane %v1011, 4
        %v2478 = vadd.f32 %v1011, %v2477
        %v2479 = vrot.slane %v2478, 2
        %v2480 = vadd.f32 %v2478, %v2479
        %v2481 = vrot.slane %v2480, 1
        %v2482 = vadd.f32 %v2480, %v2481
        %v2483 = vrot.slane %v1012, 4
        %v2484 = vadd.f32 %v1012, %v2483
        %v2485 = vrot.slane %v2484, 2
        %v2486 = vadd.f32 %v2484, %v2485
        %v2487 = vrot.slane %v2486, 1
        %v2488 = vadd.f32 %v2486, %v2487
        %v2489 = vrot.slane %v1013, 4
        %v2490 = vadd.f32 %v1013, %v2489
        %v2491 = vrot.slane %v2490, 2
        %v2492 = vadd.f32 %v2490, %v2491
        %v2493 = vrot.slane %v2492, 1
        %v2494 = vadd.f32 %v2492, %v2493
        %v2495 = vrot.slane %v1014, 4
        %v2496 = vadd.f32 %v1014, %v2495
        %v2497 = vrot.slane %v2496, 2
        %v2498 = vadd.f32 %v2496, %v2497
        %v2499 = vrot.slane %v2498, 1
        %v2500 = vadd.f32 %v2498, %v2499
        %v2501 = vrot.slane %v1015, 4
        %v2502 = vadd.f32 %v1015, %v2501
        %v2503 = vrot.slane %v2502, 2
        %v2504 = vadd.f32 %v2502, %v2503
        %v2505 = vrot.slane %v2504, 1
        %v2506 = vadd.f32 %v2504, %v2505
        %v2507 = vrot.slane %v1016, 4
        %v2508 = vadd.f32 %v1016, %v2507
        %v2509 = vrot.slane %v2508, 2
        %v2510 = vadd.f32 %v2508, %v2509
        %v2511 = vrot.slane %v2510, 1
        %v2512 = vadd.f32 %v2510, %v2511
        %v2513 = vrot.slane %v1017, 4
        %v2514 = vadd.f32 %v1017, %v2513
        %v2515 = vrot.slane %v2514, 2
        %v2516 = vadd.f32 %v2514, %v2515
        %v2517 = vrot.slane %v2516, 1
        %v2518 = vadd.f32 %v2516, %v2517
        %v2519 = vrot.slane %v1018, 4
        %v2520 = vadd.f32 %v1018, %v2519
        %v2521 = vrot.slane %v2520, 2
        %v2522 = vadd.f32 %v2520, %v2521
        %v2523 = vrot.slane %v2522, 1
        %v2524 = vadd.f32 %v2522, %v2523
        %v2525 = vrot.slane %v1019, 4
        %v2526 = vadd.f32 %v1019, %v2525
        %v2527 = vrot.slane %v2526, 2
        %v2528 = vadd.f32 %v2526, %v2527
        %v2529 = vrot.slane %v2528, 1
        %v2530 = vadd.f32 %v2528, %v2529
        %v2531 = vrot.slane %v1020, 4
        %v2532 = vadd.f32 %v1020, %v2531
        %v2533 = vrot.slane %v2532, 2
        %v2534 = vadd.f32 %v2532, %v2533
        %v2535 = vrot.slane %v2534, 1
        %v2536 = vadd.f32 %v2534, %v2535
        %v2537 = vrot.slane %v1021, 4
        %v2538 = vadd.f32 %v1021, %v2537
        %v2539 = vrot.slane %v2538, 2
        %v2540 = vadd.f32 %v2538, %v2539
        %v2541 = vrot.slane %v2540, 1
        %v2542 = vadd.f32 %v2540, %v2541
        %v2543 = vrot.slane %v1022, 4
        %v2544 = vadd.f32 %v1022, %v2543
        %v2545 = vrot.slane %v2544, 2
        %v2546 = vadd.f32 %v2544, %v2545
        %v2547 = vrot.slane %v2546, 1
        %v2548 = vadd.f32 %v2546, %v2547
        %v2549 = vrot.slane %v1023, 4
        %v2550 = vadd.f32 %v1023, %v2549
        %v2551 = vrot.slane %v2550, 2
        %v2552 = vadd.f32 %v2550, %v2551
        %v2553 = vrot.slane %v2552, 1
        %v2554 = vadd.f32 %v2552, %v2553
        %v2555 = vrot.slane %v1024, 4
        %v2556 = vadd.f32 %v1024, %v2555
        %v2557 = vrot.slane %v2556, 2
        %v2558 = vadd.f32 %v2556, %v2557
        %v2559 = vrot.slane %v2558, 1
        %v2560 = vadd.f32 %v2558, %v2559
        %v2561 = vadd.f32 %v769, %v777
        %v2562 = vadd.f32 %v2561, %v785
        %v2563 = vadd.f32 %v2562, %v793
        %v2564 = vadd.f32 %v770, %v778
        %v2565 = vadd.f32 %v2564, %v786
        %v2566 = vadd.f32 %v2565, %v794
        %v2567 = vadd.f32 %v771, %v779
        %v2568 = vadd.f32 %v2567, %v787
        %v2569 = vadd.f32 %v2568, %v795
        %v2570 = vadd.f32 %v772, %v780
        %v2571 = vadd.f32 %v2570, %v788
        %v2572 = vadd.f32 %v2571, %v796
        %v2573 = vadd.f32 %v773, %v781
        %v2574 = vadd.f32 %v2573, %v789
        %v2575 = vadd.f32 %v2574, %v797
        %v2576 = vadd.f32 %v774, %v782
        %v2577 = vadd.f32 %v2576, %v790
        %v2578 = vadd.f32 %v2577, %v798
        %v2579 = vadd.f32 %v775, %v783
        %v2580 = vadd.f32 %v2579, %v791
        %v2581 = vadd.f32 %v2580, %v799
        %v2582 = vadd.f32 %v776, %v784
        %v2583 = vadd.f32 %v2582, %v792
        %v2584 = vadd.f32 %v2583, %v800
        %v2585 = vadd.f32 %v801, %v809
        %v2586 = vadd.f32 %v2585, %v817
        %v2587 = vadd.f32 %v2586, %v825
        %v2588 = vadd.f32 %v802, %v810
        %v2589 = vadd.f32 %v2588, %v818
        %v2590 = vadd.f32 %v2589, %v826
        %v2591 = vadd.f32 %v803, %v811
        %v2592 = vadd.f32 %v2591, %v819
        %v2593 = vadd.f32 %v2592, %v827
        %v2594 = vadd.f32 %v804, %v812
        %v2595 = vadd.f32 %v2594, %v820
        %v2596 = vadd.f32 %v2595, %v828
        %v2597 = vadd.f32 %v805, %v813
        %v2598 = vadd.f32 %v2597, %v821
        %v2599 = vadd.f32 %v2598, %v829
        %v2600 = vadd.f32 %v806, %v814
        %v2601 = vadd.f32 %v2600, %v822
        %v2602 = vadd.f32 %v2601, %v830
        %v2603 = vadd.f32 %v807, %v815
        %v2604 = vadd.f32 %v2603, %v823
        %v2605 = vadd.f32 %v2604, %v831
        %v2606 = vadd.f32 %v808, %v816
        %v2607 = vadd.f32 %v2606, %v824
        %v2608 = vadd.f32 %v2607, %v832
        %v2609 = vadd.f32 %v833, %v841
        %v2610 = vadd.f32 %v2609, %v849
        %v2611 = vadd.f32 %v2610, %v857
        %v2612 = vadd.f32 %v834, %v842
        %v2613 = vadd.f32 %v2612, %v850
        %v2614 = vadd.f32 %v2613, %v858
        %v2615 = vadd.f32 %v835, %v843
        %v2616 = vadd.f32 %v2615, %v851
        %v2617 = vadd.f32 %v2616, %v859
        %v2618 = vadd.f32 %v836, %v844
        %v2619 = vadd.f32 %v2618, %v852
        %v2620 = vadd.f32 %v2619, %v860
        %v2621 = vadd.f32 %v837, %v845
        %v2622 = vadd.f32 %v2621, %v853
        %v2623 = vadd.f32 %v2622, %v861
        %v2624 = vadd.f32 %v838, %v846
        %v2625 = vadd.f32 %v2624, %v854
        %v2626 = vadd.f32 %v2625, %v862
        %v2627 = vadd.f32 %v839, %v847
        %v2628 = vadd.f32 %v2627, %v855
        %v2629 = vadd.f32 %v2628, %v863
        %v2630 = vadd.f32 %v840, %v848
        %v2631 = vadd.f32 %v2630, %v856
        %v2632 = vadd.f32 %v2631, %v864
        %v2633 = vadd.f32 %v865, %v873
        %v2634 = vadd.f32 %v2633, %v881
        %v2635 = vadd.f32 %v2634, %v889
        %v2636 = vadd.f32 %v866, %v874
        %v2637 = vadd.f32 %v2636, %v882
        %v2638 = vadd.f32 %v2637, %v890
        %v2639 = vadd.f32 %v867, %v875
        %v2640 = vadd.f32 %v2639, %v883
        %v2641 = vadd.f32 %v2640, %v891
        %v2642 = vadd.f32 %v868, %v876
        %v2643 = vadd.f32 %v2642, %v884
        %v2644 = vadd.f32 %v2643, %v892
        %v2645 = vadd.f32 %v869, %v877
        %v2646 = vadd.f32 %v2645, %v885
        %v2647 = vadd.f32 %v2646, %v893
        %v2648 = vadd.f32 %v870, %v878
        %v2649 = vadd.f32 %v2648, %v886
        %v2650 = vadd.f32 %v2649, %v894
        %v2651 = vadd.f32 %v871, %v879
        %v2652 = vadd.f32 %v2651, %v887
        %v2653 = vadd.f32 %v2652, %v895
        %v2654 = vadd.f32 %v872, %v880
        %v2655 = vadd.f32 %v2654, %v888
        %v2656 = vadd.f32 %v2655, %v896
        %v2657 = vadd.f32 %v897, %v905
        %v2658 = vadd.f32 %v2657, %v913
        %v2659 = vadd.f32 %v2658, %v921
        %v2660 = vadd.f32 %v898, %v906
        %v2661 = vadd.f32 %v2660, %v914
        %v2662 = vadd.f32 %v2661, %v922
        %v2663 = vadd.f32 %v899, %v907
        %v2664 = vadd.f32 %v2663, %v915
        %v2665 = vadd.f32 %v2664, %v923
        %v2666 = vadd.f32 %v900, %v908
        %v2667 = vadd.f32 %v2666, %v916
        %v2668 = vadd.f32 %v2667, %v924
        %v2669 = vadd.f32 %v901, %v909
        %v2670 = vadd.f32 %v2669, %v917
        %v2671 = vadd.f32 %v2670, %v925
        %v2672 = vadd.f32 %v902, %v910
        %v2673 = vadd.f32 %v2672, %v918
        %v2674 = vadd.f32 %v2673, %v926
        %v2675 = vadd.f32 %v903, %v911
        %v2676 = vadd.f32 %v2675, %v919
        %v2677 = vadd.f32 %v2676, %v927
        %v2678 = vadd.f32 %v904, %v912
        %v2679 = vadd.f32 %v2678, %v920
        %v2680 = vadd.f32 %v2679, %v928
        %v2681 = vadd.f32 %v929, %v937
        %v2682 = vadd.f32 %v2681, %v945
        %v2683 = vadd.f32 %v2682, %v953
        %v2684 = vadd.f32 %v930, %v938
        %v2685 = vadd.f32 %v2684, %v946
        %v2686 = vadd.f32 %v2685, %v954
        %v2687 = vadd.f32 %v931, %v939
        %v2688 = vadd.f32 %v2687, %v947
        %v2689 = vadd.f32 %v2688, %v955
        %v2690 = vadd.f32 %v932, %v940
        %v2691 = vadd.f32 %v2690, %v948
        %v2692 = vadd.f32 %v2691, %v956
        %v2693 = vadd.f32 %v933, %v941
        %v2694 = vadd.f32 %v2693, %v949
        %v2695 = vadd.f32 %v2694, %v957
        %v2696 = vadd.f32 %v934, %v942
        %v2697 = vadd.f32 %v2696, %v950
        %v2698 = vadd.f32 %v2697, %v958
        %v2699 = vadd.f32 %v935, %v943
        %v2700 = vadd.f32 %v2699, %v951
        %v2701 = vadd.f32 %v2700, %v959
        %v2702 = vadd.f32 %v936, %v944
        %v2703 = vadd.f32 %v2702, %v952
        %v2704 = vadd.f32 %v2703, %v960
        %v2705 = vadd.f32 %v961, %v969
        %v2706 = vadd.f32 %v2705, %v977
        %v2707 = vadd.f32 %v2706, %v985
        %v2708 = vadd.f32 %v962, %v970
        %v2709 = vadd.f32 %v2708, %v978
        %v2710 = vadd.f32 %v2709, %v986
        %v2711 = vadd.f32 %v963, %v971
        %v2712 = vadd.f32 %v2711, %v979
        %v2713 = vadd.f32 %v2712, %v987
        %v2714 = vadd.f32 %v964, %v972
        %v2715 = vadd.f32 %v2714, %v980
        %v2716 = vadd.f32 %v2715, %v988
        %v2717 = vadd.f32 %v965, %v973
        %v2718 = vadd.f32 %v2717, %v981
        %v2719 = vadd.f32 %v2718, %v989
        %v2720 = vadd.f32 %v966, %v974
        %v2721 = vadd.f32 %v2720, %v982
        %v2722 = vadd.f32 %v2721, %v990
        %v2723 = vadd.f32 %v967, %v975
        %v2724 = vadd.f32 %v2723, %v983
        %v2725 = vadd.f32 %v2724, %v991
        %v2726 = vadd.f32 %v968, %v976
        %v2727 = vadd.f32 %v2726, %v984
        %v2728 = vadd.f32 %v2727, %v992
        %v2729 = vadd.f32 %v993, %v1001
        %v2730 = vadd.f32 %v2729, %v1009
        %v2731 = vadd.f32 %v2730, %v1017
        %v2732 = vadd.f32 %v994, %v1002
        %v2733 = vadd.f32 %v2732, %v1010
        %v2734 = vadd.f32 %v2733, %v1018
        %v2735 = vadd.f32 %v995, %v1003
        %v2736 = vadd.f32 %v2735, %v1011
        %v2737 = vadd.f32 %v2736, %v1019
        %v2738 = vadd.f32 %v996, %v1004
        %v2739 = vadd.f32 %v2738, %v1012
        %v2740 = vadd.f32 %v2739, %v1020
        %v2741 = vadd.f32 %v997, %v1005
        %v2742 = vadd.f32 %v2741, %v1013
        %v2743 = vadd.f32 %v2742, %v1021
        %v2744 = vadd.f32 %v998, %v1006
        %v2745 = vadd.f32 %v2744, %v1014
        %v2746 = vadd.f32 %v2745, %v1022
        %v2747 = vadd.f32 %v999, %v1007
        %v2748 = vadd.f32 %v2747, %v1015
        %v2749 = vadd.f32 %v2748, %v1023
        %v2750 = vadd.f32 %v1000, %v1008
        %v2751 = vadd.f32 %v2750, %v1016
        %v2752 = vadd.f32 %v2751, %v1024
        %v2753 = vrot.slane %v2563, 4
        %v2754 = vadd.f32 %v2563, %v2753
        %v2755 = vrot.slane %v2754, 2
        %v2756 = vadd.f32 %v2754, %v2755
        %v2757 = vrot.slane %v2756, 1
        %v2758 = vadd.f32 %v2756, %v2757
        %v2759 = vrot.slane %v2566, 4
        %v2760 = vadd.f32 %v2566, %v2759
        %v2761 = vrot.slane %v2760, 2
        %v2762 = vadd.f32 %v2760, %v2761
        %v2763 = vrot.slane %v2762, 1
        %v2764 = vadd.f32 %v2762, %v2763
        %v2765 = vrot.slane %v2569, 4
        %v2766 = vadd.f32 %v2569, %v2765
        %v2767 = vrot.slane %v2766, 2
        %v2768 = vadd.f32 %v2766, %v2767
        %v2769 = vrot.slane %v2768, 1
        %v2770 = vadd.f32 %v2768, %v2769
        %v2771 = vrot.slane %v2572, 4
        %v2772 = vadd.f32 %v2572, %v2771
        %v2773 = vrot.slane %v2772, 2
        %v2774 = vadd.f32 %v2772, %v2773
        %v2775 = vrot.slane %v2774, 1
        %v2776 = vadd.f32 %v2774, %v2775
        %v2777 = vrot.slane %v2575, 4
        %v2778 = vadd.f32 %v2575, %v2777
        %v2779 = vrot.slane %v2778, 2
        %v2780 = vadd.f32 %v2778, %v2779
        %v2781 = vrot.slane %v2780, 1
        %v2782 = vadd.f32 %v2780, %v2781
        %v2783 = vrot.slane %v2578, 4
        %v2784 = vadd.f32 %v2578, %v2783
        %v2785 = vrot.slane %v2784, 2
        %v2786 = vadd.f32 %v2784, %v2785
        %v2787 = vrot.slane %v2786, 1
        %v2788 = vadd.f32 %v2786, %v2787
        %v2789 = vrot.slane %v2581, 4
        %v2790 = vadd.f32 %v2581, %v2789
        %v2791 = vrot.slane %v2790, 2
        %v2792 = vadd.f32 %v2790, %v2791
        %v2793 = vrot.slane %v2792, 1
        %v2794 = vadd.f32 %v2792, %v2793
        %v2795 = vrot.slane %v2584, 4
        %v2796 = vadd.f32 %v2584, %v2795
        %v2797 = vrot.slane %v2796, 2
        %v2798 = vadd.f32 %v2796, %v2797
        %v2799 = vrot.slane %v2798, 1
        %v2800 = vadd.f32 %v2798, %v2799
        %v2801 = vrot.slane %v2587, 4
        %v2802 = vadd.f32 %v2587, %v2801
        %v2803 = vrot.slane %v2802, 2
        %v2804 = vadd.f32 %v2802, %v2803
        %v2805 = vrot.slane %v2804, 1
        %v2806 = vadd.f32 %v2804, %v2805
        %v2807 = vrot.slane %v2590, 4
        %v2808 = vadd.f32 %v2590, %v2807
        %v2809 = vrot.slane %v2808, 2
        %v2810 = vadd.f32 %v2808, %v2809
        %v2811 = vrot.slane %v2810, 1
        %v2812 = vadd.f32 %v2810, %v2811
        %v2813 = vrot.slane %v2593, 4
        %v2814 = vadd.f32 %v2593, %v2813
        %v2815 = vrot.slane %v2814, 2
        %v2816 = vadd.f32 %v2814, %v2815
        %v2817 = vrot.slane %v2816, 1
        %v2818 = vadd.f32 %v2816, %v2817
        %v2819 = vrot.slane %v2596, 4
        %v2820 = vadd.f32 %v2596, %v2819
        %v2821 = vrot.slane %v2820, 2
        %v2822 = vadd.f32 %v2820, %v2821
        %v2823 = vrot.slane %v2822, 1
        %v2824 = vadd.f32 %v2822, %v2823
        %v2825 = vrot.slane %v2599, 4
        %v2826 = vadd.f32 %v2599, %v2825
        %v2827 = vrot.slane %v2826, 2
        %v2828 = vadd.f32 %v2826, %v2827
        %v2829 = vrot.slane %v2828, 1
        %v2830 = vadd.f32 %v2828, %v2829
        %v2831 = vrot.slane %v2602, 4
        %v2832 = vadd.f32 %v2602, %v2831
        %v2833 = vrot.slane %v2832, 2
        %v2834 = vadd.f32 %v2832, %v2833
        %v2835 = vrot.slane %v2834, 1
        %v2836 = vadd.f32 %v2834, %v2835
        %v2837 = vrot.slane %v2605, 4
        %v2838 = vadd.f32 %v2605, %v2837
        %v2839 = vrot.slane %v2838, 2
        %v2840 = vadd.f32 %v2838, %v2839
        %v2841 = vrot.slane %v2840, 1
        %v2842 = vadd.f32 %v2840, %v2841
        %v2843 = vrot.slane %v2608, 4
        %v2844 = vadd.f32 %v2608, %v2843
        %v2845 = vrot.slane %v2844, 2
        %v2846 = vadd.f32 %v2844, %v2845
        %v2847 = vrot.slane %v2846, 1
        %v2848 = vadd.f32 %v2846, %v2847
        %v2849 = vrot.slane %v2611, 4
        %v2850 = vadd.f32 %v2611, %v2849
        %v2851 = vrot.slane %v2850, 2
        %v2852 = vadd.f32 %v2850, %v2851
        %v2853 = vrot.slane %v2852, 1
        %v2854 = vadd.f32 %v2852, %v2853
        %v2855 = vrot.slane %v2614, 4
        %v2856 = vadd.f32 %v2614, %v2855
        %v2857 = vrot.slane %v2856, 2
        %v2858 = vadd.f32 %v2856, %v2857
        %v2859 = vrot.slane %v2858, 1
        %v2860 = vadd.f32 %v2858, %v2859
        %v2861 = vrot.slane %v2617, 4
        %v2862 = vadd.f32 %v2617, %v2861
        %v2863 = vrot.slane %v2862, 2
        %v2864 = vadd.f32 %v2862, %v2863
        %v2865 = vrot.slane %v2864, 1
        %v2866 = vadd.f32 %v2864, %v2865
        %v2867 = vrot.slane %v2620, 4
        %v2868 = vadd.f32 %v2620, %v2867
        %v2869 = vrot.slane %v2868, 2
        %v2870 = vadd.f32 %v2868, %v2869
        %v2871 = vrot.slane %v2870, 1
        %v2872 = vadd.f32 %v2870, %v2871
        %v2873 = vrot.slane %v2623, 4
        %v2874 = vadd.f32 %v2623, %v2873
        %v2875 = vrot.slane %v2874, 2
        %v2876 = vadd.f32 %v2874, %v2875
        %v2877 = vrot.slane %v2876, 1
        %v2878 = vadd.f32 %v2876, %v2877
        %v2879 = vrot.slane %v2626, 4
        %v2880 = vadd.f32 %v2626, %v2879
        %v2881 = vrot.slane %v2880, 2
        %v2882 = vadd.f32 %v2880, %v2881
        %v2883 = vrot.slane %v2882, 1
        %v2884 = vadd.f32 %v2882, %v2883
        %v2885 = vrot.slane %v2629, 4
        %v2886 = vadd.f32 %v2629, %v2885
        %v2887 = vrot.slane %v2886, 2
        %v2888 = vadd.f32 %v2886, %v2887
        %v2889 = vrot.slane %v2888, 1
        %v2890 = vadd.f32 %v2888, %v2889
        %v2891 = vrot.slane %v2632, 4
        %v2892 = vadd.f32 %v2632, %v2891
        %v2893 = vrot.slane %v2892, 2
        %v2894 = vadd.f32 %v2892, %v2893
        %v2895 = vrot.slane %v2894, 1
        %v2896 = vadd.f32 %v2894, %v2895
        %v2897 = vrot.slane %v2635, 4
        %v2898 = vadd.f32 %v2635, %v2897
        %v2899 = vrot.slane %v2898, 2
        %v2900 = vadd.f32 %v2898, %v2899
        %v2901 = vrot.slane %v2900, 1
        %v2902 = vadd.f32 %v2900, %v2901
        %v2903 = vrot.slane %v2638, 4
        %v2904 = vadd.f32 %v2638, %v2903
        %v2905 = vrot.slane %v2904, 2
        %v2906 = vadd.f32 %v2904, %v2905
        %v2907 = vrot.slane %v2906, 1
        %v2908 = vadd.f32 %v2906, %v2907
        %v2909 = vrot.slane %v2641, 4
        %v2910 = vadd.f32 %v2641, %v2909
        %v2911 = vrot.slane %v2910, 2
        %v2912 = vadd.f32 %v2910, %v2911
        %v2913 = vrot.slane %v2912, 1
        %v2914 = vadd.f32 %v2912, %v2913
        %v2915 = vrot.slane %v2644, 4
        %v2916 = vadd.f32 %v2644, %v2915
        %v2917 = vrot.slane %v2916, 2
        %v2918 = vadd.f32 %v2916, %v2917
        %v2919 = vrot.slane %v2918, 1
        %v2920 = vadd.f32 %v2918, %v2919
        %v2921 = vrot.slane %v2647, 4
        %v2922 = vadd.f32 %v2647, %v2921
        %v2923 = vrot.slane %v2922, 2
        %v2924 = vadd.f32 %v2922, %v2923
        %v2925 = vrot.slane %v2924, 1
        %v2926 = vadd.f32 %v2924, %v2925
        %v2927 = vrot.slane %v2650, 4
        %v2928 = vadd.f32 %v2650, %v2927
        %v2929 = vrot.slane %v2928, 2
        %v2930 = vadd.f32 %v2928, %v2929
        %v2931 = vrot.slane %v2930, 1
        %v2932 = vadd.f32 %v2930, %v2931
        %v2933 = vrot.slane %v2653, 4
        %v2934 = vadd.f32 %v2653, %v2933
        %v2935 = vrot.slane %v2934, 2
        %v2936 = vadd.f32 %v2934, %v2935
        %v2937 = vrot.slane %v2936, 1
        %v2938 = vadd.f32 %v2936, %v2937
        %v2939 = vrot.slane %v2656, 4
        %v2940 = vadd.f32 %v2656, %v2939
        %v2941 = vrot.slane %v2940, 2
        %v2942 = vadd.f32 %v2940, %v2941
        %v2943 = vrot.slane %v2942, 1
        %v2944 = vadd.f32 %v2942, %v2943
        %v2945 = vrot.slane %v2659, 4
        %v2946 = vadd.f32 %v2659, %v2945
        %v2947 = vrot.slane %v2946, 2
        %v2948 = vadd.f32 %v2946, %v2947
        %v2949 = vrot.slane %v2948, 1
        %v2950 = vadd.f32 %v2948, %v2949
        %v2951 = vrot.slane %v2662, 4
        %v2952 = vadd.f32 %v2662, %v2951
        %v2953 = vrot.slane %v2952, 2
        %v2954 = vadd.f32 %v2952, %v2953
        %v2955 = vrot.slane %v2954, 1
        %v2956 = vadd.f32 %v2954, %v2955
        %v2957 = vrot.slane %v2665, 4
        %v2958 = vadd.f32 %v2665, %v2957
        %v2959 = vrot.slane %v2958, 2
        %v2960 = vadd.f32 %v2958, %v2959
        %v2961 = vrot.slane %v2960, 1
        %v2962 = vadd.f32 %v2960, %v2961
        %v2963 = vrot.slane %v2668, 4
        %v2964 = vadd.f32 %v2668, %v2963
        %v2965 = vrot.slane %v2964, 2
        %v2966 = vadd.f32 %v2964, %v2965
        %v2967 = vrot.slane %v2966, 1
        %v2968 = vadd.f32 %v2966, %v2967
        %v2969 = vrot.slane %v2671, 4
        %v2970 = vadd.f32 %v2671, %v2969
        %v2971 = vrot.slane %v2970, 2
        %v2972 = vadd.f32 %v2970, %v2971
        %v2973 = vrot.slane %v2972, 1
        %v2974 = vadd.f32 %v2972, %v2973
        %v2975 = vrot.slane %v2674, 4
        %v2976 = vadd.f32 %v2674, %v2975
        %v2977 = vrot.slane %v2976, 2
        %v2978 = vadd.f32 %v2976, %v2977
        %v2979 = vrot.slane %v2978, 1
        %v2980 = vadd.f32 %v2978, %v2979
        %v2981 = vrot.slane %v2677, 4
        %v2982 = vadd.f32 %v2677, %v2981
        %v2983 = vrot.slane %v2982, 2
        %v2984 = vadd.f32 %v2982, %v2983
        %v2985 = vrot.slane %v2984, 1
        %v2986 = vadd.f32 %v2984, %v2985
        %v2987 = vrot.slane %v2680, 4
        %v2988 = vadd.f32 %v2680, %v2987
        %v2989 = vrot.slane %v2988, 2
        %v2990 = vadd.f32 %v2988, %v2989
        %v2991 = vrot.slane %v2990, 1
        %v2992 = vadd.f32 %v2990, %v2991
        %v2993 = vrot.slane %v2683, 4
        %v2994 = vadd.f32 %v2683, %v2993
        %v2995 = vrot.slane %v2994, 2
        %v2996 = vadd.f32 %v2994, %v2995
        %v2997 = vrot.slane %v2996, 1
        %v2998 = vadd.f32 %v2996, %v2997
        %v2999 = vrot.slane %v2686, 4
        %v3000 = vadd.f32 %v2686, %v2999
        %v3001 = vrot.slane %v3000, 2
        %v3002 = vadd.f32 %v3000, %v3001
        %v3003 = vrot.slane %v3002, 1
        %v3004 = vadd.f32 %v3002, %v3003
        %v3005 = vrot.slane %v2689, 4
        %v3006 = vadd.f32 %v2689, %v3005
        %v3007 = vrot.slane %v3006, 2
        %v3008 = vadd.f32 %v3006, %v3007
        %v3009 = vrot.slane %v3008, 1
        %v3010 = vadd.f32 %v3008, %v3009
        %v3011 = vrot.slane %v2692, 4
        %v3012 = vadd.f32 %v2692, %v3011
        %v3013 = vrot.slane %v3012, 2
        %v3014 = vadd.f32 %v3012, %v3013
        %v3015 = vrot.slane %v3014, 1
        %v3016 = vadd.f32 %v3014, %v3015
        %v3017 = vrot.slane %v2695, 4
        %v3018 = vadd.f32 %v2695, %v3017
        %v3019 = vrot.slane %v3018, 2
        %v3020 = vadd.f32 %v3018, %v3019
        %v3021 = vrot.slane %v3020, 1
        %v3022 = vadd.f32 %v3020, %v3021
        %v3023 = vrot.slane %v2698, 4
        %v3024 = vadd.f32 %v2698, %v3023
        %v3025 = vrot.slane %v3024, 2
        %v3026 = vadd.f32 %v3024, %v3025
        %v3027 = vrot.slane %v3026, 1
        %v3028 = vadd.f32 %v3026, %v3027
        %v3029 = vrot.slane %v2701, 4
        %v3030 = vadd.f32 %v2701, %v3029
        %v3031 = vrot.slane %v3030, 2
        %v3032 = vadd.f32 %v3030, %v3031
        %v3033 = vrot.slane %v3032, 1
        %v3034 = vadd.f32 %v3032, %v3033
        %v3035 = vrot.slane %v2704, 4
        %v3036 = vadd.f32 %v2704, %v3035
        %v3037 = vrot.slane %v3036, 2
        %v3038 = vadd.f32 %v3036, %v3037
        %v3039 = vrot.slane %v3038, 1
        %v3040 = vadd.f32 %v3038, %v3039
        %v3041 = vrot.slane %v2707, 4
        %v3042 = vadd.f32 %v2707, %v3041
        %v3043 = vrot.slane %v3042, 2
        %v3044 = vadd.f32 %v3042, %v3043
        %v3045 = vrot.slane %v3044, 1
        %v3046 = vadd.f32 %v3044, %v3045
        %v3047 = vrot.slane %v2710, 4
        %v3048 = vadd.f32 %v2710, %v3047
        %v3049 = vrot.slane %v3048, 2
        %v3050 = vadd.f32 %v3048, %v3049
        %v3051 = vrot.slane %v3050, 1
        %v3052 = vadd.f32 %v3050, %v3051
        %v3053 = vrot.slane %v2713, 4
        %v3054 = vadd.f32 %v2713, %v3053
        %v3055 = vrot.slane %v3054, 2
        %v3056 = vadd.f32 %v3054, %v3055
        %v3057 = vrot.slane %v3056, 1
        %v3058 = vadd.f32 %v3056, %v3057
        %v3059 = vrot.slane %v2716, 4
        %v3060 = vadd.f32 %v2716, %v3059
        %v3061 = vrot.slane %v3060, 2
        %v3062 = vadd.f32 %v3060, %v3061
        %v3063 = vrot.slane %v3062, 1
        %v3064 = vadd.f32 %v3062, %v3063
        %v3065 = vrot.slane %v2719, 4
        %v3066 = vadd.f32 %v2719, %v3065
        %v3067 = vrot.slane %v3066, 2
        %v3068 = vadd.f32 %v3066, %v3067
        %v3069 = vrot.slane %v3068, 1
        %v3070 = vadd.f32 %v3068, %v3069
        %v3071 = vrot.slane %v2722, 4
        %v3072 = vadd.f32 %v2722, %v3071
        %v3073 = vrot.slane %v3072, 2
        %v3074 = vadd.f32 %v3072, %v3073
        %v3075 = vrot.slane %v3074, 1
        %v3076 = vadd.f32 %v3074, %v3075
        %v3077 = vrot.slane %v2725, 4
        %v3078 = vadd.f32 %v2725, %v3077
        %v3079 = vrot.slane %v3078, 2
        %v3080 = vadd.f32 %v3078, %v3079
        %v3081 = vrot.slane %v3080, 1
        %v3082 = vadd.f32 %v3080, %v3081
        %v3083 = vrot.slane %v2728, 4
        %v3084 = vadd.f32 %v2728, %v3083
        %v3085 = vrot.slane %v3084, 2
        %v3086 = vadd.f32 %v3084, %v3085
        %v3087 = vrot.slane %v3086, 1
        %v3088 = vadd.f32 %v3086, %v3087
        %v3089 = vrot.slane %v2731, 4
        %v3090 = vadd.f32 %v2731, %v3089
        %v3091 = vrot.slane %v3090, 2
        %v3092 = vadd.f32 %v3090, %v3091
        %v3093 = vrot.slane %v3092, 1
        %v3094 = vadd.f32 %v3092, %v3093
        %v3095 = vrot.slane %v2734, 4
        %v3096 = vadd.f32 %v2734, %v3095
        %v3097 = vrot.slane %v3096, 2
        %v3098 = vadd.f32 %v3096, %v3097
        %v3099 = vrot.slane %v3098, 1
        %v3100 = vadd.f32 %v3098, %v3099
        %v3101 = vrot.slane %v2737, 4
        %v3102 = vadd.f32 %v2737, %v3101
        %v3103 = vrot.slane %v3102, 2
        %v3104 = vadd.f32 %v3102, %v3103
        %v3105 = vrot.slane %v3104, 1
        %v3106 = vadd.f32 %v3104, %v3105
        %v3107 = vrot.slane %v2740, 4
        %v3108 = vadd.f32 %v2740, %v3107
        %v3109 = vrot.slane %v3108, 2
        %v3110 = vadd.f32 %v3108, %v3109
        %v3111 = vrot.slane %v3110, 1
        %v3112 = vadd.f32 %v3110, %v3111
        %v3113 = vrot.slane %v2743, 4
        %v3114 = vadd.f32 %v2743, %v3113
        %v3115 = vrot.slane %v3114, 2
        %v3116 = vadd.f32 %v3114, %v3115
        %v3117 = vrot.slane %v3116, 1
        %v3118 = vadd.f32 %v3116, %v3117
        %v3119 = vrot.slane %v2746, 4
        %v3120 = vadd.f32 %v2746, %v3119
        %v3121 = vrot.slane %v3120, 2
        %v3122 = vadd.f32 %v3120, %v3121
        %v3123 = vrot.slane %v3122, 1
        %v3124 = vadd.f32 %v3122, %v3123
        %v3125 = vrot.slane %v2749, 4
        %v3126 = vadd.f32 %v2749, %v3125
        %v3127 = vrot.slane %v3126, 2
        %v3128 = vadd.f32 %v3126, %v3127
        %v3129 = vrot.slane %v3128, 1
        %v3130 = vadd.f32 %v3128, %v3129
        %v3131 = vrot.slane %v2752, 4
        %v3132 = vadd.f32 %v2752, %v3131
        %v3133 = vrot.slane %v3132, 2
        %v3134 = vadd.f32 %v3132, %v3133
        %v3135 = vrot.slane %v3134, 1
        %v3136 = vadd.f32 %v3134, %v3135
        %v3137 = vmul.f32 %v2758, 0.03125
        %v3138 = vmul.f32 %v2764, 0.03125
        %v3139 = vmul.f32 %v2770, 0.03125
        %v3140 = vmul.f32 %v2776, 0.03125
        %v3141 = vmul.f32 %v2782, 0.03125
        %v3142 = vmul.f32 %v2788, 0.03125
        %v3143 = vmul.f32 %v2794, 0.03125
        %v3144 = vmul.f32 %v2800, 0.03125
        %v3145 = vmul.f32 %v2806, 0.03125
        %v3146 = vmul.f32 %v2812, 0.03125
        %v3147 = vmul.f32 %v2818, 0.03125
        %v3148 = vmul.f32 %v2824, 0.03125
        %v3149 = vmul.f32 %v2830, 0.03125
        %v3150 = vmul.f32 %v2836, 0.03125
        %v3151 = vmul.f32 %v2842, 0.03125
        %v3152 = vmul.f32 %v2848, 0.03125
        %v3153 = vmul.f32 %v2854, 0.03125
        %v3154 = vmul.f32 %v2860, 0.03125
        %v3155 = vmul.f32 %v2866, 0.03125
        %v3156 = vmul.f32 %v2872, 0.03125
        %v3157 = vmul.f32 %v2878, 0.03125
        %v3158 = vmul.f32 %v2884, 0.03125
        %v3159 = vmul.f32 %v2890, 0.03125
        %v3160 = vmul.f32 %v2896, 0.03125
        %v3161 = vmul.f32 %v2902, 0.03125
        %v3162 = vmul.f32 %v2908, 0.03125
        %v3163 = vmul.f32 %v2914, 0.03125
        %v3164 = vmul.f32 %v2920, 0.03125
        %v3165 = vmul.f32 %v2926, 0.03125
        %v3166 = vmul.f32 %v2932, 0.03125
        %v3167 = vmul.f32 %v2938, 0.03125
        %v3168 = vmul.f32 %v2944, 0.03125
        %v3169 = vmul.f32 %v2950, 0.03125
        %v3170 = vmul.f32 %v2956, 0.03125
        %v3171 = vmul.f32 %v2962, 0.03125
        %v3172 = vmul.f32 %v2968, 0.03125
        %v3173 = vmul.f32 %v2974, 0.03125
        %v3174 = vmul.f32 %v2980, 0.03125
        %v3175 = vmul.f32 %v2986, 0.03125
        %v3176 = vmul.f32 %v2992, 0.03125
        %v3177 = vmul.f32 %v2998, 0.03125
        %v3178 = vmul.f32 %v3004, 0.03125
        %v3179 = vmul.f32 %v3010, 0.03125
        %v3180 = vmul.f32 %v3016, 0.03125
        %v3181 = vmul.f32 %v3022, 0.03125
        %v3182 = vmul.f32 %v3028, 0.03125
        %v3183 = vmul.f32 %v3034, 0.03125
        %v3184 = vmul.f32 %v3040, 0.03125
        %v3185 = vmul.f32 %v3046, 0.03125
        %v3186 = vmul.f32 %v3052, 0.03125
        %v3187 = vmul.f32 %v3058, 0.03125
        %v3188 = vmul.f32 %v3064, 0.03125
        %v3189 = vmul.f32 %v3070, 0.03125
        %v3190 = vmul.f32 %v3076, 0.03125
        %v3191 = vmul.f32 %v3082, 0.03125
        %v3192 = vmul.f32 %v3088, 0.03125
        %v3193 = vmul.f32 %v3094, 0.03125
        %v3194 = vmul.f32 %v3100, 0.03125
        %v3195 = vmul.f32 %v3106, 0.03125
        %v3196 = vmul.f32 %v3112, 0.03125
        %v3197 = vmul.f32 %v3118, 0.03125
        %v3198 = vmul.f32 %v3124, 0.03125
        %v3199 = vmul.f32 %v3130, 0.03125
        %v3200 = vmul.f32 %v3136, 0.03125
        %vm3265 = vcmask 1041409
        %v3266 = vsel %vm3265, %v3145, %v3137
        %vm3267 = vcmask 1042434
        %v3268 = vsel %vm3267, %v3153, %v3266
        %vm3269 = vcmask 1043459
        %v3270 = vsel %vm3269, %v3161, %v3268
        %vm3271 = vcmask 1044484
        %v3272 = vsel %vm3271, %v3169, %v3270
        %vm3273 = vcmask 1045509
        %v3274 = vsel %vm3273, %v3177, %v3272
        %vm3275 = vcmask 1046534
        %v3276 = vsel %vm3275, %v3185, %v3274
        %vm3277 = vcmask 1047559
        %v3278 = vsel %vm3277, %v3193, %v3276
        %v3279 = vsel %vm3265, %v3146, %v3138
        %v3280 = vsel %vm3267, %v3154, %v3279
        %v3281 = vsel %vm3269, %v3162, %v3280
        %v3282 = vsel %vm3271, %v3170, %v3281
        %v3283 = vsel %vm3273, %v3178, %v3282
        %v3284 = vsel %vm3275, %v3186, %v3283
        %v3285 = vsel %vm3277, %v3194, %v3284
        %v3286 = vsel %vm3265, %v3147, %v3139
        %v3287 = vsel %vm3267, %v3155, %v3286
        %v3288 = vsel %vm3269, %v3163, %v3287
        %v3289 = vsel %vm3271, %v3171, %v3288
        %v3290 = vsel %vm3273, %v3179, %v3289
        %v3291 = vsel %vm3275, %v3187, %v3290
        %v3292 = vsel %vm3277, %v3195, %v3291
        %v3293 = vsel %vm3265, %v3148, %v3140
        %v3294 = vsel %vm3267, %v3156, %v3293
        %v3295 = vsel %vm3269, %v3164, %v3294
        %v3296 = vsel %vm3271, %v3172, %v3295
        %v3297 = vsel %vm3273, %v3180, %v3296
        %v3298 = vsel %vm3275, %v3188, %v3297
        %v3299 = vsel %vm3277, %v3196, %v3298
        %v3300 = vsel %vm3265, %v3149, %v3141
        %v3301 = vsel %vm3267, %v3157, %v3300
        %v3302 = vsel %vm3269, %v3165, %v3301
        %v3303 = vsel %vm3271, %v3173, %v3302
        %v3304 = vsel %vm3273, %v3181, %v3303
        %v3305 = vsel %vm3275, %v3189, %v3304
        %v3306 = vsel %vm3277, %v3197, %v3305
        %v3307 = vsel %vm3265, %v3150, %v3142
        %v3308 = vsel %vm3267, %v3158, %v3307
        %v3309 = vsel %vm3269, %v3166, %v3308
        %v3310 = vsel %vm3271, %v3174, %v3309
        %v3311 = vsel %vm3273, %v3182, %v3310
        %v3312 = vsel %vm3275, %v3190, %v3311
        %v3313 = vsel %vm3277, %v3198, %v3312
        %v3314 = vsel %vm3265, %v3151, %v3143
        %v3315 = vsel %vm3267, %v3159, %v3314
        %v3316 = vsel %vm3269, %v3167, %v3315
        %v3317 = vsel %vm3271, %v3175, %v3316
        %v3318 = vsel %vm3273, %v3183, %v3317
        %v3319 = vsel %vm3275, %v3191, %v3318
        %v3320 = vsel %vm3277, %v3199, %v3319
        %v3321 = vsel %vm3265, %v3152, %v3144
        %v3322 = vsel %vm3267, %v3160, %v3321
        %v3323 = vsel %vm3269, %v3168, %v3322
        %v3324 = vsel %vm3271, %v3176, %v3323
        %v3325 = vsel %vm3273, %v3184, %v3324
        %v3326 = vsel %vm3275, %v3192, %v3325
        %v3327 = vsel %vm3277, %v3200, %v3326
        %3336 = vst [vmem:[%s599] sm:$0xff] %v3278
        %3337 = vst [vmem:[%s599 + $0x8] sm:$0xff] %v3285
        %3338 = vst [vmem:[%s599 + $0x10] sm:$0xff] %v3292
        %3339 = vst [vmem:[%s599 + $0x18] sm:$0xff] %v3299
        %3340 = vst [vmem:[%s599 + $0x20] sm:$0xff] %v3306
        %3341 = vst [vmem:[%s599 + $0x28] sm:$0xff] %v3313
        %3342 = vst [vmem:[%s599 + $0x30] sm:$0xff] %v3320
        %3343 = vst [vmem:[%s599 + $0x38] sm:$0xff] %v3327
        %v3344 = vld [vmem:[#allocation2] sm:$0xff]
        %v3346 = vlaneseq
        %v3347 = vshrl.u32 %v3346, 7
        %v3348 = vsub.s32 0, %v3347
        %v3349 = vrot.slane %v3344, %v3348
        %v3350 = vlaneseq
        %v3351 = vshrl.u32 %v3350, 7
        %v3352 = vsub.s32 1, %v3351
        %v3353 = vrot.slane %v3344, %v3352
        %v3354 = vlaneseq
        %v3355 = vshrl.u32 %v3354, 7
        %v3356 = vsub.s32 2, %v3355
        %v3357 = vrot.slane %v3344, %v3356
        %v3358 = vlaneseq
        %v3359 = vshrl.u32 %v3358, 7
        %v3360 = vsub.s32 3, %v3359
        %v3361 = vrot.slane %v3344, %v3360
        %v3362 = vlaneseq
        %v3363 = vshrl.u32 %v3362, 7
        %v3364 = vsub.s32 4, %v3363
        %v3365 = vrot.slane %v3344, %v3364
        %v3366 = vlaneseq
        %v3367 = vshrl.u32 %v3366, 7
        %v3368 = vsub.s32 5, %v3367
        %v3369 = vrot.slane %v3344, %v3368
        %v3370 = vlaneseq
        %v3371 = vshrl.u32 %v3370, 7
        %v3372 = vsub.s32 6, %v3371
        %v3373 = vrot.slane %v3344, %v3372
        %v3374 = vlaneseq
        %v3375 = vshrl.u32 %v3374, 7
        %v3376 = vsub.s32 7, %v3375
        %v3377 = vrot.slane %v3344, %v3376
        %v3386 = vmul.f32 %v3137, %v3349
        %v3387 = vmul.f32 %v3138, %v3353
        %v3388 = vmul.f32 %v3139, %v3357
        %v3389 = vmul.f32 %v3140, %v3361
        %v3390 = vmul.f32 %v3141, %v3365
        %v3391 = vmul.f32 %v3142, %v3369
        %v3392 = vmul.f32 %v3143, %v3373
        %v3393 = vmul.f32 %v3144, %v3377
        %v3394 = vmul.f32 %v3145, %v3349
        %v3395 = vmul.f32 %v3146, %v3353
        %v3396 = vmul.f32 %v3147, %v3357
        %v3397 = vmul.f32 %v3148, %v3361
        %v3398 = vmul.f32 %v3149, %v3365
        %v3399 = vmul.f32 %v3150, %v3369
        %v3400 = vmul.f32 %v3151, %v3373
        %v3401 = vmul.f32 %v3152, %v3377
        %v3402 = vmul.f32 %v3153, %v3349
        %v3403 = vmul.f32 %v3154, %v3353
        %v3404 = vmul.f32 %v3155, %v3357
        %v3405 = vmul.f32 %v3156, %v3361
        %v3406 = vmul.f32 %v3157, %v3365
        %v3407 = vmul.f32 %v3158, %v3369
        %v3408 = vmul.f32 %v3159, %v3373
        %v3409 = vmul.f32 %v3160, %v3377
        %v3410 = vmul.f32 %v3161, %v3349
        %v3411 = vmul.f32 %v3162, %v3353
        %v3412 = vmul.f32 %v3163, %v3357
        %v3413 = vmul.f32 %v3164, %v3361
        %v3414 = vmul.f32 %v3165, %v3365
        %v3415 = vmul.f32 %v3166, %v3369
        %v3416 = vmul.f32 %v3167, %v3373
        %v3417 = vmul.f32 %v3168, %v3377
        %v3418 = vmul.f32 %v3169, %v3349
        %v3419 = vmul.f32 %v3170, %v3353
        %v3420 = vmul.f32 %v3171, %v3357
        %v3421 = vmul.f32 %v3172, %v3361
        %v3422 = vmul.f32 %v3173, %v3365
        %v3423 = vmul.f32 %v3174, %v3369
        %v3424 = vmul.f32 %v3175, %v3373
        %v3425 = vmul.f32 %v3176, %v3377
        %v3426 = vmul.f32 %v3177, %v3349
        %v3427 = vmul.f32 %v3178, %v3353
        %v3428 = vmul.f32 %v3179, %v3357
        %v3429 = vmul.f32 %v3180, %v3361
        %v3430 = vmul.f32 %v3181, %v3365
        %v3431 = vmul.f32 %v3182, %v3369
        %v3432 = vmul.f32 %v3183, %v3373
        %v3433 = vmul.f32 %v3184, %v3377
        %v3434 = vmul.f32 %v3185, %v3349
        %v3435 = vmul.f32 %v3186, %v3353
        %v3436 = vmul.f32 %v3187, %v3357
        %v3437 = vmul.f32 %v3188, %v3361
        %v3438 = vmul.f32 %v3189, %v3365
        %v3439 = vmul.f32 %v3190, %v3369
        %v3440 = vmul.f32 %v3191, %v3373
        %v3441 = vmul.f32 %v3192, %v3377
        %v3442 = vmul.f32 %v3193, %v3349
        %v3443 = vmul.f32 %v3194, %v3353
        %v3444 = vmul.f32 %v3195, %v3357
        %v3445 = vmul.f32 %v3196, %v3361
        %v3446 = vmul.f32 %v3197, %v3365
        %v3447 = vmul.f32 %v3198, %v3369
        %v3448 = vmul.f32 %v3199, %v3373
        %v3449 = vmul.f32 %v3200, %v3377
        %v3450 = vld [vmem:[#allocation5] sm:$0xff]
        %v3452 = vlaneseq
        %v3453 = vshrl.u32 %v3452, 7
        %v3454 = vsub.s32 0, %v3453
        %v3455 = vrot.slane %v3450, %v3454
        %v3456 = vlaneseq
        %v3457 = vshrl.u32 %v3456, 7
        %v3458 = vsub.s32 1, %v3457
        %v3459 = vrot.slane %v3450, %v3458
        %v3460 = vlaneseq
        %v3461 = vshrl.u32 %v3460, 7
        %v3462 = vsub.s32 2, %v3461
        %v3463 = vrot.slane %v3450, %v3462
        %v3464 = vlaneseq
        %v3465 = vshrl.u32 %v3464, 7
        %v3466 = vsub.s32 3, %v3465
        %v3467 = vrot.slane %v3450, %v3466
        %v3468 = vlaneseq
        %v3469 = vshrl.u32 %v3468, 7
        %v3470 = vsub.s32 4, %v3469
        %v3471 = vrot.slane %v3450, %v3470
        %v3472 = vlaneseq
        %v3473 = vshrl.u32 %v3472, 7
        %v3474 = vsub.s32 5, %v3473
        %v3475 = vrot.slane %v3450, %v3474
        %v3476 = vlaneseq
        %v3477 = vshrl.u32 %v3476, 7
        %v3478 = vsub.s32 6, %v3477
        %v3479 = vrot.slane %v3450, %v3478
        %v3480 = vlaneseq
        %v3481 = vshrl.u32 %v3480, 7
        %v3482 = vsub.s32 7, %v3481
        %v3483 = vrot.slane %v3450, %v3482
        %v3492 = vadd.f32 %v3386, %v3455
        %v3493 = vadd.f32 %v3387, %v3459
        %v3494 = vadd.f32 %v3388, %v3463
        %v3495 = vadd.f32 %v3389, %v3467
        %v3496 = vadd.f32 %v3390, %v3471
        %v3497 = vadd.f32 %v3391, %v3475
        %v3498 = vadd.f32 %v3392, %v3479
        %v3499 = vadd.f32 %v3393, %v3483
        %v3500 = vadd.f32 %v3394, %v3455
        %v3501 = vadd.f32 %v3395, %v3459
        %v3502 = vadd.f32 %v3396, %v3463
        %v3503 = vadd.f32 %v3397, %v3467
        %v3504 = vadd.f32 %v3398, %v3471
        %v3505 = vadd.f32 %v3399, %v3475
        %v3506 = vadd.f32 %v3400, %v3479
        %v3507 = vadd.f32 %v3401, %v3483
        %v3508 = vadd.f32 %v3402, %v3455
        %v3509 = vadd.f32 %v3403, %v3459
        %v3510 = vadd.f32 %v3404, %v3463
        %v3511 = vadd.f32 %v3405, %v3467
        %v3512 = vadd.f32 %v3406, %v3471
        %v3513 = vadd.f32 %v3407, %v3475
        %v3514 = vadd.f32 %v3408, %v3479
        %v3515 = vadd.f32 %v3409, %v3483
        %v3516 = vadd.f32 %v3410, %v3455
        %v3517 = vadd.f32 %v3411, %v3459
        %v3518 = vadd.f32 %v3412, %v3463
        %v3519 = vadd.f32 %v3413, %v3467
        %v3520 = vadd.f32 %v3414, %v3471
        %v3521 = vadd.f32 %v3415, %v3475
        %v3522 = vadd.f32 %v3416, %v3479
        %v3523 = vadd.f32 %v3417, %v3483
        %v3524 = vadd.f32 %v3418, %v3455
        %v3525 = vadd.f32 %v3419, %v3459
        %v3526 = vadd.f32 %v3420, %v3463
        %v3527 = vadd.f32 %v3421, %v3467
        %v3528 = vadd.f32 %v3422, %v3471
        %v3529 = vadd.f32 %v3423, %v3475
        %v3530 = vadd.f32 %v3424, %v3479
        %v3531 = vadd.f32 %v3425, %v3483
        %v3532 = vadd.f32 %v3426, %v3455
        %v3533 = vadd.f32 %v3427, %v3459
        %v3534 = vadd.f32 %v3428, %v3463
        %v3535 = vadd.f32 %v3429, %v3467
        %v3536 = vadd.f32 %v3430, %v3471
        %v3537 = vadd.f32 %v3431, %v3475
        %v3538 = vadd.f32 %v3432, %v3479
        %v3539 = vadd.f32 %v3433, %v3483
        %v3540 = vadd.f32 %v3434, %v3455
        %v3541 = vadd.f32 %v3435, %v3459
        %v3542 = vadd.f32 %v3436, %v3463
        %v3543 = vadd.f32 %v3437, %v3467
        %v3544 = vadd.f32 %v3438, %v3471
        %v3545 = vadd.f32 %v3439, %v3475
        %v3546 = vadd.f32 %v3440, %v3479
        %v3547 = vadd.f32 %v3441, %v3483
        %v3548 = vadd.f32 %v3442, %v3455
        %v3549 = vadd.f32 %v3443, %v3459
        %v3550 = vadd.f32 %v3444, %v3463
        %v3551 = vadd.f32 %v3445, %v3467
        %v3552 = vadd.f32 %v3446, %v3471
        %v3553 = vadd.f32 %v3447, %v3475
        %v3554 = vadd.f32 %v3448, %v3479
        %v3555 = vadd.f32 %v3449, %v3483
        %v3556 = vpack.c.bf16 %v3492, %v3492
        %v3557 = vpack.c.bf16 %v3493, %v3493
        %v3558 = vpack.c.bf16 %v3494, %v3494
        %v3559 = vpack.c.bf16 %v3495, %v3495
        %v3560 = vpack.c.bf16 %v3496, %v3496
        %v3561 = vpack.c.bf16 %v3497, %v3497
        %v3562 = vpack.c.bf16 %v3498, %v3498
        %v3563 = vpack.c.bf16 %v3499, %v3499
        %v3564 = vpack.c.bf16 %v3500, %v3500
        %v3565 = vpack.c.bf16 %v3501, %v3501
        %v3566 = vpack.c.bf16 %v3502, %v3502
        %v3567 = vpack.c.bf16 %v3503, %v3503
        %v3568 = vpack.c.bf16 %v3504, %v3504
        %v3569 = vpack.c.bf16 %v3505, %v3505
        %v3570 = vpack.c.bf16 %v3506, %v3506
        %v3571 = vpack.c.bf16 %v3507, %v3507
        %v3572 = vpack.c.bf16 %v3508, %v3508
        %v3573 = vpack.c.bf16 %v3509, %v3509
        %v3574 = vpack.c.bf16 %v3510, %v3510
        %v3575 = vpack.c.bf16 %v3511, %v3511
        %v3576 = vpack.c.bf16 %v3512, %v3512
        %v3577 = vpack.c.bf16 %v3513, %v3513
        %v3578 = vpack.c.bf16 %v3514, %v3514
        %v3579 = vpack.c.bf16 %v3515, %v3515
        %v3580 = vpack.c.bf16 %v3516, %v3516
        %v3581 = vpack.c.bf16 %v3517, %v3517
        %v3582 = vpack.c.bf16 %v3518, %v3518
        %v3583 = vpack.c.bf16 %v3519, %v3519
        %v3584 = vpack.c.bf16 %v3520, %v3520
        %v3585 = vpack.c.bf16 %v3521, %v3521
        %v3586 = vpack.c.bf16 %v3522, %v3522
        %v3587 = vpack.c.bf16 %v3523, %v3523
        %v3588 = vpack.c.bf16 %v3524, %v3524
        %v3589 = vpack.c.bf16 %v3525, %v3525
        %v3590 = vpack.c.bf16 %v3526, %v3526
        %v3591 = vpack.c.bf16 %v3527, %v3527
        %v3592 = vpack.c.bf16 %v3528, %v3528
        %v3593 = vpack.c.bf16 %v3529, %v3529
        %v3594 = vpack.c.bf16 %v3530, %v3530
        %v3595 = vpack.c.bf16 %v3531, %v3531
        %v3596 = vpack.c.bf16 %v3532, %v3532
        %v3597 = vpack.c.bf16 %v3533, %v3533
        %v3598 = vpack.c.bf16 %v3534, %v3534
        %v3599 = vpack.c.bf16 %v3535, %v3535
        %v3600 = vpack.c.bf16 %v3536, %v3536
        %v3601 = vpack.c.bf16 %v3537, %v3537
        %v3602 = vpack.c.bf16 %v3538, %v3538
        %v3603 = vpack.c.bf16 %v3539, %v3539
        %v3604 = vpack.c.bf16 %v3540, %v3540
        %v3605 = vpack.c.bf16 %v3541, %v3541
        %v3606 = vpack.c.bf16 %v3542, %v3542
        %v3607 = vpack.c.bf16 %v3543, %v3543
        %v3608 = vpack.c.bf16 %v3544, %v3544
        %v3609 = vpack.c.bf16 %v3545, %v3545
        %v3610 = vpack.c.bf16 %v3546, %v3546
        %v3611 = vpack.c.bf16 %v3547, %v3547
        %v3612 = vpack.c.bf16 %v3548, %v3548
        %v3613 = vpack.c.bf16 %v3549, %v3549
        %v3614 = vpack.c.bf16 %v3550, %v3550
        %v3615 = vpack.c.bf16 %v3551, %v3551
        %v3616 = vpack.c.bf16 %v3552, %v3552
        %v3617 = vpack.c.bf16 %v3553, %v3553
        %v3618 = vpack.c.bf16 %v3554, %v3554
        %v3619 = vpack.c.bf16 %v3555, %v3555
        %v3620 = vld [vmem:[#allocation10] sm:$0xff]
        %v3621 = vld [vmem:[#allocation10 + $0x8] sm:$0xff]
        %v3622 = vld [vmem:[#allocation10 + $0x10] sm:$0xff]
        %v3623 = vld [vmem:[#allocation10 + $0x18] sm:$0xff]
        %v3624 = vld [vmem:[#allocation10 + $0x20] sm:$0xff]
        %v3625 = vld [vmem:[#allocation10 + $0x28] sm:$0xff]
        %v3626 = vld [vmem:[#allocation10 + $0x30] sm:$0xff]
        %v3627 = vld [vmem:[#allocation10 + $0x38] sm:$0xff]
        %v3628 = vld [vmem:[#allocation10 + $0x40] sm:$0xff]
        %v3629 = vld [vmem:[#allocation10 + $0x48] sm:$0xff]
        %v3630 = vld [vmem:[#allocation10 + $0x50] sm:$0xff]
        %v3631 = vld [vmem:[#allocation10 + $0x58] sm:$0xff]
        %v3632 = vld [vmem:[#allocation10 + $0x60] sm:$0xff]
        %v3633 = vld [vmem:[#allocation10 + $0x68] sm:$0xff]
        %v3634 = vld [vmem:[#allocation10 + $0x70] sm:$0xff]
        %v3635 = vld [vmem:[#allocation10 + $0x78] sm:$0xff]
        %v3636 = vld [vmem:[#allocation10 + $0x80] sm:$0xff]
        %v3637 = vld [vmem:[#allocation10 + $0x88] sm:$0xff]
        %v3638 = vld [vmem:[#allocation10 + $0x90] sm:$0xff]
        %v3639 = vld [vmem:[#allocation10 + $0x98] sm:$0xff]
        %v3640 = vld [vmem:[#allocation10 + $0xa0] sm:$0xff]
        %v3641 = vld [vmem:[#allocation10 + $0xa8] sm:$0xff]
        %v3642 = vld [vmem:[#allocation10 + $0xb0] sm:$0xff]
        %v3643 = vld [vmem:[#allocation10 + $0xb8] sm:$0xff]
        %v3644 = vld [vmem:[#allocation10 + $0xc0] sm:$0xff]
        %v3645 = vld [vmem:[#allocation10 + $0xc8] sm:$0xff]
        %v3646 = vld [vmem:[#allocation10 + $0xd0] sm:$0xff]
        %v3647 = vld [vmem:[#allocation10 + $0xd8] sm:$0xff]
        %v3648 = vld [vmem:[#allocation10 + $0xe0] sm:$0xff]
        %v3649 = vld [vmem:[#allocation10 + $0xe8] sm:$0xff]
        %v3650 = vld [vmem:[#allocation10 + $0xf0] sm:$0xff]
        %v3651 = vld [vmem:[#allocation10 + $0xf8] sm:$0xff]
        %v3652 = vld [vmem:[#allocation10 + $0x100] sm:$0xff]
        %v3653 = vld [vmem:[#allocation10 + $0x108] sm:$0xff]
        %v3654 = vld [vmem:[#allocation10 + $0x110] sm:$0xff]
        %v3655 = vld [vmem:[#allocation10 + $0x118] sm:$0xff]
        %v3656 = vld [vmem:[#allocation10 + $0x120] sm:$0xff]
        %v3657 = vld [vmem:[#allocation10 + $0x128] sm:$0xff]
        %v3658 = vld [vmem:[#allocation10 + $0x130] sm:$0xff]
        %v3659 = vld [vmem:[#allocation10 + $0x138] sm:$0xff]
        %v3660 = vld [vmem:[#allocation10 + $0x140] sm:$0xff]
        %v3661 = vld [vmem:[#allocation10 + $0x148] sm:$0xff]
        %v3662 = vld [vmem:[#allocation10 + $0x150] sm:$0xff]
        %v3663 = vld [vmem:[#allocation10 + $0x158] sm:$0xff]
        %v3664 = vld [vmem:[#allocation10 + $0x160] sm:$0xff]
        %v3665 = vld [vmem:[#allocation10 + $0x168] sm:$0xff]
        %v3666 = vld [vmem:[#allocation10 + $0x170] sm:$0xff]
        %v3667 = vld [vmem:[#allocation10 + $0x178] sm:$0xff]
        %v3668 = vld [vmem:[#allocation10 + $0x180] sm:$0xff]
        %v3669 = vld [vmem:[#allocation10 + $0x188] sm:$0xff]
        %v3670 = vld [vmem:[#allocation10 + $0x190] sm:$0xff]
        %v3671 = vld [vmem:[#allocation10 + $0x198] sm:$0xff]
        %v3672 = vld [vmem:[#allocation10 + $0x1a0] sm:$0xff]
        %v3673 = vld [vmem:[#allocation10 + $0x1a8] sm:$0xff]
        %v3674 = vld [vmem:[#allocation10 + $0x1b0] sm:$0xff]
        %v3675 = vld [vmem:[#allocation10 + $0x1b8] sm:$0xff]
        %v3676 = vld [vmem:[#allocation10 + $0x1c0] sm:$0xff]
        %v3677 = vld [vmem:[#allocation10 + $0x1c8] sm:$0xff]
        %v3678 = vld [vmem:[#allocation10 + $0x1d0] sm:$0xff]
        %v3679 = vld [vmem:[#allocation10 + $0x1d8] sm:$0xff]
        %v3680 = vld [vmem:[#allocation10 + $0x1e0] sm:$0xff]
        %v3681 = vld [vmem:[#allocation10 + $0x1e8] sm:$0xff]
        %v3682 = vld [vmem:[#allocation10 + $0x1f0] sm:$0xff]
        %v3683 = vld [vmem:[#allocation10 + $0x1f8] sm:$0xff]
        %v3684 = vld [vmem:[#allocation10 + $0x200] sm:$0xff]
        %v3685 = vld [vmem:[#allocation10 + $0x208] sm:$0xff]
        %v3686 = vld [vmem:[#allocation10 + $0x210] sm:$0xff]
        %v3687 = vld [vmem:[#allocation10 + $0x218] sm:$0xff]
        %v3688 = vld [vmem:[#allocation10 + $0x220] sm:$0xff]
        %v3689 = vld [vmem:[#allocation10 + $0x228] sm:$0xff]
        %v3690 = vld [vmem:[#allocation10 + $0x230] sm:$0xff]
        %v3691 = vld [vmem:[#allocation10 + $0x238] sm:$0xff]
        %v3692 = vld [vmem:[#allocation10 + $0x240] sm:$0xff]
        %v3693 = vld [vmem:[#allocation10 + $0x248] sm:$0xff]
        %v3694 = vld [vmem:[#allocation10 + $0x250] sm:$0xff]
        %v3695 = vld [vmem:[#allocation10 + $0x258] sm:$0xff]
        %v3696 = vld [vmem:[#allocation10 + $0x260] sm:$0xff]
        %v3697 = vld [vmem:[#allocation10 + $0x268] sm:$0xff]
        %v3698 = vld [vmem:[#allocation10 + $0x270] sm:$0xff]
        %v3699 = vld [vmem:[#allocation10 + $0x278] sm:$0xff]
        %v3700 = vld [vmem:[#allocation10 + $0x280] sm:$0xff]
        %v3701 = vld [vmem:[#allocation10 + $0x288] sm:$0xff]
        %v3702 = vld [vmem:[#allocation10 + $0x290] sm:$0xff]
        %v3703 = vld [vmem:[#allocation10 + $0x298] sm:$0xff]
        %v3704 = vld [vmem:[#allocation10 + $0x2a0] sm:$0xff]
        %v3705 = vld [vmem:[#allocation10 + $0x2a8] sm:$0xff]
        %v3706 = vld [vmem:[#allocation10 + $0x2b0] sm:$0xff]
        %v3707 = vld [vmem:[#allocation10 + $0x2b8] sm:$0xff]
        %v3708 = vld [vmem:[#allocation10 + $0x2c0] sm:$0xff]
        %v3709 = vld [vmem:[#allocation10 + $0x2c8] sm:$0xff]
        %v3710 = vld [vmem:[#allocation10 + $0x2d0] sm:$0xff]
        %v3711 = vld [vmem:[#allocation10 + $0x2d8] sm:$0xff]
        %v3712 = vld [vmem:[#allocation10 + $0x2e0] sm:$0xff]
        %v3713 = vld [vmem:[#allocation10 + $0x2e8] sm:$0xff]
        %v3714 = vld [vmem:[#allocation10 + $0x2f0] sm:$0xff]
        %v3715 = vld [vmem:[#allocation10 + $0x2f8] sm:$0xff]
        %v3716 = vld [vmem:[#allocation10 + $0x300] sm:$0xff]
        %v3717 = vld [vmem:[#allocation10 + $0x308] sm:$0xff]
        %v3718 = vld [vmem:[#allocation10 + $0x310] sm:$0xff]
        %v3719 = vld [vmem:[#allocation10 + $0x318] sm:$0xff]
        %v3720 = vld [vmem:[#allocation10 + $0x320] sm:$0xff]
        %v3721 = vld [vmem:[#allocation10 + $0x328] sm:$0xff]
        %v3722 = vld [vmem:[#allocation10 + $0x330] sm:$0xff]
        %v3723 = vld [vmem:[#allocation10 + $0x338] sm:$0xff]
        %v3724 = vld [vmem:[#allocation10 + $0x340] sm:$0xff]
        %v3725 = vld [vmem:[#allocation10 + $0x348] sm:$0xff]
        %v3726 = vld [vmem:[#allocation10 + $0x350] sm:$0xff]
        %v3727 = vld [vmem:[#allocation10 + $0x358] sm:$0xff]
        %v3728 = vld [vmem:[#allocation10 + $0x360] sm:$0xff]
        %v3729 = vld [vmem:[#allocation10 + $0x368] sm:$0xff]
        %v3730 = vld [vmem:[#allocation10 + $0x370] sm:$0xff]
        %v3731 = vld [vmem:[#allocation10 + $0x378] sm:$0xff]
        %v3732 = vld [vmem:[#allocation10 + $0x380] sm:$0xff]
        %v3733 = vld [vmem:[#allocation10 + $0x388] sm:$0xff]
        %v3734 = vld [vmem:[#allocation10 + $0x390] sm:$0xff]
        %v3735 = vld [vmem:[#allocation10 + $0x398] sm:$0xff]
        %v3736 = vld [vmem:[#allocation10 + $0x3a0] sm:$0xff]
        %v3737 = vld [vmem:[#allocation10 + $0x3a8] sm:$0xff]
        %v3738 = vld [vmem:[#allocation10 + $0x3b0] sm:$0xff]
        %v3739 = vld [vmem:[#allocation10 + $0x3b8] sm:$0xff]
        %v3740 = vld [vmem:[#allocation10 + $0x3c0] sm:$0xff]
        %v3741 = vld [vmem:[#allocation10 + $0x3c8] sm:$0xff]
        %v3742 = vld [vmem:[#allocation10 + $0x3d0] sm:$0xff]
        %v3743 = vld [vmem:[#allocation10 + $0x3d8] sm:$0xff]
        %v3744 = vld [vmem:[#allocation10 + $0x3e0] sm:$0xff]
        %v3745 = vld [vmem:[#allocation10 + $0x3e8] sm:$0xff]
        %v3746 = vld [vmem:[#allocation10 + $0x3f0] sm:$0xff]
        %v3747 = vld [vmem:[#allocation10 + $0x3f8] sm:$0xff]
        %v3748 = vld [vmem:[#allocation10 + $0x400] sm:$0xff]
        %v3749 = vld [vmem:[#allocation10 + $0x408] sm:$0xff]
        %v3750 = vld [vmem:[#allocation10 + $0x410] sm:$0xff]
        %v3751 = vld [vmem:[#allocation10 + $0x418] sm:$0xff]
        %v3752 = vld [vmem:[#allocation10 + $0x420] sm:$0xff]
        %v3753 = vld [vmem:[#allocation10 + $0x428] sm:$0xff]
        %v3754 = vld [vmem:[#allocation10 + $0x430] sm:$0xff]
        %v3755 = vld [vmem:[#allocation10 + $0x438] sm:$0xff]
        %v3756 = vld [vmem:[#allocation10 + $0x440] sm:$0xff]
        %v3757 = vld [vmem:[#allocation10 + $0x448] sm:$0xff]
        %v3758 = vld [vmem:[#allocation10 + $0x450] sm:$0xff]
        %v3759 = vld [vmem:[#allocation10 + $0x458] sm:$0xff]
        %v3760 = vld [vmem:[#allocation10 + $0x460] sm:$0xff]
        %v3761 = vld [vmem:[#allocation10 + $0x468] sm:$0xff]
        %v3762 = vld [vmem:[#allocation10 + $0x470] sm:$0xff]
        %v3763 = vld [vmem:[#allocation10 + $0x478] sm:$0xff]
        %v3764 = vld [vmem:[#allocation10 + $0x480] sm:$0xff]
        %v3765 = vld [vmem:[#allocation10 + $0x488] sm:$0xff]
        %v3766 = vld [vmem:[#allocation10 + $0x490] sm:$0xff]
        %v3767 = vld [vmem:[#allocation10 + $0x498] sm:$0xff]
        %v3768 = vld [vmem:[#allocation10 + $0x4a0] sm:$0xff]
        %v3769 = vld [vmem:[#allocation10 + $0x4a8] sm:$0xff]
        %v3770 = vld [vmem:[#allocation10 + $0x4b0] sm:$0xff]
        %v3771 = vld [vmem:[#allocation10 + $0x4b8] sm:$0xff]
        %v3772 = vld [vmem:[#allocation10 + $0x4c0] sm:$0xff]
        %v3773 = vld [vmem:[#allocation10 + $0x4c8] sm:$0xff]
        %v3774 = vld [vmem:[#allocation10 + $0x4d0] sm:$0xff]
        %v3775 = vld [vmem:[#allocation10 + $0x4d8] sm:$0xff]
        %v3776 = vld [vmem:[#allocation10 + $0x4e0] sm:$0xff]
        %v3777 = vld [vmem:[#allocation10 + $0x4e8] sm:$0xff]
        %v3778 = vld [vmem:[#allocation10 + $0x4f0] sm:$0xff]
        %v3779 = vld [vmem:[#allocation10 + $0x4f8] sm:$0xff]
        %v3780 = vld [vmem:[#allocation10 + $0x500] sm:$0xff]
        %v3781 = vld [vmem:[#allocation10 + $0x508] sm:$0xff]
        %v3782 = vld [vmem:[#allocation10 + $0x510] sm:$0xff]
        %v3783 = vld [vmem:[#allocation10 + $0x518] sm:$0xff]
        %v3784 = vld [vmem:[#allocation10 + $0x520] sm:$0xff]
        %v3785 = vld [vmem:[#allocation10 + $0x528] sm:$0xff]
        %v3786 = vld [vmem:[#allocation10 + $0x530] sm:$0xff]
        %v3787 = vld [vmem:[#allocation10 + $0x538] sm:$0xff]
        %v3788 = vld [vmem:[#allocation10 + $0x540] sm:$0xff]
        %v3789 = vld [vmem:[#allocation10 + $0x548] sm:$0xff]
        %v3790 = vld [vmem:[#allocation10 + $0x550] sm:$0xff]
        %v3791 = vld [vmem:[#allocation10 + $0x558] sm:$0xff]
        %v3792 = vld [vmem:[#allocation10 + $0x560] sm:$0xff]
        %v3793 = vld [vmem:[#allocation10 + $0x568] sm:$0xff]
        %v3794 = vld [vmem:[#allocation10 + $0x570] sm:$0xff]
        %v3795 = vld [vmem:[#allocation10 + $0x578] sm:$0xff]
        %v3796 = vld [vmem:[#allocation10 + $0x580] sm:$0xff]
        %v3797 = vld [vmem:[#allocation10 + $0x588] sm:$0xff]
        %v3798 = vld [vmem:[#allocation10 + $0x590] sm:$0xff]
        %v3799 = vld [vmem:[#allocation10 + $0x598] sm:$0xff]
        %v3800 = vld [vmem:[#allocation10 + $0x5a0] sm:$0xff]
        %v3801 = vld [vmem:[#allocation10 + $0x5a8] sm:$0xff]
        %v3802 = vld [vmem:[#allocation10 + $0x5b0] sm:$0xff]
        %v3803 = vld [vmem:[#allocation10 + $0x5b8] sm:$0xff]
        %v3804 = vld [vmem:[#allocation10 + $0x5c0] sm:$0xff]
        %v3805 = vld [vmem:[#allocation10 + $0x5c8] sm:$0xff]
        %v3806 = vld [vmem:[#allocation10 + $0x5d0] sm:$0xff]
        %v3807 = vld [vmem:[#allocation10 + $0x5d8] sm:$0xff]
        %v3808 = vld [vmem:[#allocation10 + $0x5e0] sm:$0xff]
        %v3809 = vld [vmem:[#allocation10 + $0x5e8] sm:$0xff]
        %v3810 = vld [vmem:[#allocation10 + $0x5f0] sm:$0xff]
        %v3811 = vld [vmem:[#allocation10 + $0x5f8] sm:$0xff]
        %v3812 = vld [vmem:[#allocation10 + $0x600] sm:$0xff]
        %v3813 = vld [vmem:[#allocation10 + $0x608] sm:$0xff]
        %v3814 = vld [vmem:[#allocation10 + $0x610] sm:$0xff]
        %v3815 = vld [vmem:[#allocation10 + $0x618] sm:$0xff]
        %v3816 = vld [vmem:[#allocation10 + $0x620] sm:$0xff]
        %v3817 = vld [vmem:[#allocation10 + $0x628] sm:$0xff]
        %v3818 = vld [vmem:[#allocation10 + $0x630] sm:$0xff]
        %v3819 = vld [vmem:[#allocation10 + $0x638] sm:$0xff]
        %v3820 = vld [vmem:[#allocation10 + $0x640] sm:$0xff]
        %v3821 = vld [vmem:[#allocation10 + $0x648] sm:$0xff]
        %v3822 = vld [vmem:[#allocation10 + $0x650] sm:$0xff]
        %v3823 = vld [vmem:[#allocation10 + $0x658] sm:$0xff]
        %v3824 = vld [vmem:[#allocation10 + $0x660] sm:$0xff]
        %v3825 = vld [vmem:[#allocation10 + $0x668] sm:$0xff]
        %v3826 = vld [vmem:[#allocation10 + $0x670] sm:$0xff]
        %v3827 = vld [vmem:[#allocation10 + $0x678] sm:$0xff]
        %v3828 = vld [vmem:[#allocation10 + $0x680] sm:$0xff]
        %v3829 = vld [vmem:[#allocation10 + $0x688] sm:$0xff]
        %v3830 = vld [vmem:[#allocation10 + $0x690] sm:$0xff]
        %v3831 = vld [vmem:[#allocation10 + $0x698] sm:$0xff]
        %v3832 = vld [vmem:[#allocation10 + $0x6a0] sm:$0xff]
        %v3833 = vld [vmem:[#allocation10 + $0x6a8] sm:$0xff]
        %v3834 = vld [vmem:[#allocation10 + $0x6b0] sm:$0xff]
        %v3835 = vld [vmem:[#allocation10 + $0x6b8] sm:$0xff]
        %v3836 = vld [vmem:[#allocation10 + $0x6c0] sm:$0xff]
        %v3837 = vld [vmem:[#allocation10 + $0x6c8] sm:$0xff]
        %v3838 = vld [vmem:[#allocation10 + $0x6d0] sm:$0xff]
        %v3839 = vld [vmem:[#allocation10 + $0x6d8] sm:$0xff]
        %v3840 = vld [vmem:[#allocation10 + $0x6e0] sm:$0xff]
        %v3841 = vld [vmem:[#allocation10 + $0x6e8] sm:$0xff]
        %v3842 = vld [vmem:[#allocation10 + $0x6f0] sm:$0xff]
        %v3843 = vld [vmem:[#allocation10 + $0x6f8] sm:$0xff]
        %v3844 = vld [vmem:[#allocation10 + $0x700] sm:$0xff]
        %v3845 = vld [vmem:[#allocation10 + $0x708] sm:$0xff]
        %v3846 = vld [vmem:[#allocation10 + $0x710] sm:$0xff]
        %v3847 = vld [vmem:[#allocation10 + $0x718] sm:$0xff]
        %v3848 = vld [vmem:[#allocation10 + $0x720] sm:$0xff]
        %v3849 = vld [vmem:[#allocation10 + $0x728] sm:$0xff]
        %v3850 = vld [vmem:[#allocation10 + $0x730] sm:$0xff]
        %v3851 = vld [vmem:[#allocation10 + $0x738] sm:$0xff]
        %v3852 = vld [vmem:[#allocation10 + $0x740] sm:$0xff]
        %v3853 = vld [vmem:[#allocation10 + $0x748] sm:$0xff]
        %v3854 = vld [vmem:[#allocation10 + $0x750] sm:$0xff]
        %v3855 = vld [vmem:[#allocation10 + $0x758] sm:$0xff]
        %v3856 = vld [vmem:[#allocation10 + $0x760] sm:$0xff]
        %v3857 = vld [vmem:[#allocation10 + $0x768] sm:$0xff]
        %v3858 = vld [vmem:[#allocation10 + $0x770] sm:$0xff]
        %v3859 = vld [vmem:[#allocation10 + $0x778] sm:$0xff]
        %v3860 = vld [vmem:[#allocation10 + $0x780] sm:$0xff]
        %v3861 = vld [vmem:[#allocation10 + $0x788] sm:$0xff]
        %v3862 = vld [vmem:[#allocation10 + $0x790] sm:$0xff]
        %v3863 = vld [vmem:[#allocation10 + $0x798] sm:$0xff]
        %v3864 = vld [vmem:[#allocation10 + $0x7a0] sm:$0xff]
        %v3865 = vld [vmem:[#allocation10 + $0x7a8] sm:$0xff]
        %v3866 = vld [vmem:[#allocation10 + $0x7b0] sm:$0xff]
        %v3867 = vld [vmem:[#allocation10 + $0x7b8] sm:$0xff]
        %v3868 = vld [vmem:[#allocation10 + $0x7c0] sm:$0xff]
        %v3869 = vld [vmem:[#allocation10 + $0x7c8] sm:$0xff]
        %v3870 = vld [vmem:[#allocation10 + $0x7d0] sm:$0xff]
        %v3871 = vld [vmem:[#allocation10 + $0x7d8] sm:$0xff]
        %v3872 = vld [vmem:[#allocation10 + $0x7e0] sm:$0xff]
        %v3873 = vld [vmem:[#allocation10 + $0x7e8] sm:$0xff]
        %v3874 = vld [vmem:[#allocation10 + $0x7f0] sm:$0xff]
        %v3875 = vld [vmem:[#allocation10 + $0x7f8] sm:$0xff]
        %v3876 = vld [vmem:[#allocation10 + $0x800] sm:$0xff]
        %v3877 = vld [vmem:[#allocation10 + $0x808] sm:$0xff]
        %v3878 = vld [vmem:[#allocation10 + $0x810] sm:$0xff]
        %v3879 = vld [vmem:[#allocation10 + $0x818] sm:$0xff]
        %v3880 = vld [vmem:[#allocation10 + $0x820] sm:$0xff]
        %v3881 = vld [vmem:[#allocation10 + $0x828] sm:$0xff]
        %v3882 = vld [vmem:[#allocation10 + $0x830] sm:$0xff]
        %v3883 = vld [vmem:[#allocation10 + $0x838] sm:$0xff]
        %v3884 = vld [vmem:[#allocation10 + $0x840] sm:$0xff]
        %v3885 = vld [vmem:[#allocation10 + $0x848] sm:$0xff]
        %v3886 = vld [vmem:[#allocation10 + $0x850] sm:$0xff]
        %v3887 = vld [vmem:[#allocation10 + $0x858] sm:$0xff]
        %v3888 = vld [vmem:[#allocation10 + $0x860] sm:$0xff]
        %v3889 = vld [vmem:[#allocation10 + $0x868] sm:$0xff]
        %v3890 = vld [vmem:[#allocation10 + $0x870] sm:$0xff]
        %v3891 = vld [vmem:[#allocation10 + $0x878] sm:$0xff]
        %v3892 = vld [vmem:[#allocation10 + $0x880] sm:$0xff]
        %v3893 = vld [vmem:[#allocation10 + $0x888] sm:$0xff]
        %v3894 = vld [vmem:[#allocation10 + $0x890] sm:$0xff]
        %v3895 = vld [vmem:[#allocation10 + $0x898] sm:$0xff]
        %v3896 = vld [vmem:[#allocation10 + $0x8a0] sm:$0xff]
        %v3897 = vld [vmem:[#allocation10 + $0x8a8] sm:$0xff]
        %v3898 = vld [vmem:[#allocation10 + $0x8b0] sm:$0xff]
        %v3899 = vld [vmem:[#allocation10 + $0x8b8] sm:$0xff]
        %v3900 = vld [vmem:[#allocation10 + $0x8c0] sm:$0xff]
        %v3901 = vld [vmem:[#allocation10 + $0x8c8] sm:$0xff]
        %v3902 = vld [vmem:[#allocation10 + $0x8d0] sm:$0xff]
        %v3903 = vld [vmem:[#allocation10 + $0x8d8] sm:$0xff]
        %v3904 = vld [vmem:[#allocation10 + $0x8e0] sm:$0xff]
        %v3905 = vld [vmem:[#allocation10 + $0x8e8] sm:$0xff]
        %v3906 = vld [vmem:[#allocation10 + $0x8f0] sm:$0xff]
        %v3907 = vld [vmem:[#allocation10 + $0x8f8] sm:$0xff]
        %v3908 = vld [vmem:[#allocation10 + $0x900] sm:$0xff]
        %v3909 = vld [vmem:[#allocation10 + $0x908] sm:$0xff]
        %v3910 = vld [vmem:[#allocation10 + $0x910] sm:$0xff]
        %v3911 = vld [vmem:[#allocation10 + $0x918] sm:$0xff]
        %v3912 = vld [vmem:[#allocation10 + $0x920] sm:$0xff]
        %v3913 = vld [vmem:[#allocation10 + $0x928] sm:$0xff]
        %v3914 = vld [vmem:[#allocation10 + $0x930] sm:$0xff]
        %v3915 = vld [vmem:[#allocation10 + $0x938] sm:$0xff]
        %v3916 = vld [vmem:[#allocation10 + $0x940] sm:$0xff]
        %v3917 = vld [vmem:[#allocation10 + $0x948] sm:$0xff]
        %v3918 = vld [vmem:[#allocation10 + $0x950] sm:$0xff]
        %v3919 = vld [vmem:[#allocation10 + $0x958] sm:$0xff]
        %v3920 = vld [vmem:[#allocation10 + $0x960] sm:$0xff]
        %v3921 = vld [vmem:[#allocation10 + $0x968] sm:$0xff]
        %v3922 = vld [vmem:[#allocation10 + $0x970] sm:$0xff]
        %v3923 = vld [vmem:[#allocation10 + $0x978] sm:$0xff]
        %v3924 = vld [vmem:[#allocation10 + $0x980] sm:$0xff]
        %v3925 = vld [vmem:[#allocation10 + $0x988] sm:$0xff]
        %v3926 = vld [vmem:[#allocation10 + $0x990] sm:$0xff]
        %v3927 = vld [vmem:[#allocation10 + $0x998] sm:$0xff]
        %v3928 = vld [vmem:[#allocation10 + $0x9a0] sm:$0xff]
        %v3929 = vld [vmem:[#allocation10 + $0x9a8] sm:$0xff]
        %v3930 = vld [vmem:[#allocation10 + $0x9b0] sm:$0xff]
        %v3931 = vld [vmem:[#allocation10 + $0x9b8] sm:$0xff]
        %v3932 = vld [vmem:[#allocation10 + $0x9c0] sm:$0xff]
        %v3933 = vld [vmem:[#allocation10 + $0x9c8] sm:$0xff]
        %v3934 = vld [vmem:[#allocation10 + $0x9d0] sm:$0xff]
        %v3935 = vld [vmem:[#allocation10 + $0x9d8] sm:$0xff]
        %v3936 = vld [vmem:[#allocation10 + $0x9e0] sm:$0xff]
        %v3937 = vld [vmem:[#allocation10 + $0x9e8] sm:$0xff]
        %v3938 = vld [vmem:[#allocation10 + $0x9f0] sm:$0xff]
        %v3939 = vld [vmem:[#allocation10 + $0x9f8] sm:$0xff]
        %v3940 = vld [vmem:[#allocation10 + $0xa00] sm:$0xff]
        %v3941 = vld [vmem:[#allocation10 + $0xa08] sm:$0xff]
        %v3942 = vld [vmem:[#allocation10 + $0xa10] sm:$0xff]
        %v3943 = vld [vmem:[#allocation10 + $0xa18] sm:$0xff]
        %v3944 = vld [vmem:[#allocation10 + $0xa20] sm:$0xff]
        %v3945 = vld [vmem:[#allocation10 + $0xa28] sm:$0xff]
        %v3946 = vld [vmem:[#allocation10 + $0xa30] sm:$0xff]
        %v3947 = vld [vmem:[#allocation10 + $0xa38] sm:$0xff]
        %v3948 = vld [vmem:[#allocation10 + $0xa40] sm:$0xff]
        %v3949 = vld [vmem:[#allocation10 + $0xa48] sm:$0xff]
        %v3950 = vld [vmem:[#allocation10 + $0xa50] sm:$0xff]
        %v3951 = vld [vmem:[#allocation10 + $0xa58] sm:$0xff]
        %v3952 = vld [vmem:[#allocation10 + $0xa60] sm:$0xff]
        %v3953 = vld [vmem:[#allocation10 + $0xa68] sm:$0xff]
        %v3954 = vld [vmem:[#allocation10 + $0xa70] sm:$0xff]
        %v3955 = vld [vmem:[#allocation10 + $0xa78] sm:$0xff]
        %v3956 = vld [vmem:[#allocation10 + $0xa80] sm:$0xff]
        %v3957 = vld [vmem:[#allocation10 + $0xa88] sm:$0xff]
        %v3958 = vld [vmem:[#allocation10 + $0xa90] sm:$0xff]
        %v3959 = vld [vmem:[#allocation10 + $0xa98] sm:$0xff]
        %v3960 = vld [vmem:[#allocation10 + $0xaa0] sm:$0xff]
        %v3961 = vld [vmem:[#allocation10 + $0xaa8] sm:$0xff]
        %v3962 = vld [vmem:[#allocation10 + $0xab0] sm:$0xff]
        %v3963 = vld [vmem:[#allocation10 + $0xab8] sm:$0xff]
        %v3964 = vld [vmem:[#allocation10 + $0xac0] sm:$0xff]
        %v3965 = vld [vmem:[#allocation10 + $0xac8] sm:$0xff]
        %v3966 = vld [vmem:[#allocation10 + $0xad0] sm:$0xff]
        %v3967 = vld [vmem:[#allocation10 + $0xad8] sm:$0xff]
        %v3968 = vld [vmem:[#allocation10 + $0xae0] sm:$0xff]
        %v3969 = vld [vmem:[#allocation10 + $0xae8] sm:$0xff]
        %v3970 = vld [vmem:[#allocation10 + $0xaf0] sm:$0xff]
        %v3971 = vld [vmem:[#allocation10 + $0xaf8] sm:$0xff]
        %v3972 = vld [vmem:[#allocation10 + $0xb00] sm:$0xff]
        %v3973 = vld [vmem:[#allocation10 + $0xb08] sm:$0xff]
        %v3974 = vld [vmem:[#allocation10 + $0xb10] sm:$0xff]
        %v3975 = vld [vmem:[#allocation10 + $0xb18] sm:$0xff]
        %v3976 = vld [vmem:[#allocation10 + $0xb20] sm:$0xff]
        %v3977 = vld [vmem:[#allocation10 + $0xb28] sm:$0xff]
        %v3978 = vld [vmem:[#allocation10 + $0xb30] sm:$0xff]
        %v3979 = vld [vmem:[#allocation10 + $0xb38] sm:$0xff]
        %v3980 = vld [vmem:[#allocation10 + $0xb40] sm:$0xff]
        %v3981 = vld [vmem:[#allocation10 + $0xb48] sm:$0xff]
        %v3982 = vld [vmem:[#allocation10 + $0xb50] sm:$0xff]
        %v3983 = vld [vmem:[#allocation10 + $0xb58] sm:$0xff]
        %v3984 = vld [vmem:[#allocation10 + $0xb60] sm:$0xff]
        %v3985 = vld [vmem:[#allocation10 + $0xb68] sm:$0xff]
        %v3986 = vld [vmem:[#allocation10 + $0xb70] sm:$0xff]
        %v3987 = vld [vmem:[#allocation10 + $0xb78] sm:$0xff]
        %v3988 = vld [vmem:[#allocation10 + $0xb80] sm:$0xff]
        %v3989 = vld [vmem:[#allocation10 + $0xb88] sm:$0xff]
        %v3990 = vld [vmem:[#allocation10 + $0xb90] sm:$0xff]
        %v3991 = vld [vmem:[#allocation10 + $0xb98] sm:$0xff]
        %v3992 = vld [vmem:[#allocation10 + $0xba0] sm:$0xff]
        %v3993 = vld [vmem:[#allocation10 + $0xba8] sm:$0xff]
        %v3994 = vld [vmem:[#allocation10 + $0xbb0] sm:$0xff]
        %v3995 = vld [vmem:[#allocation10 + $0xbb8] sm:$0xff]
        %v3996 = vld [vmem:[#allocation10 + $0xbc0] sm:$0xff]
        %v3997 = vld [vmem:[#allocation10 + $0xbc8] sm:$0xff]
        %v3998 = vld [vmem:[#allocation10 + $0xbd0] sm:$0xff]
        %v3999 = vld [vmem:[#allocation10 + $0xbd8] sm:$0xff]
        %v4000 = vld [vmem:[#allocation10 + $0xbe0] sm:$0xff]
        %v4001 = vld [vmem:[#allocation10 + $0xbe8] sm:$0xff]
        %v4002 = vld [vmem:[#allocation10 + $0xbf0] sm:$0xff]
        %v4003 = vld [vmem:[#allocation10 + $0xbf8] sm:$0xff]
        %v4004 = vld [vmem:[#allocation10 + $0xc00] sm:$0xff]
        %v4005 = vld [vmem:[#allocation10 + $0xc08] sm:$0xff]
        %v4006 = vld [vmem:[#allocation10 + $0xc10] sm:$0xff]
        %v4007 = vld [vmem:[#allocation10 + $0xc18] sm:$0xff]
        %v4008 = vld [vmem:[#allocation10 + $0xc20] sm:$0xff]
        %v4009 = vld [vmem:[#allocation10 + $0xc28] sm:$0xff]
        %v4010 = vld [vmem:[#allocation10 + $0xc30] sm:$0xff]
        %v4011 = vld [vmem:[#allocation10 + $0xc38] sm:$0xff]
        %v4012 = vld [vmem:[#allocation10 + $0xc40] sm:$0xff]
        %v4013 = vld [vmem:[#allocation10 + $0xc48] sm:$0xff]
        %v4014 = vld [vmem:[#allocation10 + $0xc50] sm:$0xff]
        %v4015 = vld [vmem:[#allocation10 + $0xc58] sm:$0xff]
        %v4016 = vld [vmem:[#allocation10 + $0xc60] sm:$0xff]
        %v4017 = vld [vmem:[#allocation10 + $0xc68] sm:$0xff]
        %v4018 = vld [vmem:[#allocation10 + $0xc70] sm:$0xff]
        %v4019 = vld [vmem:[#allocation10 + $0xc78] sm:$0xff]
        %v4020 = vld [vmem:[#allocation10 + $0xc80] sm:$0xff]
        %v4021 = vld [vmem:[#allocation10 + $0xc88] sm:$0xff]
        %v4022 = vld [vmem:[#allocation10 + $0xc90] sm:$0xff]
        %v4023 = vld [vmem:[#allocation10 + $0xc98] sm:$0xff]
        %v4024 = vld [vmem:[#allocation10 + $0xca0] sm:$0xff]
        %v4025 = vld [vmem:[#allocation10 + $0xca8] sm:$0xff]
        %v4026 = vld [vmem:[#allocation10 + $0xcb0] sm:$0xff]
        %v4027 = vld [vmem:[#allocation10 + $0xcb8] sm:$0xff]
        %v4028 = vld [vmem:[#allocation10 + $0xcc0] sm:$0xff]
        %v4029 = vld [vmem:[#allocation10 + $0xcc8] sm:$0xff]
        %v4030 = vld [vmem:[#allocation10 + $0xcd0] sm:$0xff]
        %v4031 = vld [vmem:[#allocation10 + $0xcd8] sm:$0xff]
        %v4032 = vld [vmem:[#allocation10 + $0xce0] sm:$0xff]
        %v4033 = vld [vmem:[#allocation10 + $0xce8] sm:$0xff]
        %v4034 = vld [vmem:[#allocation10 + $0xcf0] sm:$0xff]
        %v4035 = vld [vmem:[#allocation10 + $0xcf8] sm:$0xff]
        %v4036 = vld [vmem:[#allocation10 + $0xd00] sm:$0xff]
        %v4037 = vld [vmem:[#allocation10 + $0xd08] sm:$0xff]
        %v4038 = vld [vmem:[#allocation10 + $0xd10] sm:$0xff]
        %v4039 = vld [vmem:[#allocation10 + $0xd18] sm:$0xff]
        %v4040 = vld [vmem:[#allocation10 + $0xd20] sm:$0xff]
        %v4041 = vld [vmem:[#allocation10 + $0xd28] sm:$0xff]
        %v4042 = vld [vmem:[#allocation10 + $0xd30] sm:$0xff]
        %v4043 = vld [vmem:[#allocation10 + $0xd38] sm:$0xff]
        %v4044 = vld [vmem:[#allocation10 + $0xd40] sm:$0xff]
        %v4045 = vld [vmem:[#allocation10 + $0xd48] sm:$0xff]
        %v4046 = vld [vmem:[#allocation10 + $0xd50] sm:$0xff]
        %v4047 = vld [vmem:[#allocation10 + $0xd58] sm:$0xff]
        %v4048 = vld [vmem:[#allocation10 + $0xd60] sm:$0xff]
        %v4049 = vld [vmem:[#allocation10 + $0xd68] sm:$0xff]
        %v4050 = vld [vmem:[#allocation10 + $0xd70] sm:$0xff]
        %v4051 = vld [vmem:[#allocation10 + $0xd78] sm:$0xff]
        %v4052 = vld [vmem:[#allocation10 + $0xd80] sm:$0xff]
        %v4053 = vld [vmem:[#allocation10 + $0xd88] sm:$0xff]
        %v4054 = vld [vmem:[#allocation10 + $0xd90] sm:$0xff]
        %v4055 = vld [vmem:[#allocation10 + $0xd98] sm:$0xff]
        %v4056 = vld [vmem:[#allocation10 + $0xda0] sm:$0xff]
        %v4057 = vld [vmem:[#allocation10 + $0xda8] sm:$0xff]
        %v4058 = vld [vmem:[#allocation10 + $0xdb0] sm:$0xff]
        %v4059 = vld [vmem:[#allocation10 + $0xdb8] sm:$0xff]
        %v4060 = vld [vmem:[#allocation10 + $0xdc0] sm:$0xff]
        %v4061 = vld [vmem:[#allocation10 + $0xdc8] sm:$0xff]
        %v4062 = vld [vmem:[#allocation10 + $0xdd0] sm:$0xff]
        %v4063 = vld [vmem:[#allocation10 + $0xdd8] sm:$0xff]
        %v4064 = vld [vmem:[#allocation10 + $0xde0] sm:$0xff]
        %v4065 = vld [vmem:[#allocation10 + $0xde8] sm:$0xff]
        %v4066 = vld [vmem:[#allocation10 + $0xdf0] sm:$0xff]
        %v4067 = vld [vmem:[#allocation10 + $0xdf8] sm:$0xff]
        %v4068 = vld [vmem:[#allocation10 + $0xe00] sm:$0xff]
        %v4069 = vld [vmem:[#allocation10 + $0xe08] sm:$0xff]
        %v4070 = vld [vmem:[#allocation10 + $0xe10] sm:$0xff]
        %v4071 = vld [vmem:[#allocation10 + $0xe18] sm:$0xff]
        %v4072 = vld [vmem:[#allocation10 + $0xe20] sm:$0xff]
        %v4073 = vld [vmem:[#allocation10 + $0xe28] sm:$0xff]
        %v4074 = vld [vmem:[#allocation10 + $0xe30] sm:$0xff]
        %v4075 = vld [vmem:[#allocation10 + $0xe38] sm:$0xff]
        %v4076 = vld [vmem:[#allocation10 + $0xe40] sm:$0xff]
        %v4077 = vld [vmem:[#allocation10 + $0xe48] sm:$0xff]
        %v4078 = vld [vmem:[#allocation10 + $0xe50] sm:$0xff]
        %v4079 = vld [vmem:[#allocation10 + $0xe58] sm:$0xff]
        %v4080 = vld [vmem:[#allocation10 + $0xe60] sm:$0xff]
        %v4081 = vld [vmem:[#allocation10 + $0xe68] sm:$0xff]
        %v4082 = vld [vmem:[#allocation10 + $0xe70] sm:$0xff]
        %v4083 = vld [vmem:[#allocation10 + $0xe78] sm:$0xff]
        %v4084 = vld [vmem:[#allocation10 + $0xe80] sm:$0xff]
        %v4085 = vld [vmem:[#allocation10 + $0xe88] sm:$0xff]
        %v4086 = vld [vmem:[#allocation10 + $0xe90] sm:$0xff]
        %v4087 = vld [vmem:[#allocation10 + $0xe98] sm:$0xff]
        %v4088 = vld [vmem:[#allocation10 + $0xea0] sm:$0xff]
        %v4089 = vld [vmem:[#allocation10 + $0xea8] sm:$0xff]
        %v4090 = vld [vmem:[#allocation10 + $0xeb0] sm:$0xff]
        %v4091 = vld [vmem:[#allocation10 + $0xeb8] sm:$0xff]
        %v4092 = vld [vmem:[#allocation10 + $0xec0] sm:$0xff]
        %v4093 = vld [vmem:[#allocation10 + $0xec8] sm:$0xff]
        %v4094 = vld [vmem:[#allocation10 + $0xed0] sm:$0xff]
        %v4095 = vld [vmem:[#allocation10 + $0xed8] sm:$0xff]
        %v4096 = vld [vmem:[#allocation10 + $0xee0] sm:$0xff]
        %v4097 = vld [vmem:[#allocation10 + $0xee8] sm:$0xff]
        %v4098 = vld [vmem:[#allocation10 + $0xef0] sm:$0xff]
        %v4099 = vld [vmem:[#allocation10 + $0xef8] sm:$0xff]
        %v4100 = vld [vmem:[#allocation10 + $0xf00] sm:$0xff]
        %v4101 = vld [vmem:[#allocation10 + $0xf08] sm:$0xff]
        %v4102 = vld [vmem:[#allocation10 + $0xf10] sm:$0xff]
        %v4103 = vld [vmem:[#allocation10 + $0xf18] sm:$0xff]
        %v4104 = vld [vmem:[#allocation10 + $0xf20] sm:$0xff]
        %v4105 = vld [vmem:[#allocation10 + $0xf28] sm:$0xff]
        %v4106 = vld [vmem:[#allocation10 + $0xf30] sm:$0xff]
        %v4107 = vld [vmem:[#allocation10 + $0xf38] sm:$0xff]
        %v4108 = vld [vmem:[#allocation10 + $0xf40] sm:$0xff]
        %v4109 = vld [vmem:[#allocation10 + $0xf48] sm:$0xff]
        %v4110 = vld [vmem:[#allocation10 + $0xf50] sm:$0xff]
        %v4111 = vld [vmem:[#allocation10 + $0xf58] sm:$0xff]
        %v4112 = vld [vmem:[#allocation10 + $0xf60] sm:$0xff]
        %v4113 = vld [vmem:[#allocation10 + $0xf68] sm:$0xff]
        %v4114 = vld [vmem:[#allocation10 + $0xf70] sm:$0xff]
        %v4115 = vld [vmem:[#allocation10 + $0xf78] sm:$0xff]
        %v4116 = vld [vmem:[#allocation10 + $0xf80] sm:$0xff]
        %v4117 = vld [vmem:[#allocation10 + $0xf88] sm:$0xff]
        %v4118 = vld [vmem:[#allocation10 + $0xf90] sm:$0xff]
        %v4119 = vld [vmem:[#allocation10 + $0xf98] sm:$0xff]
        %v4120 = vld [vmem:[#allocation10 + $0xfa0] sm:$0xff]
        %v4121 = vld [vmem:[#allocation10 + $0xfa8] sm:$0xff]
        %v4122 = vld [vmem:[#allocation10 + $0xfb0] sm:$0xff]
        %v4123 = vld [vmem:[#allocation10 + $0xfb8] sm:$0xff]
        %v4124 = vld [vmem:[#allocation10 + $0xfc0] sm:$0xff]
        %v4125 = vld [vmem:[#allocation10 + $0xfc8] sm:$0xff]
        %v4126 = vld [vmem:[#allocation10 + $0xfd0] sm:$0xff]
        %v4127 = vld [vmem:[#allocation10 + $0xfd8] sm:$0xff]
        %v4128 = vld [vmem:[#allocation10 + $0xfe0] sm:$0xff]
        %v4129 = vld [vmem:[#allocation10 + $0xfe8] sm:$0xff]
        %v4130 = vld [vmem:[#allocation10 + $0xff0] sm:$0xff]
        %v4131 = vld [vmem:[#allocation10 + $0xff8] sm:$0xff]
        %v4132 = vld [vmem:[#allocation17] sm:$0xff]
        %v4134 = vlaneseq
        %v4135 = vshrl.u32 %v4134, 7
        %v4136 = vsub.s32 0, %v4135
        %v4137 = vrot.slane %v4132, %v4136
        %v4138 = vlaneseq
        %v4139 = vshrl.u32 %v4138, 7
        %v4140 = vsub.s32 1, %v4139
        %v4141 = vrot.slane %v4132, %v4140
        %v4142 = vlaneseq
        %v4143 = vshrl.u32 %v4142, 7
        %v4144 = vsub.s32 2, %v4143
        %v4145 = vrot.slane %v4132, %v4144
        %v4146 = vlaneseq
        %v4147 = vshrl.u32 %v4146, 7
        %v4148 = vsub.s32 3, %v4147
        %v4149 = vrot.slane %v4132, %v4148
        %v4150 = vlaneseq
        %v4151 = vshrl.u32 %v4150, 7
        %v4152 = vsub.s32 4, %v4151
        %v4153 = vrot.slane %v4132, %v4152
        %v4154 = vlaneseq
        %v4155 = vshrl.u32 %v4154, 7
        %v4156 = vsub.s32 5, %v4155
        %v4157 = vrot.slane %v4132, %v4156
        %v4158 = vlaneseq
        %v4159 = vshrl.u32 %v4158, 7
        %v4160 = vsub.s32 6, %v4159
        %v4161 = vrot.slane %v4132, %v4160
        %v4162 = vlaneseq
        %v4163 = vshrl.u32 %v4162, 7
        %v4164 = vsub.s32 7, %v4163
        %v4165 = vrot.slane %v4132, %v4164
        %v4238 = vunpack.c.l.b16 %v3556
        %v4239 = vunpack.c.l.b16 %v3557
        %v4240 = vunpack.c.l.b16 %v3558
        %v4241 = vunpack.c.l.b16 %v3559
        %v4242 = vunpack.c.l.b16 %v3560
        %v4243 = vunpack.c.l.b16 %v3561
        %v4244 = vunpack.c.l.b16 %v3562
        %v4245 = vunpack.c.l.b16 %v3563
        %v4246 = vunpack.c.l.b16 %v3564
        %v4247 = vunpack.c.l.b16 %v3565
        %v4248 = vunpack.c.l.b16 %v3566
        %v4249 = vunpack.c.l.b16 %v3567
        %v4250 = vunpack.c.l.b16 %v3568
        %v4251 = vunpack.c.l.b16 %v3569
        %v4252 = vunpack.c.l.b16 %v3570
        %v4253 = vunpack.c.l.b16 %v3571
        %v4254 = vunpack.c.l.b16 %v3572
        %v4255 = vunpack.c.l.b16 %v3573
        %v4256 = vunpack.c.l.b16 %v3574
        %v4257 = vunpack.c.l.b16 %v3575
        %v4258 = vunpack.c.l.b16 %v3576
        %v4259 = vunpack.c.l.b16 %v3577
        %v4260 = vunpack.c.l.b16 %v3578
        %v4261 = vunpack.c.l.b16 %v3579
        %v4262 = vunpack.c.l.b16 %v3580
        %v4263 = vunpack.c.l.b16 %v3581
        %v4264 = vunpack.c.l.b16 %v3582
        %v4265 = vunpack.c.l.b16 %v3583
        %v4266 = vunpack.c.l.b16 %v3584
        %v4267 = vunpack.c.l.b16 %v3585
        %v4268 = vunpack.c.l.b16 %v3586
        %v4269 = vunpack.c.l.b16 %v3587
        %v4270 = vunpack.c.l.b16 %v3588
        %v4271 = vunpack.c.l.b16 %v3589
        %v4272 = vunpack.c.l.b16 %v3590
        %v4273 = vunpack.c.l.b16 %v3591
        %v4274 = vunpack.c.l.b16 %v3592
        %v4275 = vunpack.c.l.b16 %v3593
        %v4276 = vunpack.c.l.b16 %v3594
        %v4277 = vunpack.c.l.b16 %v3595
        %v4278 = vunpack.c.l.b16 %v3596
        %v4279 = vunpack.c.l.b16 %v3597
        %v4280 = vunpack.c.l.b16 %v3598
        %v4281 = vunpack.c.l.b16 %v3599
        %v4282 = vunpack.c.l.b16 %v3600
        %v4283 = vunpack.c.l.b16 %v3601
        %v4284 = vunpack.c.l.b16 %v3602
        %v4285 = vunpack.c.l.b16 %v3603
        %v4286 = vunpack.c.l.b16 %v3604
        %v4287 = vunpack.c.l.b16 %v3605
        %v4288 = vunpack.c.l.b16 %v3606
        %v4289 = vunpack.c.l.b16 %v3607
        %v4290 = vunpack.c.l.b16 %v3608
        %v4291 = vunpack.c.l.b16 %v3609
        %v4292 = vunpack.c.l.b16 %v3610
        %v4293 = vunpack.c.l.b16 %v3611
        %v4294 = vunpack.c.l.b16 %v3612
        %v4295 = vunpack.c.l.b16 %v3613
        %v4296 = vunpack.c.l.b16 %v3614
        %v4297 = vunpack.c.l.b16 %v3615
        %v4298 = vunpack.c.l.b16 %v3616
        %v4299 = vunpack.c.l.b16 %v3617
        %v4300 = vunpack.c.l.b16 %v3618
        %v4301 = vunpack.c.l.b16 %v3619
        %v4302 = vrot.slane %v4246, 7
        %v4303 = vsel %vm3265, %v4302, %v4238
        %v4304 = vrot.slane %v4254, 6
        %v4305 = vsel %vm3267, %v4304, %v4303
        %v4306 = vrot.slane %v4262, 5
        %v4307 = vsel %vm3269, %v4306, %v4305
        %v4308 = vrot.slane %v4270, 4
        %v4309 = vsel %vm3271, %v4308, %v4307
        %v4310 = vrot.slane %v4278, 3
        %v4311 = vsel %vm3273, %v4310, %v4309
        %v4312 = vrot.slane %v4286, 2
        %v4313 = vsel %vm3275, %v4312, %v4311
        %v4314 = vrot.slane %v4294, 1
        %v4315 = vsel %vm3277, %v4314, %v4313
        %v4316 = vrot.slane %v4247, 7
        %v4317 = vsel %vm3265, %v4316, %v4239
        %v4318 = vrot.slane %v4255, 6
        %v4319 = vsel %vm3267, %v4318, %v4317
        %v4320 = vrot.slane %v4263, 5
        %v4321 = vsel %vm3269, %v4320, %v4319
        %v4322 = vrot.slane %v4271, 4
        %v4323 = vsel %vm3271, %v4322, %v4321
        %v4324 = vrot.slane %v4279, 3
        %v4325 = vsel %vm3273, %v4324, %v4323
        %v4326 = vrot.slane %v4287, 2
        %v4327 = vsel %vm3275, %v4326, %v4325
        %v4328 = vrot.slane %v4295, 1
        %v4329 = vsel %vm3277, %v4328, %v4327
        %v4330 = vrot.slane %v4248, 7
        %v4331 = vsel %vm3265, %v4330, %v4240
        %v4332 = vrot.slane %v4256, 6
        %v4333 = vsel %vm3267, %v4332, %v4331
        %v4334 = vrot.slane %v4264, 5
        %v4335 = vsel %vm3269, %v4334, %v4333
        %v4336 = vrot.slane %v4272, 4
        %v4337 = vsel %vm3271, %v4336, %v4335
        %v4338 = vrot.slane %v4280, 3
        %v4339 = vsel %vm3273, %v4338, %v4337
        %v4340 = vrot.slane %v4288, 2
        %v4341 = vsel %vm3275, %v4340, %v4339
        %v4342 = vrot.slane %v4296, 1
        %v4343 = vsel %vm3277, %v4342, %v4341
        %v4344 = vrot.slane %v4249, 7
        %v4345 = vsel %vm3265, %v4344, %v4241
        %v4346 = vrot.slane %v4257, 6
        %v4347 = vsel %vm3267, %v4346, %v4345
        %v4348 = vrot.slane %v4265, 5
        %v4349 = vsel %vm3269, %v4348, %v4347
        %v4350 = vrot.slane %v4273, 4
        %v4351 = vsel %vm3271, %v4350, %v4349
        %v4352 = vrot.slane %v4281, 3
        %v4353 = vsel %vm3273, %v4352, %v4351
        %v4354 = vrot.slane %v4289, 2
        %v4355 = vsel %vm3275, %v4354, %v4353
        %v4356 = vrot.slane %v4297, 1
        %v4357 = vsel %vm3277, %v4356, %v4355
        %v4358 = vrot.slane %v4250, 7
        %v4359 = vsel %vm3265, %v4358, %v4242
        %v4360 = vrot.slane %v4258, 6
        %v4361 = vsel %vm3267, %v4360, %v4359
        %v4362 = vrot.slane %v4266, 5
        %v4363 = vsel %vm3269, %v4362, %v4361
        %v4364 = vrot.slane %v4274, 4
        %v4365 = vsel %vm3271, %v4364, %v4363
        %v4366 = vrot.slane %v4282, 3
        %v4367 = vsel %vm3273, %v4366, %v4365
        %v4368 = vrot.slane %v4290, 2
        %v4369 = vsel %vm3275, %v4368, %v4367
        %v4370 = vrot.slane %v4298, 1
        %v4371 = vsel %vm3277, %v4370, %v4369
        %v4372 = vrot.slane %v4251, 7
        %v4373 = vsel %vm3265, %v4372, %v4243
        %v4374 = vrot.slane %v4259, 6
        %v4375 = vsel %vm3267, %v4374, %v4373
        %v4376 = vrot.slane %v4267, 5
        %v4377 = vsel %vm3269, %v4376, %v4375
        %v4378 = vrot.slane %v4275, 4
        %v4379 = vsel %vm3271, %v4378, %v4377
        %v4380 = vrot.slane %v4283, 3
        %v4381 = vsel %vm3273, %v4380, %v4379
        %v4382 = vrot.slane %v4291, 2
        %v4383 = vsel %vm3275, %v4382, %v4381
        %v4384 = vrot.slane %v4299, 1
        %v4385 = vsel %vm3277, %v4384, %v4383
        %v4386 = vrot.slane %v4252, 7
        %v4387 = vsel %vm3265, %v4386, %v4244
        %v4388 = vrot.slane %v4260, 6
        %v4389 = vsel %vm3267, %v4388, %v4387
        %v4390 = vrot.slane %v4268, 5
        %v4391 = vsel %vm3269, %v4390, %v4389
        %v4392 = vrot.slane %v4276, 4
        %v4393 = vsel %vm3271, %v4392, %v4391
        %v4394 = vrot.slane %v4284, 3
        %v4395 = vsel %vm3273, %v4394, %v4393
        %v4396 = vrot.slane %v4292, 2
        %v4397 = vsel %vm3275, %v4396, %v4395
        %v4398 = vrot.slane %v4300, 1
        %v4399 = vsel %vm3277, %v4398, %v4397
        %v4400 = vrot.slane %v4253, 7
        %v4401 = vsel %vm3265, %v4400, %v4245
        %v4402 = vrot.slane %v4261, 6
        %v4403 = vsel %vm3267, %v4402, %v4401
        %v4404 = vrot.slane %v4269, 5
        %v4405 = vsel %vm3269, %v4404, %v4403
        %v4406 = vrot.slane %v4277, 4
        %v4407 = vsel %vm3271, %v4406, %v4405
        %v4408 = vrot.slane %v4285, 3
        %v4409 = vsel %vm3273, %v4408, %v4407
        %v4410 = vrot.slane %v4293, 2
        %v4411 = vsel %vm3275, %v4410, %v4409
        %v4412 = vrot.slane %v4301, 1
        %v4413 = vsel %vm3277, %v4412, %v4411
        %v4414 = vpack.c.b16 %v4315, %v4315
        %v4415 = vpack.c.b16 %v4329, %v4329
        %v4416 = vpack.c.b16 %v4343, %v4343
        %v4417 = vpack.c.b16 %v4357, %v4357
        %v4418 = vpack.c.b16 %v4371, %v4371
        %v4419 = vpack.c.b16 %v4385, %v4385
        %v4420 = vpack.c.b16 %v4399, %v4399
        %v4421 = vpack.c.b16 %v4413, %v4413
        %v4942 = vunpack.c.l.b16 %v3620
        %v4943 = vunpack.c.h.b16 %v3620
        %v4944 = vunpack.c.l.b16 %v3621
        %v4945 = vunpack.c.h.b16 %v3621
        %v4946 = vunpack.c.l.b16 %v3622
        %v4947 = vunpack.c.h.b16 %v3622
        %v4948 = vunpack.c.l.b16 %v3623
        %v4949 = vunpack.c.h.b16 %v3623
        %v4950 = vunpack.c.l.b16 %v3624
        %v4951 = vunpack.c.h.b16 %v3624
        %v4952 = vunpack.c.l.b16 %v3625
        %v4953 = vunpack.c.h.b16 %v3625
        %v4954 = vunpack.c.l.b16 %v3626
        %v4955 = vunpack.c.h.b16 %v3626
        %v4956 = vunpack.c.l.b16 %v3627
        %v4957 = vunpack.c.h.b16 %v3627
        %v4958 = vunpack.c.l.b16 %v3628
        %v4959 = vunpack.c.h.b16 %v3628
        %v4960 = vunpack.c.l.b16 %v3629
        %v4961 = vunpack.c.h.b16 %v3629
        %v4962 = vunpack.c.l.b16 %v3630
        %v4963 = vunpack.c.h.b16 %v3630
        %v4964 = vunpack.c.l.b16 %v3631
        %v4965 = vunpack.c.h.b16 %v3631
        %v4966 = vunpack.c.l.b16 %v3632
        %v4967 = vunpack.c.h.b16 %v3632
        %v4968 = vunpack.c.l.b16 %v3633
        %v4969 = vunpack.c.h.b16 %v3633
        %v4970 = vunpack.c.l.b16 %v3634
        %v4971 = vunpack.c.h.b16 %v3634
        %v4972 = vunpack.c.l.b16 %v3635
        %v4973 = vunpack.c.h.b16 %v3635
        %v4974 = vunpack.c.l.b16 %v3636
        %v4975 = vunpack.c.h.b16 %v3636
        %v4976 = vunpack.c.l.b16 %v3637
        %v4977 = vunpack.c.h.b16 %v3637
        %v4978 = vunpack.c.l.b16 %v3638
        %v4979 = vunpack.c.h.b16 %v3638
        %v4980 = vunpack.c.l.b16 %v3639
        %v4981 = vunpack.c.h.b16 %v3639
        %v4982 = vunpack.c.l.b16 %v3640
        %v4983 = vunpack.c.h.b16 %v3640
        %v4984 = vunpack.c.l.b16 %v3641
        %v4985 = vunpack.c.h.b16 %v3641
        %v4986 = vunpack.c.l.b16 %v3642
        %v4987 = vunpack.c.h.b16 %v3642
        %v4988 = vunpack.c.l.b16 %v3643
        %v4989 = vunpack.c.h.b16 %v3643
        %v4990 = vunpack.c.l.b16 %v3644
        %v4991 = vunpack.c.h.b16 %v3644
        %v4992 = vunpack.c.l.b16 %v3645
        %v4993 = vunpack.c.h.b16 %v3645
        %v4994 = vunpack.c.l.b16 %v3646
        %v4995 = vunpack.c.h.b16 %v3646
        %v4996 = vunpack.c.l.b16 %v3647
        %v4997 = vunpack.c.h.b16 %v3647
        %v4998 = vunpack.c.l.b16 %v3648
        %v4999 = vunpack.c.h.b16 %v3648
        %v5000 = vunpack.c.l.b16 %v3649
        %v5001 = vunpack.c.h.b16 %v3649
        %v5002 = vunpack.c.l.b16 %v3650
        %v5003 = vunpack.c.h.b16 %v3650
        %v5004 = vunpack.c.l.b16 %v3651
        %v5005 = vunpack.c.h.b16 %v3651
        %v5006 = vunpack.c.l.b16 %v3652
        %v5007 = vunpack.c.h.b16 %v3652
        %v5008 = vunpack.c.l.b16 %v3653
        %v5009 = vunpack.c.h.b16 %v3653
        %v5010 = vunpack.c.l.b16 %v3654
        %v5011 = vunpack.c.h.b16 %v3654
        %v5012 = vunpack.c.l.b16 %v3655
        %v5013 = vunpack.c.h.b16 %v3655
        %v5014 = vunpack.c.l.b16 %v3656
        %v5015 = vunpack.c.h.b16 %v3656
        %v5016 = vunpack.c.l.b16 %v3657
        %v5017 = vunpack.c.h.b16 %v3657
        %v5018 = vunpack.c.l.b16 %v3658
        %v5019 = vunpack.c.h.b16 %v3658
        %v5020 = vunpack.c.l.b16 %v3659
        %v5021 = vunpack.c.h.b16 %v3659
        %v5022 = vunpack.c.l.b16 %v3660
        %v5023 = vunpack.c.h.b16 %v3660
        %v5024 = vunpack.c.l.b16 %v3661
        %v5025 = vunpack.c.h.b16 %v3661
        %v5026 = vunpack.c.l.b16 %v3662
        %v5027 = vunpack.c.h.b16 %v3662
        %v5028 = vunpack.c.l.b16 %v3663
        %v5029 = vunpack.c.h.b16 %v3663
        %v5030 = vunpack.c.l.b16 %v3664
        %v5031 = vunpack.c.h.b16 %v3664
        %v5032 = vunpack.c.l.b16 %v3665
        %v5033 = vunpack.c.h.b16 %v3665
        %v5034 = vunpack.c.l.b16 %v3666
        %v5035 = vunpack.c.h.b16 %v3666
        %v5036 = vunpack.c.l.b16 %v3667
        %v5037 = vunpack.c.h.b16 %v3667
        %v5038 = vunpack.c.l.b16 %v3668
        %v5039 = vunpack.c.h.b16 %v3668
        %v5040 = vunpack.c.l.b16 %v3669
        %v5041 = vunpack.c.h.b16 %v3669
        %v5042 = vunpack.c.l.b16 %v3670
        %v5043 = vunpack.c.h.b16 %v3670
        %v5044 = vunpack.c.l.b16 %v3671
        %v5045 = vunpack.c.h.b16 %v3671
        %v5046 = vunpack.c.l.b16 %v3672
        %v5047 = vunpack.c.h.b16 %v3672
        %v5048 = vunpack.c.l.b16 %v3673
        %v5049 = vunpack.c.h.b16 %v3673
        %v5050 = vunpack.c.l.b16 %v3674
        %v5051 = vunpack.c.h.b16 %v3674
        %v5052 = vunpack.c.l.b16 %v3675
        %v5053 = vunpack.c.h.b16 %v3675
        %v5054 = vunpack.c.l.b16 %v3676
        %v5055 = vunpack.c.h.b16 %v3676
        %v5056 = vunpack.c.l.b16 %v3677
        %v5057 = vunpack.c.h.b16 %v3677
        %v5058 = vunpack.c.l.b16 %v3678
        %v5059 = vunpack.c.h.b16 %v3678
        %v5060 = vunpack.c.l.b16 %v3679
        %v5061 = vunpack.c.h.b16 %v3679
        %v5062 = vunpack.c.l.b16 %v3680
        %v5063 = vunpack.c.h.b16 %v3680
        %v5064 = vunpack.c.l.b16 %v3681
        %v5065 = vunpack.c.h.b16 %v3681
        %v5066 = vunpack.c.l.b16 %v3682
        %v5067 = vunpack.c.h.b16 %v3682
        %v5068 = vunpack.c.l.b16 %v3683
        %v5069 = vunpack.c.h.b16 %v3683
        %v5070 = vunpack.c.l.b16 %v3684
        %v5071 = vunpack.c.h.b16 %v3684
        %v5072 = vunpack.c.l.b16 %v3685
        %v5073 = vunpack.c.h.b16 %v3685
        %v5074 = vunpack.c.l.b16 %v3686
        %v5075 = vunpack.c.h.b16 %v3686
        %v5076 = vunpack.c.l.b16 %v3687
        %v5077 = vunpack.c.h.b16 %v3687
        %v5078 = vunpack.c.l.b16 %v3688
        %v5079 = vunpack.c.h.b16 %v3688
        %v5080 = vunpack.c.l.b16 %v3689
        %v5081 = vunpack.c.h.b16 %v3689
        %v5082 = vunpack.c.l.b16 %v3690
        %v5083 = vunpack.c.h.b16 %v3690
        %v5084 = vunpack.c.l.b16 %v3691
        %v5085 = vunpack.c.h.b16 %v3691
        %v5086 = vunpack.c.l.b16 %v3692
        %v5087 = vunpack.c.h.b16 %v3692
        %v5088 = vunpack.c.l.b16 %v3693
        %v5089 = vunpack.c.h.b16 %v3693
        %v5090 = vunpack.c.l.b16 %v3694
        %v5091 = vunpack.c.h.b16 %v3694
        %v5092 = vunpack.c.l.b16 %v3695
        %v5093 = vunpack.c.h.b16 %v3695
        %v5094 = vunpack.c.l.b16 %v3696
        %v5095 = vunpack.c.h.b16 %v3696
        %v5096 = vunpack.c.l.b16 %v3697
        %v5097 = vunpack.c.h.b16 %v3697
        %v5098 = vunpack.c.l.b16 %v3698
        %v5099 = vunpack.c.h.b16 %v3698
        %v5100 = vunpack.c.l.b16 %v3699
        %v5101 = vunpack.c.h.b16 %v3699
        %v5102 = vunpack.c.l.b16 %v3700
        %v5103 = vunpack.c.h.b16 %v3700
        %v5104 = vunpack.c.l.b16 %v3701
        %v5105 = vunpack.c.h.b16 %v3701
        %v5106 = vunpack.c.l.b16 %v3702
        %v5107 = vunpack.c.h.b16 %v3702
        %v5108 = vunpack.c.l.b16 %v3703
        %v5109 = vunpack.c.h.b16 %v3703
        %v5110 = vunpack.c.l.b16 %v3704
        %v5111 = vunpack.c.h.b16 %v3704
        %v5112 = vunpack.c.l.b16 %v3705
        %v5113 = vunpack.c.h.b16 %v3705
        %v5114 = vunpack.c.l.b16 %v3706
        %v5115 = vunpack.c.h.b16 %v3706
        %v5116 = vunpack.c.l.b16 %v3707
        %v5117 = vunpack.c.h.b16 %v3707
        %v5118 = vunpack.c.l.b16 %v3708
        %v5119 = vunpack.c.h.b16 %v3708
        %v5120 = vunpack.c.l.b16 %v3709
        %v5121 = vunpack.c.h.b16 %v3709
        %v5122 = vunpack.c.l.b16 %v3710
        %v5123 = vunpack.c.h.b16 %v3710
        %v5124 = vunpack.c.l.b16 %v3711
        %v5125 = vunpack.c.h.b16 %v3711
        %v5126 = vunpack.c.l.b16 %v3712
        %v5127 = vunpack.c.h.b16 %v3712
        %v5128 = vunpack.c.l.b16 %v3713
        %v5129 = vunpack.c.h.b16 %v3713
        %v5130 = vunpack.c.l.b16 %v3714
        %v5131 = vunpack.c.h.b16 %v3714
        %v5132 = vunpack.c.l.b16 %v3715
        %v5133 = vunpack.c.h.b16 %v3715
        %v5134 = vunpack.c.l.b16 %v3716
        %v5135 = vunpack.c.h.b16 %v3716
        %v5136 = vunpack.c.l.b16 %v3717
        %v5137 = vunpack.c.h.b16 %v3717
        %v5138 = vunpack.c.l.b16 %v3718
        %v5139 = vunpack.c.h.b16 %v3718
        %v5140 = vunpack.c.l.b16 %v3719
        %v5141 = vunpack.c.h.b16 %v3719
        %v5142 = vunpack.c.l.b16 %v3720
        %v5143 = vunpack.c.h.b16 %v3720
        %v5144 = vunpack.c.l.b16 %v3721
        %v5145 = vunpack.c.h.b16 %v3721
        %v5146 = vunpack.c.l.b16 %v3722
        %v5147 = vunpack.c.h.b16 %v3722
        %v5148 = vunpack.c.l.b16 %v3723
        %v5149 = vunpack.c.h.b16 %v3723
        %v5150 = vunpack.c.l.b16 %v3724
        %v5151 = vunpack.c.h.b16 %v3724
        %v5152 = vunpack.c.l.b16 %v3725
        %v5153 = vunpack.c.h.b16 %v3725
        %v5154 = vunpack.c.l.b16 %v3726
        %v5155 = vunpack.c.h.b16 %v3726
        %v5156 = vunpack.c.l.b16 %v3727
        %v5157 = vunpack.c.h.b16 %v3727
        %v5158 = vunpack.c.l.b16 %v3728
        %v5159 = vunpack.c.h.b16 %v3728
        %v5160 = vunpack.c.l.b16 %v3729
        %v5161 = vunpack.c.h.b16 %v3729
        %v5162 = vunpack.c.l.b16 %v3730
        %v5163 = vunpack.c.h.b16 %v3730
        %v5164 = vunpack.c.l.b16 %v3731
        %v5165 = vunpack.c.h.b16 %v3731
        %v5166 = vunpack.c.l.b16 %v3732
        %v5167 = vunpack.c.h.b16 %v3732
        %v5168 = vunpack.c.l.b16 %v3733
        %v5169 = vunpack.c.h.b16 %v3733
        %v5170 = vunpack.c.l.b16 %v3734
        %v5171 = vunpack.c.h.b16 %v3734
        %v5172 = vunpack.c.l.b16 %v3735
        %v5173 = vunpack.c.h.b16 %v3735
        %v5174 = vunpack.c.l.b16 %v3736
        %v5175 = vunpack.c.h.b16 %v3736
        %v5176 = vunpack.c.l.b16 %v3737
        %v5177 = vunpack.c.h.b16 %v3737
        %v5178 = vunpack.c.l.b16 %v3738
        %v5179 = vunpack.c.h.b16 %v3738
        %v5180 = vunpack.c.l.b16 %v3739
        %v5181 = vunpack.c.h.b16 %v3739
        %v5182 = vunpack.c.l.b16 %v3740
        %v5183 = vunpack.c.h.b16 %v3740
        %v5184 = vunpack.c.l.b16 %v3741
        %v5185 = vunpack.c.h.b16 %v3741
        %v5186 = vunpack.c.l.b16 %v3742
        %v5187 = vunpack.c.h.b16 %v3742
        %v5188 = vunpack.c.l.b16 %v3743
        %v5189 = vunpack.c.h.b16 %v3743
        %v5190 = vunpack.c.l.b16 %v3744
        %v5191 = vunpack.c.h.b16 %v3744
        %v5192 = vunpack.c.l.b16 %v3745
        %v5193 = vunpack.c.h.b16 %v3745
        %v5194 = vunpack.c.l.b16 %v3746
        %v5195 = vunpack.c.h.b16 %v3746
        %v5196 = vunpack.c.l.b16 %v3747
        %v5197 = vunpack.c.h.b16 %v3747
        %v5198 = vunpack.c.l.b16 %v3748
        %v5199 = vunpack.c.h.b16 %v3748
        %v5200 = vunpack.c.l.b16 %v3749
        %v5201 = vunpack.c.h.b16 %v3749
        %v5202 = vunpack.c.l.b16 %v3750
        %v5203 = vunpack.c.h.b16 %v3750
        %v5204 = vunpack.c.l.b16 %v3751
        %v5205 = vunpack.c.h.b16 %v3751
        %v5206 = vunpack.c.l.b16 %v3752
        %v5207 = vunpack.c.h.b16 %v3752
        %v5208 = vunpack.c.l.b16 %v3753
        %v5209 = vunpack.c.h.b16 %v3753
        %v5210 = vunpack.c.l.b16 %v3754
        %v5211 = vunpack.c.h.b16 %v3754
        %v5212 = vunpack.c.l.b16 %v3755
        %v5213 = vunpack.c.h.b16 %v3755
        %v5214 = vunpack.c.l.b16 %v3756
        %v5215 = vunpack.c.h.b16 %v3756
        %v5216 = vunpack.c.l.b16 %v3757
        %v5217 = vunpack.c.h.b16 %v3757
        %v5218 = vunpack.c.l.b16 %v3758
        %v5219 = vunpack.c.h.b16 %v3758
        %v5220 = vunpack.c.l.b16 %v3759
        %v5221 = vunpack.c.h.b16 %v3759
        %v5222 = vunpack.c.l.b16 %v3760
        %v5223 = vunpack.c.h.b16 %v3760
        %v5224 = vunpack.c.l.b16 %v3761
        %v5225 = vunpack.c.h.b16 %v3761
        %v5226 = vunpack.c.l.b16 %v3762
        %v5227 = vunpack.c.h.b16 %v3762
        %v5228 = vunpack.c.l.b16 %v3763
        %v5229 = vunpack.c.h.b16 %v3763
        %v5230 = vunpack.c.l.b16 %v3764
        %v5231 = vunpack.c.h.b16 %v3764
        %v5232 = vunpack.c.l.b16 %v3765
        %v5233 = vunpack.c.h.b16 %v3765
        %v5234 = vunpack.c.l.b16 %v3766
        %v5235 = vunpack.c.h.b16 %v3766
        %v5236 = vunpack.c.l.b16 %v3767
        %v5237 = vunpack.c.h.b16 %v3767
        %v5238 = vunpack.c.l.b16 %v3768
        %v5239 = vunpack.c.h.b16 %v3768
        %v5240 = vunpack.c.l.b16 %v3769
        %v5241 = vunpack.c.h.b16 %v3769
        %v5242 = vunpack.c.l.b16 %v3770
        %v5243 = vunpack.c.h.b16 %v3770
        %v5244 = vunpack.c.l.b16 %v3771
        %v5245 = vunpack.c.h.b16 %v3771
        %v5246 = vunpack.c.l.b16 %v3772
        %v5247 = vunpack.c.h.b16 %v3772
        %v5248 = vunpack.c.l.b16 %v3773
        %v5249 = vunpack.c.h.b16 %v3773
        %v5250 = vunpack.c.l.b16 %v3774
        %v5251 = vunpack.c.h.b16 %v3774
        %v5252 = vunpack.c.l.b16 %v3775
        %v5253 = vunpack.c.h.b16 %v3775
        %v5254 = vunpack.c.l.b16 %v3776
        %v5255 = vunpack.c.h.b16 %v3776
        %v5256 = vunpack.c.l.b16 %v3777
        %v5257 = vunpack.c.h.b16 %v3777
        %v5258 = vunpack.c.l.b16 %v3778
        %v5259 = vunpack.c.h.b16 %v3778
        %v5260 = vunpack.c.l.b16 %v3779
        %v5261 = vunpack.c.h.b16 %v3779
        %v5262 = vunpack.c.l.b16 %v3780
        %v5263 = vunpack.c.h.b16 %v3780
        %v5264 = vunpack.c.l.b16 %v3781
        %v5265 = vunpack.c.h.b16 %v3781
        %v5266 = vunpack.c.l.b16 %v3782
        %v5267 = vunpack.c.h.b16 %v3782
        %v5268 = vunpack.c.l.b16 %v3783
        %v5269 = vunpack.c.h.b16 %v3783
        %v5270 = vunpack.c.l.b16 %v3784
        %v5271 = vunpack.c.h.b16 %v3784
        %v5272 = vunpack.c.l.b16 %v3785
        %v5273 = vunpack.c.h.b16 %v3785
        %v5274 = vunpack.c.l.b16 %v3786
        %v5275 = vunpack.c.h.b16 %v3786
        %v5276 = vunpack.c.l.b16 %v3787
        %v5277 = vunpack.c.h.b16 %v3787
        %v5278 = vunpack.c.l.b16 %v3788
        %v5279 = vunpack.c.h.b16 %v3788
        %v5280 = vunpack.c.l.b16 %v3789
        %v5281 = vunpack.c.h.b16 %v3789
        %v5282 = vunpack.c.l.b16 %v3790
        %v5283 = vunpack.c.h.b16 %v3790
        %v5284 = vunpack.c.l.b16 %v3791
        %v5285 = vunpack.c.h.b16 %v3791
        %v5286 = vunpack.c.l.b16 %v3792
        %v5287 = vunpack.c.h.b16 %v3792
        %v5288 = vunpack.c.l.b16 %v3793
        %v5289 = vunpack.c.h.b16 %v3793
        %v5290 = vunpack.c.l.b16 %v3794
        %v5291 = vunpack.c.h.b16 %v3794
        %v5292 = vunpack.c.l.b16 %v3795
        %v5293 = vunpack.c.h.b16 %v3795
        %v5294 = vunpack.c.l.b16 %v3796
        %v5295 = vunpack.c.h.b16 %v3796
        %v5296 = vunpack.c.l.b16 %v3797
        %v5297 = vunpack.c.h.b16 %v3797
        %v5298 = vunpack.c.l.b16 %v3798
        %v5299 = vunpack.c.h.b16 %v3798
        %v5300 = vunpack.c.l.b16 %v3799
        %v5301 = vunpack.c.h.b16 %v3799
        %v5302 = vunpack.c.l.b16 %v3800
        %v5303 = vunpack.c.h.b16 %v3800
        %v5304 = vunpack.c.l.b16 %v3801
        %v5305 = vunpack.c.h.b16 %v3801
        %v5306 = vunpack.c.l.b16 %v3802
        %v5307 = vunpack.c.h.b16 %v3802
        %v5308 = vunpack.c.l.b16 %v3803
        %v5309 = vunpack.c.h.b16 %v3803
        %v5310 = vunpack.c.l.b16 %v3804
        %v5311 = vunpack.c.h.b16 %v3804
        %v5312 = vunpack.c.l.b16 %v3805
        %v5313 = vunpack.c.h.b16 %v3805
        %v5314 = vunpack.c.l.b16 %v3806
        %v5315 = vunpack.c.h.b16 %v3806
        %v5316 = vunpack.c.l.b16 %v3807
        %v5317 = vunpack.c.h.b16 %v3807
        %v5318 = vunpack.c.l.b16 %v3808
        %v5319 = vunpack.c.h.b16 %v3808
        %v5320 = vunpack.c.l.b16 %v3809
        %v5321 = vunpack.c.h.b16 %v3809
        %v5322 = vunpack.c.l.b16 %v3810
        %v5323 = vunpack.c.h.b16 %v3810
        %v5324 = vunpack.c.l.b16 %v3811
        %v5325 = vunpack.c.h.b16 %v3811
        %v5326 = vunpack.c.l.b16 %v3812
        %v5327 = vunpack.c.h.b16 %v3812
        %v5328 = vunpack.c.l.b16 %v3813
        %v5329 = vunpack.c.h.b16 %v3813
        %v5330 = vunpack.c.l.b16 %v3814
        %v5331 = vunpack.c.h.b16 %v3814
        %v5332 = vunpack.c.l.b16 %v3815
        %v5333 = vunpack.c.h.b16 %v3815
        %v5334 = vunpack.c.l.b16 %v3816
        %v5335 = vunpack.c.h.b16 %v3816
        %v5336 = vunpack.c.l.b16 %v3817
        %v5337 = vunpack.c.h.b16 %v3817
        %v5338 = vunpack.c.l.b16 %v3818
        %v5339 = vunpack.c.h.b16 %v3818
        %v5340 = vunpack.c.l.b16 %v3819
        %v5341 = vunpack.c.h.b16 %v3819
        %v5342 = vunpack.c.l.b16 %v3820
        %v5343 = vunpack.c.h.b16 %v3820
        %v5344 = vunpack.c.l.b16 %v3821
        %v5345 = vunpack.c.h.b16 %v3821
        %v5346 = vunpack.c.l.b16 %v3822
        %v5347 = vunpack.c.h.b16 %v3822
        %v5348 = vunpack.c.l.b16 %v3823
        %v5349 = vunpack.c.h.b16 %v3823
        %v5350 = vunpack.c.l.b16 %v3824
        %v5351 = vunpack.c.h.b16 %v3824
        %v5352 = vunpack.c.l.b16 %v3825
        %v5353 = vunpack.c.h.b16 %v3825
        %v5354 = vunpack.c.l.b16 %v3826
        %v5355 = vunpack.c.h.b16 %v3826
        %v5356 = vunpack.c.l.b16 %v3827
        %v5357 = vunpack.c.h.b16 %v3827
        %v5358 = vunpack.c.l.b16 %v3828
        %v5359 = vunpack.c.h.b16 %v3828
        %v5360 = vunpack.c.l.b16 %v3829
        %v5361 = vunpack.c.h.b16 %v3829
        %v5362 = vunpack.c.l.b16 %v3830
        %v5363 = vunpack.c.h.b16 %v3830
        %v5364 = vunpack.c.l.b16 %v3831
        %v5365 = vunpack.c.h.b16 %v3831
        %v5366 = vunpack.c.l.b16 %v3832
        %v5367 = vunpack.c.h.b16 %v3832
        %v5368 = vunpack.c.l.b16 %v3833
        %v5369 = vunpack.c.h.b16 %v3833
        %v5370 = vunpack.c.l.b16 %v3834
        %v5371 = vunpack.c.h.b16 %v3834
        %v5372 = vunpack.c.l.b16 %v3835
        %v5373 = vunpack.c.h.b16 %v3835
        %v5374 = vunpack.c.l.b16 %v3836
        %v5375 = vunpack.c.h.b16 %v3836
        %v5376 = vunpack.c.l.b16 %v3837
        %v5377 = vunpack.c.h.b16 %v3837
        %v5378 = vunpack.c.l.b16 %v3838
        %v5379 = vunpack.c.h.b16 %v3838
        %v5380 = vunpack.c.l.b16 %v3839
        %v5381 = vunpack.c.h.b16 %v3839
        %v5382 = vunpack.c.l.b16 %v3840
        %v5383 = vunpack.c.h.b16 %v3840
        %v5384 = vunpack.c.l.b16 %v3841
        %v5385 = vunpack.c.h.b16 %v3841
        %v5386 = vunpack.c.l.b16 %v3842
        %v5387 = vunpack.c.h.b16 %v3842
        %v5388 = vunpack.c.l.b16 %v3843
        %v5389 = vunpack.c.h.b16 %v3843
        %v5390 = vunpack.c.l.b16 %v3844
        %v5391 = vunpack.c.h.b16 %v3844
        %v5392 = vunpack.c.l.b16 %v3845
        %v5393 = vunpack.c.h.b16 %v3845
        %v5394 = vunpack.c.l.b16 %v3846
        %v5395 = vunpack.c.h.b16 %v3846
        %v5396 = vunpack.c.l.b16 %v3847
        %v5397 = vunpack.c.h.b16 %v3847
        %v5398 = vunpack.c.l.b16 %v3848
        %v5399 = vunpack.c.h.b16 %v3848
        %v5400 = vunpack.c.l.b16 %v3849
        %v5401 = vunpack.c.h.b16 %v3849
        %v5402 = vunpack.c.l.b16 %v3850
        %v5403 = vunpack.c.h.b16 %v3850
        %v5404 = vunpack.c.l.b16 %v3851
        %v5405 = vunpack.c.h.b16 %v3851
        %v5406 = vunpack.c.l.b16 %v3852
        %v5407 = vunpack.c.h.b16 %v3852
        %v5408 = vunpack.c.l.b16 %v3853
        %v5409 = vunpack.c.h.b16 %v3853
        %v5410 = vunpack.c.l.b16 %v3854
        %v5411 = vunpack.c.h.b16 %v3854
        %v5412 = vunpack.c.l.b16 %v3855
        %v5413 = vunpack.c.h.b16 %v3855
        %v5414 = vunpack.c.l.b16 %v3856
        %v5415 = vunpack.c.h.b16 %v3856
        %v5416 = vunpack.c.l.b16 %v3857
        %v5417 = vunpack.c.h.b16 %v3857
        %v5418 = vunpack.c.l.b16 %v3858
        %v5419 = vunpack.c.h.b16 %v3858
        %v5420 = vunpack.c.l.b16 %v3859
        %v5421 = vunpack.c.h.b16 %v3859
        %v5422 = vunpack.c.l.b16 %v3860
        %v5423 = vunpack.c.h.b16 %v3860
        %v5424 = vunpack.c.l.b16 %v3861
        %v5425 = vunpack.c.h.b16 %v3861
        %v5426 = vunpack.c.l.b16 %v3862
        %v5427 = vunpack.c.h.b16 %v3862
        %v5428 = vunpack.c.l.b16 %v3863
        %v5429 = vunpack.c.h.b16 %v3863
        %v5430 = vunpack.c.l.b16 %v3864
        %v5431 = vunpack.c.h.b16 %v3864
        %v5432 = vunpack.c.l.b16 %v3865
        %v5433 = vunpack.c.h.b16 %v3865
        %v5434 = vunpack.c.l.b16 %v3866
        %v5435 = vunpack.c.h.b16 %v3866
        %v5436 = vunpack.c.l.b16 %v3867
        %v5437 = vunpack.c.h.b16 %v3867
        %v5438 = vunpack.c.l.b16 %v3868
        %v5439 = vunpack.c.h.b16 %v3868
        %v5440 = vunpack.c.l.b16 %v3869
        %v5441 = vunpack.c.h.b16 %v3869
        %v5442 = vunpack.c.l.b16 %v3870
        %v5443 = vunpack.c.h.b16 %v3870
        %v5444 = vunpack.c.l.b16 %v3871
        %v5445 = vunpack.c.h.b16 %v3871
        %v5446 = vunpack.c.l.b16 %v3872
        %v5447 = vunpack.c.h.b16 %v3872
        %v5448 = vunpack.c.l.b16 %v3873
        %v5449 = vunpack.c.h.b16 %v3873
        %v5450 = vunpack.c.l.b16 %v3874
        %v5451 = vunpack.c.h.b16 %v3874
        %v5452 = vunpack.c.l.b16 %v3875
        %v5453 = vunpack.c.h.b16 %v3875
        %v5454 = vunpack.c.l.b16 %v3876
        %v5455 = vunpack.c.h.b16 %v3876
        %v5456 = vunpack.c.l.b16 %v3877
        %v5457 = vunpack.c.h.b16 %v3877
        %v5458 = vunpack.c.l.b16 %v3878
        %v5459 = vunpack.c.h.b16 %v3878
        %v5460 = vunpack.c.l.b16 %v3879
        %v5461 = vunpack.c.h.b16 %v3879
        %v5462 = vunpack.c.l.b16 %v3880
        %v5463 = vunpack.c.h.b16 %v3880
        %v5464 = vunpack.c.l.b16 %v3881
        %v5465 = vunpack.c.h.b16 %v3881
        %v5466 = vunpack.c.l.b16 %v3882
        %v5467 = vunpack.c.h.b16 %v3882
        %v5468 = vunpack.c.l.b16 %v3883
        %v5469 = vunpack.c.h.b16 %v3883
        %v5470 = vunpack.c.l.b16 %v3884
        %v5471 = vunpack.c.h.b16 %v3884
        %v5472 = vunpack.c.l.b16 %v3885
        %v5473 = vunpack.c.h.b16 %v3885
        %v5474 = vunpack.c.l.b16 %v3886
        %v5475 = vunpack.c.h.b16 %v3886
        %v5476 = vunpack.c.l.b16 %v3887
        %v5477 = vunpack.c.h.b16 %v3887
        %v5478 = vunpack.c.l.b16 %v3888
        %v5479 = vunpack.c.h.b16 %v3888
        %v5480 = vunpack.c.l.b16 %v3889
        %v5481 = vunpack.c.h.b16 %v3889
        %v5482 = vunpack.c.l.b16 %v3890
        %v5483 = vunpack.c.h.b16 %v3890
        %v5484 = vunpack.c.l.b16 %v3891
        %v5485 = vunpack.c.h.b16 %v3891
        %v5486 = vunpack.c.l.b16 %v3892
        %v5487 = vunpack.c.h.b16 %v3892
        %v5488 = vunpack.c.l.b16 %v3893
        %v5489 = vunpack.c.h.b16 %v3893
        %v5490 = vunpack.c.l.b16 %v3894
        %v5491 = vunpack.c.h.b16 %v3894
        %v5492 = vunpack.c.l.b16 %v3895
        %v5493 = vunpack.c.h.b16 %v3895
        %v5494 = vunpack.c.l.b16 %v3896
        %v5495 = vunpack.c.h.b16 %v3896
        %v5496 = vunpack.c.l.b16 %v3897
        %v5497 = vunpack.c.h.b16 %v3897
        %v5498 = vunpack.c.l.b16 %v3898
        %v5499 = vunpack.c.h.b16 %v3898
        %v5500 = vunpack.c.l.b16 %v3899
        %v5501 = vunpack.c.h.b16 %v3899
        %v5502 = vunpack.c.l.b16 %v3900
        %v5503 = vunpack.c.h.b16 %v3900
        %v5504 = vunpack.c.l.b16 %v3901
        %v5505 = vunpack.c.h.b16 %v3901
        %v5506 = vunpack.c.l.b16 %v3902
        %v5507 = vunpack.c.h.b16 %v3902
        %v5508 = vunpack.c.l.b16 %v3903
        %v5509 = vunpack.c.h.b16 %v3903
        %v5510 = vunpack.c.l.b16 %v3904
        %v5511 = vunpack.c.h.b16 %v3904
        %v5512 = vunpack.c.l.b16 %v3905
        %v5513 = vunpack.c.h.b16 %v3905
        %v5514 = vunpack.c.l.b16 %v3906
        %v5515 = vunpack.c.h.b16 %v3906
        %v5516 = vunpack.c.l.b16 %v3907
        %v5517 = vunpack.c.h.b16 %v3907
        %v5518 = vunpack.c.l.b16 %v3908
        %v5519 = vunpack.c.h.b16 %v3908
        %v5520 = vunpack.c.l.b16 %v3909
        %v5521 = vunpack.c.h.b16 %v3909
        %v5522 = vunpack.c.l.b16 %v3910
        %v5523 = vunpack.c.h.b16 %v3910
        %v5524 = vunpack.c.l.b16 %v3911
        %v5525 = vunpack.c.h.b16 %v3911
        %v5526 = vunpack.c.l.b16 %v3912
        %v5527 = vunpack.c.h.b16 %v3912
        %v5528 = vunpack.c.l.b16 %v3913
        %v5529 = vunpack.c.h.b16 %v3913
        %v5530 = vunpack.c.l.b16 %v3914
        %v5531 = vunpack.c.h.b16 %v3914
        %v5532 = vunpack.c.l.b16 %v3915
        %v5533 = vunpack.c.h.b16 %v3915
        %v5534 = vunpack.c.l.b16 %v3916
        %v5535 = vunpack.c.h.b16 %v3916
        %v5536 = vunpack.c.l.b16 %v3917
        %v5537 = vunpack.c.h.b16 %v3917
        %v5538 = vunpack.c.l.b16 %v3918
        %v5539 = vunpack.c.h.b16 %v3918
        %v5540 = vunpack.c.l.b16 %v3919
        %v5541 = vunpack.c.h.b16 %v3919
        %v5542 = vunpack.c.l.b16 %v3920
        %v5543 = vunpack.c.h.b16 %v3920
        %v5544 = vunpack.c.l.b16 %v3921
        %v5545 = vunpack.c.h.b16 %v3921
        %v5546 = vunpack.c.l.b16 %v3922
        %v5547 = vunpack.c.h.b16 %v3922
        %v5548 = vunpack.c.l.b16 %v3923
        %v5549 = vunpack.c.h.b16 %v3923
        %v5550 = vunpack.c.l.b16 %v3924
        %v5551 = vunpack.c.h.b16 %v3924
        %v5552 = vunpack.c.l.b16 %v3925
        %v5553 = vunpack.c.h.b16 %v3925
        %v5554 = vunpack.c.l.b16 %v3926
        %v5555 = vunpack.c.h.b16 %v3926
        %v5556 = vunpack.c.l.b16 %v3927
        %v5557 = vunpack.c.h.b16 %v3927
        %v5558 = vunpack.c.l.b16 %v3928
        %v5559 = vunpack.c.h.b16 %v3928
        %v5560 = vunpack.c.l.b16 %v3929
        %v5561 = vunpack.c.h.b16 %v3929
        %v5562 = vunpack.c.l.b16 %v3930
        %v5563 = vunpack.c.h.b16 %v3930
        %v5564 = vunpack.c.l.b16 %v3931
        %v5565 = vunpack.c.h.b16 %v3931
        %v5566 = vunpack.c.l.b16 %v3932
        %v5567 = vunpack.c.h.b16 %v3932
        %v5568 = vunpack.c.l.b16 %v3933
        %v5569 = vunpack.c.h.b16 %v3933
        %v5570 = vunpack.c.l.b16 %v3934
        %v5571 = vunpack.c.h.b16 %v3934
        %v5572 = vunpack.c.l.b16 %v3935
        %v5573 = vunpack.c.h.b16 %v3935
        %v5574 = vunpack.c.l.b16 %v3936
        %v5575 = vunpack.c.h.b16 %v3936
        %v5576 = vunpack.c.l.b16 %v3937
        %v5577 = vunpack.c.h.b16 %v3937
        %v5578 = vunpack.c.l.b16 %v3938
        %v5579 = vunpack.c.h.b16 %v3938
        %v5580 = vunpack.c.l.b16 %v3939
        %v5581 = vunpack.c.h.b16 %v3939
        %v5582 = vunpack.c.l.b16 %v3940
        %v5583 = vunpack.c.h.b16 %v3940
        %v5584 = vunpack.c.l.b16 %v3941
        %v5585 = vunpack.c.h.b16 %v3941
        %v5586 = vunpack.c.l.b16 %v3942
        %v5587 = vunpack.c.h.b16 %v3942
        %v5588 = vunpack.c.l.b16 %v3943
        %v5589 = vunpack.c.h.b16 %v3943
        %v5590 = vunpack.c.l.b16 %v3944
        %v5591 = vunpack.c.h.b16 %v3944
        %v5592 = vunpack.c.l.b16 %v3945
        %v5593 = vunpack.c.h.b16 %v3945
        %v5594 = vunpack.c.l.b16 %v3946
        %v5595 = vunpack.c.h.b16 %v3946
        %v5596 = vunpack.c.l.b16 %v3947
        %v5597 = vunpack.c.h.b16 %v3947
        %v5598 = vunpack.c.l.b16 %v3948
        %v5599 = vunpack.c.h.b16 %v3948
        %v5600 = vunpack.c.l.b16 %v3949
        %v5601 = vunpack.c.h.b16 %v3949
        %v5602 = vunpack.c.l.b16 %v3950
        %v5603 = vunpack.c.h.b16 %v3950
        %v5604 = vunpack.c.l.b16 %v3951
        %v5605 = vunpack.c.h.b16 %v3951
        %v5606 = vunpack.c.l.b16 %v3952
        %v5607 = vunpack.c.h.b16 %v3952
        %v5608 = vunpack.c.l.b16 %v3953
        %v5609 = vunpack.c.h.b16 %v3953
        %v5610 = vunpack.c.l.b16 %v3954
        %v5611 = vunpack.c.h.b16 %v3954
        %v5612 = vunpack.c.l.b16 %v3955
        %v5613 = vunpack.c.h.b16 %v3955
        %v5614 = vunpack.c.l.b16 %v3956
        %v5615 = vunpack.c.h.b16 %v3956
        %v5616 = vunpack.c.l.b16 %v3957
        %v5617 = vunpack.c.h.b16 %v3957
        %v5618 = vunpack.c.l.b16 %v3958
        %v5619 = vunpack.c.h.b16 %v3958
        %v5620 = vunpack.c.l.b16 %v3959
        %v5621 = vunpack.c.h.b16 %v3959
        %v5622 = vunpack.c.l.b16 %v3960
        %v5623 = vunpack.c.h.b16 %v3960
        %v5624 = vunpack.c.l.b16 %v3961
        %v5625 = vunpack.c.h.b16 %v3961
        %v5626 = vunpack.c.l.b16 %v3962
        %v5627 = vunpack.c.h.b16 %v3962
        %v5628 = vunpack.c.l.b16 %v3963
        %v5629 = vunpack.c.h.b16 %v3963
        %v5630 = vunpack.c.l.b16 %v3964
        %v5631 = vunpack.c.h.b16 %v3964
        %v5632 = vunpack.c.l.b16 %v3965
        %v5633 = vunpack.c.h.b16 %v3965
        %v5634 = vunpack.c.l.b16 %v3966
        %v5635 = vunpack.c.h.b16 %v3966
        %v5636 = vunpack.c.l.b16 %v3967
        %v5637 = vunpack.c.h.b16 %v3967
        %v5638 = vunpack.c.l.b16 %v3968
        %v5639 = vunpack.c.h.b16 %v3968
        %v5640 = vunpack.c.l.b16 %v3969
        %v5641 = vunpack.c.h.b16 %v3969
        %v5642 = vunpack.c.l.b16 %v3970
        %v5643 = vunpack.c.h.b16 %v3970
        %v5644 = vunpack.c.l.b16 %v3971
        %v5645 = vunpack.c.h.b16 %v3971
        %v5646 = vunpack.c.l.b16 %v3972
        %v5647 = vunpack.c.h.b16 %v3972
        %v5648 = vunpack.c.l.b16 %v3973
        %v5649 = vunpack.c.h.b16 %v3973
        %v5650 = vunpack.c.l.b16 %v3974
        %v5651 = vunpack.c.h.b16 %v3974
        %v5652 = vunpack.c.l.b16 %v3975
        %v5653 = vunpack.c.h.b16 %v3975
        %v5654 = vunpack.c.l.b16 %v3976
        %v5655 = vunpack.c.h.b16 %v3976
        %v5656 = vunpack.c.l.b16 %v3977
        %v5657 = vunpack.c.h.b16 %v3977
        %v5658 = vunpack.c.l.b16 %v3978
        %v5659 = vunpack.c.h.b16 %v3978
        %v5660 = vunpack.c.l.b16 %v3979
        %v5661 = vunpack.c.h.b16 %v3979
        %v5662 = vunpack.c.l.b16 %v3980
        %v5663 = vunpack.c.h.b16 %v3980
        %v5664 = vunpack.c.l.b16 %v3981
        %v5665 = vunpack.c.h.b16 %v3981
        %v5666 = vunpack.c.l.b16 %v3982
        %v5667 = vunpack.c.h.b16 %v3982
        %v5668 = vunpack.c.l.b16 %v3983
        %v5669 = vunpack.c.h.b16 %v3983
        %v5670 = vunpack.c.l.b16 %v3984
        %v5671 = vunpack.c.h.b16 %v3984
        %v5672 = vunpack.c.l.b16 %v3985
        %v5673 = vunpack.c.h.b16 %v3985
        %v5674 = vunpack.c.l.b16 %v3986
        %v5675 = vunpack.c.h.b16 %v3986
        %v5676 = vunpack.c.l.b16 %v3987
        %v5677 = vunpack.c.h.b16 %v3987
        %v5678 = vunpack.c.l.b16 %v3988
        %v5679 = vunpack.c.h.b16 %v3988
        %v5680 = vunpack.c.l.b16 %v3989
        %v5681 = vunpack.c.h.b16 %v3989
        %v5682 = vunpack.c.l.b16 %v3990
        %v5683 = vunpack.c.h.b16 %v3990
        %v5684 = vunpack.c.l.b16 %v3991
        %v5685 = vunpack.c.h.b16 %v3991
        %v5686 = vunpack.c.l.b16 %v3992
        %v5687 = vunpack.c.h.b16 %v3992
        %v5688 = vunpack.c.l.b16 %v3993
        %v5689 = vunpack.c.h.b16 %v3993
        %v5690 = vunpack.c.l.b16 %v3994
        %v5691 = vunpack.c.h.b16 %v3994
        %v5692 = vunpack.c.l.b16 %v3995
        %v5693 = vunpack.c.h.b16 %v3995
        %v5694 = vunpack.c.l.b16 %v3996
        %v5695 = vunpack.c.h.b16 %v3996
        %v5696 = vunpack.c.l.b16 %v3997
        %v5697 = vunpack.c.h.b16 %v3997
        %v5698 = vunpack.c.l.b16 %v3998
        %v5699 = vunpack.c.h.b16 %v3998
        %v5700 = vunpack.c.l.b16 %v3999
        %v5701 = vunpack.c.h.b16 %v3999
        %v5702 = vunpack.c.l.b16 %v4000
        %v5703 = vunpack.c.h.b16 %v4000
        %v5704 = vunpack.c.l.b16 %v4001
        %v5705 = vunpack.c.h.b16 %v4001
        %v5706 = vunpack.c.l.b16 %v4002
        %v5707 = vunpack.c.h.b16 %v4002
        %v5708 = vunpack.c.l.b16 %v4003
        %v5709 = vunpack.c.h.b16 %v4003
        %v5710 = vunpack.c.l.b16 %v4004
        %v5711 = vunpack.c.h.b16 %v4004
        %v5712 = vunpack.c.l.b16 %v4005
        %v5713 = vunpack.c.h.b16 %v4005
        %v5714 = vunpack.c.l.b16 %v4006
        %v5715 = vunpack.c.h.b16 %v4006
        %v5716 = vunpack.c.l.b16 %v4007
        %v5717 = vunpack.c.h.b16 %v4007
        %v5718 = vunpack.c.l.b16 %v4008
        %v5719 = vunpack.c.h.b16 %v4008
        %v5720 = vunpack.c.l.b16 %v4009
        %v5721 = vunpack.c.h.b16 %v4009
        %v5722 = vunpack.c.l.b16 %v4010
        %v5723 = vunpack.c.h.b16 %v4010
        %v5724 = vunpack.c.l.b16 %v4011
        %v5725 = vunpack.c.h.b16 %v4011
        %v5726 = vunpack.c.l.b16 %v4012
        %v5727 = vunpack.c.h.b16 %v4012
        %v5728 = vunpack.c.l.b16 %v4013
        %v5729 = vunpack.c.h.b16 %v4013
        %v5730 = vunpack.c.l.b16 %v4014
        %v5731 = vunpack.c.h.b16 %v4014
        %v5732 = vunpack.c.l.b16 %v4015
        %v5733 = vunpack.c.h.b16 %v4015
        %v5734 = vunpack.c.l.b16 %v4016
        %v5735 = vunpack.c.h.b16 %v4016
        %v5736 = vunpack.c.l.b16 %v4017
        %v5737 = vunpack.c.h.b16 %v4017
        %v5738 = vunpack.c.l.b16 %v4018
        %v5739 = vunpack.c.h.b16 %v4018
        %v5740 = vunpack.c.l.b16 %v4019
        %v5741 = vunpack.c.h.b16 %v4019
        %v5742 = vunpack.c.l.b16 %v4020
        %v5743 = vunpack.c.h.b16 %v4020
        %v5744 = vunpack.c.l.b16 %v4021
        %v5745 = vunpack.c.h.b16 %v4021
        %v5746 = vunpack.c.l.b16 %v4022
        %v5747 = vunpack.c.h.b16 %v4022
        %v5748 = vunpack.c.l.b16 %v4023
        %v5749 = vunpack.c.h.b16 %v4023
        %v5750 = vunpack.c.l.b16 %v4024
        %v5751 = vunpack.c.h.b16 %v4024
        %v5752 = vunpack.c.l.b16 %v4025
        %v5753 = vunpack.c.h.b16 %v4025
        %v5754 = vunpack.c.l.b16 %v4026
        %v5755 = vunpack.c.h.b16 %v4026
        %v5756 = vunpack.c.l.b16 %v4027
        %v5757 = vunpack.c.h.b16 %v4027
        %v5758 = vunpack.c.l.b16 %v4028
        %v5759 = vunpack.c.h.b16 %v4028
        %v5760 = vunpack.c.l.b16 %v4029
        %v5761 = vunpack.c.h.b16 %v4029
        %v5762 = vunpack.c.l.b16 %v4030
        %v5763 = vunpack.c.h.b16 %v4030
        %v5764 = vunpack.c.l.b16 %v4031
        %v5765 = vunpack.c.h.b16 %v4031
        %v5766 = vunpack.c.l.b16 %v4032
        %v5767 = vunpack.c.h.b16 %v4032
        %v5768 = vunpack.c.l.b16 %v4033
        %v5769 = vunpack.c.h.b16 %v4033
        %v5770 = vunpack.c.l.b16 %v4034
        %v5771 = vunpack.c.h.b16 %v4034
        %v5772 = vunpack.c.l.b16 %v4035
        %v5773 = vunpack.c.h.b16 %v4035
        %v5774 = vunpack.c.l.b16 %v4036
        %v5775 = vunpack.c.h.b16 %v4036
        %v5776 = vunpack.c.l.b16 %v4037
        %v5777 = vunpack.c.h.b16 %v4037
        %v5778 = vunpack.c.l.b16 %v4038
        %v5779 = vunpack.c.h.b16 %v4038
        %v5780 = vunpack.c.l.b16 %v4039
        %v5781 = vunpack.c.h.b16 %v4039
        %v5782 = vunpack.c.l.b16 %v4040
        %v5783 = vunpack.c.h.b16 %v4040
        %v5784 = vunpack.c.l.b16 %v4041
        %v5785 = vunpack.c.h.b16 %v4041
        %v5786 = vunpack.c.l.b16 %v4042
        %v5787 = vunpack.c.h.b16 %v4042
        %v5788 = vunpack.c.l.b16 %v4043
        %v5789 = vunpack.c.h.b16 %v4043
        %v5790 = vunpack.c.l.b16 %v4044
        %v5791 = vunpack.c.h.b16 %v4044
        %v5792 = vunpack.c.l.b16 %v4045
        %v5793 = vunpack.c.h.b16 %v4045
        %v5794 = vunpack.c.l.b16 %v4046
        %v5795 = vunpack.c.h.b16 %v4046
        %v5796 = vunpack.c.l.b16 %v4047
        %v5797 = vunpack.c.h.b16 %v4047
        %v5798 = vunpack.c.l.b16 %v4048
        %v5799 = vunpack.c.h.b16 %v4048
        %v5800 = vunpack.c.l.b16 %v4049
        %v5801 = vunpack.c.h.b16 %v4049
        %v5802 = vunpack.c.l.b16 %v4050
        %v5803 = vunpack.c.h.b16 %v4050
        %v5804 = vunpack.c.l.b16 %v4051
        %v5805 = vunpack.c.h.b16 %v4051
        %v5806 = vunpack.c.l.b16 %v4052
        %v5807 = vunpack.c.h.b16 %v4052
        %v5808 = vunpack.c.l.b16 %v4053
        %v5809 = vunpack.c.h.b16 %v4053
        %v5810 = vunpack.c.l.b16 %v4054
        %v5811 = vunpack.c.h.b16 %v4054
        %v5812 = vunpack.c.l.b16 %v4055
        %v5813 = vunpack.c.h.b16 %v4055
        %v5814 = vunpack.c.l.b16 %v4056
        %v5815 = vunpack.c.h.b16 %v4056
        %v5816 = vunpack.c.l.b16 %v4057
        %v5817 = vunpack.c.h.b16 %v4057
        %v5818 = vunpack.c.l.b16 %v4058
        %v5819 = vunpack.c.h.b16 %v4058
        %v5820 = vunpack.c.l.b16 %v4059
        %v5821 = vunpack.c.h.b16 %v4059
        %v5822 = vunpack.c.l.b16 %v4060
        %v5823 = vunpack.c.h.b16 %v4060
        %v5824 = vunpack.c.l.b16 %v4061
        %v5825 = vunpack.c.h.b16 %v4061
        %v5826 = vunpack.c.l.b16 %v4062
        %v5827 = vunpack.c.h.b16 %v4062
        %v5828 = vunpack.c.l.b16 %v4063
        %v5829 = vunpack.c.h.b16 %v4063
        %v5830 = vunpack.c.l.b16 %v4064
        %v5831 = vunpack.c.h.b16 %v4064
        %v5832 = vunpack.c.l.b16 %v4065
        %v5833 = vunpack.c.h.b16 %v4065
        %v5834 = vunpack.c.l.b16 %v4066
        %v5835 = vunpack.c.h.b16 %v4066
        %v5836 = vunpack.c.l.b16 %v4067
        %v5837 = vunpack.c.h.b16 %v4067
        %v5838 = vunpack.c.l.b16 %v4068
        %v5839 = vunpack.c.h.b16 %v4068
        %v5840 = vunpack.c.l.b16 %v4069
        %v5841 = vunpack.c.h.b16 %v4069
        %v5842 = vunpack.c.l.b16 %v4070
        %v5843 = vunpack.c.h.b16 %v4070
        %v5844 = vunpack.c.l.b16 %v4071
        %v5845 = vunpack.c.h.b16 %v4071
        %v5846 = vunpack.c.l.b16 %v4072
        %v5847 = vunpack.c.h.b16 %v4072
        %v5848 = vunpack.c.l.b16 %v4073
        %v5849 = vunpack.c.h.b16 %v4073
        %v5850 = vunpack.c.l.b16 %v4074
        %v5851 = vunpack.c.h.b16 %v4074
        %v5852 = vunpack.c.l.b16 %v4075
        %v5853 = vunpack.c.h.b16 %v4075
        %v5854 = vunpack.c.l.b16 %v4076
        %v5855 = vunpack.c.h.b16 %v4076
        %v5856 = vunpack.c.l.b16 %v4077
        %v5857 = vunpack.c.h.b16 %v4077
        %v5858 = vunpack.c.l.b16 %v4078
        %v5859 = vunpack.c.h.b16 %v4078
        %v5860 = vunpack.c.l.b16 %v4079
        %v5861 = vunpack.c.h.b16 %v4079
        %v5862 = vunpack.c.l.b16 %v4080
        %v5863 = vunpack.c.h.b16 %v4080
        %v5864 = vunpack.c.l.b16 %v4081
        %v5865 = vunpack.c.h.b16 %v4081
        %v5866 = vunpack.c.l.b16 %v4082
        %v5867 = vunpack.c.h.b16 %v4082
        %v5868 = vunpack.c.l.b16 %v4083
        %v5869 = vunpack.c.h.b16 %v4083
        %v5870 = vunpack.c.l.b16 %v4084
        %v5871 = vunpack.c.h.b16 %v4084
        %v5872 = vunpack.c.l.b16 %v4085
        %v5873 = vunpack.c.h.b16 %v4085
        %v5874 = vunpack.c.l.b16 %v4086
        %v5875 = vunpack.c.h.b16 %v4086
        %v5876 = vunpack.c.l.b16 %v4087
        %v5877 = vunpack.c.h.b16 %v4087
        %v5878 = vunpack.c.l.b16 %v4088
        %v5879 = vunpack.c.h.b16 %v4088
        %v5880 = vunpack.c.l.b16 %v4089
        %v5881 = vunpack.c.h.b16 %v4089
        %v5882 = vunpack.c.l.b16 %v4090
        %v5883 = vunpack.c.h.b16 %v4090
        %v5884 = vunpack.c.l.b16 %v4091
        %v5885 = vunpack.c.h.b16 %v4091
        %v5886 = vunpack.c.l.b16 %v4092
        %v5887 = vunpack.c.h.b16 %v4092
        %v5888 = vunpack.c.l.b16 %v4093
        %v5889 = vunpack.c.h.b16 %v4093
        %v5890 = vunpack.c.l.b16 %v4094
        %v5891 = vunpack.c.h.b16 %v4094
        %v5892 = vunpack.c.l.b16 %v4095
        %v5893 = vunpack.c.h.b16 %v4095
        %v5894 = vunpack.c.l.b16 %v4096
        %v5895 = vunpack.c.h.b16 %v4096
        %v5896 = vunpack.c.l.b16 %v4097
        %v5897 = vunpack.c.h.b16 %v4097
        %v5898 = vunpack.c.l.b16 %v4098
        %v5899 = vunpack.c.h.b16 %v4098
        %v5900 = vunpack.c.l.b16 %v4099
        %v5901 = vunpack.c.h.b16 %v4099
        %v5902 = vunpack.c.l.b16 %v4100
        %v5903 = vunpack.c.h.b16 %v4100
        %v5904 = vunpack.c.l.b16 %v4101
        %v5905 = vunpack.c.h.b16 %v4101
        %v5906 = vunpack.c.l.b16 %v4102
        %v5907 = vunpack.c.h.b16 %v4102
        %v5908 = vunpack.c.l.b16 %v4103
        %v5909 = vunpack.c.h.b16 %v4103
        %v5910 = vunpack.c.l.b16 %v4104
        %v5911 = vunpack.c.h.b16 %v4104
        %v5912 = vunpack.c.l.b16 %v4105
        %v5913 = vunpack.c.h.b16 %v4105
        %v5914 = vunpack.c.l.b16 %v4106
        %v5915 = vunpack.c.h.b16 %v4106
        %v5916 = vunpack.c.l.b16 %v4107
        %v5917 = vunpack.c.h.b16 %v4107
        %v5918 = vunpack.c.l.b16 %v4108
        %v5919 = vunpack.c.h.b16 %v4108
        %v5920 = vunpack.c.l.b16 %v4109
        %v5921 = vunpack.c.h.b16 %v4109
        %v5922 = vunpack.c.l.b16 %v4110
        %v5923 = vunpack.c.h.b16 %v4110
        %v5924 = vunpack.c.l.b16 %v4111
        %v5925 = vunpack.c.h.b16 %v4111
        %v5926 = vunpack.c.l.b16 %v4112
        %v5927 = vunpack.c.h.b16 %v4112
        %v5928 = vunpack.c.l.b16 %v4113
        %v5929 = vunpack.c.h.b16 %v4113
        %v5930 = vunpack.c.l.b16 %v4114
        %v5931 = vunpack.c.h.b16 %v4114
        %v5932 = vunpack.c.l.b16 %v4115
        %v5933 = vunpack.c.h.b16 %v4115
        %v5934 = vunpack.c.l.b16 %v4116
        %v5935 = vunpack.c.h.b16 %v4116
        %v5936 = vunpack.c.l.b16 %v4117
        %v5937 = vunpack.c.h.b16 %v4117
        %v5938 = vunpack.c.l.b16 %v4118
        %v5939 = vunpack.c.h.b16 %v4118
        %v5940 = vunpack.c.l.b16 %v4119
        %v5941 = vunpack.c.h.b16 %v4119
        %v5942 = vunpack.c.l.b16 %v4120
        %v5943 = vunpack.c.h.b16 %v4120
        %v5944 = vunpack.c.l.b16 %v4121
        %v5945 = vunpack.c.h.b16 %v4121
        %v5946 = vunpack.c.l.b16 %v4122
        %v5947 = vunpack.c.h.b16 %v4122
        %v5948 = vunpack.c.l.b16 %v4123
        %v5949 = vunpack.c.h.b16 %v4123
        %v5950 = vunpack.c.l.b16 %v4124
        %v5951 = vunpack.c.h.b16 %v4124
        %v5952 = vunpack.c.l.b16 %v4125
        %v5953 = vunpack.c.h.b16 %v4125
        %v5954 = vunpack.c.l.b16 %v4126
        %v5955 = vunpack.c.h.b16 %v4126
        %v5956 = vunpack.c.l.b16 %v4127
        %v5957 = vunpack.c.h.b16 %v4127
        %v5958 = vunpack.c.l.b16 %v4128
        %v5959 = vunpack.c.h.b16 %v4128
        %v5960 = vunpack.c.l.b16 %v4129
        %v5961 = vunpack.c.h.b16 %v4129
        %v5962 = vunpack.c.l.b16 %v4130
        %v5963 = vunpack.c.h.b16 %v4130
        %v5964 = vunpack.c.l.b16 %v4131
        %v5965 = vunpack.c.h.b16 %v4131
        %v5966 = vpack.c.b16 %v4950, %v4942
        %v5967 = vpack.c.b16 %v4951, %v4943
        %v5968 = vpack.c.b16 %v4952, %v4944
        %v5969 = vpack.c.b16 %v4953, %v4945
        %v5970 = vpack.c.b16 %v4954, %v4946
        %v5971 = vpack.c.b16 %v4955, %v4947
        %v5972 = vpack.c.b16 %v4956, %v4948
        %v5973 = vpack.c.b16 %v4957, %v4949
        %v5974 = vpack.c.b16 %v4966, %v4958
        %v5975 = vpack.c.b16 %v4967, %v4959
        %v5976 = vpack.c.b16 %v4968, %v4960
        %v5977 = vpack.c.b16 %v4969, %v4961
        %v5978 = vpack.c.b16 %v4970, %v4962
        %v5979 = vpack.c.b16 %v4971, %v4963
        %v5980 = vpack.c.b16 %v4972, %v4964
        %v5981 = vpack.c.b16 %v4973, %v4965
        %v5982 = vpack.c.b16 %v4982, %v4974
        %v5983 = vpack.c.b16 %v4983, %v4975
        %v5984 = vpack.c.b16 %v4984, %v4976
        %v5985 = vpack.c.b16 %v4985, %v4977
        %v5986 = vpack.c.b16 %v4986, %v4978
        %v5987 = vpack.c.b16 %v4987, %v4979
        %v5988 = vpack.c.b16 %v4988, %v4980
        %v5989 = vpack.c.b16 %v4989, %v4981
        %v5990 = vpack.c.b16 %v4998, %v4990
        %v5991 = vpack.c.b16 %v4999, %v4991
        %v5992 = vpack.c.b16 %v5000, %v4992
        %v5993 = vpack.c.b16 %v5001, %v4993
        %v5994 = vpack.c.b16 %v5002, %v4994
        %v5995 = vpack.c.b16 %v5003, %v4995
        %v5996 = vpack.c.b16 %v5004, %v4996
        %v5997 = vpack.c.b16 %v5005, %v4997
        %v5998 = vpack.c.b16 %v5014, %v5006
        %v5999 = vpack.c.b16 %v5015, %v5007
        %v6000 = vpack.c.b16 %v5016, %v5008
        %v6001 = vpack.c.b16 %v5017, %v5009
        %v6002 = vpack.c.b16 %v5018, %v5010
        %v6003 = vpack.c.b16 %v5019, %v5011
        %v6004 = vpack.c.b16 %v5020, %v5012
        %v6005 = vpack.c.b16 %v5021, %v5013
        %v6006 = vpack.c.b16 %v5030, %v5022
        %v6007 = vpack.c.b16 %v5031, %v5023
        %v6008 = vpack.c.b16 %v5032, %v5024
        %v6009 = vpack.c.b16 %v5033, %v5025
        %v6010 = vpack.c.b16 %v5034, %v5026
        %v6011 = vpack.c.b16 %v5035, %v5027
        %v6012 = vpack.c.b16 %v5036, %v5028
        %v6013 = vpack.c.b16 %v5037, %v5029
        %v6014 = vpack.c.b16 %v5046, %v5038
        %v6015 = vpack.c.b16 %v5047, %v5039
        %v6016 = vpack.c.b16 %v5048, %v5040
        %v6017 = vpack.c.b16 %v5049, %v5041
        %v6018 = vpack.c.b16 %v5050, %v5042
        %v6019 = vpack.c.b16 %v5051, %v5043
        %v6020 = vpack.c.b16 %v5052, %v5044
        %v6021 = vpack.c.b16 %v5053, %v5045
        %v6022 = vpack.c.b16 %v5062, %v5054
        %v6023 = vpack.c.b16 %v5063, %v5055
        %v6024 = vpack.c.b16 %v5064, %v5056
        %v6025 = vpack.c.b16 %v5065, %v5057
        %v6026 = vpack.c.b16 %v5066, %v5058
        %v6027 = vpack.c.b16 %v5067, %v5059
        %v6028 = vpack.c.b16 %v5068, %v5060
        %v6029 = vpack.c.b16 %v5069, %v5061
        %v6030 = vpack.c.b16 %v5078, %v5070
        %v6031 = vpack.c.b16 %v5079, %v5071
        %v6032 = vpack.c.b16 %v5080, %v5072
        %v6033 = vpack.c.b16 %v5081, %v5073
        %v6034 = vpack.c.b16 %v5082, %v5074
        %v6035 = vpack.c.b16 %v5083, %v5075
        %v6036 = vpack.c.b16 %v5084, %v5076
        %v6037 = vpack.c.b16 %v5085, %v5077
        %v6038 = vpack.c.b16 %v5094, %v5086
        %v6039 = vpack.c.b16 %v5095, %v5087
        %v6040 = vpack.c.b16 %v5096, %v5088
        %v6041 = vpack.c.b16 %v5097, %v5089
        %v6042 = vpack.c.b16 %v5098, %v5090
        %v6043 = vpack.c.b16 %v5099, %v5091
        %v6044 = vpack.c.b16 %v5100, %v5092
        %v6045 = vpack.c.b16 %v5101, %v5093
        %v6046 = vpack.c.b16 %v5110, %v5102
        %v6047 = vpack.c.b16 %v5111, %v5103
        %v6048 = vpack.c.b16 %v5112, %v5104
        %v6049 = vpack.c.b16 %v5113, %v5105
        %v6050 = vpack.c.b16 %v5114, %v5106
        %v6051 = vpack.c.b16 %v5115, %v5107
        %v6052 = vpack.c.b16 %v5116, %v5108
        %v6053 = vpack.c.b16 %v5117, %v5109
        %v6054 = vpack.c.b16 %v5126, %v5118
        %v6055 = vpack.c.b16 %v5127, %v5119
        %v6056 = vpack.c.b16 %v5128, %v5120
        %v6057 = vpack.c.b16 %v5129, %v5121
        %v6058 = vpack.c.b16 %v5130, %v5122
        %v6059 = vpack.c.b16 %v5131, %v5123
        %v6060 = vpack.c.b16 %v5132, %v5124
        %v6061 = vpack.c.b16 %v5133, %v5125
        %v6062 = vpack.c.b16 %v5142, %v5134
        %v6063 = vpack.c.b16 %v5143, %v5135
        %v6064 = vpack.c.b16 %v5144, %v5136
        %v6065 = vpack.c.b16 %v5145, %v5137
        %v6066 = vpack.c.b16 %v5146, %v5138
        %v6067 = vpack.c.b16 %v5147, %v5139
        %v6068 = vpack.c.b16 %v5148, %v5140
        %v6069 = vpack.c.b16 %v5149, %v5141
        %v6070 = vpack.c.b16 %v5158, %v5150
        %v6071 = vpack.c.b16 %v5159, %v5151
        %v6072 = vpack.c.b16 %v5160, %v5152
        %v6073 = vpack.c.b16 %v5161, %v5153
        %v6074 = vpack.c.b16 %v5162, %v5154
        %v6075 = vpack.c.b16 %v5163, %v5155
        %v6076 = vpack.c.b16 %v5164, %v5156
        %v6077 = vpack.c.b16 %v5165, %v5157
        %v6078 = vpack.c.b16 %v5174, %v5166
        %v6079 = vpack.c.b16 %v5175, %v5167
        %v6080 = vpack.c.b16 %v5176, %v5168
        %v6081 = vpack.c.b16 %v5177, %v5169
        %v6082 = vpack.c.b16 %v5178, %v5170
        %v6083 = vpack.c.b16 %v5179, %v5171
        %v6084 = vpack.c.b16 %v5180, %v5172
        %v6085 = vpack.c.b16 %v5181, %v5173
        %v6086 = vpack.c.b16 %v5190, %v5182
        %v6087 = vpack.c.b16 %v5191, %v5183
        %v6088 = vpack.c.b16 %v5192, %v5184
        %v6089 = vpack.c.b16 %v5193, %v5185
        %v6090 = vpack.c.b16 %v5194, %v5186
        %v6091 = vpack.c.b16 %v5195, %v5187
        %v6092 = vpack.c.b16 %v5196, %v5188
        %v6093 = vpack.c.b16 %v5197, %v5189
        %v6094 = vpack.c.b16 %v5206, %v5198
        %v6095 = vpack.c.b16 %v5207, %v5199
        %v6096 = vpack.c.b16 %v5208, %v5200
        %v6097 = vpack.c.b16 %v5209, %v5201
        %v6098 = vpack.c.b16 %v5210, %v5202
        %v6099 = vpack.c.b16 %v5211, %v5203
        %v6100 = vpack.c.b16 %v5212, %v5204
        %v6101 = vpack.c.b16 %v5213, %v5205
        %v6102 = vpack.c.b16 %v5222, %v5214
        %v6103 = vpack.c.b16 %v5223, %v5215
        %v6104 = vpack.c.b16 %v5224, %v5216
        %v6105 = vpack.c.b16 %v5225, %v5217
        %v6106 = vpack.c.b16 %v5226, %v5218
        %v6107 = vpack.c.b16 %v5227, %v5219
        %v6108 = vpack.c.b16 %v5228, %v5220
        %v6109 = vpack.c.b16 %v5229, %v5221
        %v6110 = vpack.c.b16 %v5238, %v5230
        %v6111 = vpack.c.b16 %v5239, %v5231
        %v6112 = vpack.c.b16 %v5240, %v5232
        %v6113 = vpack.c.b16 %v5241, %v5233
        %v6114 = vpack.c.b16 %v5242, %v5234
        %v6115 = vpack.c.b16 %v5243, %v5235
        %v6116 = vpack.c.b16 %v5244, %v5236
        %v6117 = vpack.c.b16 %v5245, %v5237
        %v6118 = vpack.c.b16 %v5254, %v5246
        %v6119 = vpack.c.b16 %v5255, %v5247
        %v6120 = vpack.c.b16 %v5256, %v5248
        %v6121 = vpack.c.b16 %v5257, %v5249
        %v6122 = vpack.c.b16 %v5258, %v5250
        %v6123 = vpack.c.b16 %v5259, %v5251
        %v6124 = vpack.c.b16 %v5260, %v5252
        %v6125 = vpack.c.b16 %v5261, %v5253
        %v6126 = vpack.c.b16 %v5270, %v5262
        %v6127 = vpack.c.b16 %v5271, %v5263
        %v6128 = vpack.c.b16 %v5272, %v5264
        %v6129 = vpack.c.b16 %v5273, %v5265
        %v6130 = vpack.c.b16 %v5274, %v5266
        %v6131 = vpack.c.b16 %v5275, %v5267
        %v6132 = vpack.c.b16 %v5276, %v5268
        %v6133 = vpack.c.b16 %v5277, %v5269
        %v6134 = vpack.c.b16 %v5286, %v5278
        %v6135 = vpack.c.b16 %v5287, %v5279
        %v6136 = vpack.c.b16 %v5288, %v5280
        %v6137 = vpack.c.b16 %v5289, %v5281
        %v6138 = vpack.c.b16 %v5290, %v5282
        %v6139 = vpack.c.b16 %v5291, %v5283
        %v6140 = vpack.c.b16 %v5292, %v5284
        %v6141 = vpack.c.b16 %v5293, %v5285
        %v6142 = vpack.c.b16 %v5302, %v5294
        %v6143 = vpack.c.b16 %v5303, %v5295
        %v6144 = vpack.c.b16 %v5304, %v5296
        %v6145 = vpack.c.b16 %v5305, %v5297
        %v6146 = vpack.c.b16 %v5306, %v5298
        %v6147 = vpack.c.b16 %v5307, %v5299
        %v6148 = vpack.c.b16 %v5308, %v5300
        %v6149 = vpack.c.b16 %v5309, %v5301
        %v6150 = vpack.c.b16 %v5318, %v5310
        %v6151 = vpack.c.b16 %v5319, %v5311
        %v6152 = vpack.c.b16 %v5320, %v5312
        %v6153 = vpack.c.b16 %v5321, %v5313
        %v6154 = vpack.c.b16 %v5322, %v5314
        %v6155 = vpack.c.b16 %v5323, %v5315
        %v6156 = vpack.c.b16 %v5324, %v5316
        %v6157 = vpack.c.b16 %v5325, %v5317
        %v6158 = vpack.c.b16 %v5334, %v5326
        %v6159 = vpack.c.b16 %v5335, %v5327
        %v6160 = vpack.c.b16 %v5336, %v5328
        %v6161 = vpack.c.b16 %v5337, %v5329
        %v6162 = vpack.c.b16 %v5338, %v5330
        %v6163 = vpack.c.b16 %v5339, %v5331
        %v6164 = vpack.c.b16 %v5340, %v5332
        %v6165 = vpack.c.b16 %v5341, %v5333
        %v6166 = vpack.c.b16 %v5350, %v5342
        %v6167 = vpack.c.b16 %v5351, %v5343
        %v6168 = vpack.c.b16 %v5352, %v5344
        %v6169 = vpack.c.b16 %v5353, %v5345
        %v6170 = vpack.c.b16 %v5354, %v5346
        %v6171 = vpack.c.b16 %v5355, %v5347
        %v6172 = vpack.c.b16 %v5356, %v5348
        %v6173 = vpack.c.b16 %v5357, %v5349
        %v6174 = vpack.c.b16 %v5366, %v5358
        %v6175 = vpack.c.b16 %v5367, %v5359
        %v6176 = vpack.c.b16 %v5368, %v5360
        %v6177 = vpack.c.b16 %v5369, %v5361
        %v6178 = vpack.c.b16 %v5370, %v5362
        %v6179 = vpack.c.b16 %v5371, %v5363
        %v6180 = vpack.c.b16 %v5372, %v5364
        %v6181 = vpack.c.b16 %v5373, %v5365
        %v6182 = vpack.c.b16 %v5382, %v5374
        %v6183 = vpack.c.b16 %v5383, %v5375
        %v6184 = vpack.c.b16 %v5384, %v5376
        %v6185 = vpack.c.b16 %v5385, %v5377
        %v6186 = vpack.c.b16 %v5386, %v5378
        %v6187 = vpack.c.b16 %v5387, %v5379
        %v6188 = vpack.c.b16 %v5388, %v5380
        %v6189 = vpack.c.b16 %v5389, %v5381
        %v6190 = vpack.c.b16 %v5398, %v5390
        %v6191 = vpack.c.b16 %v5399, %v5391
        %v6192 = vpack.c.b16 %v5400, %v5392
        %v6193 = vpack.c.b16 %v5401, %v5393
        %v6194 = vpack.c.b16 %v5402, %v5394
        %v6195 = vpack.c.b16 %v5403, %v5395
        %v6196 = vpack.c.b16 %v5404, %v5396
        %v6197 = vpack.c.b16 %v5405, %v5397
        %v6198 = vpack.c.b16 %v5414, %v5406
        %v6199 = vpack.c.b16 %v5415, %v5407
        %v6200 = vpack.c.b16 %v5416, %v5408
        %v6201 = vpack.c.b16 %v5417, %v5409
        %v6202 = vpack.c.b16 %v5418, %v5410
        %v6203 = vpack.c.b16 %v5419, %v5411
        %v6204 = vpack.c.b16 %v5420, %v5412
        %v6205 = vpack.c.b16 %v5421, %v5413
        %v6206 = vpack.c.b16 %v5430, %v5422
        %v6207 = vpack.c.b16 %v5431, %v5423
        %v6208 = vpack.c.b16 %v5432, %v5424
        %v6209 = vpack.c.b16 %v5433, %v5425
        %v6210 = vpack.c.b16 %v5434, %v5426
        %v6211 = vpack.c.b16 %v5435, %v5427
        %v6212 = vpack.c.b16 %v5436, %v5428
        %v6213 = vpack.c.b16 %v5437, %v5429
        %v6214 = vpack.c.b16 %v5446, %v5438
        %v6215 = vpack.c.b16 %v5447, %v5439
        %v6216 = vpack.c.b16 %v5448, %v5440
        %v6217 = vpack.c.b16 %v5449, %v5441
        %v6218 = vpack.c.b16 %v5450, %v5442
        %v6219 = vpack.c.b16 %v5451, %v5443
        %v6220 = vpack.c.b16 %v5452, %v5444
        %v6221 = vpack.c.b16 %v5453, %v5445
        %v6222 = vpack.c.b16 %v5462, %v5454
        %v6223 = vpack.c.b16 %v5463, %v5455
        %v6224 = vpack.c.b16 %v5464, %v5456
        %v6225 = vpack.c.b16 %v5465, %v5457
        %v6226 = vpack.c.b16 %v5466, %v5458
        %v6227 = vpack.c.b16 %v5467, %v5459
        %v6228 = vpack.c.b16 %v5468, %v5460
        %v6229 = vpack.c.b16 %v5469, %v5461
        %v6230 = vpack.c.b16 %v5478, %v5470
        %v6231 = vpack.c.b16 %v5479, %v5471
        %v6232 = vpack.c.b16 %v5480, %v5472
        %v6233 = vpack.c.b16 %v5481, %v5473
        %v6234 = vpack.c.b16 %v5482, %v5474
        %v6235 = vpack.c.b16 %v5483, %v5475
        %v6236 = vpack.c.b16 %v5484, %v5476
        %v6237 = vpack.c.b16 %v5485, %v5477
        %v6238 = vpack.c.b16 %v5494, %v5486
        %v6239 = vpack.c.b16 %v5495, %v5487
        %v6240 = vpack.c.b16 %v5496, %v5488
        %v6241 = vpack.c.b16 %v5497, %v5489
        %v6242 = vpack.c.b16 %v5498, %v5490
        %v6243 = vpack.c.b16 %v5499, %v5491
        %v6244 = vpack.c.b16 %v5500, %v5492
        %v6245 = vpack.c.b16 %v5501, %v5493
        %v6246 = vpack.c.b16 %v5510, %v5502
        %v6247 = vpack.c.b16 %v5511, %v5503
        %v6248 = vpack.c.b16 %v5512, %v5504
        %v6249 = vpack.c.b16 %v5513, %v5505
        %v6250 = vpack.c.b16 %v5514, %v5506
        %v6251 = vpack.c.b16 %v5515, %v5507
        %v6252 = vpack.c.b16 %v5516, %v5508
        %v6253 = vpack.c.b16 %v5517, %v5509
        %v6254 = vpack.c.b16 %v5526, %v5518
        %v6255 = vpack.c.b16 %v5527, %v5519
        %v6256 = vpack.c.b16 %v5528, %v5520
        %v6257 = vpack.c.b16 %v5529, %v5521
        %v6258 = vpack.c.b16 %v5530, %v5522
        %v6259 = vpack.c.b16 %v5531, %v5523
        %v6260 = vpack.c.b16 %v5532, %v5524
        %v6261 = vpack.c.b16 %v5533, %v5525
        %v6262 = vpack.c.b16 %v5542, %v5534
        %v6263 = vpack.c.b16 %v5543, %v5535
        %v6264 = vpack.c.b16 %v5544, %v5536
        %v6265 = vpack.c.b16 %v5545, %v5537
        %v6266 = vpack.c.b16 %v5546, %v5538
        %v6267 = vpack.c.b16 %v5547, %v5539
        %v6268 = vpack.c.b16 %v5548, %v5540
        %v6269 = vpack.c.b16 %v5549, %v5541
        %v6270 = vpack.c.b16 %v5558, %v5550
        %v6271 = vpack.c.b16 %v5559, %v5551
        %v6272 = vpack.c.b16 %v5560, %v5552
        %v6273 = vpack.c.b16 %v5561, %v5553
        %v6274 = vpack.c.b16 %v5562, %v5554
        %v6275 = vpack.c.b16 %v5563, %v5555
        %v6276 = vpack.c.b16 %v5564, %v5556
        %v6277 = vpack.c.b16 %v5565, %v5557
        %v6278 = vpack.c.b16 %v5574, %v5566
        %v6279 = vpack.c.b16 %v5575, %v5567
        %v6280 = vpack.c.b16 %v5576, %v5568
        %v6281 = vpack.c.b16 %v5577, %v5569
        %v6282 = vpack.c.b16 %v5578, %v5570
        %v6283 = vpack.c.b16 %v5579, %v5571
        %v6284 = vpack.c.b16 %v5580, %v5572
        %v6285 = vpack.c.b16 %v5581, %v5573
        %v6286 = vpack.c.b16 %v5590, %v5582
        %v6287 = vpack.c.b16 %v5591, %v5583
        %v6288 = vpack.c.b16 %v5592, %v5584
        %v6289 = vpack.c.b16 %v5593, %v5585
        %v6290 = vpack.c.b16 %v5594, %v5586
        %v6291 = vpack.c.b16 %v5595, %v5587
        %v6292 = vpack.c.b16 %v5596, %v5588
        %v6293 = vpack.c.b16 %v5597, %v5589
        %v6294 = vpack.c.b16 %v5606, %v5598
        %v6295 = vpack.c.b16 %v5607, %v5599
        %v6296 = vpack.c.b16 %v5608, %v5600
        %v6297 = vpack.c.b16 %v5609, %v5601
        %v6298 = vpack.c.b16 %v5610, %v5602
        %v6299 = vpack.c.b16 %v5611, %v5603
        %v6300 = vpack.c.b16 %v5612, %v5604
        %v6301 = vpack.c.b16 %v5613, %v5605
        %v6302 = vpack.c.b16 %v5622, %v5614
        %v6303 = vpack.c.b16 %v5623, %v5615
        %v6304 = vpack.c.b16 %v5624, %v5616
        %v6305 = vpack.c.b16 %v5625, %v5617
        %v6306 = vpack.c.b16 %v5626, %v5618
        %v6307 = vpack.c.b16 %v5627, %v5619
        %v6308 = vpack.c.b16 %v5628, %v5620
        %v6309 = vpack.c.b16 %v5629, %v5621
        %v6310 = vpack.c.b16 %v5638, %v5630
        %v6311 = vpack.c.b16 %v5639, %v5631
        %v6312 = vpack.c.b16 %v5640, %v5632
        %v6313 = vpack.c.b16 %v5641, %v5633
        %v6314 = vpack.c.b16 %v5642, %v5634
        %v6315 = vpack.c.b16 %v5643, %v5635
        %v6316 = vpack.c.b16 %v5644, %v5636
        %v6317 = vpack.c.b16 %v5645, %v5637
        %v6318 = vpack.c.b16 %v5654, %v5646
        %v6319 = vpack.c.b16 %v5655, %v5647
        %v6320 = vpack.c.b16 %v5656, %v5648
        %v6321 = vpack.c.b16 %v5657, %v5649
        %v6322 = vpack.c.b16 %v5658, %v5650
        %v6323 = vpack.c.b16 %v5659, %v5651
        %v6324 = vpack.c.b16 %v5660, %v5652
        %v6325 = vpack.c.b16 %v5661, %v5653
        %v6326 = vpack.c.b16 %v5670, %v5662
        %v6327 = vpack.c.b16 %v5671, %v5663
        %v6328 = vpack.c.b16 %v5672, %v5664
        %v6329 = vpack.c.b16 %v5673, %v5665
        %v6330 = vpack.c.b16 %v5674, %v5666
        %v6331 = vpack.c.b16 %v5675, %v5667
        %v6332 = vpack.c.b16 %v5676, %v5668
        %v6333 = vpack.c.b16 %v5677, %v5669
        %v6334 = vpack.c.b16 %v5686, %v5678
        %v6335 = vpack.c.b16 %v5687, %v5679
        %v6336 = vpack.c.b16 %v5688, %v5680
        %v6337 = vpack.c.b16 %v5689, %v5681
        %v6338 = vpack.c.b16 %v5690, %v5682
        %v6339 = vpack.c.b16 %v5691, %v5683
        %v6340 = vpack.c.b16 %v5692, %v5684
        %v6341 = vpack.c.b16 %v5693, %v5685
        %v6342 = vpack.c.b16 %v5702, %v5694
        %v6343 = vpack.c.b16 %v5703, %v5695
        %v6344 = vpack.c.b16 %v5704, %v5696
        %v6345 = vpack.c.b16 %v5705, %v5697
        %v6346 = vpack.c.b16 %v5706, %v5698
        %v6347 = vpack.c.b16 %v5707, %v5699
        %v6348 = vpack.c.b16 %v5708, %v5700
        %v6349 = vpack.c.b16 %v5709, %v5701
        %v6350 = vpack.c.b16 %v5718, %v5710
        %v6351 = vpack.c.b16 %v5719, %v5711
        %v6352 = vpack.c.b16 %v5720, %v5712
        %v6353 = vpack.c.b16 %v5721, %v5713
        %v6354 = vpack.c.b16 %v5722, %v5714
        %v6355 = vpack.c.b16 %v5723, %v5715
        %v6356 = vpack.c.b16 %v5724, %v5716
        %v6357 = vpack.c.b16 %v5725, %v5717
        %v6358 = vpack.c.b16 %v5734, %v5726
        %v6359 = vpack.c.b16 %v5735, %v5727
        %v6360 = vpack.c.b16 %v5736, %v5728
        %v6361 = vpack.c.b16 %v5737, %v5729
        %v6362 = vpack.c.b16 %v5738, %v5730
        %v6363 = vpack.c.b16 %v5739, %v5731
        %v6364 = vpack.c.b16 %v5740, %v5732
        %v6365 = vpack.c.b16 %v5741, %v5733
        %v6366 = vpack.c.b16 %v5750, %v5742
        %v6367 = vpack.c.b16 %v5751, %v5743
        %v6368 = vpack.c.b16 %v5752, %v5744
        %v6369 = vpack.c.b16 %v5753, %v5745
        %v6370 = vpack.c.b16 %v5754, %v5746
        %v6371 = vpack.c.b16 %v5755, %v5747
        %v6372 = vpack.c.b16 %v5756, %v5748
        %v6373 = vpack.c.b16 %v5757, %v5749
        %v6374 = vpack.c.b16 %v5766, %v5758
        %v6375 = vpack.c.b16 %v5767, %v5759
        %v6376 = vpack.c.b16 %v5768, %v5760
        %v6377 = vpack.c.b16 %v5769, %v5761
        %v6378 = vpack.c.b16 %v5770, %v5762
        %v6379 = vpack.c.b16 %v5771, %v5763
        %v6380 = vpack.c.b16 %v5772, %v5764
        %v6381 = vpack.c.b16 %v5773, %v5765
        %v6382 = vpack.c.b16 %v5782, %v5774
        %v6383 = vpack.c.b16 %v5783, %v5775
        %v6384 = vpack.c.b16 %v5784, %v5776
        %v6385 = vpack.c.b16 %v5785, %v5777
        %v6386 = vpack.c.b16 %v5786, %v5778
        %v6387 = vpack.c.b16 %v5787, %v5779
        %v6388 = vpack.c.b16 %v5788, %v5780
        %v6389 = vpack.c.b16 %v5789, %v5781
        %v6390 = vpack.c.b16 %v5798, %v5790
        %v6391 = vpack.c.b16 %v5799, %v5791
        %v6392 = vpack.c.b16 %v5800, %v5792
        %v6393 = vpack.c.b16 %v5801, %v5793
        %v6394 = vpack.c.b16 %v5802, %v5794
        %v6395 = vpack.c.b16 %v5803, %v5795
        %v6396 = vpack.c.b16 %v5804, %v5796
        %v6397 = vpack.c.b16 %v5805, %v5797
        %v6398 = vpack.c.b16 %v5814, %v5806
        %v6399 = vpack.c.b16 %v5815, %v5807
        %v6400 = vpack.c.b16 %v5816, %v5808
        %v6401 = vpack.c.b16 %v5817, %v5809
        %v6402 = vpack.c.b16 %v5818, %v5810
        %v6403 = vpack.c.b16 %v5819, %v5811
        %v6404 = vpack.c.b16 %v5820, %v5812
        %v6405 = vpack.c.b16 %v5821, %v5813
        %v6406 = vpack.c.b16 %v5830, %v5822
        %v6407 = vpack.c.b16 %v5831, %v5823
        %v6408 = vpack.c.b16 %v5832, %v5824
        %v6409 = vpack.c.b16 %v5833, %v5825
        %v6410 = vpack.c.b16 %v5834, %v5826
        %v6411 = vpack.c.b16 %v5835, %v5827
        %v6412 = vpack.c.b16 %v5836, %v5828
        %v6413 = vpack.c.b16 %v5837, %v5829
        %v6414 = vpack.c.b16 %v5846, %v5838
        %v6415 = vpack.c.b16 %v5847, %v5839
        %v6416 = vpack.c.b16 %v5848, %v5840
        %v6417 = vpack.c.b16 %v5849, %v5841
        %v6418 = vpack.c.b16 %v5850, %v5842
        %v6419 = vpack.c.b16 %v5851, %v5843
        %v6420 = vpack.c.b16 %v5852, %v5844
        %v6421 = vpack.c.b16 %v5853, %v5845
        %v6422 = vpack.c.b16 %v5862, %v5854
        %v6423 = vpack.c.b16 %v5863, %v5855
        %v6424 = vpack.c.b16 %v5864, %v5856
        %v6425 = vpack.c.b16 %v5865, %v5857
        %v6426 = vpack.c.b16 %v5866, %v5858
        %v6427 = vpack.c.b16 %v5867, %v5859
        %v6428 = vpack.c.b16 %v5868, %v5860
        %v6429 = vpack.c.b16 %v5869, %v5861
        %v6430 = vpack.c.b16 %v5878, %v5870
        %v6431 = vpack.c.b16 %v5879, %v5871
        %v6432 = vpack.c.b16 %v5880, %v5872
        %v6433 = vpack.c.b16 %v5881, %v5873
        %v6434 = vpack.c.b16 %v5882, %v5874
        %v6435 = vpack.c.b16 %v5883, %v5875
        %v6436 = vpack.c.b16 %v5884, %v5876
        %v6437 = vpack.c.b16 %v5885, %v5877
        %v6438 = vpack.c.b16 %v5894, %v5886
        %v6439 = vpack.c.b16 %v5895, %v5887
        %v6440 = vpack.c.b16 %v5896, %v5888
        %v6441 = vpack.c.b16 %v5897, %v5889
        %v6442 = vpack.c.b16 %v5898, %v5890
        %v6443 = vpack.c.b16 %v5899, %v5891
        %v6444 = vpack.c.b16 %v5900, %v5892
        %v6445 = vpack.c.b16 %v5901, %v5893
        %v6446 = vpack.c.b16 %v5910, %v5902
        %v6447 = vpack.c.b16 %v5911, %v5903
        %v6448 = vpack.c.b16 %v5912, %v5904
        %v6449 = vpack.c.b16 %v5913, %v5905
        %v6450 = vpack.c.b16 %v5914, %v5906
        %v6451 = vpack.c.b16 %v5915, %v5907
        %v6452 = vpack.c.b16 %v5916, %v5908
        %v6453 = vpack.c.b16 %v5917, %v5909
        %v6454 = vpack.c.b16 %v5926, %v5918
        %v6455 = vpack.c.b16 %v5927, %v5919
        %v6456 = vpack.c.b16 %v5928, %v5920
        %v6457 = vpack.c.b16 %v5929, %v5921
        %v6458 = vpack.c.b16 %v5930, %v5922
        %v6459 = vpack.c.b16 %v5931, %v5923
        %v6460 = vpack.c.b16 %v5932, %v5924
        %v6461 = vpack.c.b16 %v5933, %v5925
        %v6462 = vpack.c.b16 %v5942, %v5934
        %v6463 = vpack.c.b16 %v5943, %v5935
        %v6464 = vpack.c.b16 %v5944, %v5936
        %v6465 = vpack.c.b16 %v5945, %v5937
        %v6466 = vpack.c.b16 %v5946, %v5938
        %v6467 = vpack.c.b16 %v5947, %v5939
        %v6468 = vpack.c.b16 %v5948, %v5940
        %v6469 = vpack.c.b16 %v5949, %v5941
        %v6470 = vpack.c.b16 %v5958, %v5950
        %v6471 = vpack.c.b16 %v5959, %v5951
        %v6472 = vpack.c.b16 %v5960, %v5952
        %v6473 = vpack.c.b16 %v5961, %v5953
        %v6474 = vpack.c.b16 %v5962, %v5954
        %v6475 = vpack.c.b16 %v5963, %v5955
        %v6476 = vpack.c.b16 %v5964, %v5956
        %v6477 = vpack.c.b16 %v5965, %v5957
        %6990 = vmatprep.subr.bf16.mxu0 %v6023
        %6991 = vmatpush1.bf16.msra.mxu0 %v6022
        %6992 = vmatprep.subr.bf16.mxu0 %v6015
        %6993 = vmatpush1.bf16.msra.mxu0 %v6014
        %6994 = vmatprep.subr.bf16.mxu0 %v6007
        %6995 = vmatpush1.bf16.msra.mxu0 %v6006
        %6996 = vmatprep.subr.bf16.mxu0 %v5999
        %6997 = vmatpush1.bf16.msra.mxu0 %v5998
        %6998 = vmatprep.subr.bf16.mxu0 %v5991
        %6999 = vmatpush1.bf16.msra.mxu0 %v5990
        %7000 = vmatprep.subr.bf16.mxu0 %v5983
        %7001 = vmatpush1.bf16.msra.mxu0 %v5982
        %7002 = vmatprep.subr.bf16.mxu0 %v5975
        %7003 = vmatpush1.bf16.msra.mxu0 %v5974
        %7004 = vmatprep.subr.bf16.mxu0 %v5967
        %7005 = vmatpush1.bf16.msra.mxu0 %v5966
        %7006 = vmatprep.subr.bf16.mxu0 %v6087
        %7007 = vmatpush2.bf16.msra.mxu0 %v6086
        %7008 = vmatprep.subr.bf16.mxu0 %v6079
        %7009 = vmatpush2.bf16.msra.mxu0 %v6078
        %7010 = vmatprep.subr.bf16.mxu0 %v6071
        %7011 = vmatpush2.bf16.msra.mxu0 %v6070
        %7012 = vmatprep.subr.bf16.mxu0 %v6063
        %7013 = vmatpush2.bf16.msra.mxu0 %v6062
        %7014 = vmatprep.subr.bf16.mxu0 %v6055
        %7015 = vmatpush2.bf16.msra.mxu0 %v6054
        %7016 = vmatprep.subr.bf16.mxu0 %v6047
        %7017 = vmatpush2.bf16.msra.mxu0 %v6046
        %7018 = vmatprep.subr.bf16.mxu0 %v6039
        %7019 = vmatpush2.bf16.msra.mxu0 %v6038
        %7020 = vmatprep.subr.bf16.mxu0 %v6031
        %7021 = vmatpush2.bf16.msra.mxu0 %v6030
        %7022 = vmatprep.mubr.bf16.mxu0 %v4415
        %7023 = vmatmul.mubr.bf16.gmra.mxu0 %v4414
        %v7024 = vpop.f32.mrf.mxu0
        %v7025 = vadd.f32 %v4137, %v7024
        %v7026 = vpop.f32.mrf.mxu0
        %v7027 = vadd.f32 %v4141, %v7026
        %v7028 = vpop.f32.mrf.mxu0
        %v7029 = vpop.f32.mrf.mxu0
        %7030 = vdwg.mxu0
        %7031 = vmatprep.subr.bf16.mxu0 %v6151
        %7032 = vmatpush1.bf16.msra.mxu0 %v6150
        %7033 = vmatprep.subr.bf16.mxu0 %v6143
        %7034 = vmatpush1.bf16.msra.mxu0 %v6142
        %7035 = vmatprep.subr.bf16.mxu0 %v6135
        %7036 = vmatpush1.bf16.msra.mxu0 %v6134
        %7037 = vmatprep.subr.bf16.mxu0 %v6127
        %7038 = vmatpush1.bf16.msra.mxu0 %v6126
        %7039 = vmatprep.subr.bf16.mxu0 %v6119
        %7040 = vmatpush1.bf16.msra.mxu0 %v6118
        %7041 = vmatprep.subr.bf16.mxu0 %v6111
        %7042 = vmatpush1.bf16.msra.mxu0 %v6110
        %7043 = vmatprep.subr.bf16.mxu0 %v6103
        %7044 = vmatpush1.bf16.msra.mxu0 %v6102
        %7045 = vmatprep.subr.bf16.mxu0 %v6095
        %7046 = vmatpush1.bf16.msra.mxu0 %v6094
        %7047 = vmatprep.subr.bf16.mxu0 %v6215
        %7048 = vmatpush2.bf16.msra.mxu0 %v6214
        %7049 = vmatprep.subr.bf16.mxu0 %v6207
        %7050 = vmatpush2.bf16.msra.mxu0 %v6206
        %7051 = vmatprep.subr.bf16.mxu0 %v6199
        %7052 = vmatpush2.bf16.msra.mxu0 %v6198
        %7053 = vmatprep.subr.bf16.mxu0 %v6191
        %7054 = vmatpush2.bf16.msra.mxu0 %v6190
        %7055 = vmatprep.subr.bf16.mxu0 %v6183
        %7056 = vmatpush2.bf16.msra.mxu0 %v6182
        %7057 = vmatprep.subr.bf16.mxu0 %v6175
        %7058 = vmatpush2.bf16.msra.mxu0 %v6174
        %7059 = vmatprep.subr.bf16.mxu0 %v6167
        %7060 = vmatpush2.bf16.msra.mxu0 %v6166
        %7061 = vmatprep.subr.bf16.mxu0 %v6159
        %7062 = vmatpush2.bf16.msra.mxu0 %v6158
        %7063 = vmatprep.mubr.bf16.mxu0 %v4417
        %7064 = vmatmul.mubr.bf16.gmra.mxu0 %v4416
        %v7065 = vpop.f32.mrf.mxu0
        %v7066 = vadd.f32 %v7025, %v7065
        %v7067 = vpop.f32.mrf.mxu0
        %v7068 = vadd.f32 %v7027, %v7067
        %v7069 = vpop.f32.mrf.mxu0
        %v7070 = vpop.f32.mrf.mxu0
        %7071 = vdwg.mxu0
        %7072 = vmatprep.subr.bf16.mxu0 %v6279
        %7073 = vmatpush1.bf16.msra.mxu0 %v6278
        %7074 = vmatprep.subr.bf16.mxu0 %v6271
        %7075 = vmatpush1.bf16.msra.mxu0 %v6270
        %7076 = vmatprep.subr.bf16.mxu0 %v6263
        %7077 = vmatpush1.bf16.msra.mxu0 %v6262
        %7078 = vmatprep.subr.bf16.mxu0 %v6255
        %7079 = vmatpush1.bf16.msra.mxu0 %v6254
        %7080 = vmatprep.subr.bf16.mxu0 %v6247
        %7081 = vmatpush1.bf16.msra.mxu0 %v6246
        %7082 = vmatprep.subr.bf16.mxu0 %v6239
        %7083 = vmatpush1.bf16.msra.mxu0 %v6238
        %7084 = vmatprep.subr.bf16.mxu0 %v6231
        %7085 = vmatpush1.bf16.msra.mxu0 %v6230
        %7086 = vmatprep.subr.bf16.mxu0 %v6223
        %7087 = vmatpush1.bf16.msra.mxu0 %v6222
        %7088 = vmatprep.subr.bf16.mxu0 %v6343
        %7089 = vmatpush2.bf16.msra.mxu0 %v6342
        %7090 = vmatprep.subr.bf16.mxu0 %v6335
        %7091 = vmatpush2.bf16.msra.mxu0 %v6334
        %7092 = vmatprep.subr.bf16.mxu0 %v6327
        %7093 = vmatpush2.bf16.msra.mxu0 %v6326
        %7094 = vmatprep.subr.bf16.mxu0 %v6319
        %7095 = vmatpush2.bf16.msra.mxu0 %v6318
        %7096 = vmatprep.subr.bf16.mxu0 %v6311
        %7097 = vmatpush2.bf16.msra.mxu0 %v6310
        %7098 = vmatprep.subr.bf16.mxu0 %v6303
        %7099 = vmatpush2.bf16.msra.mxu0 %v6302
        %7100 = vmatprep.subr.bf16.mxu0 %v6295
        %7101 = vmatpush2.bf16.msra.mxu0 %v6294
        %7102 = vmatprep.subr.bf16.mxu0 %v6287
        %7103 = vmatpush2.bf16.msra.mxu0 %v6286
        %7104 = vmatprep.mubr.bf16.mxu0 %v4419
        %7105 = vmatmul.mubr.bf16.gmra.mxu0 %v4418
        %v7106 = vpop.f32.mrf.mxu0
        %v7107 = vadd.f32 %v7066, %v7106
        %v7108 = vpop.f32.mrf.mxu0
        %v7109 = vadd.f32 %v7068, %v7108
        %v7110 = vpop.f32.mrf.mxu0
        %v7111 = vpop.f32.mrf.mxu0
        %7112 = vdwg.mxu0
        %7113 = vmatprep.subr.bf16.mxu0 %v6407
        %7114 = vmatpush1.bf16.msra.mxu0 %v6406
        %7115 = vmatprep.subr.bf16.mxu0 %v6399
        %7116 = vmatpush1.bf16.msra.mxu0 %v6398
        %7117 = vmatprep.subr.bf16.mxu0 %v6391
        %7118 = vmatpush1.bf16.msra.mxu0 %v6390
        %7119 = vmatprep.subr.bf16.mxu0 %v6383
        %7120 = vmatpush1.bf16.msra.mxu0 %v6382
        %7121 = vmatprep.subr.bf16.mxu0 %v6375
        %7122 = vmatpush1.bf16.msra.mxu0 %v6374
        %7123 = vmatprep.subr.bf16.mxu0 %v6367
        %7124 = vmatpush1.bf16.msra.mxu0 %v6366
        %7125 = vmatprep.subr.bf16.mxu0 %v6359
        %7126 = vmatpush1.bf16.msra.mxu0 %v6358
        %7127 = vmatprep.subr.bf16.mxu0 %v6351
        %7128 = vmatpush1.bf16.msra.mxu0 %v6350
        %7129 = vmatprep.subr.bf16.mxu0 %v6471
        %7130 = vmatpush2.bf16.msra.mxu0 %v6470
        %7131 = vmatprep.subr.bf16.mxu0 %v6463
        %7132 = vmatpush2.bf16.msra.mxu0 %v6462
        %7133 = vmatprep.subr.bf16.mxu0 %v6455
        %7134 = vmatpush2.bf16.msra.mxu0 %v6454
        %7135 = vmatprep.subr.bf16.mxu0 %v6447
        %7136 = vmatpush2.bf16.msra.mxu0 %v6446
        %7137 = vmatprep.subr.bf16.mxu0 %v6439
        %7138 = vmatpush2.bf16.msra.mxu0 %v6438
        %7139 = vmatprep.subr.bf16.mxu0 %v6431
        %7140 = vmatpush2.bf16.msra.mxu0 %v6430
        %7141 = vmatprep.subr.bf16.mxu0 %v6423
        %7142 = vmatpush2.bf16.msra.mxu0 %v6422
        %7143 = vmatprep.subr.bf16.mxu0 %v6415
        %7144 = vmatpush2.bf16.msra.mxu0 %v6414
        %7145 = vmatprep.mubr.bf16.mxu0 %v4421
        %7146 = vmatmul.mubr.bf16.gmra.mxu0 %v4420
        %v7147 = vpop.f32.mrf.mxu0
        %v7148 = vadd.f32 %v7107, %v7147
        %v7149 = vpop.f32.mrf.mxu0
        %v7150 = vadd.f32 %v7109, %v7149
        %v7151 = vpop.f32.mrf.mxu0
        %v7152 = vpop.f32.mrf.mxu0
        %7153 = vdwg.mxu0
        %7154 = vmatprep.subr.bf16.mxu0 %v6025
        %7155 = vmatpush1.bf16.msra.mxu0 %v6024
        %7156 = vmatprep.subr.bf16.mxu0 %v6017
        %7157 = vmatpush1.bf16.msra.mxu0 %v6016
        %7158 = vmatprep.subr.bf16.mxu0 %v6009
        %7159 = vmatpush1.bf16.msra.mxu0 %v6008
        %7160 = vmatprep.subr.bf16.mxu0 %v6001
        %7161 = vmatpush1.bf16.msra.mxu0 %v6000
        %7162 = vmatprep.subr.bf16.mxu0 %v5993
        %7163 = vmatpush1.bf16.msra.mxu0 %v5992
        %7164 = vmatprep.subr.bf16.mxu0 %v5985
        %7165 = vmatpush1.bf16.msra.mxu0 %v5984
        %7166 = vmatprep.subr.bf16.mxu0 %v5977
        %7167 = vmatpush1.bf16.msra.mxu0 %v5976
        %7168 = vmatprep.subr.bf16.mxu0 %v5969
        %7169 = vmatpush1.bf16.msra.mxu0 %v5968
        %7170 = vmatprep.subr.bf16.mxu0 %v6089
        %7171 = vmatpush2.bf16.msra.mxu0 %v6088
        %7172 = vmatprep.subr.bf16.mxu0 %v6081
        %7173 = vmatpush2.bf16.msra.mxu0 %v6080
        %7174 = vmatprep.subr.bf16.mxu0 %v6073
        %7175 = vmatpush2.bf16.msra.mxu0 %v6072
        %7176 = vmatprep.subr.bf16.mxu0 %v6065
        %7177 = vmatpush2.bf16.msra.mxu0 %v6064
        %7178 = vmatprep.subr.bf16.mxu0 %v6057
        %7179 = vmatpush2.bf16.msra.mxu0 %v6056
        %7180 = vmatprep.subr.bf16.mxu0 %v6049
        %7181 = vmatpush2.bf16.msra.mxu0 %v6048
        %7182 = vmatprep.subr.bf16.mxu0 %v6041
        %7183 = vmatpush2.bf16.msra.mxu0 %v6040
        %7184 = vmatprep.subr.bf16.mxu0 %v6033
        %7185 = vmatpush2.bf16.msra.mxu0 %v6032
        %7186 = vmatprep.mubr.bf16.mxu0 %v4415
        %7187 = vmatmul.mubr.bf16.gmra.mxu0 %v4414
        %v7188 = vpop.f32.mrf.mxu0
        %v7189 = vadd.f32 %v4145, %v7188
        %v7190 = vpop.f32.mrf.mxu0
        %v7191 = vadd.f32 %v4149, %v7190
        %v7192 = vpop.f32.mrf.mxu0
        %v7193 = vpop.f32.mrf.mxu0
        %7194 = vdwg.mxu0
        %7195 = vmatprep.subr.bf16.mxu0 %v6153
        %7196 = vmatpush1.bf16.msra.mxu0 %v6152
        %7197 = vmatprep.subr.bf16.mxu0 %v6145
        %7198 = vmatpush1.bf16.msra.mxu0 %v6144
        %7199 = vmatprep.subr.bf16.mxu0 %v6137
        %7200 = vmatpush1.bf16.msra.mxu0 %v6136
        %7201 = vmatprep.subr.bf16.mxu0 %v6129
        %7202 = vmatpush1.bf16.msra.mxu0 %v6128
        %7203 = vmatprep.subr.bf16.mxu0 %v6121
        %7204 = vmatpush1.bf16.msra.mxu0 %v6120
        %7205 = vmatprep.subr.bf16.mxu0 %v6113
        %7206 = vmatpush1.bf16.msra.mxu0 %v6112
        %7207 = vmatprep.subr.bf16.mxu0 %v6105
        %7208 = vmatpush1.bf16.msra.mxu0 %v6104
        %7209 = vmatprep.subr.bf16.mxu0 %v6097
        %7210 = vmatpush1.bf16.msra.mxu0 %v6096
        %7211 = vmatprep.subr.bf16.mxu0 %v6217
        %7212 = vmatpush2.bf16.msra.mxu0 %v6216
        %7213 = vmatprep.subr.bf16.mxu0 %v6209
        %7214 = vmatpush2.bf16.msra.mxu0 %v6208
        %7215 = vmatprep.subr.bf16.mxu0 %v6201
        %7216 = vmatpush2.bf16.msra.mxu0 %v6200
        %7217 = vmatprep.subr.bf16.mxu0 %v6193
        %7218 = vmatpush2.bf16.msra.mxu0 %v6192
        %7219 = vmatprep.subr.bf16.mxu0 %v6185
        %7220 = vmatpush2.bf16.msra.mxu0 %v6184
        %7221 = vmatprep.subr.bf16.mxu0 %v6177
        %7222 = vmatpush2.bf16.msra.mxu0 %v6176
        %7223 = vmatprep.subr.bf16.mxu0 %v6169
        %7224 = vmatpush2.bf16.msra.mxu0 %v6168
        %7225 = vmatprep.subr.bf16.mxu0 %v6161
        %7226 = vmatpush2.bf16.msra.mxu0 %v6160
        %7227 = vmatprep.mubr.bf16.mxu0 %v4417
        %7228 = vmatmul.mubr.bf16.gmra.mxu0 %v4416
        %v7229 = vpop.f32.mrf.mxu0
        %v7230 = vadd.f32 %v7189, %v7229
        %v7231 = vpop.f32.mrf.mxu0
        %v7232 = vadd.f32 %v7191, %v7231
        %v7233 = vpop.f32.mrf.mxu0
        %v7234 = vpop.f32.mrf.mxu0
        %7235 = vdwg.mxu0
        %7236 = vmatprep.subr.bf16.mxu0 %v6281
        %7237 = vmatpush1.bf16.msra.mxu0 %v6280
        %7238 = vmatprep.subr.bf16.mxu0 %v6273
        %7239 = vmatpush1.bf16.msra.mxu0 %v6272
        %7240 = vmatprep.subr.bf16.mxu0 %v6265
        %7241 = vmatpush1.bf16.msra.mxu0 %v6264
        %7242 = vmatprep.subr.bf16.mxu0 %v6257
        %7243 = vmatpush1.bf16.msra.mxu0 %v6256
        %7244 = vmatprep.subr.bf16.mxu0 %v6249
        %7245 = vmatpush1.bf16.msra.mxu0 %v6248
        %7246 = vmatprep.subr.bf16.mxu0 %v6241
        %7247 = vmatpush1.bf16.msra.mxu0 %v6240
        %7248 = vmatprep.subr.bf16.mxu0 %v6233
        %7249 = vmatpush1.bf16.msra.mxu0 %v6232
        %7250 = vmatprep.subr.bf16.mxu0 %v6225
        %7251 = vmatpush1.bf16.msra.mxu0 %v6224
        %7252 = vmatprep.subr.bf16.mxu0 %v6345
        %7253 = vmatpush2.bf16.msra.mxu0 %v6344
        %7254 = vmatprep.subr.bf16.mxu0 %v6337
        %7255 = vmatpush2.bf16.msra.mxu0 %v6336
        %7256 = vmatprep.subr.bf16.mxu0 %v6329
        %7257 = vmatpush2.bf16.msra.mxu0 %v6328
        %7258 = vmatprep.subr.bf16.mxu0 %v6321
        %7259 = vmatpush2.bf16.msra.mxu0 %v6320
        %7260 = vmatprep.subr.bf16.mxu0 %v6313
        %7261 = vmatpush2.bf16.msra.mxu0 %v6312
        %7262 = vmatprep.subr.bf16.mxu0 %v6305
        %7263 = vmatpush2.bf16.msra.mxu0 %v6304
        %7264 = vmatprep.subr.bf16.mxu0 %v6297
        %7265 = vmatpush2.bf16.msra.mxu0 %v6296
        %7266 = vmatprep.subr.bf16.mxu0 %v6289
        %7267 = vmatpush2.bf16.msra.mxu0 %v6288
        %7268 = vmatprep.mubr.bf16.mxu0 %v4419
        %7269 = vmatmul.mubr.bf16.gmra.mxu0 %v4418
        %v7270 = vpop.f32.mrf.mxu0
        %v7271 = vadd.f32 %v7230, %v7270
        %v7272 = vpop.f32.mrf.mxu0
        %v7273 = vadd.f32 %v7232, %v7272
        %v7274 = vpop.f32.mrf.mxu0
        %v7275 = vpop.f32.mrf.mxu0
        %7276 = vdwg.mxu0
        %7277 = vmatprep.subr.bf16.mxu0 %v6409
        %7278 = vmatpush1.bf16.msra.mxu0 %v6408
        %7279 = vmatprep.subr.bf16.mxu0 %v6401
        %7280 = vmatpush1.bf16.msra.mxu0 %v6400
        %7281 = vmatprep.subr.bf16.mxu0 %v6393
        %7282 = vmatpush1.bf16.msra.mxu0 %v6392
        %7283 = vmatprep.subr.bf16.mxu0 %v6385
        %7284 = vmatpush1.bf16.msra.mxu0 %v6384
        %7285 = vmatprep.subr.bf16.mxu0 %v6377
        %7286 = vmatpush1.bf16.msra.mxu0 %v6376
        %7287 = vmatprep.subr.bf16.mxu0 %v6369
        %7288 = vmatpush1.bf16.msra.mxu0 %v6368
        %7289 = vmatprep.subr.bf16.mxu0 %v6361
        %7290 = vmatpush1.bf16.msra.mxu0 %v6360
        %7291 = vmatprep.subr.bf16.mxu0 %v6353
        %7292 = vmatpush1.bf16.msra.mxu0 %v6352
        %7293 = vmatprep.subr.bf16.mxu0 %v6473
        %7294 = vmatpush2.bf16.msra.mxu0 %v6472
        %7295 = vmatprep.subr.bf16.mxu0 %v6465
        %7296 = vmatpush2.bf16.msra.mxu0 %v6464
        %7297 = vmatprep.subr.bf16.mxu0 %v6457
        %7298 = vmatpush2.bf16.msra.mxu0 %v6456
        %7299 = vmatprep.subr.bf16.mxu0 %v6449
        %7300 = vmatpush2.bf16.msra.mxu0 %v6448
        %7301 = vmatprep.subr.bf16.mxu0 %v6441
        %7302 = vmatpush2.bf16.msra.mxu0 %v6440
        %7303 = vmatprep.subr.bf16.mxu0 %v6433
        %7304 = vmatpush2.bf16.msra.mxu0 %v6432
        %7305 = vmatprep.subr.bf16.mxu0 %v6425
        %7306 = vmatpush2.bf16.msra.mxu0 %v6424
        %7307 = vmatprep.subr.bf16.mxu0 %v6417
        %7308 = vmatpush2.bf16.msra.mxu0 %v6416
        %7309 = vmatprep.mubr.bf16.mxu0 %v4421
        %7310 = vmatmul.mubr.bf16.gmra.mxu0 %v4420
        %v7311 = vpop.f32.mrf.mxu0
        %v7312 = vadd.f32 %v7271, %v7311
        %v7313 = vpop.f32.mrf.mxu0
        %v7314 = vadd.f32 %v7273, %v7313
        %v7315 = vpop.f32.mrf.mxu0
        %v7316 = vpop.f32.mrf.mxu0
        %7317 = vdwg.mxu0
        %7318 = vmatprep.subr.bf16.mxu0 %v6027
        %7319 = vmatpush1.bf16.msra.mxu0 %v6026
        %7320 = vmatprep.subr.bf16.mxu0 %v6019
        %7321 = vmatpush1.bf16.msra.mxu0 %v6018
        %7322 = vmatprep.subr.bf16.mxu0 %v6011
        %7323 = vmatpush1.bf16.msra.mxu0 %v6010
        %7324 = vmatprep.subr.bf16.mxu0 %v6003
        %7325 = vmatpush1.bf16.msra.mxu0 %v6002
        %7326 = vmatprep.subr.bf16.mxu0 %v5995
        %7327 = vmatpush1.bf16.msra.mxu0 %v5994
        %7328 = vmatprep.subr.bf16.mxu0 %v5987
        %7329 = vmatpush1.bf16.msra.mxu0 %v5986
        %7330 = vmatprep.subr.bf16.mxu0 %v5979
        %7331 = vmatpush1.bf16.msra.mxu0 %v5978
        %7332 = vmatprep.subr.bf16.mxu0 %v5971
        %7333 = vmatpush1.bf16.msra.mxu0 %v5970
        %7334 = vmatprep.subr.bf16.mxu0 %v6091
        %7335 = vmatpush2.bf16.msra.mxu0 %v6090
        %7336 = vmatprep.subr.bf16.mxu0 %v6083
        %7337 = vmatpush2.bf16.msra.mxu0 %v6082
        %7338 = vmatprep.subr.bf16.mxu0 %v6075
        %7339 = vmatpush2.bf16.msra.mxu0 %v6074
        %7340 = vmatprep.subr.bf16.mxu0 %v6067
        %7341 = vmatpush2.bf16.msra.mxu0 %v6066
        %7342 = vmatprep.subr.bf16.mxu0 %v6059
        %7343 = vmatpush2.bf16.msra.mxu0 %v6058
        %7344 = vmatprep.subr.bf16.mxu0 %v6051
        %7345 = vmatpush2.bf16.msra.mxu0 %v6050
        %7346 = vmatprep.subr.bf16.mxu0 %v6043
        %7347 = vmatpush2.bf16.msra.mxu0 %v6042
        %7348 = vmatprep.subr.bf16.mxu0 %v6035
        %7349 = vmatpush2.bf16.msra.mxu0 %v6034
        %7350 = vmatprep.mubr.bf16.mxu0 %v4415
        %7351 = vmatmul.mubr.bf16.gmra.mxu0 %v4414
        %v7352 = vpop.f32.mrf.mxu0
        %v7353 = vadd.f32 %v4153, %v7352
        %v7354 = vpop.f32.mrf.mxu0
        %v7355 = vadd.f32 %v4157, %v7354
        %v7356 = vpop.f32.mrf.mxu0
        %v7357 = vpop.f32.mrf.mxu0
        %7358 = vdwg.mxu0
        %7359 = vmatprep.subr.bf16.mxu0 %v6155
        %7360 = vmatpush1.bf16.msra.mxu0 %v6154
        %7361 = vmatprep.subr.bf16.mxu0 %v6147
        %7362 = vmatpush1.bf16.msra.mxu0 %v6146
        %7363 = vmatprep.subr.bf16.mxu0 %v6139
        %7364 = vmatpush1.bf16.msra.mxu0 %v6138
        %7365 = vmatprep.subr.bf16.mxu0 %v6131
        %7366 = vmatpush1.bf16.msra.mxu0 %v6130
        %7367 = vmatprep.subr.bf16.mxu0 %v6123
        %7368 = vmatpush1.bf16.msra.mxu0 %v6122
        %7369 = vmatprep.subr.bf16.mxu0 %v6115
        %7370 = vmatpush1.bf16.msra.mxu0 %v6114
        %7371 = vmatprep.subr.bf16.mxu0 %v6107
        %7372 = vmatpush1.bf16.msra.mxu0 %v6106
        %7373 = vmatprep.subr.bf16.mxu0 %v6099
        %7374 = vmatpush1.bf16.msra.mxu0 %v6098
        %7375 = vmatprep.subr.bf16.mxu0 %v6219
        %7376 = vmatpush2.bf16.msra.mxu0 %v6218
        %7377 = vmatprep.subr.bf16.mxu0 %v6211
        %7378 = vmatpush2.bf16.msra.mxu0 %v6210
        %7379 = vmatprep.subr.bf16.mxu0 %v6203
        %7380 = vmatpush2.bf16.msra.mxu0 %v6202
        %7381 = vmatprep.subr.bf16.mxu0 %v6195
        %7382 = vmatpush2.bf16.msra.mxu0 %v6194
        %7383 = vmatprep.subr.bf16.mxu0 %v6187
        %7384 = vmatpush2.bf16.msra.mxu0 %v6186
        %7385 = vmatprep.subr.bf16.mxu0 %v6179
        %7386 = vmatpush2.bf16.msra.mxu0 %v6178
        %7387 = vmatprep.subr.bf16.mxu0 %v6171
        %7388 = vmatpush2.bf16.msra.mxu0 %v6170
        %7389 = vmatprep.subr.bf16.mxu0 %v6163
        %7390 = vmatpush2.bf16.msra.mxu0 %v6162
        %7391 = vmatprep.mubr.bf16.mxu0 %v4417
        %7392 = vmatmul.mubr.bf16.gmra.mxu0 %v4416
        %v7393 = vpop.f32.mrf.mxu0
        %v7394 = vadd.f32 %v7353, %v7393
        %v7395 = vpop.f32.mrf.mxu0
        %v7396 = vadd.f32 %v7355, %v7395
        %v7397 = vpop.f32.mrf.mxu0
        %v7398 = vpop.f32.mrf.mxu0
        %7399 = vdwg.mxu0
        %7400 = vmatprep.subr.bf16.mxu0 %v6283
        %7401 = vmatpush1.bf16.msra.mxu0 %v6282
        %7402 = vmatprep.subr.bf16.mxu0 %v6275
        %7403 = vmatpush1.bf16.msra.mxu0 %v6274
        %7404 = vmatprep.subr.bf16.mxu0 %v6267
        %7405 = vmatpush1.bf16.msra.mxu0 %v6266
        %7406 = vmatprep.subr.bf16.mxu0 %v6259
        %7407 = vmatpush1.bf16.msra.mxu0 %v6258
        %7408 = vmatprep.subr.bf16.mxu0 %v6251
        %7409 = vmatpush1.bf16.msra.mxu0 %v6250
        %7410 = vmatprep.subr.bf16.mxu0 %v6243
        %7411 = vmatpush1.bf16.msra.mxu0 %v6242
        %7412 = vmatprep.subr.bf16.mxu0 %v6235
        %7413 = vmatpush1.bf16.msra.mxu0 %v6234
        %7414 = vmatprep.subr.bf16.mxu0 %v6227
        %7415 = vmatpush1.bf16.msra.mxu0 %v6226
        %7416 = vmatprep.subr.bf16.mxu0 %v6347
        %7417 = vmatpush2.bf16.msra.mxu0 %v6346
        %7418 = vmatprep.subr.bf16.mxu0 %v6339
        %7419 = vmatpush2.bf16.msra.mxu0 %v6338
        %7420 = vmatprep.subr.bf16.mxu0 %v6331
        %7421 = vmatpush2.bf16.msra.mxu0 %v6330
        %7422 = vmatprep.subr.bf16.mxu0 %v6323
        %7423 = vmatpush2.bf16.msra.mxu0 %v6322
        %7424 = vmatprep.subr.bf16.mxu0 %v6315
        %7425 = vmatpush2.bf16.msra.mxu0 %v6314
        %7426 = vmatprep.subr.bf16.mxu0 %v6307
        %7427 = vmatpush2.bf16.msra.mxu0 %v6306
        %7428 = vmatprep.subr.bf16.mxu0 %v6299
        %7429 = vmatpush2.bf16.msra.mxu0 %v6298
        %7430 = vmatprep.subr.bf16.mxu0 %v6291
        %7431 = vmatpush2.bf16.msra.mxu0 %v6290
        %7432 = vmatprep.mubr.bf16.mxu0 %v4419
        %7433 = vmatmul.mubr.bf16.gmra.mxu0 %v4418
        %v7434 = vpop.f32.mrf.mxu0
        %v7435 = vadd.f32 %v7394, %v7434
        %v7436 = vpop.f32.mrf.mxu0
        %v7437 = vadd.f32 %v7396, %v7436
        %v7438 = vpop.f32.mrf.mxu0
        %v7439 = vpop.f32.mrf.mxu0
        %7440 = vdwg.mxu0
        %7441 = vmatprep.subr.bf16.mxu0 %v6411
        %7442 = vmatpush1.bf16.msra.mxu0 %v6410
        %7443 = vmatprep.subr.bf16.mxu0 %v6403
        %7444 = vmatpush1.bf16.msra.mxu0 %v6402
        %7445 = vmatprep.subr.bf16.mxu0 %v6395
        %7446 = vmatpush1.bf16.msra.mxu0 %v6394
        %7447 = vmatprep.subr.bf16.mxu0 %v6387
        %7448 = vmatpush1.bf16.msra.mxu0 %v6386
        %7449 = vmatprep.subr.bf16.mxu0 %v6379
        %7450 = vmatpush1.bf16.msra.mxu0 %v6378
        %7451 = vmatprep.subr.bf16.mxu0 %v6371
        %7452 = vmatpush1.bf16.msra.mxu0 %v6370
        %7453 = vmatprep.subr.bf16.mxu0 %v6363
        %7454 = vmatpush1.bf16.msra.mxu0 %v6362
        %7455 = vmatprep.subr.bf16.mxu0 %v6355
        %7456 = vmatpush1.bf16.msra.mxu0 %v6354
        %7457 = vmatprep.subr.bf16.mxu0 %v6475
        %7458 = vmatpush2.bf16.msra.mxu0 %v6474
        %7459 = vmatprep.subr.bf16.mxu0 %v6467
        %7460 = vmatpush2.bf16.msra.mxu0 %v6466
        %7461 = vmatprep.subr.bf16.mxu0 %v6459
        %7462 = vmatpush2.bf16.msra.mxu0 %v6458
        %7463 = vmatprep.subr.bf16.mxu0 %v6451
        %7464 = vmatpush2.bf16.msra.mxu0 %v6450
        %7465 = vmatprep.subr.bf16.mxu0 %v6443
        %7466 = vmatpush2.bf16.msra.mxu0 %v6442
        %7467 = vmatprep.subr.bf16.mxu0 %v6435
        %7468 = vmatpush2.bf16.msra.mxu0 %v6434
        %7469 = vmatprep.subr.bf16.mxu0 %v6427
        %7470 = vmatpush2.bf16.msra.mxu0 %v6426
        %7471 = vmatprep.subr.bf16.mxu0 %v6419
        %7472 = vmatpush2.bf16.msra.mxu0 %v6418
        %7473 = vmatprep.mubr.bf16.mxu0 %v4421
        %7474 = vmatmul.mubr.bf16.gmra.mxu0 %v4420
        %v7475 = vpop.f32.mrf.mxu0
        %v7476 = vadd.f32 %v7435, %v7475
        %v7477 = vpop.f32.mrf.mxu0
        %v7478 = vadd.f32 %v7437, %v7477
        %v7479 = vpop.f32.mrf.mxu0
        %v7480 = vpop.f32.mrf.mxu0
        %7481 = vdwg.mxu0
        %7482 = vmatprep.subr.bf16.mxu0 %v6029
        %7483 = vmatpush1.bf16.msra.mxu0 %v6028
        %7484 = vmatprep.subr.bf16.mxu0 %v6021
        %7485 = vmatpush1.bf16.msra.mxu0 %v6020
        %7486 = vmatprep.subr.bf16.mxu0 %v6013
        %7487 = vmatpush1.bf16.msra.mxu0 %v6012
        %7488 = vmatprep.subr.bf16.mxu0 %v6005
        %7489 = vmatpush1.bf16.msra.mxu0 %v6004
        %7490 = vmatprep.subr.bf16.mxu0 %v5997
        %7491 = vmatpush1.bf16.msra.mxu0 %v5996
        %7492 = vmatprep.subr.bf16.mxu0 %v5989
        %7493 = vmatpush1.bf16.msra.mxu0 %v5988
        %7494 = vmatprep.subr.bf16.mxu0 %v5981
        %7495 = vmatpush1.bf16.msra.mxu0 %v5980
        %7496 = vmatprep.subr.bf16.mxu0 %v5973
        %7497 = vmatpush1.bf16.msra.mxu0 %v5972
        %7498 = vmatprep.subr.bf16.mxu0 %v6093
        %7499 = vmatpush2.bf16.msra.mxu0 %v6092
        %7500 = vmatprep.subr.bf16.mxu0 %v6085
        %7501 = vmatpush2.bf16.msra.mxu0 %v6084
        %7502 = vmatprep.subr.bf16.mxu0 %v6077
        %7503 = vmatpush2.bf16.msra.mxu0 %v6076
        %7504 = vmatprep.subr.bf16.mxu0 %v6069
        %7505 = vmatpush2.bf16.msra.mxu0 %v6068
        %7506 = vmatprep.subr.bf16.mxu0 %v6061
        %7507 = vmatpush2.bf16.msra.mxu0 %v6060
        %7508 = vmatprep.subr.bf16.mxu0 %v6053
        %7509 = vmatpush2.bf16.msra.mxu0 %v6052
        %7510 = vmatprep.subr.bf16.mxu0 %v6045
        %7511 = vmatpush2.bf16.msra.mxu0 %v6044
        %7512 = vmatprep.subr.bf16.mxu0 %v6037
        %7513 = vmatpush2.bf16.msra.mxu0 %v6036
        %7514 = vmatprep.mubr.bf16.mxu0 %v4415
        %7515 = vmatmul.mubr.bf16.gmra.mxu0 %v4414
        %v7516 = vpop.f32.mrf.mxu0
        %v7517 = vadd.f32 %v4161, %v7516
        %v7518 = vpop.f32.mrf.mxu0
        %v7519 = vadd.f32 %v4165, %v7518
        %v7520 = vpop.f32.mrf.mxu0
        %v7521 = vpop.f32.mrf.mxu0
        %7522 = vdwg.mxu0
        %7523 = vmatprep.subr.bf16.mxu0 %v6157
        %7524 = vmatpush1.bf16.msra.mxu0 %v6156
        %7525 = vmatprep.subr.bf16.mxu0 %v6149
        %7526 = vmatpush1.bf16.msra.mxu0 %v6148
        %7527 = vmatprep.subr.bf16.mxu0 %v6141
        %7528 = vmatpush1.bf16.msra.mxu0 %v6140
        %7529 = vmatprep.subr.bf16.mxu0 %v6133
        %7530 = vmatpush1.bf16.msra.mxu0 %v6132
        %7531 = vmatprep.subr.bf16.mxu0 %v6125
        %7532 = vmatpush1.bf16.msra.mxu0 %v6124
        %7533 = vmatprep.subr.bf16.mxu0 %v6117
        %7534 = vmatpush1.bf16.msra.mxu0 %v6116
        %7535 = vmatprep.subr.bf16.mxu0 %v6109
        %7536 = vmatpush1.bf16.msra.mxu0 %v6108
        %7537 = vmatprep.subr.bf16.mxu0 %v6101
        %7538 = vmatpush1.bf16.msra.mxu0 %v6100
        %7539 = vmatprep.subr.bf16.mxu0 %v6221
        %7540 = vmatpush2.bf16.msra.mxu0 %v6220
        %7541 = vmatprep.subr.bf16.mxu0 %v6213
        %7542 = vmatpush2.bf16.msra.mxu0 %v6212
        %7543 = vmatprep.subr.bf16.mxu0 %v6205
        %7544 = vmatpush2.bf16.msra.mxu0 %v6204
        %7545 = vmatprep.subr.bf16.mxu0 %v6197
        %7546 = vmatpush2.bf16.msra.mxu0 %v6196
        %7547 = vmatprep.subr.bf16.mxu0 %v6189
        %7548 = vmatpush2.bf16.msra.mxu0 %v6188
        %7549 = vmatprep.subr.bf16.mxu0 %v6181
        %7550 = vmatpush2.bf16.msra.mxu0 %v6180
        %7551 = vmatprep.subr.bf16.mxu0 %v6173
        %7552 = vmatpush2.bf16.msra.mxu0 %v6172
        %7553 = vmatprep.subr.bf16.mxu0 %v6165
        %7554 = vmatpush2.bf16.msra.mxu0 %v6164
        %7555 = vmatprep.mubr.bf16.mxu0 %v4417
        %7556 = vmatmul.mubr.bf16.gmra.mxu0 %v4416
        %v7557 = vpop.f32.mrf.mxu0
        %v7558 = vadd.f32 %v7517, %v7557
        %v7559 = vpop.f32.mrf.mxu0
        %v7560 = vadd.f32 %v7519, %v7559
        %v7561 = vpop.f32.mrf.mxu0
        %v7562 = vpop.f32.mrf.mxu0
        %7563 = vdwg.mxu0
        %7564 = vmatprep.subr.bf16.mxu0 %v6285
        %7565 = vmatpush1.bf16.msra.mxu0 %v6284
        %7566 = vmatprep.subr.bf16.mxu0 %v6277
        %7567 = vmatpush1.bf16.msra.mxu0 %v6276
        %7568 = vmatprep.subr.bf16.mxu0 %v6269
        %7569 = vmatpush1.bf16.msra.mxu0 %v6268
        %7570 = vmatprep.subr.bf16.mxu0 %v6261
        %7571 = vmatpush1.bf16.msra.mxu0 %v6260
        %7572 = vmatprep.subr.bf16.mxu0 %v6253
        %7573 = vmatpush1.bf16.msra.mxu0 %v6252
        %7574 = vmatprep.subr.bf16.mxu0 %v6245
        %7575 = vmatpush1.bf16.msra.mxu0 %v6244
        %7576 = vmatprep.subr.bf16.mxu0 %v6237
        %7577 = vmatpush1.bf16.msra.mxu0 %v6236
        %7578 = vmatprep.subr.bf16.mxu0 %v6229
        %7579 = vmatpush1.bf16.msra.mxu0 %v6228
        %7580 = vmatprep.subr.bf16.mxu0 %v6349
        %7581 = vmatpush2.bf16.msra.mxu0 %v6348
        %7582 = vmatprep.subr.bf16.mxu0 %v6341
        %7583 = vmatpush2.bf16.msra.mxu0 %v6340
        %7584 = vmatprep.subr.bf16.mxu0 %v6333
        %7585 = vmatpush2.bf16.msra.mxu0 %v6332
        %7586 = vmatprep.subr.bf16.mxu0 %v6325
        %7587 = vmatpush2.bf16.msra.mxu0 %v6324
        %7588 = vmatprep.subr.bf16.mxu0 %v6317
        %7589 = vmatpush2.bf16.msra.mxu0 %v6316
        %7590 = vmatprep.subr.bf16.mxu0 %v6309
        %7591 = vmatpush2.bf16.msra.mxu0 %v6308
        %7592 = vmatprep.subr.bf16.mxu0 %v6301
        %7593 = vmatpush2.bf16.msra.mxu0 %v6300
        %7594 = vmatprep.subr.bf16.mxu0 %v6293
        %7595 = vmatpush2.bf16.msra.mxu0 %v6292
        %7596 = vmatprep.mubr.bf16.mxu0 %v4419
        %7597 = vmatmul.mubr.bf16.gmra.mxu0 %v4418
        %v7598 = vpop.f32.mrf.mxu0
        %v7599 = vadd.f32 %v7558, %v7598
        %v7600 = vpop.f32.mrf.mxu0
        %v7601 = vadd.f32 %v7560, %v7600
        %v7602 = vpop.f32.mrf.mxu0
        %v7603 = vpop.f32.mrf.mxu0
        %7604 = vdwg.mxu0
        %7605 = vmatprep.subr.bf16.mxu0 %v6413
        %7606 = vmatpush1.bf16.msra.mxu0 %v6412
        %7607 = vmatprep.subr.bf16.mxu0 %v6405
        %7608 = vmatpush1.bf16.msra.mxu0 %v6404
        %7609 = vmatprep.subr.bf16.mxu0 %v6397
        %7610 = vmatpush1.bf16.msra.mxu0 %v6396
        %7611 = vmatprep.subr.bf16.mxu0 %v6389
        %7612 = vmatpush1.bf16.msra.mxu0 %v6388
        %7613 = vmatprep.subr.bf16.mxu0 %v6381
        %7614 = vmatpush1.bf16.msra.mxu0 %v6380
        %7615 = vmatprep.subr.bf16.mxu0 %v6373
        %7616 = vmatpush1.bf16.msra.mxu0 %v6372
        %7617 = vmatprep.subr.bf16.mxu0 %v6365
        %7618 = vmatpush1.bf16.msra.mxu0 %v6364
        %7619 = vmatprep.subr.bf16.mxu0 %v6357
        %7620 = vmatpush1.bf16.msra.mxu0 %v6356
        %7621 = vmatprep.subr.bf16.mxu0 %v6477
        %7622 = vmatpush2.bf16.msra.mxu0 %v6476
        %7623 = vmatprep.subr.bf16.mxu0 %v6469
        %7624 = vmatpush2.bf16.msra.mxu0 %v6468
        %7625 = vmatprep.subr.bf16.mxu0 %v6461
        %7626 = vmatpush2.bf16.msra.mxu0 %v6460
        %7627 = vmatprep.subr.bf16.mxu0 %v6453
        %7628 = vmatpush2.bf16.msra.mxu0 %v6452
        %7629 = vmatprep.subr.bf16.mxu0 %v6445
        %7630 = vmatpush2.bf16.msra.mxu0 %v6444
        %7631 = vmatprep.subr.bf16.mxu0 %v6437
        %7632 = vmatpush2.bf16.msra.mxu0 %v6436
        %7633 = vmatprep.subr.bf16.mxu0 %v6429
        %7634 = vmatpush2.bf16.msra.mxu0 %v6428
        %7635 = vmatprep.subr.bf16.mxu0 %v6421
        %7636 = vmatpush2.bf16.msra.mxu0 %v6420
        %7637 = vmatprep.mubr.bf16.mxu0 %v4421
        %7638 = vmatmul.mubr.bf16.gmra.mxu0 %v4420
        %v7639 = vpop.f32.mrf.mxu0
        %v7640 = vadd.f32 %v7599, %v7639
        %v7641 = vpop.f32.mrf.mxu0
        %v7642 = vadd.f32 %v7601, %v7641
        %v7643 = vpop.f32.mrf.mxu0
        %v7644 = vpop.f32.mrf.mxu0
        %7645 = vdwg.mxu0
        %7646 = vst [vmem:[%s620] sm:$0xff] %v7148
        %7647 = vst [vmem:[%s620 + $0x8] sm:$0xff] %v7150
        %7648 = vst [vmem:[%s620 + $0x10] sm:$0xff] %v7312
        %7649 = vst [vmem:[%s620 + $0x18] sm:$0xff] %v7314
        %7650 = vst [vmem:[%s620 + $0x20] sm:$0xff] %v7476
        %7651 = vst [vmem:[%s620 + $0x28] sm:$0xff] %v7478
        %7652 = vst [vmem:[%s620 + $0x30] sm:$0xff] %v7640
        %7653 = vst [vmem:[%s620 + $0x38] sm:$0xff] %v7642
        %v7654 = vpack.c.bf16 %v1030, %v1030
        %v7655 = vpack.c.bf16 %v1036, %v1036
        %v7656 = vpack.c.bf16 %v1042, %v1042
        %v7657 = vpack.c.bf16 %v1048, %v1048
        %v7658 = vpack.c.bf16 %v1054, %v1054
        %v7659 = vpack.c.bf16 %v1060, %v1060
        %v7660 = vpack.c.bf16 %v1066, %v1066
        %v7661 = vpack.c.bf16 %v1072, %v1072
        %v7662 = vpack.c.bf16 %v1078, %v1078
        %v7663 = vpack.c.bf16 %v1084, %v1084
        %v7664 = vpack.c.bf16 %v1090, %v1090
        %v7665 = vpack.c.bf16 %v1096, %v1096
        %v7666 = vpack.c.bf16 %v1102, %v1102
        %v7667 = vpack.c.bf16 %v1108, %v1108
        %v7668 = vpack.c.bf16 %v1114, %v1114
        %v7669 = vpack.c.bf16 %v1120, %v1120
        %v7670 = vpack.c.bf16 %v1126, %v1126
        %v7671 = vpack.c.bf16 %v1132, %v1132
        %v7672 = vpack.c.bf16 %v1138, %v1138
        %v7673 = vpack.c.bf16 %v1144, %v1144
        %v7674 = vpack.c.bf16 %v1150, %v1150
        %v7675 = vpack.c.bf16 %v1156, %v1156
        %v7676 = vpack.c.bf16 %v1162, %v1162
        %v7677 = vpack.c.bf16 %v1168, %v1168
        %v7678 = vpack.c.bf16 %v1174, %v1174
        %v7679 = vpack.c.bf16 %v1180, %v1180
        %v7680 = vpack.c.bf16 %v1186, %v1186
        %v7681 = vpack.c.bf16 %v1192, %v1192
        %v7682 = vpack.c.bf16 %v1198, %v1198
        %v7683 = vpack.c.bf16 %v1204, %v1204
        %v7684 = vpack.c.bf16 %v1210, %v1210
        %v7685 = vpack.c.bf16 %v1216, %v1216
        %v7686 = vpack.c.bf16 %v1222, %v1222
        %v7687 = vpack.c.bf16 %v1228, %v1228
        %v7688 = vpack.c.bf16 %v1234, %v1234
        %v7689 = vpack.c.bf16 %v1240, %v1240
        %v7690 = vpack.c.bf16 %v1246, %v1246
        %v7691 = vpack.c.bf16 %v1252, %v1252
        %v7692 = vpack.c.bf16 %v1258, %v1258
        %v7693 = vpack.c.bf16 %v1264, %v1264
        %v7694 = vpack.c.bf16 %v1270, %v1270
        %v7695 = vpack.c.bf16 %v1276, %v1276
        %v7696 = vpack.c.bf16 %v1282, %v1282
        %v7697 = vpack.c.bf16 %v1288, %v1288
        %v7698 = vpack.c.bf16 %v1294, %v1294
        %v7699 = vpack.c.bf16 %v1300, %v1300
        %v7700 = vpack.c.bf16 %v1306, %v1306
        %v7701 = vpack.c.bf16 %v1312, %v1312
        %v7702 = vpack.c.bf16 %v1318, %v1318
        %v7703 = vpack.c.bf16 %v1324, %v1324
        %v7704 = vpack.c.bf16 %v1330, %v1330
        %v7705 = vpack.c.bf16 %v1336, %v1336
        %v7706 = vpack.c.bf16 %v1342, %v1342
        %v7707 = vpack.c.bf16 %v1348, %v1348
        %v7708 = vpack.c.bf16 %v1354, %v1354
        %v7709 = vpack.c.bf16 %v1360, %v1360
        %v7710 = vpack.c.bf16 %v1366, %v1366
        %v7711 = vpack.c.bf16 %v1372, %v1372
        %v7712 = vpack.c.bf16 %v1378, %v1378
        %v7713 = vpack.c.bf16 %v1384, %v1384
        %v7714 = vpack.c.bf16 %v1390, %v1390
        %v7715 = vpack.c.bf16 %v1396, %v1396
        %v7716 = vpack.c.bf16 %v1402, %v1402
        %v7717 = vpack.c.bf16 %v1408, %v1408
        %v7718 = vpack.c.bf16 %v1414, %v1414
        %v7719 = vpack.c.bf16 %v1420, %v1420
        %v7720 = vpack.c.bf16 %v1426, %v1426
        %v7721 = vpack.c.bf16 %v1432, %v1432
        %v7722 = vpack.c.bf16 %v1438, %v1438
        %v7723 = vpack.c.bf16 %v1444, %v1444
        %v7724 = vpack.c.bf16 %v1450, %v1450
        %v7725 = vpack.c.bf16 %v1456, %v1456
        %v7726 = vpack.c.bf16 %v1462, %v1462
        %v7727 = vpack.c.bf16 %v1468, %v1468
        %v7728 = vpack.c.bf16 %v1474, %v1474
        %v7729 = vpack.c.bf16 %v1480, %v1480
        %v7730 = vpack.c.bf16 %v1486, %v1486
        %v7731 = vpack.c.bf16 %v1492, %v1492
        %v7732 = vpack.c.bf16 %v1498, %v1498
        %v7733 = vpack.c.bf16 %v1504, %v1504
        %v7734 = vpack.c.bf16 %v1510, %v1510
        %v7735 = vpack.c.bf16 %v1516, %v1516
        %v7736 = vpack.c.bf16 %v1522, %v1522
        %v7737 = vpack.c.bf16 %v1528, %v1528
        %v7738 = vpack.c.bf16 %v1534, %v1534
        %v7739 = vpack.c.bf16 %v1540, %v1540
        %v7740 = vpack.c.bf16 %v1546, %v1546
        %v7741 = vpack.c.bf16 %v1552, %v1552
        %v7742 = vpack.c.bf16 %v1558, %v1558
        %v7743 = vpack.c.bf16 %v1564, %v1564
        %v7744 = vpack.c.bf16 %v1570, %v1570
        %v7745 = vpack.c.bf16 %v1576, %v1576
        %v7746 = vpack.c.bf16 %v1582, %v1582
        %v7747 = vpack.c.bf16 %v1588, %v1588
        %v7748 = vpack.c.bf16 %v1594, %v1594
        %v7749 = vpack.c.bf16 %v1600, %v1600
        %v7750 = vpack.c.bf16 %v1606, %v1606
        %v7751 = vpack.c.bf16 %v1612, %v1612
        %v7752 = vpack.c.bf16 %v1618, %v1618
        %v7753 = vpack.c.bf16 %v1624, %v1624
        %v7754 = vpack.c.bf16 %v1630, %v1630
        %v7755 = vpack.c.bf16 %v1636, %v1636
        %v7756 = vpack.c.bf16 %v1642, %v1642
        %v7757 = vpack.c.bf16 %v1648, %v1648
        %v7758 = vpack.c.bf16 %v1654, %v1654
        %v7759 = vpack.c.bf16 %v1660, %v1660
        %v7760 = vpack.c.bf16 %v1666, %v1666
        %v7761 = vpack.c.bf16 %v1672, %v1672
        %v7762 = vpack.c.bf16 %v1678, %v1678
        %v7763 = vpack.c.bf16 %v1684, %v1684
        %v7764 = vpack.c.bf16 %v1690, %v1690
        %v7765 = vpack.c.bf16 %v1696, %v1696
        %v7766 = vpack.c.bf16 %v1702, %v1702
        %v7767 = vpack.c.bf16 %v1708, %v1708
        %v7768 = vpack.c.bf16 %v1714, %v1714
        %v7769 = vpack.c.bf16 %v1720, %v1720
        %v7770 = vpack.c.bf16 %v1726, %v1726
        %v7771 = vpack.c.bf16 %v1732, %v1732
        %v7772 = vpack.c.bf16 %v1738, %v1738
        %v7773 = vpack.c.bf16 %v1744, %v1744
        %v7774 = vpack.c.bf16 %v1750, %v1750
        %v7775 = vpack.c.bf16 %v1756, %v1756
        %v7776 = vpack.c.bf16 %v1762, %v1762
        %v7777 = vpack.c.bf16 %v1768, %v1768
        %v7778 = vpack.c.bf16 %v1774, %v1774
        %v7779 = vpack.c.bf16 %v1780, %v1780
        %v7780 = vpack.c.bf16 %v1786, %v1786
        %v7781 = vpack.c.bf16 %v1792, %v1792
        %v7782 = vpack.c.bf16 %v1798, %v1798
        %v7783 = vpack.c.bf16 %v1804, %v1804
        %v7784 = vpack.c.bf16 %v1810, %v1810
        %v7785 = vpack.c.bf16 %v1816, %v1816
        %v7786 = vpack.c.bf16 %v1822, %v1822
        %v7787 = vpack.c.bf16 %v1828, %v1828
        %v7788 = vpack.c.bf16 %v1834, %v1834
        %v7789 = vpack.c.bf16 %v1840, %v1840
        %v7790 = vpack.c.bf16 %v1846, %v1846
        %v7791 = vpack.c.bf16 %v1852, %v1852
        %v7792 = vpack.c.bf16 %v1858, %v1858
        %v7793 = vpack.c.bf16 %v1864, %v1864
        %v7794 = vpack.c.bf16 %v1870, %v1870
        %v7795 = vpack.c.bf16 %v1876, %v1876
        %v7796 = vpack.c.bf16 %v1882, %v1882
        %v7797 = vpack.c.bf16 %v1888, %v1888
        %v7798 = vpack.c.bf16 %v1894, %v1894
        %v7799 = vpack.c.bf16 %v1900, %v1900
        %v7800 = vpack.c.bf16 %v1906, %v1906
        %v7801 = vpack.c.bf16 %v1912, %v1912
        %v7802 = vpack.c.bf16 %v1918, %v1918
        %v7803 = vpack.c.bf16 %v1924, %v1924
        %v7804 = vpack.c.bf16 %v1930, %v1930
        %v7805 = vpack.c.bf16 %v1936, %v1936
        %v7806 = vpack.c.bf16 %v1942, %v1942
        %v7807 = vpack.c.bf16 %v1948, %v1948
        %v7808 = vpack.c.bf16 %v1954, %v1954
        %v7809 = vpack.c.bf16 %v1960, %v1960
        %v7810 = vpack.c.bf16 %v1966, %v1966
        %v7811 = vpack.c.bf16 %v1972, %v1972
        %v7812 = vpack.c.bf16 %v1978, %v1978
        %v7813 = vpack.c.bf16 %v1984, %v1984
        %v7814 = vpack.c.bf16 %v1990, %v1990
        %v7815 = vpack.c.bf16 %v1996, %v1996
        %v7816 = vpack.c.bf16 %v2002, %v2002
        %v7817 = vpack.c.bf16 %v2008, %v2008
        %v7818 = vpack.c.bf16 %v2014, %v2014
        %v7819 = vpack.c.bf16 %v2020, %v2020
        %v7820 = vpack.c.bf16 %v2026, %v2026
        %v7821 = vpack.c.bf16 %v2032, %v2032
        %v7822 = vpack.c.bf16 %v2038, %v2038
        %v7823 = vpack.c.bf16 %v2044, %v2044
        %v7824 = vpack.c.bf16 %v2050, %v2050
        %v7825 = vpack.c.bf16 %v2056, %v2056
        %v7826 = vpack.c.bf16 %v2062, %v2062
        %v7827 = vpack.c.bf16 %v2068, %v2068
        %v7828 = vpack.c.bf16 %v2074, %v2074
        %v7829 = vpack.c.bf16 %v2080, %v2080
        %v7830 = vpack.c.bf16 %v2086, %v2086
        %v7831 = vpack.c.bf16 %v2092, %v2092
        %v7832 = vpack.c.bf16 %v2098, %v2098
        %v7833 = vpack.c.bf16 %v2104, %v2104
        %v7834 = vpack.c.bf16 %v2110, %v2110
        %v7835 = vpack.c.bf16 %v2116, %v2116
        %v7836 = vpack.c.bf16 %v2122, %v2122
        %v7837 = vpack.c.bf16 %v2128, %v2128
        %v7838 = vpack.c.bf16 %v2134, %v2134
        %v7839 = vpack.c.bf16 %v2140, %v2140
        %v7840 = vpack.c.bf16 %v2146, %v2146
        %v7841 = vpack.c.bf16 %v2152, %v2152
        %v7842 = vpack.c.bf16 %v2158, %v2158
        %v7843 = vpack.c.bf16 %v2164, %v2164
        %v7844 = vpack.c.bf16 %v2170, %v2170
        %v7845 = vpack.c.bf16 %v2176, %v2176
        %v7846 = vpack.c.bf16 %v2182, %v2182
        %v7847 = vpack.c.bf16 %v2188, %v2188
        %v7848 = vpack.c.bf16 %v2194, %v2194
        %v7849 = vpack.c.bf16 %v2200, %v2200
        %v7850 = vpack.c.bf16 %v2206, %v2206
        %v7851 = vpack.c.bf16 %v2212, %v2212
        %v7852 = vpack.c.bf16 %v2218, %v2218
        %v7853 = vpack.c.bf16 %v2224, %v2224
        %v7854 = vpack.c.bf16 %v2230, %v2230
        %v7855 = vpack.c.bf16 %v2236, %v2236
        %v7856 = vpack.c.bf16 %v2242, %v2242
        %v7857 = vpack.c.bf16 %v2248, %v2248
        %v7858 = vpack.c.bf16 %v2254, %v2254
        %v7859 = vpack.c.bf16 %v2260, %v2260
        %v7860 = vpack.c.bf16 %v2266, %v2266
        %v7861 = vpack.c.bf16 %v2272, %v2272
        %v7862 = vpack.c.bf16 %v2278, %v2278
        %v7863 = vpack.c.bf16 %v2284, %v2284
        %v7864 = vpack.c.bf16 %v2290, %v2290
        %v7865 = vpack.c.bf16 %v2296, %v2296
        %v7866 = vpack.c.bf16 %v2302, %v2302
        %v7867 = vpack.c.bf16 %v2308, %v2308
        %v7868 = vpack.c.bf16 %v2314, %v2314
        %v7869 = vpack.c.bf16 %v2320, %v2320
        %v7870 = vpack.c.bf16 %v2326, %v2326
        %v7871 = vpack.c.bf16 %v2332, %v2332
        %v7872 = vpack.c.bf16 %v2338, %v2338
        %v7873 = vpack.c.bf16 %v2344, %v2344
        %v7874 = vpack.c.bf16 %v2350, %v2350
        %v7875 = vpack.c.bf16 %v2356, %v2356
        %v7876 = vpack.c.bf16 %v2362, %v2362
        %v7877 = vpack.c.bf16 %v2368, %v2368
        %v7878 = vpack.c.bf16 %v2374, %v2374
        %v7879 = vpack.c.bf16 %v2380, %v2380
        %v7880 = vpack.c.bf16 %v2386, %v2386
        %v7881 = vpack.c.bf16 %v2392, %v2392
        %v7882 = vpack.c.bf16 %v2398, %v2398
        %v7883 = vpack.c.bf16 %v2404, %v2404
        %v7884 = vpack.c.bf16 %v2410, %v2410
        %v7885 = vpack.c.bf16 %v2416, %v2416
        %v7886 = vpack.c.bf16 %v2422, %v2422
        %v7887 = vpack.c.bf16 %v2428, %v2428
        %v7888 = vpack.c.bf16 %v2434, %v2434
        %v7889 = vpack.c.bf16 %v2440, %v2440
        %v7890 = vpack.c.bf16 %v2446, %v2446
        %v7891 = vpack.c.bf16 %v2452, %v2452
        %v7892 = vpack.c.bf16 %v2458, %v2458
        %v7893 = vpack.c.bf16 %v2464, %v2464
        %v7894 = vpack.c.bf16 %v2470, %v2470
        %v7895 = vpack.c.bf16 %v2476, %v2476
        %v7896 = vpack.c.bf16 %v2482, %v2482
        %v7897 = vpack.c.bf16 %v2488, %v2488
        %v7898 = vpack.c.bf16 %v2494, %v2494
        %v7899 = vpack.c.bf16 %v2500, %v2500
        %v7900 = vpack.c.bf16 %v2506, %v2506
        %v7901 = vpack.c.bf16 %v2512, %v2512
        %v7902 = vpack.c.bf16 %v2518, %v2518
        %v7903 = vpack.c.bf16 %v2524, %v2524
        %v7904 = vpack.c.bf16 %v2530, %v2530
        %v7905 = vpack.c.bf16 %v2536, %v2536
        %v7906 = vpack.c.bf16 %v2542, %v2542
        %v7907 = vpack.c.bf16 %v2548, %v2548
        %v7908 = vpack.c.bf16 %v2554, %v2554
        %v7909 = vpack.c.bf16 %v2560, %v2560
        %v7910 = vld [vmem:[#allocation7] sm:$0xf]
        %v7911 = vld [vmem:[#allocation7 + $0x4] sm:$0xf]
        %v7912 = vld [vmem:[#allocation7 + $0x8] sm:$0xf]
        %v7913 = vld [vmem:[#allocation7 + $0xc] sm:$0xf]
        %v7914 = vld [vmem:[#allocation7 + $0x10] sm:$0xf]
        %v7915 = vld [vmem:[#allocation7 + $0x14] sm:$0xf]
        %v7916 = vld [vmem:[#allocation7 + $0x18] sm:$0xf]
        %v7917 = vld [vmem:[#allocation7 + $0x1c] sm:$0xf]
        %v7918 = vld [vmem:[#allocation7 + $0x20] sm:$0xf]
        %v7919 = vld [vmem:[#allocation7 + $0x24] sm:$0xf]
        %v7920 = vld [vmem:[#allocation7 + $0x28] sm:$0xf]
        %v7921 = vld [vmem:[#allocation7 + $0x2c] sm:$0xf]
        %v7922 = vld [vmem:[#allocation7 + $0x30] sm:$0xf]
        %v7923 = vld [vmem:[#allocation7 + $0x34] sm:$0xf]
        %v7924 = vld [vmem:[#allocation7 + $0x38] sm:$0xf]
        %v7925 = vld [vmem:[#allocation7 + $0x3c] sm:$0xf]
        %v7926 = vld [vmem:[#allocation7 + $0x40] sm:$0xf]
        %v7927 = vld [vmem:[#allocation7 + $0x44] sm:$0xf]
        %v7928 = vld [vmem:[#allocation7 + $0x48] sm:$0xf]
        %v7929 = vld [vmem:[#allocation7 + $0x4c] sm:$0xf]
        %v7930 = vld [vmem:[#allocation7 + $0x50] sm:$0xf]
        %v7931 = vld [vmem:[#allocation7 + $0x54] sm:$0xf]
        %v7932 = vld [vmem:[#allocation7 + $0x58] sm:$0xf]
        %v7933 = vld [vmem:[#allocation7 + $0x5c] sm:$0xf]
        %v7934 = vld [vmem:[#allocation7 + $0x60] sm:$0xf]
        %v7935 = vld [vmem:[#allocation7 + $0x64] sm:$0xf]
        %v7936 = vld [vmem:[#allocation7 + $0x68] sm:$0xf]
        %v7937 = vld [vmem:[#allocation7 + $0x6c] sm:$0xf]
        %v7938 = vld [vmem:[#allocation7 + $0x70] sm:$0xf]
        %v7939 = vld [vmem:[#allocation7 + $0x74] sm:$0xf]
        %v7940 = vld [vmem:[#allocation7 + $0x78] sm:$0xf]
        %v7941 = vld [vmem:[#allocation7 + $0x7c] sm:$0xf]
        %v7942 = vld [vmem:[#allocation7 + $0x80] sm:$0xf]
        %v7943 = vld [vmem:[#allocation7 + $0x84] sm:$0xf]
        %v7944 = vld [vmem:[#allocation7 + $0x88] sm:$0xf]
        %v7945 = vld [vmem:[#allocation7 + $0x8c] sm:$0xf]
        %v7946 = vld [vmem:[#allocation7 + $0x90] sm:$0xf]
        %v7947 = vld [vmem:[#allocation7 + $0x94] sm:$0xf]
        %v7948 = vld [vmem:[#allocation7 + $0x98] sm:$0xf]
        %v7949 = vld [vmem:[#allocation7 + $0x9c] sm:$0xf]
        %v7950 = vld [vmem:[#allocation7 + $0xa0] sm:$0xf]
        %v7951 = vld [vmem:[#allocation7 + $0xa4] sm:$0xf]
        %v7952 = vld [vmem:[#allocation7 + $0xa8] sm:$0xf]
        %v7953 = vld [vmem:[#allocation7 + $0xac] sm:$0xf]
        %v7954 = vld [vmem:[#allocation7 + $0xb0] sm:$0xf]
        %v7955 = vld [vmem:[#allocation7 + $0xb4] sm:$0xf]
        %v7956 = vld [vmem:[#allocation7 + $0xb8] sm:$0xf]
        %v7957 = vld [vmem:[#allocation7 + $0xbc] sm:$0xf]
        %v7958 = vld [vmem:[#allocation7 + $0xc0] sm:$0xf]
        %v7959 = vld [vmem:[#allocation7 + $0xc4] sm:$0xf]
        %v7960 = vld [vmem:[#allocation7 + $0xc8] sm:$0xf]
        %v7961 = vld [vmem:[#allocation7 + $0xcc] sm:$0xf]
        %v7962 = vld [vmem:[#allocation7 + $0xd0] sm:$0xf]
        %v7963 = vld [vmem:[#allocation7 + $0xd4] sm:$0xf]
        %v7964 = vld [vmem:[#allocation7 + $0xd8] sm:$0xf]
        %v7965 = vld [vmem:[#allocation7 + $0xdc] sm:$0xf]
        %v7966 = vld [vmem:[#allocation7 + $0xe0] sm:$0xf]
        %v7967 = vld [vmem:[#allocation7 + $0xe4] sm:$0xf]
        %v7968 = vld [vmem:[#allocation7 + $0xe8] sm:$0xf]
        %v7969 = vld [vmem:[#allocation7 + $0xec] sm:$0xf]
        %v7970 = vld [vmem:[#allocation7 + $0xf0] sm:$0xf]
        %v7971 = vld [vmem:[#allocation7 + $0xf4] sm:$0xf]
        %v7972 = vld [vmem:[#allocation7 + $0xf8] sm:$0xf]
        %v7973 = vld [vmem:[#allocation7 + $0xfc] sm:$0xf]
        %v7974 = vld [vmem:[#allocation7 + $0x100] sm:$0xf]
        %v7975 = vld [vmem:[#allocation7 + $0x104] sm:$0xf]
        %v7976 = vld [vmem:[#allocation7 + $0x108] sm:$0xf]
        %v7977 = vld [vmem:[#allocation7 + $0x10c] sm:$0xf]
        %v7978 = vld [vmem:[#allocation7 + $0x110] sm:$0xf]
        %v7979 = vld [vmem:[#allocation7 + $0x114] sm:$0xf]
        %v7980 = vld [vmem:[#allocation7 + $0x118] sm:$0xf]
        %v7981 = vld [vmem:[#allocation7 + $0x11c] sm:$0xf]
        %v7982 = vld [vmem:[#allocation7 + $0x120] sm:$0xf]
        %v7983 = vld [vmem:[#allocation7 + $0x124] sm:$0xf]
        %v7984 = vld [vmem:[#allocation7 + $0x128] sm:$0xf]
        %v7985 = vld [vmem:[#allocation7 + $0x12c] sm:$0xf]
        %v7986 = vld [vmem:[#allocation7 + $0x130] sm:$0xf]
        %v7987 = vld [vmem:[#allocation7 + $0x134] sm:$0xf]
        %v7988 = vld [vmem:[#allocation7 + $0x138] sm:$0xf]
        %v7989 = vld [vmem:[#allocation7 + $0x13c] sm:$0xf]
        %v7990 = vld [vmem:[#allocation7 + $0x140] sm:$0xf]
        %v7991 = vld [vmem:[#allocation7 + $0x144] sm:$0xf]
        %v7992 = vld [vmem:[#allocation7 + $0x148] sm:$0xf]
        %v7993 = vld [vmem:[#allocation7 + $0x14c] sm:$0xf]
        %v7994 = vld [vmem:[#allocation7 + $0x150] sm:$0xf]
        %v7995 = vld [vmem:[#allocation7 + $0x154] sm:$0xf]
        %v7996 = vld [vmem:[#allocation7 + $0x158] sm:$0xf]
        %v7997 = vld [vmem:[#allocation7 + $0x15c] sm:$0xf]
        %v7998 = vld [vmem:[#allocation7 + $0x160] sm:$0xf]
        %v7999 = vld [vmem:[#allocation7 + $0x164] sm:$0xf]
        %v8000 = vld [vmem:[#allocation7 + $0x168] sm:$0xf]
        %v8001 = vld [vmem:[#allocation7 + $0x16c] sm:$0xf]
        %v8002 = vld [vmem:[#allocation7 + $0x170] sm:$0xf]
        %v8003 = vld [vmem:[#allocation7 + $0x174] sm:$0xf]
        %v8004 = vld [vmem:[#allocation7 + $0x178] sm:$0xf]
        %v8005 = vld [vmem:[#allocation7 + $0x17c] sm:$0xf]
        %v8006 = vld [vmem:[#allocation7 + $0x180] sm:$0xf]
        %v8007 = vld [vmem:[#allocation7 + $0x184] sm:$0xf]
        %v8008 = vld [vmem:[#allocation7 + $0x188] sm:$0xf]
        %v8009 = vld [vmem:[#allocation7 + $0x18c] sm:$0xf]
        %v8010 = vld [vmem:[#allocation7 + $0x190] sm:$0xf]
        %v8011 = vld [vmem:[#allocation7 + $0x194] sm:$0xf]
        %v8012 = vld [vmem:[#allocation7 + $0x198] sm:$0xf]
        %v8013 = vld [vmem:[#allocation7 + $0x19c] sm:$0xf]
        %v8014 = vld [vmem:[#allocation7 + $0x1a0] sm:$0xf]
        %v8015 = vld [vmem:[#allocation7 + $0x1a4] sm:$0xf]
        %v8016 = vld [vmem:[#allocation7 + $0x1a8] sm:$0xf]
        %v8017 = vld [vmem:[#allocation7 + $0x1ac] sm:$0xf]
        %v8018 = vld [vmem:[#allocation7 + $0x1b0] sm:$0xf]
        %v8019 = vld [vmem:[#allocation7 + $0x1b4] sm:$0xf]
        %v8020 = vld [vmem:[#allocation7 + $0x1b8] sm:$0xf]
        %v8021 = vld [vmem:[#allocation7 + $0x1bc] sm:$0xf]
        %v8022 = vld [vmem:[#allocation7 + $0x1c0] sm:$0xf]
        %v8023 = vld [vmem:[#allocation7 + $0x1c4] sm:$0xf]
        %v8024 = vld [vmem:[#allocation7 + $0x1c8] sm:$0xf]
        %v8025 = vld [vmem:[#allocation7 + $0x1cc] sm:$0xf]
        %v8026 = vld [vmem:[#allocation7 + $0x1d0] sm:$0xf]
        %v8027 = vld [vmem:[#allocation7 + $0x1d4] sm:$0xf]
        %v8028 = vld [vmem:[#allocation7 + $0x1d8] sm:$0xf]
        %v8029 = vld [vmem:[#allocation7 + $0x1dc] sm:$0xf]
        %v8030 = vld [vmem:[#allocation7 + $0x1e0] sm:$0xf]
        %v8031 = vld [vmem:[#allocation7 + $0x1e4] sm:$0xf]
        %v8032 = vld [vmem:[#allocation7 + $0x1e8] sm:$0xf]
        %v8033 = vld [vmem:[#allocation7 + $0x1ec] sm:$0xf]
        %v8034 = vld [vmem:[#allocation7 + $0x1f0] sm:$0xf]
        %v8035 = vld [vmem:[#allocation7 + $0x1f4] sm:$0xf]
        %v8036 = vld [vmem:[#allocation7 + $0x1f8] sm:$0xf]
        %v8037 = vld [vmem:[#allocation7 + $0x1fc] sm:$0xf]
        %v8294 = vunpack.c.l.b16 %v7654
        %v8295 = vunpack.c.l.b16 %v7655
        %v8296 = vunpack.c.l.b16 %v7656
        %v8297 = vunpack.c.l.b16 %v7657
        %v8298 = vunpack.c.l.b16 %v7658
        %v8299 = vunpack.c.l.b16 %v7659
        %v8300 = vunpack.c.l.b16 %v7660
        %v8301 = vunpack.c.l.b16 %v7661
        %v8302 = vunpack.c.l.b16 %v7662
        %v8303 = vunpack.c.l.b16 %v7663
        %v8304 = vunpack.c.l.b16 %v7664
        %v8305 = vunpack.c.l.b16 %v7665
        %v8306 = vunpack.c.l.b16 %v7666
        %v8307 = vunpack.c.l.b16 %v7667
        %v8308 = vunpack.c.l.b16 %v7668
        %v8309 = vunpack.c.l.b16 %v7669
        %v8310 = vunpack.c.l.b16 %v7670
        %v8311 = vunpack.c.l.b16 %v7671
        %v8312 = vunpack.c.l.b16 %v7672
        %v8313 = vunpack.c.l.b16 %v7673
        %v8314 = vunpack.c.l.b16 %v7674
        %v8315 = vunpack.c.l.b16 %v7675
        %v8316 = vunpack.c.l.b16 %v7676
        %v8317 = vunpack.c.l.b16 %v7677
        %v8318 = vunpack.c.l.b16 %v7678
        %v8319 = vunpack.c.l.b16 %v7679
        %v8320 = vunpack.c.l.b16 %v7680
        %v8321 = vunpack.c.l.b16 %v7681
        %v8322 = vunpack.c.l.b16 %v7682
        %v8323 = vunpack.c.l.b16 %v7683
        %v8324 = vunpack.c.l.b16 %v7684
        %v8325 = vunpack.c.l.b16 %v7685
        %v8326 = vunpack.c.l.b16 %v7686
        %v8327 = vunpack.c.l.b16 %v7687
        %v8328 = vunpack.c.l.b16 %v7688
        %v8329 = vunpack.c.l.b16 %v7689
        %v8330 = vunpack.c.l.b16 %v7690
        %v8331 = vunpack.c.l.b16 %v7691
        %v8332 = vunpack.c.l.b16 %v7692
        %v8333 = vunpack.c.l.b16 %v7693
        %v8334 = vunpack.c.l.b16 %v7694
        %v8335 = vunpack.c.l.b16 %v7695
        %v8336 = vunpack.c.l.b16 %v7696
        %v8337 = vunpack.c.l.b16 %v7697
        %v8338 = vunpack.c.l.b16 %v7698
        %v8339 = vunpack.c.l.b16 %v7699
        %v8340 = vunpack.c.l.b16 %v7700
        %v8341 = vunpack.c.l.b16 %v7701
        %v8342 = vunpack.c.l.b16 %v7702
        %v8343 = vunpack.c.l.b16 %v7703
        %v8344 = vunpack.c.l.b16 %v7704
        %v8345 = vunpack.c.l.b16 %v7705
        %v8346 = vunpack.c.l.b16 %v7706
        %v8347 = vunpack.c.l.b16 %v7707
        %v8348 = vunpack.c.l.b16 %v7708
        %v8349 = vunpack.c.l.b16 %v7709
        %v8350 = vunpack.c.l.b16 %v7710
        %v8351 = vunpack.c.l.b16 %v7711
        %v8352 = vunpack.c.l.b16 %v7712
        %v8353 = vunpack.c.l.b16 %v7713
        %v8354 = vunpack.c.l.b16 %v7714
        %v8355 = vunpack.c.l.b16 %v7715
        %v8356 = vunpack.c.l.b16 %v7716
        %v8357 = vunpack.c.l.b16 %v7717
        %v8358 = vunpack.c.l.b16 %v7718
        %v8359 = vunpack.c.l.b16 %v7719
        %v8360 = vunpack.c.l.b16 %v7720
        %v8361 = vunpack.c.l.b16 %v7721
        %v8362 = vunpack.c.l.b16 %v7722
        %v8363 = vunpack.c.l.b16 %v7723
        %v8364 = vunpack.c.l.b16 %v7724
        %v8365 = vunpack.c.l.b16 %v7725
        %v8366 = vunpack.c.l.b16 %v7726
        %v8367 = vunpack.c.l.b16 %v7727
        %v8368 = vunpack.c.l.b16 %v7728
        %v8369 = vunpack.c.l.b16 %v7729
        %v8370 = vunpack.c.l.b16 %v7730
        %v8371 = vunpack.c.l.b16 %v7731
        %v8372 = vunpack.c.l.b16 %v7732
        %v8373 = vunpack.c.l.b16 %v7733
        %v8374 = vunpack.c.l.b16 %v7734
        %v8375 = vunpack.c.l.b16 %v7735
        %v8376 = vunpack.c.l.b16 %v7736
        %v8377 = vunpack.c.l.b16 %v7737
        %v8378 = vunpack.c.l.b16 %v7738
        %v8379 = vunpack.c.l.b16 %v7739
        %v8380 = vunpack.c.l.b16 %v7740
        %v8381 = vunpack.c.l.b16 %v7741
        %v8382 = vunpack.c.l.b16 %v7742
        %v8383 = vunpack.c.l.b16 %v7743
        %v8384 = vunpack.c.l.b16 %v7744
        %v8385 = vunpack.c.l.b16 %v7745
        %v8386 = vunpack.c.l.b16 %v7746
        %v8387 = vunpack.c.l.b16 %v7747
        %v8388 = vunpack.c.l.b16 %v7748
        %v8389 = vunpack.c.l.b16 %v7749
        %v8390 = vunpack.c.l.b16 %v7750
        %v8391 = vunpack.c.l.b16 %v7751
        %v8392 = vunpack.c.l.b16 %v7752
        %v8393 = vunpack.c.l.b16 %v7753
        %v8394 = vunpack.c.l.b16 %v7754
        %v8395 = vunpack.c.l.b16 %v7755
        %v8396 = vunpack.c.l.b16 %v7756
        %v8397 = vunpack.c.l.b16 %v7757
        %v8398 = vunpack.c.l.b16 %v7758
        %v8399 = vunpack.c.l.b16 %v7759
        %v8400 = vunpack.c.l.b16 %v7760
        %v8401 = vunpack.c.l.b16 %v7761
        %v8402 = vunpack.c.l.b16 %v7762
        %v8403 = vunpack.c.l.b16 %v7763
        %v8404 = vunpack.c.l.b16 %v7764
        %v8405 = vunpack.c.l.b16 %v7765
        %v8406 = vunpack.c.l.b16 %v7766
        %v8407 = vunpack.c.l.b16 %v7767
        %v8408 = vunpack.c.l.b16 %v7768
        %v8409 = vunpack.c.l.b16 %v7769
        %v8410 = vunpack.c.l.b16 %v7770
        %v8411 = vunpack.c.l.b16 %v7771
        %v8412 = vunpack.c.l.b16 %v7772
        %v8413 = vunpack.c.l.b16 %v7773
        %v8414 = vunpack.c.l.b16 %v7774
        %v8415 = vunpack.c.l.b16 %v7775
        %v8416 = vunpack.c.l.b16 %v7776
        %v8417 = vunpack.c.l.b16 %v7777
        %v8418 = vunpack.c.l.b16 %v7778
        %v8419 = vunpack.c.l.b16 %v7779
        %v8420 = vunpack.c.l.b16 %v7780
        %v8421 = vunpack.c.l.b16 %v7781
        %v8422 = vunpack.c.l.b16 %v7782
        %v8423 = vunpack.c.l.b16 %v7783
        %v8424 = vunpack.c.l.b16 %v7784
        %v8425 = vunpack.c.l.b16 %v7785
        %v8426 = vunpack.c.l.b16 %v7786
        %v8427 = vunpack.c.l.b16 %v7787
        %v8428 = vunpack.c.l.b16 %v7788
        %v8429 = vunpack.c.l.b16 %v7789
        %v8430 = vunpack.c.l.b16 %v7790
        %v8431 = vunpack.c.l.b16 %v7791
        %v8432 = vunpack.c.l.b16 %v7792
        %v8433 = vunpack.c.l.b16 %v7793
        %v8434 = vunpack.c.l.b16 %v7794
        %v8435 = vunpack.c.l.b16 %v7795
        %v8436 = vunpack.c.l.b16 %v7796
        %v8437 = vunpack.c.l.b16 %v7797
        %v8438 = vunpack.c.l.b16 %v7798
        %v8439 = vunpack.c.l.b16 %v7799
        %v8440 = vunpack.c.l.b16 %v7800
        %v8441 = vunpack.c.l.b16 %v7801
        %v8442 = vunpack.c.l.b16 %v7802
        %v8443 = vunpack.c.l.b16 %v7803
        %v8444 = vunpack.c.l.b16 %v7804
        %v8445 = vunpack.c.l.b16 %v7805
        %v8446 = vunpack.c.l.b16 %v7806
        %v8447 = vunpack.c.l.b16 %v7807
        %v8448 = vunpack.c.l.b16 %v7808
        %v8449 = vunpack.c.l.b16 %v7809
        %v8450 = vunpack.c.l.b16 %v7810
        %v8451 = vunpack.c.l.b16 %v7811
        %v8452 = vunpack.c.l.b16 %v7812
        %v8453 = vunpack.c.l.b16 %v7813
        %v8454 = vunpack.c.l.b16 %v7814
        %v8455 = vunpack.c.l.b16 %v7815
        %v8456 = vunpack.c.l.b16 %v7816
        %v8457 = vunpack.c.l.b16 %v7817
        %v8458 = vunpack.c.l.b16 %v7818
        %v8459 = vunpack.c.l.b16 %v7819
        %v8460 = vunpack.c.l.b16 %v7820
        %v8461 = vunpack.c.l.b16 %v7821
        %v8462 = vunpack.c.l.b16 %v7822
        %v8463 = vunpack.c.l.b16 %v7823
        %v8464 = vunpack.c.l.b16 %v7824
        %v8465 = vunpack.c.l.b16 %v7825
        %v8466 = vunpack.c.l.b16 %v7826
        %v8467 = vunpack.c.l.b16 %v7827
        %v8468 = vunpack.c.l.b16 %v7828
        %v8469 = vunpack.c.l.b16 %v7829
        %v8470 = vunpack.c.l.b16 %v7830
        %v8471 = vunpack.c.l.b16 %v7831
        %v8472 = vunpack.c.l.b16 %v7832
        %v8473 = vunpack.c.l.b16 %v7833
        %v8474 = vunpack.c.l.b16 %v7834
        %v8475 = vunpack.c.l.b16 %v7835
        %v8476 = vunpack.c.l.b16 %v7836
        %v8477 = vunpack.c.l.b16 %v7837
        %v8478 = vunpack.c.l.b16 %v7838
        %v8479 = vunpack.c.l.b16 %v7839
        %v8480 = vunpack.c.l.b16 %v7840
        %v8481 = vunpack.c.l.b16 %v7841
        %v8482 = vunpack.c.l.b16 %v7842
        %v8483 = vunpack.c.l.b16 %v7843
        %v8484 = vunpack.c.l.b16 %v7844
        %v8485 = vunpack.c.l.b16 %v7845
        %v8486 = vunpack.c.l.b16 %v7846
        %v8487 = vunpack.c.l.b16 %v7847
        %v8488 = vunpack.c.l.b16 %v7848
        %v8489 = vunpack.c.l.b16 %v7849
        %v8490 = vunpack.c.l.b16 %v7850
        %v8491 = vunpack.c.l.b16 %v7851
        %v8492 = vunpack.c.l.b16 %v7852
        %v8493 = vunpack.c.l.b16 %v7853
        %v8494 = vunpack.c.l.b16 %v7854
        %v8495 = vunpack.c.l.b16 %v7855
        %v8496 = vunpack.c.l.b16 %v7856
        %v8497 = vunpack.c.l.b16 %v7857
        %v8498 = vunpack.c.l.b16 %v7858
        %v8499 = vunpack.c.l.b16 %v7859
        %v8500 = vunpack.c.l.b16 %v7860
        %v8501 = vunpack.c.l.b16 %v7861
        %v8502 = vunpack.c.l.b16 %v7862
        %v8503 = vunpack.c.l.b16 %v7863
        %v8504 = vunpack.c.l.b16 %v7864
        %v8505 = vunpack.c.l.b16 %v7865
        %v8506 = vunpack.c.l.b16 %v7866
        %v8507 = vunpack.c.l.b16 %v7867
        %v8508 = vunpack.c.l.b16 %v7868
        %v8509 = vunpack.c.l.b16 %v7869
        %v8510 = vunpack.c.l.b16 %v7870
        %v8511 = vunpack.c.l.b16 %v7871
        %v8512 = vunpack.c.l.b16 %v7872
        %v8513 = vunpack.c.l.b16 %v7873
        %v8514 = vunpack.c.l.b16 %v7874
        %v8515 = vunpack.c.l.b16 %v7875
        %v8516 = vunpack.c.l.b16 %v7876
        %v8517 = vunpack.c.l.b16 %v7877
        %v8518 = vunpack.c.l.b16 %v7878
        %v8519 = vunpack.c.l.b16 %v7879
        %v8520 = vunpack.c.l.b16 %v7880
        %v8521 = vunpack.c.l.b16 %v7881
        %v8522 = vunpack.c.l.b16 %v7882
        %v8523 = vunpack.c.l.b16 %v7883
        %v8524 = vunpack.c.l.b16 %v7884
        %v8525 = vunpack.c.l.b16 %v7885
        %v8526 = vunpack.c.l.b16 %v7886
        %v8527 = vunpack.c.l.b16 %v7887
        %v8528 = vunpack.c.l.b16 %v7888
        %v8529 = vunpack.c.l.b16 %v7889
        %v8530 = vunpack.c.l.b16 %v7890
        %v8531 = vunpack.c.l.b16 %v7891
        %v8532 = vunpack.c.l.b16 %v7892
        %v8533 = vunpack.c.l.b16 %v7893
        %v8534 = vunpack.c.l.b16 %v7894
        %v8535 = vunpack.c.l.b16 %v7895
        %v8536 = vunpack.c.l.b16 %v7896
        %v8537 = vunpack.c.l.b16 %v7897
        %v8538 = vunpack.c.l.b16 %v7898
        %v8539 = vunpack.c.l.b16 %v7899
        %v8540 = vunpack.c.l.b16 %v7900
        %v8541 = vunpack.c.l.b16 %v7901
        %v8542 = vunpack.c.l.b16 %v7902
        %v8543 = vunpack.c.l.b16 %v7903
        %v8544 = vunpack.c.l.b16 %v7904
        %v8545 = vunpack.c.l.b16 %v7905
        %v8546 = vunpack.c.l.b16 %v7906
        %v8547 = vunpack.c.l.b16 %v7907
        %v8548 = vunpack.c.l.b16 %v7908
        %v8549 = vunpack.c.l.b16 %v7909
        %v8550 = vsel %vm3265, %v8302, %v8294
        %v8551 = vsel %vm3267, %v8310, %v8550
        %v8552 = vsel %vm3269, %v8318, %v8551
        %v8553 = vsel %vm3271, %v8326, %v8552
        %v8554 = vsel %vm3273, %v8334, %v8553
        %v8555 = vsel %vm3275, %v8342, %v8554
        %v8556 = vsel %vm3277, %v8350, %v8555
        %v8557 = vsel %vm3265, %v8303, %v8295
        %v8558 = vsel %vm3267, %v8311, %v8557
        %v8559 = vsel %vm3269, %v8319, %v8558
        %v8560 = vsel %vm3271, %v8327, %v8559
        %v8561 = vsel %vm3273, %v8335, %v8560
        %v8562 = vsel %vm3275, %v8343, %v8561
        %v8563 = vsel %vm3277, %v8351, %v8562
        %v8564 = vsel %vm3265, %v8304, %v8296
        %v8565 = vsel %vm3267, %v8312, %v8564
        %v8566 = vsel %vm3269, %v8320, %v8565
        %v8567 = vsel %vm3271, %v8328, %v8566
        %v8568 = vsel %vm3273, %v8336, %v8567
        %v8569 = vsel %vm3275, %v8344, %v8568
        %v8570 = vsel %vm3277, %v8352, %v8569
        %v8571 = vsel %vm3265, %v8305, %v8297
        %v8572 = vsel %vm3267, %v8313, %v8571
        %v8573 = vsel %vm3269, %v8321, %v8572
        %v8574 = vsel %vm3271, %v8329, %v8573
        %v8575 = vsel %vm3273, %v8337, %v8574
        %v8576 = vsel %vm3275, %v8345, %v8575
        %v8577 = vsel %vm3277, %v8353, %v8576
        %v8578 = vsel %vm3265, %v8306, %v8298
        %v8579 = vsel %vm3267, %v8314, %v8578
        %v8580 = vsel %vm3269, %v8322, %v8579
        %v8581 = vsel %vm3271, %v8330, %v8580
        %v8582 = vsel %vm3273, %v8338, %v8581
        %v8583 = vsel %vm3275, %v8346, %v8582
        %v8584 = vsel %vm3277, %v8354, %v8583
        %v8585 = vsel %vm3265, %v8307, %v8299
        %v8586 = vsel %vm3267, %v8315, %v8585
        %v8587 = vsel %vm3269, %v8323, %v8586
        %v8588 = vsel %vm3271, %v8331, %v8587
        %v8589 = vsel %vm3273, %v8339, %v8588
        %v8590 = vsel %vm3275, %v8347, %v8589
        %v8591 = vsel %vm3277, %v8355, %v8590
        %v8592 = vsel %vm3265, %v8308, %v8300
        %v8593 = vsel %vm3267, %v8316, %v8592
        %v8594 = vsel %vm3269, %v8324, %v8593
        %v8595 = vsel %vm3271, %v8332, %v8594
        %v8596 = vsel %vm3273, %v8340, %v8595
        %v8597 = vsel %vm3275, %v8348, %v8596
        %v8598 = vsel %vm3277, %v8356, %v8597
        %v8599 = vsel %vm3265, %v8309, %v8301
        %v8600 = vsel %vm3267, %v8317, %v8599
        %v8601 = vsel %vm3269, %v8325, %v8600
        %v8602 = vsel %vm3271, %v8333, %v8601
        %v8603 = vsel %vm3273, %v8341, %v8602
        %v8604 = vsel %vm3275, %v8349, %v8603
        %v8605 = vsel %vm3277, %v8357, %v8604
        %v8606 = vsel %vm3265, %v8366, %v8358
        %v8607 = vsel %vm3267, %v8374, %v8606
        %v8608 = vsel %vm3269, %v8382, %v8607
        %v8609 = vsel %vm3271, %v8390, %v8608
        %v8610 = vsel %vm3273, %v8398, %v8609
        %v8611 = vsel %vm3275, %v8406, %v8610
        %v8612 = vsel %vm3277, %v8414, %v8611
        %v8613 = vsel %vm3265, %v8367, %v8359
        %v8614 = vsel %vm3267, %v8375, %v8613
        %v8615 = vsel %vm3269, %v8383, %v8614
        %v8616 = vsel %vm3271, %v8391, %v8615
        %v8617 = vsel %vm3273, %v8399, %v8616
        %v8618 = vsel %vm3275, %v8407, %v8617
        %v8619 = vsel %vm3277, %v8415, %v8618
        %v8620 = vsel %vm3265, %v8368, %v8360
        %v8621 = vsel %vm3267, %v8376, %v8620
        %v8622 = vsel %vm3269, %v8384, %v8621
        %v8623 = vsel %vm3271, %v8392, %v8622
        %v8624 = vsel %vm3273, %v8400, %v8623
        %v8625 = vsel %vm3275, %v8408, %v8624
        %v8626 = vsel %vm3277, %v8416, %v8625
        %v8627 = vsel %vm3265, %v8369, %v8361
        %v8628 = vsel %vm3267, %v8377, %v8627
        %v8629 = vsel %vm3269, %v8385, %v8628
        %v8630 = vsel %vm3271, %v8393, %v8629
        %v8631 = vsel %vm3273, %v8401, %v8630
        %v8632 = vsel %vm3275, %v8409, %v8631
        %v8633 = vsel %vm3277, %v8417, %v8632
        %v8634 = vsel %vm3265, %v8370, %v8362
        %v8635 = vsel %vm3267, %v8378, %v8634
        %v8636 = vsel %vm3269, %v8386, %v8635
        %v8637 = vsel %vm3271, %v8394, %v8636
        %v8638 = vsel %vm3273, %v8402, %v8637
        %v8639 = vsel %vm3275, %v8410, %v8638
        %v8640 = vsel %vm3277, %v8418, %v8639
        %v8641 = vsel %vm3265, %v8371, %v8363
        %v8642 = vsel %vm3267, %v8379, %v8641
        %v8643 = vsel %vm3269, %v8387, %v8642
        %v8644 = vsel %vm3271, %v8395, %v8643
        %v8645 = vsel %vm3273, %v8403, %v8644
        %v8646 = vsel %vm3275, %v8411, %v8645
        %v8647 = vsel %vm3277, %v8419, %v8646
        %v8648 = vsel %vm3265, %v8372, %v8364
        %v8649 = vsel %vm3267, %v8380, %v8648
        %v8650 = vsel %vm3269, %v8388, %v8649
        %v8651 = vsel %vm3271, %v8396, %v8650
        %v8652 = vsel %vm3273, %v8404, %v8651
        %v8653 = vsel %vm3275, %v8412, %v8652
        %v8654 = vsel %vm3277, %v8420, %v8653
        %v8655 = vsel %vm3265, %v8373, %v8365
        %v8656 = vsel %vm3267, %v8381, %v8655
        %v8657 = vsel %vm3269, %v8389, %v8656
        %v8658 = vsel %vm3271, %v8397, %v8657
        %v8659 = vsel %vm3273, %v8405, %v8658
        %v8660 = vsel %vm3275, %v8413, %v8659
        %v8661 = vsel %vm3277, %v8421, %v8660
        %v8662 = vsel %vm3265, %v8430, %v8422
        %v8663 = vsel %vm3267, %v8438, %v8662
        %v8664 = vsel %vm3269, %v8446, %v8663
        %v8665 = vsel %vm3271, %v8454, %v8664
        %v8666 = vsel %vm3273, %v8462, %v8665
        %v8667 = vsel %vm3275, %v8470, %v8666
        %v8668 = vsel %vm3277, %v8478, %v8667
        %v8669 = vsel %vm3265, %v8431, %v8423
        %v8670 = vsel %vm3267, %v8439, %v8669
        %v8671 = vsel %vm3269, %v8447, %v8670
        %v8672 = vsel %vm3271, %v8455, %v8671
        %v8673 = vsel %vm3273, %v8463, %v8672
        %v8674 = vsel %vm3275, %v8471, %v8673
        %v8675 = vsel %vm3277, %v8479, %v8674
        %v8676 = vsel %vm3265, %v8432, %v8424
        %v8677 = vsel %vm3267, %v8440, %v8676
        %v8678 = vsel %vm3269, %v8448, %v8677
        %v8679 = vsel %vm3271, %v8456, %v8678
        %v8680 = vsel %vm3273, %v8464, %v8679
        %v8681 = vsel %vm3275, %v8472, %v8680
        %v8682 = vsel %vm3277, %v8480, %v8681
        %v8683 = vsel %vm3265, %v8433, %v8425
        %v8684 = vsel %vm3267, %v8441, %v8683
        %v8685 = vsel %vm3269, %v8449, %v8684
        %v8686 = vsel %vm3271, %v8457, %v8685
        %v8687 = vsel %vm3273, %v8465, %v8686
        %v8688 = vsel %vm3275, %v8473, %v8687
        %v8689 = vsel %vm3277, %v8481, %v8688
        %v8690 = vsel %vm3265, %v8434, %v8426
        %v8691 = vsel %vm3267, %v8442, %v8690
        %v8692 = vsel %vm3269, %v8450, %v8691
        %v8693 = vsel %vm3271, %v8458, %v8692
        %v8694 = vsel %vm3273, %v8466, %v8693
        %v8695 = vsel %vm3275, %v8474, %v8694
        %v8696 = vsel %vm3277, %v8482, %v8695
        %v8697 = vsel %vm3265, %v8435, %v8427
        %v8698 = vsel %vm3267, %v8443, %v8697
        %v8699 = vsel %vm3269, %v8451, %v8698
        %v8700 = vsel %vm3271, %v8459, %v8699
        %v8701 = vsel %vm3273, %v8467, %v8700
        %v8702 = vsel %vm3275, %v8475, %v8701
        %v8703 = vsel %vm3277, %v8483, %v8702
        %v8704 = vsel %vm3265, %v8436, %v8428
        %v8705 = vsel %vm3267, %v8444, %v8704
        %v8706 = vsel %vm3269, %v8452, %v8705
        %v8707 = vsel %vm3271, %v8460, %v8706
        %v8708 = vsel %vm3273, %v8468, %v8707
        %v8709 = vsel %vm3275, %v8476, %v8708
        %v8710 = vsel %vm3277, %v8484, %v8709
        %v8711 = vsel %vm3265, %v8437, %v8429
        %v8712 = vsel %vm3267, %v8445, %v8711
        %v8713 = vsel %vm3269, %v8453, %v8712
        %v8714 = vsel %vm3271, %v8461, %v8713
        %v8715 = vsel %vm3273, %v8469, %v8714
        %v8716 = vsel %vm3275, %v8477, %v8715
        %v8717 = vsel %vm3277, %v8485, %v8716
        %v8718 = vsel %vm3265, %v8494, %v8486
        %v8719 = vsel %vm3267, %v8502, %v8718
        %v8720 = vsel %vm3269, %v8510, %v8719
        %v8721 = vsel %vm3271, %v8518, %v8720
        %v8722 = vsel %vm3273, %v8526, %v8721
        %v8723 = vsel %vm3275, %v8534, %v8722
        %v8724 = vsel %vm3277, %v8542, %v8723
        %v8725 = vsel %vm3265, %v8495, %v8487
        %v8726 = vsel %vm3267, %v8503, %v8725
        %v8727 = vsel %vm3269, %v8511, %v8726
        %v8728 = vsel %vm3271, %v8519, %v8727
        %v8729 = vsel %vm3273, %v8527, %v8728
        %v8730 = vsel %vm3275, %v8535, %v8729
        %v8731 = vsel %vm3277, %v8543, %v8730
        %v8732 = vsel %vm3265, %v8496, %v8488
        %v8733 = vsel %vm3267, %v8504, %v8732
        %v8734 = vsel %vm3269, %v8512, %v8733
        %v8735 = vsel %vm3271, %v8520, %v8734
        %v8736 = vsel %vm3273, %v8528, %v8735
        %v8737 = vsel %vm3275, %v8536, %v8736
        %v8738 = vsel %vm3277, %v8544, %v8737
        %v8739 = vsel %vm3265, %v8497, %v8489
        %v8740 = vsel %vm3267, %v8505, %v8739
        %v8741 = vsel %vm3269, %v8513, %v8740
        %v8742 = vsel %vm3271, %v8521, %v8741
        %v8743 = vsel %vm3273, %v8529, %v8742
        %v8744 = vsel %vm3275, %v8537, %v8743
        %v8745 = vsel %vm3277, %v8545, %v8744
        %v8746 = vsel %vm3265, %v8498, %v8490
        %v8747 = vsel %vm3267, %v8506, %v8746
        %v8748 = vsel %vm3269, %v8514, %v8747
        %v8749 = vsel %vm3271, %v8522, %v8748
        %v8750 = vsel %vm3273, %v8530, %v8749
        %v8751 = vsel %vm3275, %v8538, %v8750
        %v8752 = vsel %vm3277, %v8546, %v8751
        %v8753 = vsel %vm3265, %v8499, %v8491
        %v8754 = vsel %vm3267, %v8507, %v8753
        %v8755 = vsel %vm3269, %v8515, %v8754
        %v8756 = vsel %vm3271, %v8523, %v8755
        %v8757 = vsel %vm3273, %v8531, %v8756
        %v8758 = vsel %vm3275, %v8539, %v8757
        %v8759 = vsel %vm3277, %v8547, %v8758
        %v8760 = vsel %vm3265, %v8500, %v8492
        %v8761 = vsel %vm3267, %v8508, %v8760
        %v8762 = vsel %vm3269, %v8516, %v8761
        %v8763 = vsel %vm3271, %v8524, %v8762
        %v8764 = vsel %vm3273, %v8532, %v8763
        %v8765 = vsel %vm3275, %v8540, %v8764
        %v8766 = vsel %vm3277, %v8548, %v8765
        %v8767 = vsel %vm3265, %v8501, %v8493
        %v8768 = vsel %vm3267, %v8509, %v8767
        %v8769 = vsel %vm3269, %v8517, %v8768
        %v8770 = vsel %vm3271, %v8525, %v8769
        %v8771 = vsel %vm3273, %v8533, %v8770
        %v8772 = vsel %vm3275, %v8541, %v8771
        %v8773 = vsel %vm3277, %v8549, %v8772
        %v8774 = vpack.c.b16 %v8612, %v8556
        %v8775 = vpack.c.b16 %v8619, %v8563
        %v8776 = vpack.c.b16 %v8626, %v8570
        %v8777 = vpack.c.b16 %v8633, %v8577
        %v8778 = vpack.c.b16 %v8640, %v8584
        %v8779 = vpack.c.b16 %v8647, %v8591
        %v8780 = vpack.c.b16 %v8654, %v8598
        %v8781 = vpack.c.b16 %v8661, %v8605
        %v8782 = vpack.c.b16 %v8724, %v8668
        %v8783 = vpack.c.b16 %v8731, %v8675
        %v8784 = vpack.c.b16 %v8738, %v8682
        %v8785 = vpack.c.b16 %v8745, %v8689
        %v8786 = vpack.c.b16 %v8752, %v8696
        %v8787 = vpack.c.b16 %v8759, %v8703
        %v8788 = vpack.c.b16 %v8766, %v8710
        %v8789 = vpack.c.b16 %v8773, %v8717
        %v8934 = vunpack.c.l.b16 %v7910
        %v8935 = vunpack.c.l.b16 %v7911
        %v8936 = vunpack.c.l.b16 %v7912
        %v8937 = vunpack.c.l.b16 %v7913
        %v8938 = vunpack.c.l.b16 %v7914
        %v8939 = vunpack.c.l.b16 %v7915
        %v8940 = vunpack.c.l.b16 %v7916
        %v8941 = vunpack.c.l.b16 %v7917
        %v8942 = vunpack.c.l.b16 %v7918
        %v8943 = vunpack.c.l.b16 %v7919
        %v8944 = vunpack.c.l.b16 %v7920
        %v8945 = vunpack.c.l.b16 %v7921
        %v8946 = vunpack.c.l.b16 %v7922
        %v8947 = vunpack.c.l.b16 %v7923
        %v8948 = vunpack.c.l.b16 %v7924
        %v8949 = vunpack.c.l.b16 %v7925
        %v8950 = vunpack.c.l.b16 %v7926
        %v8951 = vunpack.c.l.b16 %v7927
        %v8952 = vunpack.c.l.b16 %v7928
        %v8953 = vunpack.c.l.b16 %v7929
        %v8954 = vunpack.c.l.b16 %v7930
        %v8955 = vunpack.c.l.b16 %v7931
        %v8956 = vunpack.c.l.b16 %v7932
        %v8957 = vunpack.c.l.b16 %v7933
        %v8958 = vunpack.c.l.b16 %v7934
        %v8959 = vunpack.c.l.b16 %v7935
        %v8960 = vunpack.c.l.b16 %v7936
        %v8961 = vunpack.c.l.b16 %v7937
        %v8962 = vunpack.c.l.b16 %v7938
        %v8963 = vunpack.c.l.b16 %v7939
        %v8964 = vunpack.c.l.b16 %v7940
        %v8965 = vunpack.c.l.b16 %v7941
        %v8966 = vunpack.c.l.b16 %v7942
        %v8967 = vunpack.c.l.b16 %v7943
        %v8968 = vunpack.c.l.b16 %v7944
        %v8969 = vunpack.c.l.b16 %v7945
        %v8970 = vunpack.c.l.b16 %v7946
        %v8971 = vunpack.c.l.b16 %v7947
        %v8972 = vunpack.c.l.b16 %v7948
        %v8973 = vunpack.c.l.b16 %v7949
        %v8974 = vunpack.c.l.b16 %v7950
        %v8975 = vunpack.c.l.b16 %v7951
        %v8976 = vunpack.c.l.b16 %v7952
        %v8977 = vunpack.c.l.b16 %v7953
        %v8978 = vunpack.c.l.b16 %v7954
        %v8979 = vunpack.c.l.b16 %v7955
        %v8980 = vunpack.c.l.b16 %v7956
        %v8981 = vunpack.c.l.b16 %v7957
        %v8982 = vunpack.c.l.b16 %v7958
        %v8983 = vunpack.c.l.b16 %v7959
        %v8984 = vunpack.c.l.b16 %v7960
        %v8985 = vunpack.c.l.b16 %v7961
        %v8986 = vunpack.c.l.b16 %v7962
        %v8987 = vunpack.c.l.b16 %v7963
        %v8988 = vunpack.c.l.b16 %v7964
        %v8989 = vunpack.c.l.b16 %v7965
        %v8990 = vunpack.c.l.b16 %v7966
        %v8991 = vunpack.c.l.b16 %v7967
        %v8992 = vunpack.c.l.b16 %v7968
        %v8993 = vunpack.c.l.b16 %v7969
        %v8994 = vunpack.c.l.b16 %v7970
        %v8995 = vunpack.c.l.b16 %v7971
        %v8996 = vunpack.c.l.b16 %v7972
        %v8997 = vunpack.c.l.b16 %v7973
        %v8998 = vunpack.c.l.b16 %v7974
        %v8999 = vunpack.c.l.b16 %v7975
        %v9000 = vunpack.c.l.b16 %v7976
        %v9001 = vunpack.c.l.b16 %v7977
        %v9002 = vunpack.c.l.b16 %v7978
        %v9003 = vunpack.c.l.b16 %v7979
        %v9004 = vunpack.c.l.b16 %v7980
        %v9005 = vunpack.c.l.b16 %v7981
        %v9006 = vunpack.c.l.b16 %v7982
        %v9007 = vunpack.c.l.b16 %v7983
        %v9008 = vunpack.c.l.b16 %v7984
        %v9009 = vunpack.c.l.b16 %v7985
        %v9010 = vunpack.c.l.b16 %v7986
        %v9011 = vunpack.c.l.b16 %v7987
        %v9012 = vunpack.c.l.b16 %v7988
        %v9013 = vunpack.c.l.b16 %v7989
        %v9014 = vunpack.c.l.b16 %v7990
        %v9015 = vunpack.c.l.b16 %v7991
        %v9016 = vunpack.c.l.b16 %v7992
        %v9017 = vunpack.c.l.b16 %v7993
        %v9018 = vunpack.c.l.b16 %v7994
        %v9019 = vunpack.c.l.b16 %v7995
        %v9020 = vunpack.c.l.b16 %v7996
        %v9021 = vunpack.c.l.b16 %v7997
        %v9022 = vunpack.c.l.b16 %v7998
        %v9023 = vunpack.c.l.b16 %v7999
        %v9024 = vunpack.c.l.b16 %v8000
        %v9025 = vunpack.c.l.b16 %v8001
        %v9026 = vunpack.c.l.b16 %v8002
        %v9027 = vunpack.c.l.b16 %v8003
        %v9028 = vunpack.c.l.b16 %v8004
        %v9029 = vunpack.c.l.b16 %v8005
        %v9030 = vunpack.c.l.b16 %v8006
        %v9031 = vunpack.c.l.b16 %v8007
        %v9032 = vunpack.c.l.b16 %v8008
        %v9033 = vunpack.c.l.b16 %v8009
        %v9034 = vunpack.c.l.b16 %v8010
        %v9035 = vunpack.c.l.b16 %v8011
        %v9036 = vunpack.c.l.b16 %v8012
        %v9037 = vunpack.c.l.b16 %v8013
        %v9038 = vunpack.c.l.b16 %v8014
        %v9039 = vunpack.c.l.b16 %v8015
        %v9040 = vunpack.c.l.b16 %v8016
        %v9041 = vunpack.c.l.b16 %v8017
        %v9042 = vunpack.c.l.b16 %v8018
        %v9043 = vunpack.c.l.b16 %v8019
        %v9044 = vunpack.c.l.b16 %v8020
        %v9045 = vunpack.c.l.b16 %v8021
        %v9046 = vunpack.c.l.b16 %v8022
        %v9047 = vunpack.c.l.b16 %v8023
        %v9048 = vunpack.c.l.b16 %v8024
        %v9049 = vunpack.c.l.b16 %v8025
        %v9050 = vunpack.c.l.b16 %v8026
        %v9051 = vunpack.c.l.b16 %v8027
        %v9052 = vunpack.c.l.b16 %v8028
        %v9053 = vunpack.c.l.b16 %v8029
        %v9054 = vunpack.c.l.b16 %v8030
        %v9055 = vunpack.c.l.b16 %v8031
        %v9056 = vunpack.c.l.b16 %v8032
        %v9057 = vunpack.c.l.b16 %v8033
        %v9058 = vunpack.c.l.b16 %v8034
        %v9059 = vunpack.c.l.b16 %v8035
        %v9060 = vunpack.c.l.b16 %v8036
        %v9061 = vunpack.c.l.b16 %v8037
        %v9062 = vpack.c.b16 %v8935, %v8934
        %v9063 = vpack.c.b16 %v8937, %v8936
        %v9064 = vpack.c.b16 %v8939, %v8938
        %v9065 = vpack.c.b16 %v8941, %v8940
        %v9066 = vpack.c.b16 %v8943, %v8942
        %v9067 = vpack.c.b16 %v8945, %v8944
        %v9068 = vpack.c.b16 %v8947, %v8946
        %v9069 = vpack.c.b16 %v8949, %v8948
        %v9070 = vpack.c.b16 %v8951, %v8950
        %v9071 = vpack.c.b16 %v8953, %v8952
        %v9072 = vpack.c.b16 %v8955, %v8954
        %v9073 = vpack.c.b16 %v8957, %v8956
        %v9074 = vpack.c.b16 %v8959, %v8958
        %v9075 = vpack.c.b16 %v8961, %v8960
        %v9076 = vpack.c.b16 %v8963, %v8962
        %v9077 = vpack.c.b16 %v8965, %v8964
        %v9078 = vpack.c.b16 %v8967, %v8966
        %v9079 = vpack.c.b16 %v8969, %v8968
        %v9080 = vpack.c.b16 %v8971, %v8970
        %v9081 = vpack.c.b16 %v8973, %v8972
        %v9082 = vpack.c.b16 %v8975, %v8974
        %v9083 = vpack.c.b16 %v8977, %v8976
        %v9084 = vpack.c.b16 %v8979, %v8978
        %v9085 = vpack.c.b16 %v8981, %v8980
        %v9086 = vpack.c.b16 %v8983, %v8982
        %v9087 = vpack.c.b16 %v8985, %v8984
        %v9088 = vpack.c.b16 %v8987, %v8986
        %v9089 = vpack.c.b16 %v8989, %v8988
        %v9090 = vpack.c.b16 %v8991, %v8990
        %v9091 = vpack.c.b16 %v8993, %v8992
        %v9092 = vpack.c.b16 %v8995, %v8994
        %v9093 = vpack.c.b16 %v8997, %v8996
        %v9094 = vpack.c.b16 %v8999, %v8998
        %v9095 = vpack.c.b16 %v9001, %v9000
        %v9096 = vpack.c.b16 %v9003, %v9002
        %v9097 = vpack.c.b16 %v9005, %v9004
        %v9098 = vpack.c.b16 %v9007, %v9006
        %v9099 = vpack.c.b16 %v9009, %v9008
        %v9100 = vpack.c.b16 %v9011, %v9010
        %v9101 = vpack.c.b16 %v9013, %v9012
        %v9102 = vpack.c.b16 %v9015, %v9014
        %v9103 = vpack.c.b16 %v9017, %v9016
        %v9104 = vpack.c.b16 %v9019, %v9018
        %v9105 = vpack.c.b16 %v9021, %v9020
        %v9106 = vpack.c.b16 %v9023, %v9022
        %v9107 = vpack.c.b16 %v9025, %v9024
        %v9108 = vpack.c.b16 %v9027, %v9026
        %v9109 = vpack.c.b16 %v9029, %v9028
        %v9110 = vpack.c.b16 %v9031, %v9030
        %v9111 = vpack.c.b16 %v9033, %v9032
        %v9112 = vpack.c.b16 %v9035, %v9034
        %v9113 = vpack.c.b16 %v9037, %v9036
        %v9114 = vpack.c.b16 %v9039, %v9038
        %v9115 = vpack.c.b16 %v9041, %v9040
        %v9116 = vpack.c.b16 %v9043, %v9042
        %v9117 = vpack.c.b16 %v9045, %v9044
        %v9118 = vpack.c.b16 %v9047, %v9046
        %v9119 = vpack.c.b16 %v9049, %v9048
        %v9120 = vpack.c.b16 %v9051, %v9050
        %v9121 = vpack.c.b16 %v9053, %v9052
        %v9122 = vpack.c.b16 %v9055, %v9054
        %v9123 = vpack.c.b16 %v9057, %v9056
        %v9124 = vpack.c.b16 %v9059, %v9058
        %v9125 = vpack.c.b16 %v9061, %v9060
        %9190 = vmatprep.subr.bf16.mxu0 0
        %9191 = vmatpush1.bf16.msra.mxu0 %v9069
        %9192 = vmatprep.subr.bf16.mxu0 0
        %9193 = vmatpush1.bf16.msra.mxu0 %v9068
        %9194 = vmatprep.subr.bf16.mxu0 0
        %9195 = vmatpush1.bf16.msra.mxu0 %v9067
        %9196 = vmatprep.subr.bf16.mxu0 0
        %9197 = vmatpush1.bf16.msra.mxu0 %v9066
        %9198 = vmatprep.subr.bf16.mxu0 0
        %9199 = vmatpush1.bf16.msra.mxu0 %v9065
        %9200 = vmatprep.subr.bf16.mxu0 0
        %9201 = vmatpush1.bf16.msra.mxu0 %v9064
        %9202 = vmatprep.subr.bf16.mxu0 0
        %9203 = vmatpush1.bf16.msra.mxu0 %v9063
        %9204 = vmatprep.subr.bf16.mxu0 0
        %9205 = vmatpush1.bf16.msra.mxu0 %v9062
        %9206 = vmatprep.subr.bf16.mxu0 0
        %9207 = vmatpush2.bf16.msra.mxu0 %v9077
        %9208 = vmatprep.subr.bf16.mxu0 0
        %9209 = vmatpush2.bf16.msra.mxu0 %v9076
        %9210 = vmatprep.subr.bf16.mxu0 0
        %9211 = vmatpush2.bf16.msra.mxu0 %v9075
        %9212 = vmatprep.subr.bf16.mxu0 0
        %9213 = vmatpush2.bf16.msra.mxu0 %v9074
        %9214 = vmatprep.subr.bf16.mxu0 0
        %9215 = vmatpush2.bf16.msra.mxu0 %v9073
        %9216 = vmatprep.subr.bf16.mxu0 0
        %9217 = vmatpush2.bf16.msra.mxu0 %v9072
        %9218 = vmatprep.subr.bf16.mxu0 0
        %9219 = vmatpush2.bf16.msra.mxu0 %v9071
        %9220 = vmatprep.subr.bf16.mxu0 0
        %9221 = vmatpush2.bf16.msra.mxu0 %v9070
        %9222 = vmatprep.mubr.bf16.mxu0 %v8775
        %9223 = vmatmul.mubr.bf16.gmra.mxu0 %v8774
        %v9224 = vpop.f32.mrf.mxu0
        %v9225 = vadd.f32 0.0, %v9224
        %v9226 = vpop.f32.mrf.mxu0
        %v9227 = vpop.f32.mrf.mxu0
        %v9228 = vadd.f32 0.0, %v9227
        %v9229 = vpop.f32.mrf.mxu0
        %9230 = vmatprep.mubr.bf16.mxu0 %v8783
        %9231 = vmatmul.mubr.bf16.gmra.mxu0 %v8782
        %v9232 = vpop.f32.mrf.mxu0
        %v9233 = vadd.f32 0.0, %v9232
        %v9234 = vpop.f32.mrf.mxu0
        %v9235 = vpop.f32.mrf.mxu0
        %v9236 = vadd.f32 0.0, %v9235
        %v9237 = vpop.f32.mrf.mxu0
        %9238 = vdwg.mxu0
        %9239 = vmatprep.subr.bf16.mxu0 0
        %9240 = vmatpush1.bf16.msra.mxu0 %v9085
        %9241 = vmatprep.subr.bf16.mxu0 0
        %9242 = vmatpush1.bf16.msra.mxu0 %v9084
        %9243 = vmatprep.subr.bf16.mxu0 0
        %9244 = vmatpush1.bf16.msra.mxu0 %v9083
        %9245 = vmatprep.subr.bf16.mxu0 0
        %9246 = vmatpush1.bf16.msra.mxu0 %v9082
        %9247 = vmatprep.subr.bf16.mxu0 0
        %9248 = vmatpush1.bf16.msra.mxu0 %v9081
        %9249 = vmatprep.subr.bf16.mxu0 0
        %9250 = vmatpush1.bf16.msra.mxu0 %v9080
        %9251 = vmatprep.subr.bf16.mxu0 0
        %9252 = vmatpush1.bf16.msra.mxu0 %v9079
        %9253 = vmatprep.subr.bf16.mxu0 0
        %9254 = vmatpush1.bf16.msra.mxu0 %v9078
        %9255 = vmatprep.subr.bf16.mxu0 0
        %9256 = vmatpush2.bf16.msra.mxu0 %v9093
        %9257 = vmatprep.subr.bf16.mxu0 0
        %9258 = vmatpush2.bf16.msra.mxu0 %v9092
        %9259 = vmatprep.subr.bf16.mxu0 0
        %9260 = vmatpush2.bf16.msra.mxu0 %v9091
        %9261 = vmatprep.subr.bf16.mxu0 0
        %9262 = vmatpush2.bf16.msra.mxu0 %v9090
        %9263 = vmatprep.subr.bf16.mxu0 0
        %9264 = vmatpush2.bf16.msra.mxu0 %v9089
        %9265 = vmatprep.subr.bf16.mxu0 0
        %9266 = vmatpush2.bf16.msra.mxu0 %v9088
        %9267 = vmatprep.subr.bf16.mxu0 0
        %9268 = vmatpush2.bf16.msra.mxu0 %v9087
        %9269 = vmatprep.subr.bf16.mxu0 0
        %9270 = vmatpush2.bf16.msra.mxu0 %v9086
        %9271 = vmatprep.mubr.bf16.mxu0 %v8777
        %9272 = vmatmul.mubr.bf16.gmra.mxu0 %v8776
        %v9273 = vpop.f32.mrf.mxu0
        %v9274 = vadd.f32 %v9225, %v9273
        %v9275 = vpop.f32.mrf.mxu0
        %v9276 = vpop.f32.mrf.mxu0
        %v9277 = vadd.f32 %v9228, %v9276
        %v9278 = vpop.f32.mrf.mxu0
        %9279 = vmatprep.mubr.bf16.mxu0 %v8785
        %9280 = vmatmul.mubr.bf16.gmra.mxu0 %v8784
        %v9281 = vpop.f32.mrf.mxu0
        %v9282 = vadd.f32 %v9233, %v9281
        %v9283 = vpop.f32.mrf.mxu0
        %v9284 = vpop.f32.mrf.mxu0
        %v9285 = vadd.f32 %v9236, %v9284
        %v9286 = vpop.f32.mrf.mxu0
        %9287 = vdwg.mxu0
        %9288 = vmatprep.subr.bf16.mxu0 0
        %9289 = vmatpush1.bf16.msra.mxu0 %v9101
        %9290 = vmatprep.subr.bf16.mxu0 0
        %9291 = vmatpush1.bf16.msra.mxu0 %v9100
        %9292 = vmatprep.subr.bf16.mxu0 0
        %9293 = vmatpush1.bf16.msra.mxu0 %v9099
        %9294 = vmatprep.subr.bf16.mxu0 0
        %9295 = vmatpush1.bf16.msra.mxu0 %v9098
        %9296 = vmatprep.subr.bf16.mxu0 0
        %9297 = vmatpush1.bf16.msra.mxu0 %v9097
        %9298 = vmatprep.subr.bf16.mxu0 0
        %9299 = vmatpush1.bf16.msra.mxu0 %v9096
        %9300 = vmatprep.subr.bf16.mxu0 0
        %9301 = vmatpush1.bf16.msra.mxu0 %v9095
        %9302 = vmatprep.subr.bf16.mxu0 0
        %9303 = vmatpush1.bf16.msra.mxu0 %v9094
        %9304 = vmatprep.subr.bf16.mxu0 0
        %9305 = vmatpush2.bf16.msra.mxu0 %v9109
        %9306 = vmatprep.subr.bf16.mxu0 0
        %9307 = vmatpush2.bf16.msra.mxu0 %v9108
        %9308 = vmatprep.subr.bf16.mxu0 0
        %9309 = vmatpush2.bf16.msra.mxu0 %v9107
        %9310 = vmatprep.subr.bf16.mxu0 0
        %9311 = vmatpush2.bf16.msra.mxu0 %v9106
        %9312 = vmatprep.subr.bf16.mxu0 0
        %9313 = vmatpush2.bf16.msra.mxu0 %v9105
        %9314 = vmatprep.subr.bf16.mxu0 0
        %9315 = vmatpush2.bf16.msra.mxu0 %v9104
        %9316 = vmatprep.subr.bf16.mxu0 0
        %9317 = vmatpush2.bf16.msra.mxu0 %v9103
        %9318 = vmatprep.subr.bf16.mxu0 0
        %9319 = vmatpush2.bf16.msra.mxu0 %v9102
        %9320 = vmatprep.mubr.bf16.mxu0 %v8779
        %9321 = vmatmul.mubr.bf16.gmra.mxu0 %v8778
        %v9322 = vpop.f32.mrf.mxu0
        %v9323 = vadd.f32 %v9274, %v9322
        %v9324 = vpop.f32.mrf.mxu0
        %v9325 = vpop.f32.mrf.mxu0
        %v9326 = vadd.f32 %v9277, %v9325
        %v9327 = vpop.f32.mrf.mxu0
        %9328 = vmatprep.mubr.bf16.mxu0 %v8787
        %9329 = vmatmul.mubr.bf16.gmra.mxu0 %v8786
        %v9330 = vpop.f32.mrf.mxu0
        %v9331 = vadd.f32 %v9282, %v9330
        %v9332 = vpop.f32.mrf.mxu0
        %v9333 = vpop.f32.mrf.mxu0
        %v9334 = vadd.f32 %v9285, %v9333
        %v9335 = vpop.f32.mrf.mxu0
        %9336 = vdwg.mxu0
        %9337 = vmatprep.subr.bf16.mxu0 0
        %9338 = vmatpush1.bf16.msra.mxu0 %v9117
        %9339 = vmatprep.subr.bf16.mxu0 0
        %9340 = vmatpush1.bf16.msra.mxu0 %v9116
        %9341 = vmatprep.subr.bf16.mxu0 0
        %9342 = vmatpush1.bf16.msra.mxu0 %v9115
        %9343 = vmatprep.subr.bf16.mxu0 0
        %9344 = vmatpush1.bf16.msra.mxu0 %v9114
        %9345 = vmatprep.subr.bf16.mxu0 0
        %9346 = vmatpush1.bf16.msra.mxu0 %v9113
        %9347 = vmatprep.subr.bf16.mxu0 0
        %9348 = vmatpush1.bf16.msra.mxu0 %v9112
        %9349 = vmatprep.subr.bf16.mxu0 0
        %9350 = vmatpush1.bf16.msra.mxu0 %v9111
        %9351 = vmatprep.subr.bf16.mxu0 0
        %9352 = vmatpush1.bf16.msra.mxu0 %v9110
        %9353 = vmatprep.subr.bf16.mxu0 0
        %9354 = vmatpush2.bf16.msra.mxu0 %v9125
        %9355 = vmatprep.subr.bf16.mxu0 0
        %9356 = vmatpush2.bf16.msra.mxu0 %v9124
        %9357 = vmatprep.subr.bf16.mxu0 0
        %9358 = vmatpush2.bf16.msra.mxu0 %v9123
        %9359 = vmatprep.subr.bf16.mxu0 0
        %9360 = vmatpush2.bf16.msra.mxu0 %v9122
        %9361 = vmatprep.subr.bf16.mxu0 0
        %9362 = vmatpush2.bf16.msra.mxu0 %v9121
        %9363 = vmatprep.subr.bf16.mxu0 0
        %9364 = vmatpush2.bf16.msra.mxu0 %v9120
        %9365 = vmatprep.subr.bf16.mxu0 0
        %9366 = vmatpush2.bf16.msra.mxu0 %v9119
        %9367 = vmatprep.subr.bf16.mxu0 0
        %9368 = vmatpush2.bf16.msra.mxu0 %v9118
        %9369 = vmatprep.mubr.bf16.mxu0 %v8781
        %9370 = vmatmul.mubr.bf16.gmra.mxu0 %v8780
        %v9371 = vpop.f32.mrf.mxu0
        %v9372 = vadd.f32 %v9323, %v9371
        %v9373 = vpop.f32.mrf.mxu0
        %v9374 = vpop.f32.mrf.mxu0
        %v9375 = vadd.f32 %v9326, %v9374
        %v9376 = vpop.f32.mrf.mxu0
        %9377 = vmatprep.mubr.bf16.mxu0 %v8789
        %9378 = vmatmul.mubr.bf16.gmra.mxu0 %v8788
        %v9379 = vpop.f32.mrf.mxu0
        %v9380 = vadd.f32 %v9331, %v9379
        %v9381 = vpop.f32.mrf.mxu0
        %v9382 = vpop.f32.mrf.mxu0
        %v9383 = vadd.f32 %v9334, %v9382
        %v9384 = vpop.f32.mrf.mxu0
        %9385 = vdwg.mxu0
        %v9386 = vld [vmem:[#allocation11] sm:$0x1]
        %v9388 = vlaneseq
        %v9389 = vshrl.u32 %v9388, 7
        %v9390 = vsub.s32 0, %v9389
        %v9391 = vrot.slane %v9386, %v9390
        %v9393 = vmul.f32 %v9372, %v9391
        %v9394 = vmul.f32 %v9375, %v9391
        %v9395 = vmul.f32 %v9380, %v9391
        %v9396 = vmul.f32 %v9383, %v9391
        %v9397 = vld [vmem:[#allocation13] sm:$0x1]
        %v9399 = vlaneseq
        %v9400 = vshrl.u32 %v9399, 7
        %v9401 = vsub.s32 0, %v9400
        %v9402 = vrot.slane %v9397, %v9401
        %v9404 = vadd.f32 %v9393, %v9402
        %v9405 = vadd.f32 %v9394, %v9402
        %v9406 = vadd.f32 %v9395, %v9402
        %v9407 = vadd.f32 %v9396, %v9402
        %v9408 = vmax.f32 %v9404, 0.0
        %v9409 = vmax.f32 %v9405, 0.0
        %v9410 = vmax.f32 %v9406, 0.0
        %v9411 = vmax.f32 %v9407, 0.0
        %9412 = vst [vmem:[%s632] sm:$0xff] %v9408
        %9413 = vst [vmem:[%s632 + $0x8] sm:$0xff] %v9409
        %9414 = vst [vmem:[%s632 + $0x10] sm:$0xff] %v9410
        %9415 = vst [vmem:[%s632 + $0x18] sm:$0xff] %v9411
        %v9416 = vpack.c.bf16 %v2587, %v2563
        %v9417 = vpack.c.bf16 %v2590, %v2566
        %v9418 = vpack.c.bf16 %v2593, %v2569
        %v9419 = vpack.c.bf16 %v2596, %v2572
        %v9420 = vpack.c.bf16 %v2599, %v2575
        %v9421 = vpack.c.bf16 %v2602, %v2578
        %v9422 = vpack.c.bf16 %v2605, %v2581
        %v9423 = vpack.c.bf16 %v2608, %v2584
        %v9424 = vpack.c.bf16 %v2635, %v2611
        %v9425 = vpack.c.bf16 %v2638, %v2614
        %v9426 = vpack.c.bf16 %v2641, %v2617
        %v9427 = vpack.c.bf16 %v2644, %v2620
        %v9428 = vpack.c.bf16 %v2647, %v2623
        %v9429 = vpack.c.bf16 %v2650, %v2626
        %v9430 = vpack.c.bf16 %v2653, %v2629
        %v9431 = vpack.c.bf16 %v2656, %v2632
        %v9432 = vpack.c.bf16 %v2683, %v2659
        %v9433 = vpack.c.bf16 %v2686, %v2662
        %v9434 = vpack.c.bf16 %v2689, %v2665
        %v9435 = vpack.c.bf16 %v2692, %v2668
        %v9436 = vpack.c.bf16 %v2695, %v2671
        %v9437 = vpack.c.bf16 %v2698, %v2674
        %v9438 = vpack.c.bf16 %v2701, %v2677
        %v9439 = vpack.c.bf16 %v2704, %v2680
        %v9440 = vpack.c.bf16 %v2731, %v2707
        %v9441 = vpack.c.bf16 %v2734, %v2710
        %v9442 = vpack.c.bf16 %v2737, %v2713
        %v9443 = vpack.c.bf16 %v2740, %v2716
        %v9444 = vpack.c.bf16 %v2743, %v2719
        %v9445 = vpack.c.bf16 %v2746, %v2722
        %v9446 = vpack.c.bf16 %v2749, %v2725
        %v9447 = vpack.c.bf16 %v2752, %v2728
        %v9448 = vld [vmem:[#allocation8] sm:$0xf]
        %v9449 = vld [vmem:[#allocation8 + $0x4] sm:$0xf]
        %v9450 = vld [vmem:[#allocation8 + $0x8] sm:$0xf]
        %v9451 = vld [vmem:[#allocation8 + $0xc] sm:$0xf]
        %v9452 = vld [vmem:[#allocation8 + $0x10] sm:$0xf]
        %v9453 = vld [vmem:[#allocation8 + $0x14] sm:$0xf]
        %v9454 = vld [vmem:[#allocation8 + $0x18] sm:$0xf]
        %v9455 = vld [vmem:[#allocation8 + $0x1c] sm:$0xf]
        %v9456 = vld [vmem:[#allocation8 + $0x20] sm:$0xf]
        %v9457 = vld [vmem:[#allocation8 + $0x24] sm:$0xf]
        %v9458 = vld [vmem:[#allocation8 + $0x28] sm:$0xf]
        %v9459 = vld [vmem:[#allocation8 + $0x2c] sm:$0xf]
        %v9460 = vld [vmem:[#allocation8 + $0x30] sm:$0xf]
        %v9461 = vld [vmem:[#allocation8 + $0x34] sm:$0xf]
        %v9462 = vld [vmem:[#allocation8 + $0x38] sm:$0xf]
        %v9463 = vld [vmem:[#allocation8 + $0x3c] sm:$0xf]
        %v9464 = vld [vmem:[#allocation8 + $0x40] sm:$0xf]
        %v9465 = vld [vmem:[#allocation8 + $0x44] sm:$0xf]
        %v9466 = vld [vmem:[#allocation8 + $0x48] sm:$0xf]
        %v9467 = vld [vmem:[#allocation8 + $0x4c] sm:$0xf]
        %v9468 = vld [vmem:[#allocation8 + $0x50] sm:$0xf]
        %v9469 = vld [vmem:[#allocation8 + $0x54] sm:$0xf]
        %v9470 = vld [vmem:[#allocation8 + $0x58] sm:$0xf]
        %v9471 = vld [vmem:[#allocation8 + $0x5c] sm:$0xf]
        %v9472 = vld [vmem:[#allocation8 + $0x60] sm:$0xf]
        %v9473 = vld [vmem:[#allocation8 + $0x64] sm:$0xf]
        %v9474 = vld [vmem:[#allocation8 + $0x68] sm:$0xf]
        %v9475 = vld [vmem:[#allocation8 + $0x6c] sm:$0xf]
        %v9476 = vld [vmem:[#allocation8 + $0x70] sm:$0xf]
        %v9477 = vld [vmem:[#allocation8 + $0x74] sm:$0xf]
        %v9478 = vld [vmem:[#allocation8 + $0x78] sm:$0xf]
        %v9479 = vld [vmem:[#allocation8 + $0x7c] sm:$0xf]
        %v9480 = vld [vmem:[#allocation8 + $0x80] sm:$0xf]
        %v9481 = vld [vmem:[#allocation8 + $0x84] sm:$0xf]
        %v9482 = vld [vmem:[#allocation8 + $0x88] sm:$0xf]
        %v9483 = vld [vmem:[#allocation8 + $0x8c] sm:$0xf]
        %v9484 = vld [vmem:[#allocation8 + $0x90] sm:$0xf]
        %v9485 = vld [vmem:[#allocation8 + $0x94] sm:$0xf]
        %v9486 = vld [vmem:[#allocation8 + $0x98] sm:$0xf]
        %v9487 = vld [vmem:[#allocation8 + $0x9c] sm:$0xf]
        %v9488 = vld [vmem:[#allocation8 + $0xa0] sm:$0xf]
        %v9489 = vld [vmem:[#allocation8 + $0xa4] sm:$0xf]
        %v9490 = vld [vmem:[#allocation8 + $0xa8] sm:$0xf]
        %v9491 = vld [vmem:[#allocation8 + $0xac] sm:$0xf]
        %v9492 = vld [vmem:[#allocation8 + $0xb0] sm:$0xf]
        %v9493 = vld [vmem:[#allocation8 + $0xb4] sm:$0xf]
        %v9494 = vld [vmem:[#allocation8 + $0xb8] sm:$0xf]
        %v9495 = vld [vmem:[#allocation8 + $0xbc] sm:$0xf]
        %v9496 = vld [vmem:[#allocation8 + $0xc0] sm:$0xf]
        %v9497 = vld [vmem:[#allocation8 + $0xc4] sm:$0xf]
        %v9498 = vld [vmem:[#allocation8 + $0xc8] sm:$0xf]
        %v9499 = vld [vmem:[#allocation8 + $0xcc] sm:$0xf]
        %v9500 = vld [vmem:[#allocation8 + $0xd0] sm:$0xf]
        %v9501 = vld [vmem:[#allocation8 + $0xd4] sm:$0xf]
        %v9502 = vld [vmem:[#allocation8 + $0xd8] sm:$0xf]
        %v9503 = vld [vmem:[#allocation8 + $0xdc] sm:$0xf]
        %v9504 = vld [vmem:[#allocation8 + $0xe0] sm:$0xf]
        %v9505 = vld [vmem:[#allocation8 + $0xe4] sm:$0xf]
        %v9506 = vld [vmem:[#allocation8 + $0xe8] sm:$0xf]
        %v9507 = vld [vmem:[#allocation8 + $0xec] sm:$0xf]
        %v9508 = vld [vmem:[#allocation8 + $0xf0] sm:$0xf]
        %v9509 = vld [vmem:[#allocation8 + $0xf4] sm:$0xf]
        %v9510 = vld [vmem:[#allocation8 + $0xf8] sm:$0xf]
        %v9511 = vld [vmem:[#allocation8 + $0xfc] sm:$0xf]
        %v9512 = vld [vmem:[#allocation8 + $0x100] sm:$0xf]
        %v9513 = vld [vmem:[#allocation8 + $0x104] sm:$0xf]
        %v9514 = vld [vmem:[#allocation8 + $0x108] sm:$0xf]
        %v9515 = vld [vmem:[#allocation8 + $0x10c] sm:$0xf]
        %v9516 = vld [vmem:[#allocation8 + $0x110] sm:$0xf]
        %v9517 = vld [vmem:[#allocation8 + $0x114] sm:$0xf]
        %v9518 = vld [vmem:[#allocation8 + $0x118] sm:$0xf]
        %v9519 = vld [vmem:[#allocation8 + $0x11c] sm:$0xf]
        %v9520 = vld [vmem:[#allocation8 + $0x120] sm:$0xf]
        %v9521 = vld [vmem:[#allocation8 + $0x124] sm:$0xf]
        %v9522 = vld [vmem:[#allocation8 + $0x128] sm:$0xf]
        %v9523 = vld [vmem:[#allocation8 + $0x12c] sm:$0xf]
        %v9524 = vld [vmem:[#allocation8 + $0x130] sm:$0xf]
        %v9525 = vld [vmem:[#allocation8 + $0x134] sm:$0xf]
        %v9526 = vld [vmem:[#allocation8 + $0x138] sm:$0xf]
        %v9527 = vld [vmem:[#allocation8 + $0x13c] sm:$0xf]
        %v9528 = vld [vmem:[#allocation8 + $0x140] sm:$0xf]
        %v9529 = vld [vmem:[#allocation8 + $0x144] sm:$0xf]
        %v9530 = vld [vmem:[#allocation8 + $0x148] sm:$0xf]
        %v9531 = vld [vmem:[#allocation8 + $0x14c] sm:$0xf]
        %v9532 = vld [vmem:[#allocation8 + $0x150] sm:$0xf]
        %v9533 = vld [vmem:[#allocation8 + $0x154] sm:$0xf]
        %v9534 = vld [vmem:[#allocation8 + $0x158] sm:$0xf]
        %v9535 = vld [vmem:[#allocation8 + $0x15c] sm:$0xf]
        %v9536 = vld [vmem:[#allocation8 + $0x160] sm:$0xf]
        %v9537 = vld [vmem:[#allocation8 + $0x164] sm:$0xf]
        %v9538 = vld [vmem:[#allocation8 + $0x168] sm:$0xf]
        %v9539 = vld [vmem:[#allocation8 + $0x16c] sm:$0xf]
        %v9540 = vld [vmem:[#allocation8 + $0x170] sm:$0xf]
        %v9541 = vld [vmem:[#allocation8 + $0x174] sm:$0xf]
        %v9542 = vld [vmem:[#allocation8 + $0x178] sm:$0xf]
        %v9543 = vld [vmem:[#allocation8 + $0x17c] sm:$0xf]
        %v9544 = vld [vmem:[#allocation8 + $0x180] sm:$0xf]
        %v9545 = vld [vmem:[#allocation8 + $0x184] sm:$0xf]
        %v9546 = vld [vmem:[#allocation8 + $0x188] sm:$0xf]
        %v9547 = vld [vmem:[#allocation8 + $0x18c] sm:$0xf]
        %v9548 = vld [vmem:[#allocation8 + $0x190] sm:$0xf]
        %v9549 = vld [vmem:[#allocation8 + $0x194] sm:$0xf]
        %v9550 = vld [vmem:[#allocation8 + $0x198] sm:$0xf]
        %v9551 = vld [vmem:[#allocation8 + $0x19c] sm:$0xf]
        %v9552 = vld [vmem:[#allocation8 + $0x1a0] sm:$0xf]
        %v9553 = vld [vmem:[#allocation8 + $0x1a4] sm:$0xf]
        %v9554 = vld [vmem:[#allocation8 + $0x1a8] sm:$0xf]
        %v9555 = vld [vmem:[#allocation8 + $0x1ac] sm:$0xf]
        %v9556 = vld [vmem:[#allocation8 + $0x1b0] sm:$0xf]
        %v9557 = vld [vmem:[#allocation8 + $0x1b4] sm:$0xf]
        %v9558 = vld [vmem:[#allocation8 + $0x1b8] sm:$0xf]
        %v9559 = vld [vmem:[#allocation8 + $0x1bc] sm:$0xf]
        %v9560 = vld [vmem:[#allocation8 + $0x1c0] sm:$0xf]
        %v9561 = vld [vmem:[#allocation8 + $0x1c4] sm:$0xf]
        %v9562 = vld [vmem:[#allocation8 + $0x1c8] sm:$0xf]
        %v9563 = vld [vmem:[#allocation8 + $0x1cc] sm:$0xf]
        %v9564 = vld [vmem:[#allocation8 + $0x1d0] sm:$0xf]
        %v9565 = vld [vmem:[#allocation8 + $0x1d4] sm:$0xf]
        %v9566 = vld [vmem:[#allocation8 + $0x1d8] sm:$0xf]
        %v9567 = vld [vmem:[#allocation8 + $0x1dc] sm:$0xf]
        %v9568 = vld [vmem:[#allocation8 + $0x1e0] sm:$0xf]
        %v9569 = vld [vmem:[#allocation8 + $0x1e4] sm:$0xf]
        %v9570 = vld [vmem:[#allocation8 + $0x1e8] sm:$0xf]
        %v9571 = vld [vmem:[#allocation8 + $0x1ec] sm:$0xf]
        %v9572 = vld [vmem:[#allocation8 + $0x1f0] sm:$0xf]
        %v9573 = vld [vmem:[#allocation8 + $0x1f4] sm:$0xf]
        %v9574 = vld [vmem:[#allocation8 + $0x1f8] sm:$0xf]
        %v9575 = vld [vmem:[#allocation8 + $0x1fc] sm:$0xf]
        %v9704 = vunpack.c.l.b16 %v9448
        %v9705 = vunpack.c.l.b16 %v9449
        %v9706 = vunpack.c.l.b16 %v9450
        %v9707 = vunpack.c.l.b16 %v9451
        %v9708 = vunpack.c.l.b16 %v9452
        %v9709 = vunpack.c.l.b16 %v9453
        %v9710 = vunpack.c.l.b16 %v9454
        %v9711 = vunpack.c.l.b16 %v9455
        %v9712 = vunpack.c.l.b16 %v9456
        %v9713 = vunpack.c.l.b16 %v9457
        %v9714 = vunpack.c.l.b16 %v9458
        %v9715 = vunpack.c.l.b16 %v9459
        %v9716 = vunpack.c.l.b16 %v9460
        %v9717 = vunpack.c.l.b16 %v9461
        %v9718 = vunpack.c.l.b16 %v9462
        %v9719 = vunpack.c.l.b16 %v9463
        %v9720 = vunpack.c.l.b16 %v9464
        %v9721 = vunpack.c.l.b16 %v9465
        %v9722 = vunpack.c.l.b16 %v9466
        %v9723 = vunpack.c.l.b16 %v9467
        %v9724 = vunpack.c.l.b16 %v9468
        %v9725 = vunpack.c.l.b16 %v9469
        %v9726 = vunpack.c.l.b16 %v9470
        %v9727 = vunpack.c.l.b16 %v9471
        %v9728 = vunpack.c.l.b16 %v9472
        %v9729 = vunpack.c.l.b16 %v9473
        %v9730 = vunpack.c.l.b16 %v9474
        %v9731 = vunpack.c.l.b16 %v9475
        %v9732 = vunpack.c.l.b16 %v9476
        %v9733 = vunpack.c.l.b16 %v9477
        %v9734 = vunpack.c.l.b16 %v9478
        %v9735 = vunpack.c.l.b16 %v9479
        %v9736 = vunpack.c.l.b16 %v9480
        %v9737 = vunpack.c.l.b16 %v9481
        %v9738 = vunpack.c.l.b16 %v9482
        %v9739 = vunpack.c.l.b16 %v9483
        %v9740 = vunpack.c.l.b16 %v9484
        %v9741 = vunpack.c.l.b16 %v9485
        %v9742 = vunpack.c.l.b16 %v9486
        %v9743 = vunpack.c.l.b16 %v9487
        %v9744 = vunpack.c.l.b16 %v9488
        %v9745 = vunpack.c.l.b16 %v9489
        %v9746 = vunpack.c.l.b16 %v9490
        %v9747 = vunpack.c.l.b16 %v9491
        %v9748 = vunpack.c.l.b16 %v9492
        %v9749 = vunpack.c.l.b16 %v9493
        %v9750 = vunpack.c.l.b16 %v9494
        %v9751 = vunpack.c.l.b16 %v9495
        %v9752 = vunpack.c.l.b16 %v9496
        %v9753 = vunpack.c.l.b16 %v9497
        %v9754 = vunpack.c.l.b16 %v9498
        %v9755 = vunpack.c.l.b16 %v9499
        %v9756 = vunpack.c.l.b16 %v9500
        %v9757 = vunpack.c.l.b16 %v9501
        %v9758 = vunpack.c.l.b16 %v9502
        %v9759 = vunpack.c.l.b16 %v9503
        %v9760 = vunpack.c.l.b16 %v9504
        %v9761 = vunpack.c.l.b16 %v9505
        %v9762 = vunpack.c.l.b16 %v9506
        %v9763 = vunpack.c.l.b16 %v9507
        %v9764 = vunpack.c.l.b16 %v9508
        %v9765 = vunpack.c.l.b16 %v9509
        %v9766 = vunpack.c.l.b16 %v9510
        %v9767 = vunpack.c.l.b16 %v9511
        %v9768 = vunpack.c.l.b16 %v9512
        %v9769 = vunpack.c.l.b16 %v9513
        %v9770 = vunpack.c.l.b16 %v9514
        %v9771 = vunpack.c.l.b16 %v9515
        %v9772 = vunpack.c.l.b16 %v9516
        %v9773 = vunpack.c.l.b16 %v9517
        %v9774 = vunpack.c.l.b16 %v9518
        %v9775 = vunpack.c.l.b16 %v9519
        %v9776 = vunpack.c.l.b16 %v9520
        %v9777 = vunpack.c.l.b16 %v9521
        %v9778 = vunpack.c.l.b16 %v9522
        %v9779 = vunpack.c.l.b16 %v9523
        %v9780 = vunpack.c.l.b16 %v9524
        %v9781 = vunpack.c.l.b16 %v9525
        %v9782 = vunpack.c.l.b16 %v9526
        %v9783 = vunpack.c.l.b16 %v9527
        %v9784 = vunpack.c.l.b16 %v9528
        %v9785 = vunpack.c.l.b16 %v9529
        %v9786 = vunpack.c.l.b16 %v9530
        %v9787 = vunpack.c.l.b16 %v9531
        %v9788 = vunpack.c.l.b16 %v9532
        %v9789 = vunpack.c.l.b16 %v9533
        %v9790 = vunpack.c.l.b16 %v9534
        %v9791 = vunpack.c.l.b16 %v9535
        %v9792 = vunpack.c.l.b16 %v9536
        %v9793 = vunpack.c.l.b16 %v9537
        %v9794 = vunpack.c.l.b16 %v9538
        %v9795 = vunpack.c.l.b16 %v9539
        %v9796 = vunpack.c.l.b16 %v9540
        %v9797 = vunpack.c.l.b16 %v9541
        %v9798 = vunpack.c.l.b16 %v9542
        %v9799 = vunpack.c.l.b16 %v9543
        %v9800 = vunpack.c.l.b16 %v9544
        %v9801 = vunpack.c.l.b16 %v9545
        %v9802 = vunpack.c.l.b16 %v9546
        %v9803 = vunpack.c.l.b16 %v9547
        %v9804 = vunpack.c.l.b16 %v9548
        %v9805 = vunpack.c.l.b16 %v9549
        %v9806 = vunpack.c.l.b16 %v9550
        %v9807 = vunpack.c.l.b16 %v9551
        %v9808 = vunpack.c.l.b16 %v9552
        %v9809 = vunpack.c.l.b16 %v9553
        %v9810 = vunpack.c.l.b16 %v9554
        %v9811 = vunpack.c.l.b16 %v9555
        %v9812 = vunpack.c.l.b16 %v9556
        %v9813 = vunpack.c.l.b16 %v9557
        %v9814 = vunpack.c.l.b16 %v9558
        %v9815 = vunpack.c.l.b16 %v9559
        %v9816 = vunpack.c.l.b16 %v9560
        %v9817 = vunpack.c.l.b16 %v9561
        %v9818 = vunpack.c.l.b16 %v9562
        %v9819 = vunpack.c.l.b16 %v9563
        %v9820 = vunpack.c.l.b16 %v9564
        %v9821 = vunpack.c.l.b16 %v9565
        %v9822 = vunpack.c.l.b16 %v9566
        %v9823 = vunpack.c.l.b16 %v9567
        %v9824 = vunpack.c.l.b16 %v9568
        %v9825 = vunpack.c.l.b16 %v9569
        %v9826 = vunpack.c.l.b16 %v9570
        %v9827 = vunpack.c.l.b16 %v9571
        %v9828 = vunpack.c.l.b16 %v9572
        %v9829 = vunpack.c.l.b16 %v9573
        %v9830 = vunpack.c.l.b16 %v9574
        %v9831 = vunpack.c.l.b16 %v9575
        %v9832 = vpack.c.b16 %v9705, %v9704
        %v9833 = vpack.c.b16 %v9707, %v9706
        %v9834 = vpack.c.b16 %v9709, %v9708
        %v9835 = vpack.c.b16 %v9711, %v9710
        %v9836 = vpack.c.b16 %v9713, %v9712
        %v9837 = vpack.c.b16 %v9715, %v9714
        %v9838 = vpack.c.b16 %v9717, %v9716
        %v9839 = vpack.c.b16 %v9719, %v9718
        %v9840 = vpack.c.b16 %v9721, %v9720
        %v9841 = vpack.c.b16 %v9723, %v9722
        %v9842 = vpack.c.b16 %v9725, %v9724
        %v9843 = vpack.c.b16 %v9727, %v9726
        %v9844 = vpack.c.b16 %v9729, %v9728
        %v9845 = vpack.c.b16 %v9731, %v9730
        %v9846 = vpack.c.b16 %v9733, %v9732
        %v9847 = vpack.c.b16 %v9735, %v9734
        %v9848 = vpack.c.b16 %v9737, %v9736
        %v9849 = vpack.c.b16 %v9739, %v9738
        %v9850 = vpack.c.b16 %v9741, %v9740
        %v9851 = vpack.c.b16 %v9743, %v9742
        %v9852 = vpack.c.b16 %v9745, %v9744
        %v9853 = vpack.c.b16 %v9747, %v9746
        %v9854 = vpack.c.b16 %v9749, %v9748
        %v9855 = vpack.c.b16 %v9751, %v9750
        %v9856 = vpack.c.b16 %v9753, %v9752
        %v9857 = vpack.c.b16 %v9755, %v9754
        %v9858 = vpack.c.b16 %v9757, %v9756
        %v9859 = vpack.c.b16 %v9759, %v9758
        %v9860 = vpack.c.b16 %v9761, %v9760
        %v9861 = vpack.c.b16 %v9763, %v9762
        %v9862 = vpack.c.b16 %v9765, %v9764
        %v9863 = vpack.c.b16 %v9767, %v9766
        %v9864 = vpack.c.b16 %v9769, %v9768
        %v9865 = vpack.c.b16 %v9771, %v9770
        %v9866 = vpack.c.b16 %v9773, %v9772
        %v9867 = vpack.c.b16 %v9775, %v9774
        %v9868 = vpack.c.b16 %v9777, %v9776
        %v9869 = vpack.c.b16 %v9779, %v9778
        %v9870 = vpack.c.b16 %v9781, %v9780
        %v9871 = vpack.c.b16 %v9783, %v9782
        %v9872 = vpack.c.b16 %v9785, %v9784
        %v9873 = vpack.c.b16 %v9787, %v9786
        %v9874 = vpack.c.b16 %v9789, %v9788
        %v9875 = vpack.c.b16 %v9791, %v9790
        %v9876 = vpack.c.b16 %v9793, %v9792
        %v9877 = vpack.c.b16 %v9795, %v9794
        %v9878 = vpack.c.b16 %v9797, %v9796
        %v9879 = vpack.c.b16 %v9799, %v9798
        %v9880 = vpack.c.b16 %v9801, %v9800
        %v9881 = vpack.c.b16 %v9803, %v9802
        %v9882 = vpack.c.b16 %v9805, %v9804
        %v9883 = vpack.c.b16 %v9807, %v9806
        %v9884 = vpack.c.b16 %v9809, %v9808
        %v9885 = vpack.c.b16 %v9811, %v9810
        %v9886 = vpack.c.b16 %v9813, %v9812
        %v9887 = vpack.c.b16 %v9815, %v9814
        %v9888 = vpack.c.b16 %v9817, %v9816
        %v9889 = vpack.c.b16 %v9819, %v9818
        %v9890 = vpack.c.b16 %v9821, %v9820
        %v9891 = vpack.c.b16 %v9823, %v9822
        %v9892 = vpack.c.b16 %v9825, %v9824
        %v9893 = vpack.c.b16 %v9827, %v9826
        %v9894 = vpack.c.b16 %v9829, %v9828
        %v9895 = vpack.c.b16 %v9831, %v9830
        %9960 = vmatprep.subr.bf16.mxu0 0
        %9961 = vmatpush1.bf16.msra.mxu0 %v9839
        %9962 = vmatprep.subr.bf16.mxu0 0
        %9963 = vmatpush1.bf16.msra.mxu0 %v9838
        %9964 = vmatprep.subr.bf16.mxu0 0
        %9965 = vmatpush1.bf16.msra.mxu0 %v9837
        %9966 = vmatprep.subr.bf16.mxu0 0
        %9967 = vmatpush1.bf16.msra.mxu0 %v9836
        %9968 = vmatprep.subr.bf16.mxu0 0
        %9969 = vmatpush1.bf16.msra.mxu0 %v9835
        %9970 = vmatprep.subr.bf16.mxu0 0
        %9971 = vmatpush1.bf16.msra.mxu0 %v9834
        %9972 = vmatprep.subr.bf16.mxu0 0
        %9973 = vmatpush1.bf16.msra.mxu0 %v9833
        %9974 = vmatprep.subr.bf16.mxu0 0
        %9975 = vmatpush1.bf16.msra.mxu0 %v9832
        %9976 = vmatprep.subr.bf16.mxu0 0
        %9977 = vmatpush2.bf16.msra.mxu0 %v9847
        %9978 = vmatprep.subr.bf16.mxu0 0
        %9979 = vmatpush2.bf16.msra.mxu0 %v9846
        %9980 = vmatprep.subr.bf16.mxu0 0
        %9981 = vmatpush2.bf16.msra.mxu0 %v9845
        %9982 = vmatprep.subr.bf16.mxu0 0
        %9983 = vmatpush2.bf16.msra.mxu0 %v9844
        %9984 = vmatprep.subr.bf16.mxu0 0
        %9985 = vmatpush2.bf16.msra.mxu0 %v9843
        %9986 = vmatprep.subr.bf16.mxu0 0
        %9987 = vmatpush2.bf16.msra.mxu0 %v9842
        %9988 = vmatprep.subr.bf16.mxu0 0
        %9989 = vmatpush2.bf16.msra.mxu0 %v9841
        %9990 = vmatprep.subr.bf16.mxu0 0
        %9991 = vmatpush2.bf16.msra.mxu0 %v9840
        %9992 = vmatprep.mubr.bf16.mxu0 %v9417
        %9993 = vmatmul.mubr.bf16.gmra.mxu0 %v9416
        %v9994 = vpop.f32.mrf.mxu0
        %v9995 = vadd.f32 0.0, %v9994
        %v9996 = vpop.f32.mrf.mxu0
        %v9997 = vpop.f32.mrf.mxu0
        %v9998 = vadd.f32 0.0, %v9997
        %v9999 = vpop.f32.mrf.mxu0
        %10000 = vmatprep.mubr.bf16.mxu0 %v9425
        %10001 = vmatmul.mubr.bf16.gmra.mxu0 %v9424
        %v10002 = vpop.f32.mrf.mxu0
        %v10003 = vadd.f32 0.0, %v10002
        %v10004 = vpop.f32.mrf.mxu0
        %v10005 = vpop.f32.mrf.mxu0
        %v10006 = vadd.f32 0.0, %v10005
        %v10007 = vpop.f32.mrf.mxu0
        %10008 = vmatprep.mubr.bf16.mxu0 %v9433
        %10009 = vmatmul.mubr.bf16.gmra.mxu0 %v9432
        %v10010 = vpop.f32.mrf.mxu0
        %v10011 = vadd.f32 0.0, %v10010
        %v10012 = vpop.f32.mrf.mxu0
        %v10013 = vpop.f32.mrf.mxu0
        %v10014 = vadd.f32 0.0, %v10013
        %v10015 = vpop.f32.mrf.mxu0
        %10016 = vmatprep.mubr.bf16.mxu0 %v9441
        %10017 = vmatmul.mubr.bf16.gmra.mxu0 %v9440
        %v10018 = vpop.f32.mrf.mxu0
        %v10019 = vadd.f32 0.0, %v10018
        %v10020 = vpop.f32.mrf.mxu0
        %v10021 = vpop.f32.mrf.mxu0
        %v10022 = vadd.f32 0.0, %v10021
        %v10023 = vpop.f32.mrf.mxu0
        %10024 = vdwg.mxu0
        %10025 = vmatprep.subr.bf16.mxu0 0
        %10026 = vmatpush1.bf16.msra.mxu0 %v9855
        %10027 = vmatprep.subr.bf16.mxu0 0
        %10028 = vmatpush1.bf16.msra.mxu0 %v9854
        %10029 = vmatprep.subr.bf16.mxu0 0
        %10030 = vmatpush1.bf16.msra.mxu0 %v9853
        %10031 = vmatprep.subr.bf16.mxu0 0
        %10032 = vmatpush1.bf16.msra.mxu0 %v9852
        %10033 = vmatprep.subr.bf16.mxu0 0
        %10034 = vmatpush1.bf16.msra.mxu0 %v9851
        %10035 = vmatprep.subr.bf16.mxu0 0
        %10036 = vmatpush1.bf16.msra.mxu0 %v9850
        %10037 = vmatprep.subr.bf16.mxu0 0
        %10038 = vmatpush1.bf16.msra.mxu0 %v9849
        %10039 = vmatprep.subr.bf16.mxu0 0
        %10040 = vmatpush1.bf16.msra.mxu0 %v9848
        %10041 = vmatprep.subr.bf16.mxu0 0
        %10042 = vmatpush2.bf16.msra.mxu0 %v9863
        %10043 = vmatprep.subr.bf16.mxu0 0
        %10044 = vmatpush2.bf16.msra.mxu0 %v9862
        %10045 = vmatprep.subr.bf16.mxu0 0
        %10046 = vmatpush2.bf16.msra.mxu0 %v9861
        %10047 = vmatprep.subr.bf16.mxu0 0
        %10048 = vmatpush2.bf16.msra.mxu0 %v9860
        %10049 = vmatprep.subr.bf16.mxu0 0
        %10050 = vmatpush2.bf16.msra.mxu0 %v9859
        %10051 = vmatprep.subr.bf16.mxu0 0
        %10052 = vmatpush2.bf16.msra.mxu0 %v9858
        %10053 = vmatprep.subr.bf16.mxu0 0
        %10054 = vmatpush2.bf16.msra.mxu0 %v9857
        %10055 = vmatprep.subr.bf16.mxu0 0
        %10056 = vmatpush2.bf16.msra.mxu0 %v9856
        %10057 = vmatprep.mubr.bf16.mxu0 %v9419
        %10058 = vmatmul.mubr.bf16.gmra.mxu0 %v9418
        %v10059 = vpop.f32.mrf.mxu0
        %v10060 = vadd.f32 %v9995, %v10059
        %v10061 = vpop.f32.mrf.mxu0
        %v10062 = vpop.f32.mrf.mxu0
        %v10063 = vadd.f32 %v9998, %v10062
        %v10064 = vpop.f32.mrf.mxu0
        %10065 = vmatprep.mubr.bf16.mxu0 %v9427
        %10066 = vmatmul.mubr.bf16.gmra.mxu0 %v9426
        %v10067 = vpop.f32.mrf.mxu0
        %v10068 = vadd.f32 %v10003, %v10067
        %v10069 = vpop.f32.mrf.mxu0
        %v10070 = vpop.f32.mrf.mxu0
        %v10071 = vadd.f32 %v10006, %v10070
        %v10072 = vpop.f32.mrf.mxu0
        %10073 = vmatprep.mubr.bf16.mxu0 %v9435
        %10074 = vmatmul.mubr.bf16.gmra.mxu0 %v9434
        %v10075 = vpop.f32.mrf.mxu0
        %v10076 = vadd.f32 %v10011, %v10075
        %v10077 = vpop.f32.mrf.mxu0
        %v10078 = vpop.f32.mrf.mxu0
        %v10079 = vadd.f32 %v10014, %v10078
        %v10080 = vpop.f32.mrf.mxu0
        %10081 = vmatprep.mubr.bf16.mxu0 %v9443
        %10082 = vmatmul.mubr.bf16.gmra.mxu0 %v9442
        %v10083 = vpop.f32.mrf.mxu0
        %v10084 = vadd.f32 %v10019, %v10083
        %v10085 = vpop.f32.mrf.mxu0
        %v10086 = vpop.f32.mrf.mxu0
        %v10087 = vadd.f32 %v10022, %v10086
        %v10088 = vpop.f32.mrf.mxu0
        %10089 = vdwg.mxu0
        %10090 = vmatprep.subr.bf16.mxu0 0
        %10091 = vmatpush1.bf16.msra.mxu0 %v9871
        %10092 = vmatprep.subr.bf16.mxu0 0
        %10093 = vmatpush1.bf16.msra.mxu0 %v9870
        %10094 = vmatprep.subr.bf16.mxu0 0
        %10095 = vmatpush1.bf16.msra.mxu0 %v9869
        %10096 = vmatprep.subr.bf16.mxu0 0
        %10097 = vmatpush1.bf16.msra.mxu0 %v9868
        %10098 = vmatprep.subr.bf16.mxu0 0
        %10099 = vmatpush1.bf16.msra.mxu0 %v9867
        %10100 = vmatprep.subr.bf16.mxu0 0
        %10101 = vmatpush1.bf16.msra.mxu0 %v9866
        %10102 = vmatprep.subr.bf16.mxu0 0
        %10103 = vmatpush1.bf16.msra.mxu0 %v9865
        %10104 = vmatprep.subr.bf16.mxu0 0
        %10105 = vmatpush1.bf16.msra.mxu0 %v9864
        %10106 = vmatprep.subr.bf16.mxu0 0
        %10107 = vmatpush2.bf16.msra.mxu0 %v9879
        %10108 = vmatprep.subr.bf16.mxu0 0
        %10109 = vmatpush2.bf16.msra.mxu0 %v9878
        %10110 = vmatprep.subr.bf16.mxu0 0
        %10111 = vmatpush2.bf16.msra.mxu0 %v9877
        %10112 = vmatprep.subr.bf16.mxu0 0
        %10113 = vmatpush2.bf16.msra.mxu0 %v9876
        %10114 = vmatprep.subr.bf16.mxu0 0
        %10115 = vmatpush2.bf16.msra.mxu0 %v9875
        %10116 = vmatprep.subr.bf16.mxu0 0
        %10117 = vmatpush2.bf16.msra.mxu0 %v9874
        %10118 = vmatprep.subr.bf16.mxu0 0
        %10119 = vmatpush2.bf16.msra.mxu0 %v9873
        %10120 = vmatprep.subr.bf16.mxu0 0
        %10121 = vmatpush2.bf16.msra.mxu0 %v9872
        %10122 = vmatprep.mubr.bf16.mxu0 %v9421
        %10123 = vmatmul.mubr.bf16.gmra.mxu0 %v9420
        %v10124 = vpop.f32.mrf.mxu0
        %v10125 = vadd.f32 %v10060, %v10124
        %v10126 = vpop.f32.mrf.mxu0
        %v10127 = vpop.f32.mrf.mxu0
        %v10128 = vadd.f32 %v10063, %v10127
        %v10129 = vpop.f32.mrf.mxu0
        %10130 = vmatprep.mubr.bf16.mxu0 %v9429
        %10131 = vmatmul.mubr.bf16.gmra.mxu0 %v9428
        %v10132 = vpop.f32.mrf.mxu0
        %v10133 = vadd.f32 %v10068, %v10132
        %v10134 = vpop.f32.mrf.mxu0
        %v10135 = vpop.f32.mrf.mxu0
        %v10136 = vadd.f32 %v10071, %v10135
        %v10137 = vpop.f32.mrf.mxu0
        %10138 = vmatprep.mubr.bf16.mxu0 %v9437
        %10139 = vmatmul.mubr.bf16.gmra.mxu0 %v9436
        %v10140 = vpop.f32.mrf.mxu0
        %v10141 = vadd.f32 %v10076, %v10140
        %v10142 = vpop.f32.mrf.mxu0
        %v10143 = vpop.f32.mrf.mxu0
        %v10144 = vadd.f32 %v10079, %v10143
        %v10145 = vpop.f32.mrf.mxu0
        %10146 = vmatprep.mubr.bf16.mxu0 %v9445
        %10147 = vmatmul.mubr.bf16.gmra.mxu0 %v9444
        %v10148 = vpop.f32.mrf.mxu0
        %v10149 = vadd.f32 %v10084, %v10148
        %v10150 = vpop.f32.mrf.mxu0
        %v10151 = vpop.f32.mrf.mxu0
        %v10152 = vadd.f32 %v10087, %v10151
        %v10153 = vpop.f32.mrf.mxu0
        %10154 = vdwg.mxu0
        %10155 = vmatprep.subr.bf16.mxu0 0
        %10156 = vmatpush1.bf16.msra.mxu0 %v9887
        %10157 = vmatprep.subr.bf16.mxu0 0
        %10158 = vmatpush1.bf16.msra.mxu0 %v9886
        %10159 = vmatprep.subr.bf16.mxu0 0
        %10160 = vmatpush1.bf16.msra.mxu0 %v9885
        %10161 = vmatprep.subr.bf16.mxu0 0
        %10162 = vmatpush1.bf16.msra.mxu0 %v9884
        %10163 = vmatprep.subr.bf16.mxu0 0
        %10164 = vmatpush1.bf16.msra.mxu0 %v9883
        %10165 = vmatprep.subr.bf16.mxu0 0
        %10166 = vmatpush1.bf16.msra.mxu0 %v9882
        %10167 = vmatprep.subr.bf16.mxu0 0
        %10168 = vmatpush1.bf16.msra.mxu0 %v9881
        %10169 = vmatprep.subr.bf16.mxu0 0
        %10170 = vmatpush1.bf16.msra.mxu0 %v9880
        %10171 = vmatprep.subr.bf16.mxu0 0
        %10172 = vmatpush2.bf16.msra.mxu0 %v9895
        %10173 = vmatprep.subr.bf16.mxu0 0
        %10174 = vmatpush2.bf16.msra.mxu0 %v9894
        %10175 = vmatprep.subr.bf16.mxu0 0
        %10176 = vmatpush2.bf16.msra.mxu0 %v9893
        %10177 = vmatprep.subr.bf16.mxu0 0
        %10178 = vmatpush2.bf16.msra.mxu0 %v9892
        %10179 = vmatprep.subr.bf16.mxu0 0
        %10180 = vmatpush2.bf16.msra.mxu0 %v9891
        %10181 = vmatprep.subr.bf16.mxu0 0
        %10182 = vmatpush2.bf16.msra.mxu0 %v9890
        %10183 = vmatprep.subr.bf16.mxu0 0
        %10184 = vmatpush2.bf16.msra.mxu0 %v9889
        %10185 = vmatprep.subr.bf16.mxu0 0
        %10186 = vmatpush2.bf16.msra.mxu0 %v9888
        %10187 = vmatprep.mubr.bf16.mxu0 %v9423
        %10188 = vmatmul.mubr.bf16.gmra.mxu0 %v9422
        %v10189 = vpop.f32.mrf.mxu0
        %v10190 = vadd.f32 %v10125, %v10189
        %v10191 = vpop.f32.mrf.mxu0
        %v10192 = vpop.f32.mrf.mxu0
        %v10193 = vadd.f32 %v10128, %v10192
        %v10194 = vpop.f32.mrf.mxu0
        %10195 = vmatprep.mubr.bf16.mxu0 %v9431
        %10196 = vmatmul.mubr.bf16.gmra.mxu0 %v9430
        %v10197 = vpop.f32.mrf.mxu0
        %v10198 = vadd.f32 %v10133, %v10197
        %v10199 = vpop.f32.mrf.mxu0
        %v10200 = vpop.f32.mrf.mxu0
        %v10201 = vadd.f32 %v10136, %v10200
        %v10202 = vpop.f32.mrf.mxu0
        %10203 = vmatprep.mubr.bf16.mxu0 %v9439
        %10204 = vmatmul.mubr.bf16.gmra.mxu0 %v9438
        %v10205 = vpop.f32.mrf.mxu0
        %v10206 = vadd.f32 %v10141, %v10205
        %v10207 = vpop.f32.mrf.mxu0
        %v10208 = vpop.f32.mrf.mxu0
        %v10209 = vadd.f32 %v10144, %v10208
        %v10210 = vpop.f32.mrf.mxu0
        %10211 = vmatprep.mubr.bf16.mxu0 %v9447
        %10212 = vmatmul.mubr.bf16.gmra.mxu0 %v9446
        %v10213 = vpop.f32.mrf.mxu0
        %v10214 = vadd.f32 %v10149, %v10213
        %v10215 = vpop.f32.mrf.mxu0
        %v10216 = vpop.f32.mrf.mxu0
        %v10217 = vadd.f32 %v10152, %v10216
        %v10218 = vpop.f32.mrf.mxu0
        %10219 = vdwg.mxu0
        %v10220 = vld [vmem:[#allocation14] sm:$0x1]
        %v10222 = vlaneseq
        %v10223 = vshrl.u32 %v10222, 7
        %v10224 = vsub.s32 0, %v10223
        %v10225 = vrot.slane %v10220, %v10224
        %v10227 = vmul.f32 %v10190, %v10225
        %v10228 = vmul.f32 %v10193, %v10225
        %v10229 = vmul.f32 %v10198, %v10225
        %v10230 = vmul.f32 %v10201, %v10225
        %v10231 = vmul.f32 %v10206, %v10225
        %v10232 = vmul.f32 %v10209, %v10225
        %v10233 = vmul.f32 %v10214, %v10225
        %v10234 = vmul.f32 %v10217, %v10225
        %v10235 = vld [vmem:[#allocation16] sm:$0x1]
        %v10237 = vlaneseq
        %v10238 = vshrl.u32 %v10237, 7
        %v10239 = vsub.s32 0, %v10238
        %v10240 = vrot.slane %v10235, %v10239
        %v10242 = vadd.f32 %v10227, %v10240
        %v10243 = vadd.f32 %v10228, %v10240
        %v10244 = vadd.f32 %v10229, %v10240
        %v10245 = vadd.f32 %v10230, %v10240
        %v10246 = vadd.f32 %v10231, %v10240
        %v10247 = vadd.f32 %v10232, %v10240
        %v10248 = vadd.f32 %v10233, %v10240
        %v10249 = vadd.f32 %v10234, %v10240
        %v10250 = vmax.f32 %v10242, 0.0
        %v10251 = vmax.f32 %v10243, 0.0
        %v10252 = vmax.f32 %v10244, 0.0
        %v10253 = vmax.f32 %v10245, 0.0
        %v10254 = vmax.f32 %v10246, 0.0
        %v10255 = vmax.f32 %v10247, 0.0
        %v10256 = vmax.f32 %v10248, 0.0
        %v10257 = vmax.f32 %v10249, 0.0
        %10258 = vst [vmem:[%s638] sm:$0xff] %v10250
        %10259 = vst [vmem:[%s638 + $0x8] sm:$0xff] %v10251
        %10260 = vst [vmem:[%s638 + $0x10] sm:$0xff] %v10252
        %10261 = vst [vmem:[%s638 + $0x18] sm:$0xff] %v10253
        %10262 = vst [vmem:[%s638 + $0x20] sm:$0xff] %v10254
        %10263 = vst [vmem:[%s638 + $0x28] sm:$0xff] %v10255
        %10264 = vst [vmem:[%s638 + $0x30] sm:$0xff] %v10256
        %10265 = vst [vmem:[%s638 + $0x38] sm:$0xff] %v10257
        %s10266 = sand.u32 %s282, 1
        %s10267 = scalar_lea.sflag [#allocation4], %s10266
        %s10268 = sand.u32 %s282, 1
        %s10269 = smul.addr %s10268, 64
        %s10270 = scalar_lea.vmem [#allocation19], %s10269
        %s10271 = smul.u32 4, %s38
        %p10272 = scmp.lt.s32.totalorder %s10271, 7
        %s10273 = scalar_select %p10272, %s10271, 7
        %s10274 = smul.addr %s10273, 8
        %s10275 = scalar_lea.vmem %s12, %s10274
        %s10276 = smul.u32 8, %s38
        %p10277 = scmp.lt.s32.totalorder %s10276, 15
        %s10278 = scalar_select %p10277, %s10276, 15
        %s10279 = smul.addr %s10278, 8
        %s10280 = scalar_lea.vmem %s13, %s10279
        %s10281 = sand.u32 %s360, 1
        %s10282 = scalar_lea.sflag [#allocation21], %s10281
        %s10283 = sand.u32 %s360, 1
        %s10284 = smul.addr %s10283, 64
        %s10285 = scalar_lea.vmem [#allocation20], %s10284
        // Predicated region
        $region105: #{model_head.1} parent=63 // pred_check
          %p10286 = pneg %p292
        $region106: #{model_head.1} parent=63 // pred_check_branch
          %10288 = sbr.rel (%p10286) target = $region108
        $region107: #{model_head.1} parent=63 // pred_region
          %s10290 = ssub.s32 1024, 1024
          %10291 = vsyncadd %s10267, %s10290
          %s10292 = smul.addr %s38, 8
          %s10293 = smul.addr %s10292, 128
          %s10294 = scalar_lea.hbm %s11, %s10293
          %s10296 = sshll.u32 %s10270, 4
          %s10297 = int_to_ptr.vmem [resolvable:$true] %s10296
          %10299 = dma.vmem_to_hbm [thread:$0]  %s10297, 1024, %s10294, %s10267
        $region108: #{model_head.1} parent=63 // pred_fallthru
          _
        // Predicated region
        $region109: #{model_head.1} parent=63 // pred_check
          %p10300 = pneg %p318
        $region110: #{model_head.1} parent=63 // pred_check_branch
          %10302 = sbr.rel (%p10300) target = $region112
        $region111: #{model_head.1} parent=63 // pred_region
          %s10303 = smul.u32 4, %s38
        $region112: #{model_head.1} parent=63 // pred_fallthru
          _
        // Predicated region
        $region113: #{model_head.1} parent=63 // pred_check
          %p10304 = pneg %p344
        $region114: #{model_head.1} parent=63 // pred_check_branch
          %10306 = sbr.rel (%p10304) target = $region116
        $region115: #{model_head.1} parent=63 // pred_region
          %s10307 = smul.u32 8, %s38
        $region116: #{model_head.1} parent=63 // pred_fallthru
          _
        // Predicated region
        $region117: #{model_head.1} parent=63 // pred_check
          %p10308 = pneg %p370
        $region118: #{model_head.1} parent=63 // pred_check_branch
          %10310 = sbr.rel (%p10308) target = $region120
        $region119: #{model_head.1} parent=63 // pred_region
          %s10312 = ssub.s32 1024, 1024
          %10313 = vsyncadd %s10282, %s10312
          %s10314 = smul.addr %s38, 8
          %s10315 = smul.addr %s10314, 128
          %s10316 = scalar_lea.hbm %s14, %s10315
          %s10318 = sshll.u32 %s10285, 4
          %s10319 = int_to_ptr.vmem [resolvable:$true] %s10318
          %10321 = dma.vmem_to_hbm [thread:$0]  %s10319, 1024, %s10316, %s10282
        $region120: #{model_head.1} parent=63 // pred_fallthru
          _
      $region64: #{model_head.1} parent=5 // pred_fallthru
        _
      %p10322 = scmp.le.s32.totalorder 2, %s33
      // Predicated region
      $region121: #{model_head.1} parent=5 // pred_check
        %p10323 = pneg %p10322
      $region122: #{model_head.1} parent=5 // pred_check_branch
        %10325 = sbr.rel (%p10323) target = $region124
      $region123: #{model_head.1} parent=5 // pred_region
        %s10326 = ssub.s32 %s33, 2
        // Predicated region
        $region125: #{model_head.1} parent=123 // pred_check
          %p10327 = pneg %p298
        $region126: #{model_head.1} parent=123 // pred_check_branch
          %10329 = sbr.rel (%p10327) target = $region128
        $region127: #{model_head.1} parent=123 // pred_region
          %s10330 = sand.u32 %s283, 1
          %s10331 = scalar_lea.sflag [#allocation4], %s10330
          %s10332 = sand.u32 %s283, 1
          %s10333 = smul.addr %s10332, 64
          %s10334 = scalar_lea.vmem [#allocation19], %s10333
          %10335 = dma.done %s10331, 1024
        $region128: #{model_head.1} parent=123 // pred_fallthru
          _
        // Predicated region
        $region129: #{model_head.1} parent=123 // pred_check
          %p10336 = pneg %p324
        $region130: #{model_head.1} parent=123 // pred_check_branch
          %10338 = sbr.rel (%p10336) target = $region132
        $region131: #{model_head.1} parent=123 // pred_region
          %s10339 = smul.u32 4, %s39
          %p10340 = scmp.lt.s32.totalorder %s10339, 7
          %s10341 = scalar_select %p10340, %s10339, 7
          %s10342 = smul.addr %s10341, 8
          %s10343 = scalar_lea.vmem %s12, %s10342
        $region132: #{model_head.1} parent=123 // pred_fallthru
          _
        // Predicated region
        $region133: #{model_head.1} parent=123 // pred_check
          %p10344 = pneg %p350
        $region134: #{model_head.1} parent=123 // pred_check_branch
          %10346 = sbr.rel (%p10344) target = $region136
        $region135: #{model_head.1} parent=123 // pred_region
          %s10347 = smul.u32 8, %s39
          %p10348 = scmp.lt.s32.totalorder %s10347, 15
          %s10349 = scalar_select %p10348, %s10347, 15
          %s10350 = smul.addr %s10349, 8
          %s10351 = scalar_lea.vmem %s13, %s10350
        $region136: #{model_head.1} parent=123 // pred_fallthru
          _
        // Predicated region
        $region137: #{model_head.1} parent=123 // pred_check
          %p10352 = pneg %p376
        $region138: #{model_head.1} parent=123 // pred_check_branch
          %10354 = sbr.rel (%p10352) target = $region140
        $region139: #{model_head.1} parent=123 // pred_region
          %s10355 = sand.u32 %s361, 1
          %s10356 = scalar_lea.sflag [#allocation21], %s10355
          %s10357 = sand.u32 %s361, 1
          %s10358 = smul.addr %s10357, 64
          %s10359 = scalar_lea.vmem [#allocation20], %s10358
          %10360 = dma.done %s10356, 1024
        $region140: #{model_head.1} parent=123 // pred_fallthru
          _
      $region124: #{model_head.1} parent=5 // pred_fallthru
        _
    $region6: #{model_head.1} parent=1 // loop_footer
      %s37 = sadd.s32 1, %s33
    $region7: #{model_head.1} parent=1 // loop_footer_branch
      %32 = sbr.rel target = $region3
    $region8: #{model_head.1} parent=1 // loop_exit
      _
    %10361 = vsyncpa [#allocation3], 1
    %s10362 = scalar_lea.sflag [#allocation3], 1
    %10363 = vsyncpa %s10362, 1
    %10364 = vsyncpa [#allocation6], 1
    %10365 = vsyncpa [#allocation9], 1
    %10366 = vsyncpa [#allocation12], 1
    %10367 = vsyncpa [#allocation15], 1
    %10368 = vsyncpa [#allocation18], 1
    %10369 = vsyncpa [#allocation4], 1
    %s10370 = scalar_lea.sflag [#allocation4], 1
    %10371 = vsyncpa %s10370, 1
    %10372 = vsyncpa [#allocation21], 1
    %s10373 = scalar_lea.sflag [#allocation21], 1
    %10374 = vsyncpa %s10373, 1

</llo_original>
